<compile_context>
chip_gen: v7x
topology: tpu7x:2x2x1
jax: 0.10.0
libtpu: 0.0.40
codegen_flags: <defaults>
</compile_context>

<pallas_src>
import functools

import jax
import jax.numpy as jnp
from jax.experimental import pallas as pl
from jax.experimental.pallas import tpu as pltpu


# ----------------------------------------------------------------------------
# Generation-aware scoped-VMEM limit (v5e/v6e: 128 MiB phys -> ~96 MiB, v7x: 64 -> 48 MiB).
# ----------------------------------------------------------------------------
@functools.cache
def _vmem_limit_bytes():
    try:
        return int(pltpu.get_tpu_info().vmem_capacity_bytes * 3 // 4)
    except Exception:
        return 48 * 1024 * 1024


# ----------------------------------------------------------------------------
# Compile-only lowering probe: does this Mosaic build support the lane concat of
# sublane-shifted slices used by the folded (K = 3*Cin) conv path?  No execution is
# involved, so transient runtime failures can never pin us to the slow fallback.
# ----------------------------------------------------------------------------
def _fold_probe_kernel(x_ref, w_ref, o_ref):
    H, W = 8, 8
    C = x_ref.shape[-1]
    xp = x_ref[...]
    cols = jnp.concatenate([xp[:, kj:kj + W, :] for kj in range(3)], axis=-1)
    o_ref[...] = jnp.dot(cols[0:H].reshape(H * W, 3 * C), w_ref[...],
                         preferred_element_type=jnp.float32)


@functools.cache
def _fold_taps_supported():
    try:
        fn = pl.pallas_call(_fold_probe_kernel,
                            out_shape=jax.ShapeDtypeStruct((64, 8), jnp.float32))
        for dt in (jnp.float32, jnp.bfloat16):
            jax.jit(fn).lower(jax.ShapeDtypeStruct((8, 10, 4), dt),
                              jax.ShapeDtypeStruct((12, 8), dt)).compile()
        return True
    except Exception:
        return False


# ----------------------------------------------------------------------------
# Kernel 1: ConvTranspose2d(kernel=2, stride=2) with the sub-pixel scatter done in VMEM.
# Output HBM array is (B, H, 2, W, 2*Cup) with columns ordered (dj, co); reshaping it to
# the interleaved (B, 2H, 2W, Cup) afterwards is a free metadata-only reshape.
# ----------------------------------------------------------------------------
def _deconv_kernel(x_ref, w_ref, b_ref, o_ref, *, cdt):
    tr, W, Cin = x_ref.shape
    F2 = w_ref.shape[-1]                               # 2 * Cup, columns ordered (dj, co)
    xf = x_ref[...].astype(cdt).reshape(tr * W, Cin)   # cast in-kernel (no XLA cast pass)
    b = b_ref[...]
    for di in range(2):                                # output sub-row parity
        y = jnp.dot(xf, w_ref[di], preferred_element_type=jnp.float32) + b
        o_ref[:, di:di + 1, :, :] = y.reshape(tr, 1, W, F2).astype(o_ref.dtype)


def _pick_deconv_row_tile(B, H, W, Cin, F2, in_itemsize, out_itemsize):
    budget = _vmem_limit_bytes() // 2                  # headroom for temps / weights
    per_row = W * (2 * Cin * in_itemsize               # x block, double-buffered
                   + 2 * 2 * F2 * out_itemsize         # out block, double-buffered
                   + 2 * F2 * 4)                       # f32 matmul results
    divisors = [d for d in range(1, H + 1) if H % d == 0]
    tr = 1
    for d in divisors:
        if d * per_row <= budget:
            tr = d
    # keep >= 2 total grid steps so both v7x TensorCores get work even when B == 1
    while B * (H // tr) < 2:
        smaller = [d for d in divisors if d < tr]
        if not smaller:
            break
        tr = smaller[-1]
    return tr


def deconv2x2_s2(x_nhwc, w_packed, b2, cdt):
    """x_nhwc: (B,H,W,Cin); w_packed: (2[kh], Cin, 2*Cup[(kw,co)]); b2: (1, 2*Cup).
    Returns the upsampled map (B, 2H, 2W, Cup) in the compute dtype."""
    B, H, W, Cin = x_nhwc.shape
    F2 = w_packed.shape[-1]
    Cup = F2 // 2
    tr = _pick_deconv_row_tile(B, H, W, Cin, F2,
                               jnp.dtype(x_nhwc.dtype).itemsize,
                               jnp.dtype(cdt).itemsize)
    y = pl.pallas_call(
        functools.partial(_deconv_kernel, cdt=cdt),
        out_shape=jax.ShapeDtypeStruct((B, H, 2, W, F2), cdt),
        grid=(B, H // tr),
        in_specs=[
            pl.BlockSpec((None, tr, W, Cin), lambda b, r: (b, r, 0, 0)),
            pl.BlockSpec((2, Cin, F2), lambda b, r: (0, 0, 0)),
            pl.BlockSpec((1, F2), lambda b, r: (0, 0)),
        ],
        out_specs=pl.BlockSpec((None, tr, 2, W, F2), lambda b, r: (b, r, 0, 0, 0)),
        compiler_params=pltpu.CompilerParams(
            dimension_semantics=("parallel", "parallel"),
            vmem_limit_bytes=_vmem_limit_bytes()),
    )(x_nhwc, w_packed, b2)
    return y.reshape(B, 2 * H, 2 * W, Cup)             # free reshape (contiguous)


# ----------------------------------------------------------------------------
# Kernel 2: fused TwoConv.  conv3x3(zero-pad 1) -> InstanceNorm(affine) -> LeakyReLU, twice,
# with the intermediate map and all 1-px zero pads kept in VMEM scratch.
# Packed conv weights: (3[kh], 3*Ci[(kw,ci)], Cout).
# ----------------------------------------------------------------------------
def _twoconv_kernel(xe_ref, x0_ref, we_ref, wu_ref, b0_ref, g0_ref, bt0_ref,
                    w1_ref, b1_ref, g1_ref, bt1_ref, o_ref,
                    xe_pad, x0_pad, h_pad,
                    *, fold_taps, neg_slope, eps):
    H, W, _ = o_ref.shape
    inv_n = 1.0 / float(H * W)

    def fill_padded(dst, src):                         # zero 1-px halo + interior, in VMEM
        dst[...] = jnp.zeros(dst.shape, dst.dtype)
        dst[1:H + 1, 1:W + 1, :] = src.astype(dst.dtype)

    def conv_in_lrelu(srcs, b, g, bt):
        n_out = srcs[0][1].shape[-1]
        acc = jnp.zeros((H * W, n_out), jnp.float32)
        for xpad_ref, w_ref in srcs:
            Ci = xpad_ref.shape[-1]
            xp = xpad_ref[...]                         # (H+2, W+2, Ci)
            if fold_taps:
                # column taps stacked along channels; hoisted out of the kh loop so only
                # 3 sublane shifts + 1 lane concat happen per input.
                cols = jnp.concatenate(
                    [xp[:, kj:kj + W, :] for kj in range(3)], axis=-1)  # (H+2, W, 3*Ci)
                for ki in range(3):
                    acc = acc + jnp.dot(cols[ki:ki + H].reshape(H * W, 3 * Ci),
                                        w_ref[ki], preferred_element_type=jnp.float32)
            else:
                for ki in range(3):
                    wk = w_ref[ki]
                    for kj in range(3):
                        xs = xp[ki:ki + H, kj:kj + W, :].reshape(H * W, Ci)
                        acc = acc + jnp.dot(xs, wk[kj * Ci:(kj + 1) * Ci, :],
                                            preferred_element_type=jnp.float32)
        acc = acc + b
        # InstanceNorm (biased variance), shifted two-pass to avoid E[x^2]-E[x]^2 cancellation
        mean = jnp.sum(acc, axis=0, keepdims=True) * inv_n
        cen = acc - mean
        var = jnp.sum(cen * cen, axis=0, keepdims=True) * inv_n
        y = cen * jax.lax.rsqrt(var + eps) * g + bt
        return jnp.where(y > 0, y, neg_slope * y)      # LeakyReLU(0.1)

    # conv_0: x_e and x_0 as two inputs (weight pre-split along Cin) -> no HBM concat.
    fill_padded(xe_pad, xe_ref[...])
    fill_padded(x0_pad, x0_ref[...])
    h = conv_in_lrelu([(xe_pad, we_ref), (x0_pad, wu_ref)],
                      b0_ref[...], g0_ref[...], bt0_ref[...])

    # conv_1 consumes the VMEM-resident h (no HBM round trip between the two convs).
    fill_padded(h_pad, h.reshape(H, W, g0_ref.shape[-1]))
    y = conv_in_lrelu([(h_pad, w1_ref)], b1_ref[...], g1_ref[...], bt1_ref[...])
    o_ref[...] = y.reshape(H, W, o_ref.shape[-1]).astype(o_ref.dtype)


def twoconv_fused(p, xe, x0, cdt, *, neg_slope=0.1, eps=1e-5):
    # TODO(synk): for large maps on v7x (64 MiB VMEM) add spatial (row) tiling with a 2-row
    # halo and cross-tile InstanceNorm statistics instead of whole-image blocks per batch.
    B, H, W, Ce = xe.shape
    Cup = x0.shape[-1]
    Cout = p["c0_g"].shape[-1]                 # real out_chns (conv_0 params are unpadded)
    Cout_pad = p["c1_g"].shape[-1]             # conv_1 Cout padded to a lane-dense width

    kern = functools.partial(_twoconv_kernel, fold_taps=_fold_taps_supported(),
                             neg_slope=neg_slope, eps=eps)
    out = pl.pallas_call(
        kern,
        out_shape=jax.ShapeDtypeStruct((B, H, W, Cout_pad), jnp.float32),
        grid=(B,),
        in_specs=[
            pl.BlockSpec((None, H, W, Ce), lambda b: (b, 0, 0, 0)),
            pl.BlockSpec((None, H, W, Cup), lambda b: (b, 0, 0, 0)),
            pl.BlockSpec((3, 3 * Ce, Cout), lambda b: (0, 0, 0)),
            pl.BlockSpec((3, 3 * Cup, Cout), lambda b: (0, 0, 0)),
            pl.BlockSpec((1, Cout), lambda b: (0, 0)),
            pl.BlockSpec((1, Cout), lambda b: (0, 0)),
            pl.BlockSpec((1, Cout), lambda b: (0, 0)),
            pl.BlockSpec((3, 3 * Cout, Cout_pad), lambda b: (0, 0, 0)),
            pl.BlockSpec((1, Cout_pad), lambda b: (0, 0)),
            pl.BlockSpec((1, Cout_pad), lambda b: (0, 0)),
            pl.BlockSpec((1, Cout_pad), lambda b: (0, 0)),
        ],
        out_specs=pl.BlockSpec((None, H, W, Cout_pad), lambda b: (b, 0, 0, 0)),
        scratch_shapes=[pltpu.VMEM((H + 2, W + 2, Ce), cdt),
                        pltpu.VMEM((H + 2, W + 2, Cup), cdt),
                        pltpu.VMEM((H + 2, W + 2, Cout), cdt)],
        compiler_params=pltpu.CompilerParams(
            dimension_semantics=("parallel",),
            vmem_limit_bytes=_vmem_limit_bytes()),
    )(xe, x0, p["c0_we"], p["c0_wu"], p["c0_b"], p["c0_g"], p["c0_bt"],
      p["c1_w"], p["c1_b"], p["c1_g"], p["c1_bt"])
    return out[..., :Cout] if Cout_pad != Cout else out


# ----------------------------------------------------------------------------
# One-time parameter repack (hoisted out of the forward path).
# ----------------------------------------------------------------------------
def pack_upcat_params(raw, compute_dtype=jnp.bfloat16):
    _fold_taps_supported()                     # warm the compile-only probe outside jit

    up_w = raw["up_w"]                         # (Cin, Cup, 2, 2) PyTorch layout
    Cup = up_w.shape[1]

    def pack_conv(w_oihw):                     # (O, I, 3, 3) -> (3[kh], 3*I[(kw,ci)], O)
        O, I = w_oihw.shape[0], w_oihw.shape[1]
        return (jnp.transpose(w_oihw, (2, 3, 1, 0))
                .reshape(3, 3 * I, O).astype(compute_dtype))

    c0_w = raw["c0_w"]                         # (O, Ce + Cup, 3, 3)
    Cout = c0_w.shape[0]
    Ce = c0_w.shape[1] - Cup

    # lane-dense final stores: pad conv_1's Cout to 128 when below 128; pad channels have
    # zero weight/bias/gamma/beta (InstanceNorm is per-channel) and are sliced off later.
    cout_pad = 128 if Cout < 128 else Cout
    pad = cout_pad - Cout
    c1_w = pack_conv(raw["c1_w"])
    if pad:
        c1_w = jnp.pad(c1_w, ((0, 0), (0, 0), (0, pad)))

    def row(v, extra=0):
        v = v.reshape(1, -1).astype(jnp.float32)
        return jnp.pad(v, ((0, 0), (0, extra))) if extra else v

    return {
        # deconv weight packed as (2[kh], Cin, 2*Cup[(kw, co)])
        "up_w": jnp.transpose(up_w, (2, 0, 3, 1)).reshape(2, up_w.shape[0], 2 * Cup)
                   .astype(compute_dtype),
        "up_b": jnp.tile(raw["up_b"], 2).reshape(1, 2 * Cup).astype(jnp.float32),
        "c0_we": pack_conv(c0_w[:, :Ce]),
        "c0_wu": pack_conv(c0_w[:, Ce:]),
        "c0_b": row(raw["c0_b"]), "c0_g": row(raw["c0_g"]), "c0_bt": row(raw["c0_bt"]),
        "c1_w": c1_w,
        "c1_b": row(raw["c1_b"], pad), "c1_g": row(raw["c1_g"], pad),
        "c1_bt": row(raw["c1_bt"], pad),
    }


# ----------------------------------------------------------------------------
# UpCat forward.  groups == 1 path only.
# ----------------------------------------------------------------------------
def upcat_forward_nhwc(p, x_nhwc, xe_nhwc):
    # TODO(synk): grouped convolution / group_cat path (groups > 1) not implemented.
    cdt = p["up_w"].dtype                      # compute dtype (bf16 fast path or f32)

    # upsample (deconv, kernel=2, stride=2); scatter done in-kernel, output in `cdt`
    x0 = deconv2x2_s2(x_nhwc, p["up_w"], p["up_b"], cdt)   # (B, 2H, 2W, Cup)

    # replicate pad (right/bottom) if the encoder map is one pixel larger (rare path)
    ph = xe_nhwc.shape[1] - x0.shape[1]
    pw = xe_nhwc.shape[2] - x0.shape[2]
    if ph or pw:
        x0 = jnp.pad(x0, ((0, 0), (0, ph), (0, pw), (0, 0)), mode="edge")

    # fused TwoConv (conv_0 -> IN -> LReLU -> conv_1 -> IN -> LReLU) in one pallas_call
    return twoconv_fused(p, xe_nhwc, x0, cdt)


def upcat_forward(p, x, x_e):
    # NCHW public interface (PyTorch parity). Each NCHW<->NHWC transpose is a full HBM pass
    # of a feature map; prefer upcat_forward_nhwc when the caller can supply NHWC.
    x_nhwc = jnp.transpose(x, (0, 2, 3, 1))
    xe_nhwc = jnp.transpose(x_e, (0, 2, 3, 1))
    out = upcat_forward_nhwc(p, x_nhwc, xe_nhwc)
    return jnp.transpose(out, (0, 3, 1, 2))


# ----------------------------------------------------------------------------
# Pure-JAX reference (NCHW, full f32, HIGHEST precision) for correctness checks.
# ----------------------------------------------------------------------------
def upcat_reference(params, x, x_e, neg_slope=0.1, eps=1e-5):
    Wd, bd = params["up_w"], params["up_b"]
    N, _, H, W = x.shape
    O = Wd.shape[1]
    y6 = jnp.einsum("nchw,cokl->nohkwl", x, Wd, precision=jax.lax.Precision.HIGHEST)
    x0 = y6.reshape(N, O, 2 * H, 2 * W) + bd[None, :, None, None]
    ph = x_e.shape[2] - x0.shape[2]
    pw = x_e.shape[3] - x0.shape[3]
    if ph or pw:
        x0 = jnp.pad(x0, ((0, 0), (0, 0), (0, ph), (0, pw)), mode="edge")
    cat = jnp.concatenate([x_e, x0], axis=1)

    def conv_block(z, w, b, g, bt):
        y = jax.lax.conv_general_dilated(
            z, w, (1, 1), ((1, 1), (1, 1)),
            dimension_numbers=("NCHW", "OIHW", "NCHW"),
            precision=jax.lax.Precision.HIGHEST,
        ) + b[None, :, None, None]
        m = jnp.mean(y, axis=(2, 3), keepdims=True)
        v = jnp.mean((y - m) ** 2, axis=(2, 3), keepdims=True)
        yn = (y - m) * jax.lax.rsqrt(v + eps) * g[None, :, None, None] + bt[None, :, None, None]
        return jnp.where(yn > 0, yn, neg_slope * yn)

    h = conv_block(cat, params["c0_w"], params["c0_b"], params["c0_g"], params["c0_bt"])
    h = conv_block(h, params["c1_w"], params["c1_b"], params["c1_g"], params["c1_bt"])
    return h


# ----------------------------------------------------------------------------
# Deterministic parameter init (PyTorch-like uniform(-1/sqrt(fan_in), +)).
# ----------------------------------------------------------------------------
def init_upcat_params(key, in_chns, cat_chns, out_chns, halves=True):
    up = in_chns // 2 if halves else in_chns
    ks = jax.random.split(key, 6)

    def u(k, shape, fan_in):
        bound = 1.0 / float(fan_in) ** 0.5
        return jax.random.uniform(k, shape, jnp.float32, -bound, bound)

    cin0 = cat_chns + up
    return {
        "up_w": u(ks[0], (in_chns, up, 2, 2), in_chns * 4),
        "up_b": u(ks[1], (up,), in_chns * 4),
        "c0_w": u(ks[2], (out_chns, cin0, 3, 3), cin0 * 9),
        "c0_b": u(ks[3], (out_chns,), cin0 * 9),
        "c0_g": jnp.ones((out_chns,), jnp.float32),
        "c0_bt": jnp.zeros((out_chns,), jnp.float32),
        "c1_w": u(ks[4], (out_chns, out_chns, 3, 3), out_chns * 9),
        "c1_b": u(ks[5], (out_chns,), out_chns * 9),
        "c1_g": jnp.ones((out_chns,), jnp.float32),
        "c1_bt": jnp.zeros((out_chns,), jnp.float32),
    }


if __name__ == "__main__":
    key = jax.random.PRNGKey(0)
    B, in_chns, cat_chns, out_chns = 2, 8, 4, 4
    H = W = 8  # x spatial; x_e is 2x larger (standard U-Net skip)

    raw = init_upcat_params(key, in_chns, cat_chns, out_chns, halves=True)
    kx, ke = jax.random.split(jax.random.fold_in(key, 1))
    x = jax.random.normal(kx, (B, in_chns, H, W), jnp.float32)
    x_e = jax.random.normal(ke, (B, cat_chns, 2 * H, 2 * W), jnp.float32)

    ref = upcat_reference(raw, x, x_e)
    fwd = jax.jit(upcat_forward)

    # f32 compute mode: tight check against the HIGHEST-precision reference.
    out_f32 = jax.block_until_ready(fwd(pack_upcat_params(raw, jnp.float32), x, x_e))
    assert out_f32.shape == (B, out_chns, 2 * H, 2 * W), out_f32.shape
    assert jnp.allclose(out_f32, ref, atol=2e-3, rtol=2e-3), \
        float(jnp.max(jnp.abs(out_f32 - ref)))

    # bf16 fast path (bf16 MXU operands, f32 accumulation / norm / activation).
    out_bf16 = jax.block_until_ready(fwd(pack_upcat_params(raw, jnp.bfloat16), x, x_e))
    assert out_bf16.shape == (B, out_chns, 2 * H, 2 * W), out_bf16.shape
    assert jnp.allclose(out_bf16, ref, atol=1e-1, rtol=1e-1), \
        float(jnp.max(jnp.abs(out_bf16 - ref)))

    print("KERNEL_OK")
</pallas_src>

<mosaic_0001>
module attributes {stable_mosaic.version = 11 : i64} {
  func.func @_deconv_kernel(%arg0: i32, %arg1: i32, %arg2: memref<1x8x8x8xf32, #tpu.memory_space<vmem>>, %arg3: memref<2x8x8xf32, #tpu.memory_space<vmem>>, %arg4: memref<1x8xf32, #tpu.memory_space<vmem>>, %arg5: memref<1x8x2x8x8xf32, #tpu.memory_space<vmem>>) attributes {dimension_semantics = [#tpu.dimension_semantics<parallel>, #tpu.dimension_semantics<parallel>], iteration_bounds = array<i64: 2, 1>, scalar_prefetch = 0 : i64, scratch_operands = 0 : i64, tpu.core_type = #tpu.core_type<tc>, window_params = [{transform_indices = @transform_0, window_bounds = array<i64: 1, 8, 8, 8>}, {pipeline_mode = #tpu.pipeline_mode<synchronous>, transform_indices = @transform_1, window_bounds = array<i64: 2, 8, 8>}, {pipeline_mode = #tpu.pipeline_mode<synchronous>, transform_indices = @transform_2, window_bounds = array<i64: 1, 8>}, {transform_indices = @transform_3, window_bounds = array<i64: 1, 8, 2, 8, 8>}]} {
    %c0 = arith.constant 0 : index
    %c0_0 = arith.constant 0 : index
    %c0_1 = arith.constant 0 : index
    %c0_2 = arith.constant 0 : index
    %0 = vector.load %arg2[%c0, %c0_0, %c0_1, %c0_2] : memref<1x8x8x8xf32, #tpu.memory_space<vmem>>, vector<1x8x8x8xf32>
    %1 = vector.shape_cast %0 : vector<1x8x8x8xf32> to vector<8x8x8xf32>
    %2 = vector.shape_cast %1 : vector<8x8x8xf32> to vector<64x8xf32>
    %c0_3 = arith.constant 0 : index
    %c0_4 = arith.constant 0 : index
    %3 = vector.load %arg4[%c0_3, %c0_4] : memref<1x8xf32, #tpu.memory_space<vmem>>, vector<1x8xf32>
    %c0_5 = arith.constant 0 : index
    %c0_6 = arith.constant 0 : index
    %c0_7 = arith.constant 0 : index
    %4 = vector.load %arg3[%c0_5, %c0_6, %c0_7] : memref<2x8x8xf32, #tpu.memory_space<vmem>>, vector<1x8x8xf32>
    %5 = vector.shape_cast %4 : vector<1x8x8xf32> to vector<8x8xf32>
    %cst = arith.constant dense<0.000000e+00> : vector<64x8xf32>
    %6 = tpu.matmul %2, %5, %cst {dimension_numbers = #tpu.dot_dimension_numbers<[1], [0], [0], [1], [0, 0, 1, 1], [], []>} : vector<64x8xf32>, vector<8x8xf32>, vector<64x8xf32> -> vector<64x8xf32>
    %7 = vector.broadcast %3 : vector<1x8xf32> to vector<64x8xf32>
    %8 = arith.addf %6, %7 : vector<64x8xf32>
    %9 = vector.shape_cast %8 : vector<64x8xf32> to vector<8x1x8x8xf32>
    %c0_8 = arith.constant 0 : index
    %c0_9 = arith.constant 0 : index
    %c0_10 = arith.constant 0 : index
    %c0_11 = arith.constant 0 : index
    %c0_12 = arith.constant 0 : index
    %10 = vector.load %arg5[%c0_8, %c0_9, %c0_10, %c0_11, %c0_12] : memref<1x8x2x8x8xf32, #tpu.memory_space<vmem>>, vector<1x8x1x8x8xf32>
    %11 = vector.shape_cast %10 : vector<1x8x1x8x8xf32> to vector<8x1x8x8xf32>
    %12 = vector.shape_cast %9 : vector<8x1x8x8xf32> to vector<1x8x1x8x8xf32>
    tpu.vector_store %arg5[%c0_8, %c0_9, %c0_10, %c0_11, %c0_12], %12 {strides = array<i32>} : memref<1x8x2x8x8xf32, #tpu.memory_space<vmem>>, vector<1x8x1x8x8xf32>,
    %c1 = arith.constant 1 : index
    %c0_13 = arith.constant 0 : index
    %c0_14 = arith.constant 0 : index
    %13 = vector.load %arg3[%c1, %c0_13, %c0_14] : memref<2x8x8xf32, #tpu.memory_space<vmem>>, vector<1x8x8xf32>
    %14 = vector.shape_cast %13 : vector<1x8x8xf32> to vector<8x8xf32>
    %cst_15 = arith.constant dense<0.000000e+00> : vector<64x8xf32>
    %15 = tpu.matmul %2, %14, %cst_15 {dimension_numbers = #tpu.dot_dimension_numbers<[1], [0], [0], [1], [0, 0, 1, 1], [], []>} : vector<64x8xf32>, vector<8x8xf32>, vector<64x8xf32> -> vector<64x8xf32>
    %16 = vector.broadcast %3 : vector<1x8xf32> to vector<64x8xf32>
    %17 = arith.addf %15, %16 : vector<64x8xf32>
    %18 = vector.shape_cast %17 : vector<64x8xf32> to vector<8x1x8x8xf32>
    %c0_16 = arith.constant 0 : index
    %c0_17 = arith.constant 0 : index
    %c1_18 = arith.constant 1 : index
    %c0_19 = arith.constant 0 : index
    %c0_20 = arith.constant 0 : index
    %19 = vector.load %arg5[%c0_16, %c0_17, %c1_18, %c0_19, %c0_20] : memref<1x8x2x8x8xf32, #tpu.memory_space<vmem>>, vector<1x8x1x8x8xf32>
    %20 = vector.shape_cast %19 : vector<1x8x1x8x8xf32> to vector<8x1x8x8xf32>
    %21 = vector.shape_cast %18 : vector<8x1x8x8xf32> to vector<1x8x1x8x8xf32>
    tpu.vector_store %arg5[%c0_16, %c0_17, %c1_18, %c0_19, %c0_20], %21 {strides = array<i32>} : memref<1x8x2x8x8xf32, #tpu.memory_space<vmem>>, vector<1x8x1x8x8xf32>,
    return
  }
  func.func @transform_0(%arg0: i32, %arg1: i32) -> (i32, i32, i32, i32) {
    %c0_i32 = arith.constant 0 : i32
    %c0_i32_0 = arith.constant 0 : i32
    %c0_i32_1 = arith.constant 0 : i32
    return %arg0, %arg1, %c0_i32, %c0_i32_0 : i32, i32, i32, i32
  }
  func.func @transform_1(%arg0: i32, %arg1: i32) -> (i32, i32, i32) {
    %c0_i32 = arith.constant 0 : i32
    %c0_i32_0 = arith.constant 0 : i32
    %c0_i32_1 = arith.constant 0 : i32
    %c0_i32_2 = arith.constant 0 : i32
    return %c0_i32, %c0_i32_0, %c0_i32_1 : i32, i32, i32
  }
  func.func @transform_2(%arg0: i32, %arg1: i32) -> (i32, i32) {
    %c0_i32 = arith.constant 0 : i32
    %c0_i32_0 = arith.constant 0 : i32
    %c0_i32_1 = arith.constant 0 : i32
    return %c0_i32, %c0_i32_0 : i32, i32
  }
  func.func @transform_3(%arg0: i32, %arg1: i32) -> (i32, i32, i32, i32, i32) {
    %c0_i32 = arith.constant 0 : i32
    %c0_i32_0 = arith.constant 0 : i32
    %c0_i32_1 = arith.constant 0 : i32
    %c0_i32_2 = arith.constant 0 : i32
    return %arg0, %arg1, %c0_i32, %c0_i32_0, %c0_i32_1 : i32, i32, i32, i32, i32
  }
}

module attributes {stable_mosaic.version = 11 : i64} {
  func.func @_twoconv_kernel(%arg0: i32, %arg1: memref<1x16x16x4xf32, #tpu.memory_space<vmem>>, %arg2: memref<1x16x16x4xf32, #tpu.memory_space<vmem>>, %arg3: memref<3x12x4xf32, #tpu.memory_space<vmem>>, %arg4: memref<3x12x4xf32, #tpu.memory_space<vmem>>, %arg5: memref<1x4xf32, #tpu.memory_space<vmem>>, %arg6: memref<1x4xf32, #tpu.memory_space<vmem>>, %arg7: memref<1x4xf32, #tpu.memory_space<vmem>>, %arg8: memref<3x12x128xf32, #tpu.memory_space<vmem>>, %arg9: memref<1x128xf32, #tpu.memory_space<vmem>>, %arg10: memref<1x128xf32, #tpu.memory_space<vmem>>, %arg11: memref<1x128xf32, #tpu.memory_space<vmem>>, %arg12: memref<1x16x16x128xf32, #tpu.memory_space<vmem>>, %arg13: memref<18x18x4xf32, #tpu.memory_space<vmem>>, %arg14: memref<18x18x4xf32, #tpu.memory_space<vmem>>, %arg15: memref<18x18x4xf32, #tpu.memory_space<vmem>>) attributes {dimension_semantics = [#tpu.dimension_semantics<parallel>], iteration_bounds = array<i64: 2>, scalar_prefetch = 0 : i64, scratch_operands = 3 : i64, tpu.core_type = #tpu.core_type<tc>, window_params = [{transform_indices = @transform_0, window_bounds = array<i64: 1, 16, 16, 4>}, {transform_indices = @transform_1, window_bounds = array<i64: 1, 16, 16, 4>}, {pipeline_mode = #tpu.pipeline_mode<synchronous>, transform_indices = @transform_2, window_bounds = array<i64: 3, 12, 4>}, {pipeline_mode = #tpu.pipeline_mode<synchronous>, transform_indices = @transform_3, window_bounds = array<i64: 3, 12, 4>}, {pipeline_mode = #tpu.pipeline_mode<synchronous>, transform_indices = @transform_4, window_bounds = array<i64: 1, 4>}, {pipeline_mode = #tpu.pipeline_mode<synchronous>, transform_indices = @transform_5, window_bounds = array<i64: 1, 4>}, {pipeline_mode = #tpu.pipeline_mode<synchronous>, transform_indices = @transform_6, window_bounds = array<i64: 1, 4>}, {pipeline_mode = #tpu.pipeline_mode<synchronous>, transform_indices = @transform_7, window_bounds = array<i64: 3, 12, 128>}, {pipeline_mode = #tpu.pipeline_mode<synchronous>, transform_indices = @transform_8, window_bounds = array<i64: 1, 128>}, {pipeline_mode = #tpu.pipeline_mode<synchronous>, transform_indices = @transform_9, window_bounds = array<i64: 1, 128>}, {pipeline_mode = #tpu.pipeline_mode<synchronous>, transform_indices = @transform_10, window_bounds = array<i64: 1, 128>}, {transform_indices = @transform_11, window_bounds = array<i64: 1, 16, 16, 128>}]} {
    %c0 = arith.constant 0 : index
    %c0_0 = arith.constant 0 : index
    %c0_1 = arith.constant 0 : index
    %c0_2 = arith.constant 0 : index
    %0 = vector.load %arg1[%c0, %c0_0, %c0_1, %c0_2] : memref<1x16x16x4xf32, #tpu.memory_space<vmem>>, vector<1x16x16x4xf32>
    %1 = vector.shape_cast %0 : vector<1x16x16x4xf32> to vector<16x16x4xf32>
    %cst = arith.constant 0.000000e+00 : f32
    %2 = vector.broadcast %cst : f32 to vector<18x18x4xf32>
    %c0_3 = arith.constant 0 : index
    %c0_4 = arith.constant 0 : index
    %c0_5 = arith.constant 0 : index
    %3 = vector.load %arg13[%c0_3, %c0_4, %c0_5] : memref<18x18x4xf32, #tpu.memory_space<vmem>>, vector<18x18x4xf32>
    tpu.vector_store %arg13[%c0_3, %c0_4, %c0_5], %2 {strides = array<i32>} : memref<18x18x4xf32, #tpu.memory_space<vmem>>, vector<18x18x4xf32>,
    %c1 = arith.constant 1 : index
    %c1_6 = arith.constant 1 : index
    %c0_7 = arith.constant 0 : index
    %4 = vector.load %arg13[%c1, %c1_6, %c0_7] : memref<18x18x4xf32, #tpu.memory_space<vmem>>, vector<16x16x4xf32>
    tpu.vector_store %arg13[%c1, %c1_6, %c0_7], %1 {strides = array<i32>} : memref<18x18x4xf32, #tpu.memory_space<vmem>>, vector<16x16x4xf32>,
    %c0_8 = arith.constant 0 : index
    %c0_9 = arith.constant 0 : index
    %c0_10 = arith.constant 0 : index
    %c0_11 = arith.constant 0 : index
    %5 = vector.load %arg2[%c0_8, %c0_9, %c0_10, %c0_11] : memref<1x16x16x4xf32, #tpu.memory_space<vmem>>, vector<1x16x16x4xf32>
    %6 = vector.shape_cast %5 : vector<1x16x16x4xf32> to vector<16x16x4xf32>
    %cst_12 = arith.constant 0.000000e+00 : f32
    %7 = vector.broadcast %cst_12 : f32 to vector<18x18x4xf32>
    %c0_13 = arith.constant 0 : index
    %c0_14 = arith.constant 0 : index
    %c0_15 = arith.constant 0 : index
    %8 = vector.load %arg14[%c0_13, %c0_14, %c0_15] : memref<18x18x4xf32, #tpu.memory_space<vmem>>, vector<18x18x4xf32>
    tpu.vector_store %arg14[%c0_13, %c0_14, %c0_15], %7 {strides = array<i32>} : memref<18x18x4xf32, #tpu.memory_space<vmem>>, vector<18x18x4xf32>,
    %c1_16 = arith.constant 1 : index
    %c1_17 = arith.constant 1 : index
    %c0_18 = arith.constant 0 : index
    %9 = vector.load %arg14[%c1_16, %c1_17, %c0_18] : memref<18x18x4xf32, #tpu.memory_space<vmem>>, vector<16x16x4xf32>
    tpu.vector_store %arg14[%c1_16, %c1_17, %c0_18], %6 {strides = array<i32>} : memref<18x18x4xf32, #tpu.memory_space<vmem>>, vector<16x16x4xf32>,
    %c0_19 = arith.constant 0 : index
    %c0_20 = arith.constant 0 : index
    %10 = vector.load %arg5[%c0_19, %c0_20] : memref<1x4xf32, #tpu.memory_space<vmem>>, vector<1x4xf32>
    %c0_21 = arith.constant 0 : index
    %c0_22 = arith.constant 0 : index
    %11 = vector.load %arg6[%c0_21, %c0_22] : memref<1x4xf32, #tpu.memory_space<vmem>>, vector<1x4xf32>
    %c0_23 = arith.constant 0 : index
    %c0_24 = arith.constant 0 : index
    %12 = vector.load %arg7[%c0_23, %c0_24] : memref<1x4xf32, #tpu.memory_space<vmem>>, vector<1x4xf32>
    %cst_25 = arith.constant 0.000000e+00 : f32
    %13 = vector.broadcast %cst_25 : f32 to vector<256x4xf32>
    %c0_26 = arith.constant 0 : index
    %c0_27 = arith.constant 0 : index
    %c0_28 = arith.constant 0 : index
    %14 = vector.load %arg13[%c0_26, %c0_27, %c0_28] : memref<18x18x4xf32, #tpu.memory_space<vmem>>, vector<18x18x4xf32>
    %c0_29 = arith.constant 0 : index
    %c0_30 = arith.constant 0 : index
    %c0_31 = arith.constant 0 : index
    %15 = vector.load %arg3[%c0_29, %c0_30, %c0_31] : memref<3x12x4xf32, #tpu.memory_space<vmem>>, vector<1x12x4xf32>
    %16 = vector.shape_cast %15 : vector<1x12x4xf32> to vector<12x4xf32>
    %17 = vector.extract_strided_slice %14 {offsets = [0, 0, 0], sizes = [16, 16, 4], strides = [1, 1, 1]} : vector<18x18x4xf32> to vector<16x16x4xf32>
    %18 = vector.shape_cast %17 : vector<16x16x4xf32> to vector<256x4xf32>
    %19 = vector.extract_strided_slice %16 {offsets = [0, 0], sizes = [4, 4], strides = [1, 1]} : vector<12x4xf32> to vector<4x4xf32>
    %cst_32 = arith.constant dense<0.000000e+00> : vector<256x4xf32>
    %20 = tpu.matmul %18, %19, %cst_32 {dimension_numbers = #tpu.dot_dimension_numbers<[1], [0], [0], [1], [0, 0, 1, 1], [], []>} : vector<256x4xf32>, vector<4x4xf32>, vector<256x4xf32> -> vector<256x4xf32>
    %21 = arith.addf %13, %20 : vector<256x4xf32>
    %22 = vector.extract_strided_slice %14 {offsets = [0, 1, 0], sizes = [16, 16, 4], strides = [1, 1, 1]} : vector<18x18x4xf32> to vector<16x16x4xf32>
    %23 = vector.shape_cast %22 : vector<16x16x4xf32> to vector<256x4xf32>
    %24 = vector.extract_strided_slice %16 {offsets = [4, 0], sizes = [4, 4], strides = [1, 1]} : vector<12x4xf32> to vector<4x4xf32>
    %cst_33 = arith.constant dense<0.000000e+00> : vector<256x4xf32>
    %25 = tpu.matmul %23, %24, %cst_33 {dimension_numbers = #tpu.dot_dimension_numbers<[1], [0], [0], [1], [0, 0, 1, 1], [], []>} : vector<256x4xf32>, vector<4x4xf32>, vector<256x4xf32> -> vector<256x4xf32>
    %26 = arith.addf %21, %25 : vector<256x4xf32>
    %27 = vector.extract_strided_slice %14 {offsets = [0, 2, 0], sizes = [16, 16, 4], strides = [1, 1, 1]} : vector<18x18x4xf32> to vector<16x16x4xf32>
    %28 = vector.shape_cast %27 : vector<16x16x4xf32> to vector<256x4xf32>
    %29 = vector.extract_strided_slice %16 {offsets = [8, 0], sizes = [4, 4], strides = [1, 1]} : vector<12x4xf32> to vector<4x4xf32>
    %cst_34 = arith.constant dense<0.000000e+00> : vector<256x4xf32>
    %30 = tpu.matmul %28, %29, %cst_34 {dimension_numbers = #tpu.dot_dimension_numbers<[1], [0], [0], [1], [0, 0, 1, 1], [], []>} : vector<256x4xf32>, vector<4x4xf32>, vector<256x4xf32> -> vector<256x4xf32>
    %31 = arith.addf %26, %30 : vector<256x4xf32>
    %c1_35 = arith.constant 1 : index
    %c0_36 = arith.constant 0 : index
    %c0_37 = arith.constant 0 : index
    %32 = vector.load %arg3[%c1_35, %c0_36, %c0_37] : memref<3x12x4xf32, #tpu.memory_space<vmem>>, vector<1x12x4xf32>
    %33 = vector.shape_cast %32 : vector<1x12x4xf32> to vector<12x4xf32>
    %34 = vector.extract_strided_slice %14 {offsets = [1, 0, 0], sizes = [16, 16, 4], strides = [1, 1, 1]} : vector<18x18x4xf32> to vector<16x16x4xf32>
    %35 = vector.shape_cast %34 : vector<16x16x4xf32> to vector<256x4xf32>
    %36 = vector.extract_strided_slice %33 {offsets = [0, 0], sizes = [4, 4], strides = [1, 1]} : vector<12x4xf32> to vector<4x4xf32>
    %cst_38 = arith.constant dense<0.000000e+00> : vector<256x4xf32>
    %37 = tpu.matmul %35, %36, %cst_38 {dimension_numbers = #tpu.dot_dimension_numbers<[1], [0], [0], [1], [0, 0, 1, 1], [], []>} : vector<256x4xf32>, vector<4x4xf32>, vector<256x4xf32> -> vector<256x4xf32>
    %38 = arith.addf %31, %37 : vector<256x4xf32>
    %39 = vector.extract_strided_slice %14 {offsets = [1, 1, 0], sizes = [16, 16, 4], strides = [1, 1, 1]} : vector<18x18x4xf32> to vector<16x16x4xf32>
    %40 = vector.shape_cast %39 : vector<16x16x4xf32> to vector<256x4xf32>
    %41 = vector.extract_strided_slice %33 {offsets = [4, 0], sizes = [4, 4], strides = [1, 1]} : vector<12x4xf32> to vector<4x4xf32>
    %cst_39 = arith.constant dense<0.000000e+00> : vector<256x4xf32>
    %42 = tpu.matmul %40, %41, %cst_39 {dimension_numbers = #tpu.dot_dimension_numbers<[1], [0], [0], [1], [0, 0, 1, 1], [], []>} : vector<256x4xf32>, vector<4x4xf32>, vector<256x4xf32> -> vector<256x4xf32>
    %43 = arith.addf %38, %42 : vector<256x4xf32>
    %44 = vector.extract_strided_slice %14 {offsets = [1, 2, 0], sizes = [16, 16, 4], strides = [1, 1, 1]} : vector<18x18x4xf32> to vector<16x16x4xf32>
    %45 = vector.shape_cast %44 : vector<16x16x4xf32> to vector<256x4xf32>
    %46 = vector.extract_strided_slice %33 {offsets = [8, 0], sizes = [4, 4], strides = [1, 1]} : vector<12x4xf32> to vector<4x4xf32>
    %cst_40 = arith.constant dense<0.000000e+00> : vector<256x4xf32>
    %47 = tpu.matmul %45, %46, %cst_40 {dimension_numbers = #tpu.dot_dimension_numbers<[1], [0], [0], [1], [0, 0, 1, 1], [], []>} : vector<256x4xf32>, vector<4x4xf32>, vector<256x4xf32> -> vector<256x4xf32>
    %48 = arith.addf %43, %47 : vector<256x4xf32>
    %c2 = arith.constant 2 : index
    %c0_41 = arith.constant 0 : index
    %c0_42 = arith.constant 0 : index
    %49 = vector.load %arg3[%c2, %c0_41, %c0_42] : memref<3x12x4xf32, #tpu.memory_space<vmem>>, vector<1x12x4xf32>
    %50 = vector.shape_cast %49 : vector<1x12x4xf32> to vector<12x4xf32>
    %51 = vector.extract_strided_slice %14 {offsets = [2, 0, 0], sizes = [16, 16, 4], strides = [1, 1, 1]} : vector<18x18x4xf32> to vector<16x16x4xf32>
    %52 = vector.shape_cast %51 : vector<16x16x4xf32> to vector<256x4xf32>
    %53 = vector.extract_strided_slice %50 {offsets = [0, 0], sizes = [4, 4], strides = [1, 1]} : vector<12x4xf32> to vector<4x4xf32>
    %cst_43 = arith.constant dense<0.000000e+00> : vector<256x4xf32>
    %54 = tpu.matmul %52, %53, %cst_43 {dimension_numbers = #tpu.dot_dimension_numbers<[1], [0], [0], [1], [0, 0, 1, 1], [], []>} : vector<256x4xf32>, vector<4x4xf32>, vector<256x4xf32> -> vector<256x4xf32>
    %55 = arith.addf %48, %54 : vector<256x4xf32>
    %56 = vector.extract_strided_slice %14 {offsets = [2, 1, 0], sizes = [16, 16, 4], strides = [1, 1, 1]} : vector<18x18x4xf32> to vector<16x16x4xf32>
    %57 = vector.shape_cast %56 : vector<16x16x4xf32> to vector<256x4xf32>
    %58 = vector.extract_strided_slice %50 {offsets = [4, 0], sizes = [4, 4], strides = [1, 1]} : vector<12x4xf32> to vector<4x4xf32>
    %cst_44 = arith.constant dense<0.000000e+00> : vector<256x4xf32>
    %59 = tpu.matmul %57, %58, %cst_44 {dimension_numbers = #tpu.dot_dimension_numbers<[1], [0], [0], [1], [0, 0, 1, 1], [], []>} : vector<256x4xf32>, vector<4x4xf32>, vector<256x4xf32> -> vector<256x4xf32>
    %60 = arith.addf %55, %59 : vector<256x4xf32>
    %61 = vector.extract_strided_slice %14 {offsets = [2, 2, 0], sizes = [16, 16, 4], strides = [1, 1, 1]} : vector<18x18x4xf32> to vector<16x16x4xf32>
    %62 = vector.shape_cast %61 : vector<16x16x4xf32> to vector<256x4xf32>
    %63 = vector.extract_strided_slice %50 {offsets = [8, 0], sizes = [4, 4], strides = [1, 1]} : vector<12x4xf32> to vector<4x4xf32>
    %cst_45 = arith.constant dense<0.000000e+00> : vector<256x4xf32>
    %64 = tpu.matmul %62, %63, %cst_45 {dimension_numbers = #tpu.dot_dimension_numbers<[1], [0], [0], [1], [0, 0, 1, 1], [], []>} : vector<256x4xf32>, vector<4x4xf32>, vector<256x4xf32> -> vector<256x4xf32>
    %65 = arith.addf %60, %64 : vector<256x4xf32>
    %c0_46 = arith.constant 0 : index
    %c0_47 = arith.constant 0 : index
    %c0_48 = arith.constant 0 : index
    %66 = vector.load %arg14[%c0_46, %c0_47, %c0_48] : memref<18x18x4xf32, #tpu.memory_space<vmem>>, vector<18x18x4xf32>
    %c0_49 = arith.constant 0 : index
    %c0_50 = arith.constant 0 : index
    %c0_51 = arith.constant 0 : index
    %67 = vector.load %arg4[%c0_49, %c0_50, %c0_51] : memref<3x12x4xf32, #tpu.memory_space<vmem>>, vector<1x12x4xf32>
    %68 = vector.shape_cast %67 : vector<1x12x4xf32> to vector<12x4xf32>
    %69 = vector.extract_strided_slice %66 {offsets = [0, 0, 0], sizes = [16, 16, 4], strides = [1, 1, 1]} : vector<18x18x4xf32> to vector<16x16x4xf32>
    %70 = vector.shape_cast %69 : vector<16x16x4xf32> to vector<256x4xf32>
    %71 = vector.extract_strided_slice %68 {offsets = [0, 0], sizes = [4, 4], strides = [1, 1]} : vector<12x4xf32> to vector<4x4xf32>
    %cst_52 = arith.constant dense<0.000000e+00> : vector<256x4xf32>
    %72 = tpu.matmul %70, %71, %cst_52 {dimension_numbers = #tpu.dot_dimension_numbers<[1], [0], [0], [1], [0, 0, 1, 1], [], []>} : vector<256x4xf32>, vector<4x4xf32>, vector<256x4xf32> -> vector<256x4xf32>
    %73 = arith.addf %65, %72 : vector<256x4xf32>
    %74 = vector.extract_strided_slice %66 {offsets = [0, 1, 0], sizes = [16, 16, 4], strides = [1, 1, 1]} : vector<18x18x4xf32> to vector<16x16x4xf32>
    %75 = vector.shape_cast %74 : vector<16x16x4xf32> to vector<256x4xf32>
    %76 = vector.extract_strided_slice %68 {offsets = [4, 0], sizes = [4, 4], strides = [1, 1]} : vector<12x4xf32> to vector<4x4xf32>
    %cst_53 = arith.constant dense<0.000000e+00> : vector<256x4xf32>
    %77 = tpu.matmul %75, %76, %cst_53 {dimension_numbers = #tpu.dot_dimension_numbers<[1], [0], [0], [1], [0, 0, 1, 1], [], []>} : vector<256x4xf32>, vector<4x4xf32>, vector<256x4xf32> -> vector<256x4xf32>
    %78 = arith.addf %73, %77 : vector<256x4xf32>
    %79 = vector.extract_strided_slice %66 {offsets = [0, 2, 0], sizes = [16, 16, 4], strides = [1, 1, 1]} : vector<18x18x4xf32> to vector<16x16x4xf32>
    %80 = vector.shape_cast %79 : vector<16x16x4xf32> to vector<256x4xf32>
    %81 = vector.extract_strided_slice %68 {offsets = [8, 0], sizes = [4, 4], strides = [1, 1]} : vector<12x4xf32> to vector<4x4xf32>
    %cst_54 = arith.constant dense<0.000000e+00> : vector<256x4xf32>
    %82 = tpu.matmul %80, %81, %cst_54 {dimension_numbers = #tpu.dot_dimension_numbers<[1], [0], [0], [1], [0, 0, 1, 1], [], []>} : vector<256x4xf32>, vector<4x4xf32>, vector<256x4xf32> -> vector<256x4xf32>
    %83 = arith.addf %78, %82 : vector<256x4xf32>
    %c1_55 = arith.constant 1 : index
    %c0_56 = arith.constant 0 : index
    %c0_57 = arith.constant 0 : index
    %84 = vector.load %arg4[%c1_55, %c0_56, %c0_57] : memref<3x12x4xf32, #tpu.memory_space<vmem>>, vector<1x12x4xf32>
    %85 = vector.shape_cast %84 : vector<1x12x4xf32> to vector<12x4xf32>
    %86 = vector.extract_strided_slice %66 {offsets = [1, 0, 0], sizes = [16, 16, 4], strides = [1, 1, 1]} : vector<18x18x4xf32> to vector<16x16x4xf32>
    %87 = vector.shape_cast %86 : vector<16x16x4xf32> to vector<256x4xf32>
    %88 = vector.extract_strided_slice %85 {offsets = [0, 0], sizes = [4, 4], strides = [1, 1]} : vector<12x4xf32> to vector<4x4xf32>
    %cst_58 = arith.constant dense<0.000000e+00> : vector<256x4xf32>
    %89 = tpu.matmul %87, %88, %cst_58 {dimension_numbers = #tpu.dot_dimension_numbers<[1], [0], [0], [1], [0, 0, 1, 1], [], []>} : vector<256x4xf32>, vector<4x4xf32>, vector<256x4xf32> -> vector<256x4xf32>
    %90 = arith.addf %83, %89 : vector<256x4xf32>
    %91 = vector.extract_strided_slice %66 {offsets = [1, 1, 0], sizes = [16, 16, 4], strides = [1, 1, 1]} : vector<18x18x4xf32> to vector<16x16x4xf32>
    %92 = vector.shape_cast %91 : vector<16x16x4xf32> to vector<256x4xf32>
    %93 = vector.extract_strided_slice %85 {offsets = [4, 0], sizes = [4, 4], strides = [1, 1]} : vector<12x4xf32> to vector<4x4xf32>
    %cst_59 = arith.constant dense<0.000000e+00> : vector<256x4xf32>
    %94 = tpu.matmul %92, %93, %cst_59 {dimension_numbers = #tpu.dot_dimension_numbers<[1], [0], [0], [1], [0, 0, 1, 1], [], []>} : vector<256x4xf32>, vector<4x4xf32>, vector<256x4xf32> -> vector<256x4xf32>
    %95 = arith.addf %90, %94 : vector<256x4xf32>
    %96 = vector.extract_strided_slice %66 {offsets = [1, 2, 0], sizes = [16, 16, 4], strides = [1, 1, 1]} : vector<18x18x4xf32> to vector<16x16x4xf32>
    %97 = vector.shape_cast %96 : vector<16x16x4xf32> to vector<256x4xf32>
    %98 = vector.extract_strided_slice %85 {offsets = [8, 0], sizes = [4, 4], strides = [1, 1]} : vector<12x4xf32> to vector<4x4xf32>
    %cst_60 = arith.constant dense<0.000000e+00> : vector<256x4xf32>
    %99 = tpu.matmul %97, %98, %cst_60 {dimension_numbers = #tpu.dot_dimension_numbers<[1], [0], [0], [1], [0, 0, 1, 1], [], []>} : vector<256x4xf32>, vector<4x4xf32>, vector<256x4xf32> -> vector<256x4xf32>
    %100 = arith.addf %95, %99 : vector<256x4xf32>
    %c2_61 = arith.constant 2 : index
    %c0_62 = arith.constant 0 : index
    %c0_63 = arith.constant 0 : index
    %101 = vector.load %arg4[%c2_61, %c0_62, %c0_63] : memref<3x12x4xf32, #tpu.memory_space<vmem>>, vector<1x12x4xf32>
    %102 = vector.shape_cast %101 : vector<1x12x4xf32> to vector<12x4xf32>
    %103 = vector.extract_strided_slice %66 {offsets = [2, 0, 0], sizes = [16, 16, 4], strides = [1, 1, 1]} : vector<18x18x4xf32> to vector<16x16x4xf32>
    %104 = vector.shape_cast %103 : vector<16x16x4xf32> to vector<256x4xf32>
    %105 = vector.extract_strided_slice %102 {offsets = [0, 0], sizes = [4, 4], strides = [1, 1]} : vector<12x4xf32> to vector<4x4xf32>
    %cst_64 = arith.constant dense<0.000000e+00> : vector<256x4xf32>
    %106 = tpu.matmul %104, %105, %cst_64 {dimension_numbers = #tpu.dot_dimension_numbers<[1], [0], [0], [1], [0, 0, 1, 1], [], []>} : vector<256x4xf32>, vector<4x4xf32>, vector<256x4xf32> -> vector<256x4xf32>
    %107 = arith.addf %100, %106 : vector<256x4xf32>
    %108 = vector.extract_strided_slice %66 {offsets = [2, 1, 0], sizes = [16, 16, 4], strides = [1, 1, 1]} : vector<18x18x4xf32> to vector<16x16x4xf32>
    %109 = vector.shape_cast %108 : vector<16x16x4xf32> to vector<256x4xf32>
    %110 = vector.extract_strided_slice %102 {offsets = [4, 0], sizes = [4, 4], strides = [1, 1]} : vector<12x4xf32> to vector<4x4xf32>
    %cst_65 = arith.constant dense<0.000000e+00> : vector<256x4xf32>
    %111 = tpu.matmul %109, %110, %cst_65 {dimension_numbers = #tpu.dot_dimension_numbers<[1], [0], [0], [1], [0, 0, 1, 1], [], []>} : vector<256x4xf32>, vector<4x4xf32>, vector<256x4xf32> -> vector<256x4xf32>
    %112 = arith.addf %107, %111 : vector<256x4xf32>
    %113 = vector.extract_strided_slice %66 {offsets = [2, 2, 0], sizes = [16, 16, 4], strides = [1, 1, 1]} : vector<18x18x4xf32> to vector<16x16x4xf32>
    %114 = vector.shape_cast %113 : vector<16x16x4xf32> to vector<256x4xf32>
    %115 = vector.extract_strided_slice %102 {offsets = [8, 0], sizes = [4, 4], strides = [1, 1]} : vector<12x4xf32> to vector<4x4xf32>
    %cst_66 = arith.constant dense<0.000000e+00> : vector<256x4xf32>
    %116 = tpu.matmul %114, %115, %cst_66 {dimension_numbers = #tpu.dot_dimension_numbers<[1], [0], [0], [1], [0, 0, 1, 1], [], []>} : vector<256x4xf32>, vector<4x4xf32>, vector<256x4xf32> -> vector<256x4xf32>
    %117 = arith.addf %112, %116 : vector<256x4xf32>
    %118 = vector.broadcast %10 : vector<1x4xf32> to vector<256x4xf32>
    %119 = arith.addf %117, %118 : vector<256x4xf32>
    %cst_67 = arith.constant dense<0.000000e+00> : vector<4xf32>
    %120 = vector.multi_reduction <add>, %119, %cst_67 [0] : vector<256x4xf32> to vector<4xf32>
    %121 = vector.shape_cast %120 : vector<4xf32> to vector<1x4xf32>
    %cst_68 = arith.constant 3.906250e-03 : f32
    %122 = vector.broadcast %cst_68 : f32 to vector<1x4xf32>
    %123 = arith.mulf %121, %122 : vector<1x4xf32>
    %124 = vector.broadcast %123 : vector<1x4xf32> to vector<256x4xf32>
    %125 = arith.subf %119, %124 : vector<256x4xf32>
    %126 = arith.mulf %125, %125 : vector<256x4xf32>
    %cst_69 = arith.constant dense<0.000000e+00> : vector<4xf32>
    %127 = vector.multi_reduction <add>, %126, %cst_69 [0] : vector<256x4xf32> to vector<4xf32>
    %128 = vector.shape_cast %127 : vector<4xf32> to vector<1x4xf32>
    %cst_70 = arith.constant 3.906250e-03 : f32
    %129 = vector.broadcast %cst_70 : f32 to vector<1x4xf32>
    %130 = arith.mulf %128, %129 : vector<1x4xf32>
    %cst_71 = arith.constant 9.99999974E-6 : f32
    %131 = vector.broadcast %cst_71 : f32 to vector<1x4xf32>
    %132 = arith.addf %130, %131 : vector<1x4xf32>
    %133 = math.rsqrt %132 : vector<1x4xf32>
    %134 = vector.broadcast %133 : vector<1x4xf32> to vector<256x4xf32>
    %135 = arith.mulf %125, %134 : vector<256x4xf32>
    %136 = vector.broadcast %11 : vector<1x4xf32> to vector<256x4xf32>
    %137 = arith.mulf %135, %136 : vector<256x4xf32>
    %138 = vector.broadcast %12 : vector<1x4xf32> to vector<256x4xf32>
    %139 = arith.addf %137, %138 : vector<256x4xf32>
    %cst_72 = arith.constant 0.000000e+00 : f32
    %140 = vector.broadcast %cst_72 : f32 to vector<256x4xf32>
    %141 = arith.cmpf ogt, %139, %140 : vector<256x4xf32>
    %cst_73 = arith.constant 1.000000e-01 : f32
    %142 = vector.broadcast %cst_73 : f32 to vector<256x4xf32>
    %143 = arith.mulf %142, %139 : vector<256x4xf32>
    %144 = arith.select %141, %139, %143 : vector<256x4xi1>, vector<256x4xf32>
    %145 = vector.shape_cast %144 : vector<256x4xf32> to vector<16x16x4xf32>
    %cst_74 = arith.constant 0.000000e+00 : f32
    %146 = vector.broadcast %cst_74 : f32 to vector<18x18x4xf32>
    %c0_75 = arith.constant 0 : index
    %c0_76 = arith.constant 0 : index
    %c0_77 = arith.constant 0 : index
    %147 = vector.load %arg15[%c0_75, %c0_76, %c0_77] : memref<18x18x4xf32, #tpu.memory_space<vmem>>, vector<18x18x4xf32>
    tpu.vector_store %arg15[%c0_75, %c0_76, %c0_77], %146 {strides = array<i32>} : memref<18x18x4xf32, #tpu.memory_space<vmem>>, vector<18x18x4xf32>,
    %c1_78 = arith.constant 1 : index
    %c1_79 = arith.constant 1 : index
    %c0_80 = arith.constant 0 : index
    %148 = vector.load %arg15[%c1_78, %c1_79, %c0_80] : memref<18x18x4xf32, #tpu.memory_space<vmem>>, vector<16x16x4xf32>
    tpu.vector_store %arg15[%c1_78, %c1_79, %c0_80], %145 {strides = array<i32>} : memref<18x18x4xf32, #tpu.memory_space<vmem>>, vector<16x16x4xf32>,
    %c0_81 = arith.constant 0 : index
    %c0_82 = arith.constant 0 : index
    %149 = vector.load %arg9[%c0_81, %c0_82] : memref<1x128xf32, #tpu.memory_space<vmem>>, vector<1x128xf32>
    %c0_83 = arith.constant 0 : index
    %c0_84 = arith.constant 0 : index
    %150 = vector.load %arg10[%c0_83, %c0_84] : memref<1x128xf32, #tpu.memory_space<vmem>>, vector<1x128xf32>
    %c0_85 = arith.constant 0 : index
    %c0_86 = arith.constant 0 : index
    %151 = vector.load %arg11[%c0_85, %c0_86] : memref<1x128xf32, #tpu.memory_space<vmem>>, vector<1x128xf32>
    %cst_87 = arith.constant 0.000000e+00 : f32
    %152 = vector.broadcast %cst_87 : f32 to vector<256x128xf32>
    %c0_88 = arith.constant 0 : index
    %c0_89 = arith.constant 0 : index
    %c0_90 = arith.constant 0 : index
    %153 = vector.load %arg15[%c0_88, %c0_89, %c0_90] : memref<18x18x4xf32, #tpu.memory_space<vmem>>, vector<18x18x4xf32>
    %c0_91 = arith.constant 0 : index
    %c0_92 = arith.constant 0 : index
    %c0_93 = arith.constant 0 : index
    %154 = vector.load %arg8[%c0_91, %c0_92, %c0_93] : memref<3x12x128xf32, #tpu.memory_space<vmem>>, vector<1x12x128xf32>
    %155 = vector.shape_cast %154 : vector<1x12x128xf32> to vector<12x128xf32>
    %156 = vector.extract_strided_slice %153 {offsets = [0, 0, 0], sizes = [16, 16, 4], strides = [1, 1, 1]} : vector<18x18x4xf32> to vector<16x16x4xf32>
    %157 = vector.shape_cast %156 : vector<16x16x4xf32> to vector<256x4xf32>
    %158 = vector.extract_strided_slice %155 {offsets = [0, 0], sizes = [4, 128], strides = [1, 1]} : vector<12x128xf32> to vector<4x128xf32>
    %cst_94 = arith.constant dense<0.000000e+00> : vector<256x128xf32>
    %159 = tpu.matmul %157, %158, %cst_94 {dimension_numbers = #tpu.dot_dimension_numbers<[1], [0], [0], [1], [0, 0, 1, 1], [], []>} : vector<256x4xf32>, vector<4x128xf32>, vector<256x128xf32> -> vector<256x128xf32>
    %160 = arith.addf %152, %159 : vector<256x128xf32>
    %161 = vector.extract_strided_slice %153 {offsets = [0, 1, 0], sizes = [16, 16, 4], strides = [1, 1, 1]} : vector<18x18x4xf32> to vector<16x16x4xf32>
    %162 = vector.shape_cast %161 : vector<16x16x4xf32> to vector<256x4xf32>
    %163 = vector.extract_strided_slice %155 {offsets = [4, 0], sizes = [4, 128], strides = [1, 1]} : vector<12x128xf32> to vector<4x128xf32>
    %cst_95 = arith.constant dense<0.000000e+00> : vector<256x128xf32>
    %164 = tpu.matmul %162, %163, %cst_95 {dimension_numbers = #tpu.dot_dimension_numbers<[1], [0], [0], [1], [0, 0, 1, 1], [], []>} : vector<256x4xf32>, vector<4x128xf32>, vector<256x128xf32> -> vector<256x128xf32>
    %165 = arith.addf %160, %164 : vector<256x128xf32>
    %166 = vector.extract_strided_slice %153 {offsets = [0, 2, 0], sizes = [16, 16, 4], strides = [1, 1, 1]} : vector<18x18x4xf32> to vector<16x16x4xf32>
    %167 = vector.shape_cast %166 : vector<16x16x4xf32> to vector<256x4xf32>
    %168 = vector.extract_strided_slice %155 {offsets = [8, 0], sizes = [4, 128], strides = [1, 1]} : vector<12x128xf32> to vector<4x128xf32>
    %cst_96 = arith.constant dense<0.000000e+00> : vector<256x128xf32>
    %169 = tpu.matmul %167, %168, %cst_96 {dimension_numbers = #tpu.dot_dimension_numbers<[1], [0], [0], [1], [0, 0, 1, 1], [], []>} : vector<256x4xf32>, vector<4x128xf32>, vector<256x128xf32> -> vector<256x128xf32>
    %170 = arith.addf %165, %169 : vector<256x128xf32>
    %c1_97 = arith.constant 1 : index
    %c0_98 = arith.constant 0 : index
    %c0_99 = arith.constant 0 : index
    %171 = vector.load %arg8[%c1_97, %c0_98, %c0_99] : memref<3x12x128xf32, #tpu.memory_space<vmem>>, vector<1x12x128xf32>
    %172 = vector.shape_cast %171 : vector<1x12x128xf32> to vector<12x128xf32>
    %173 = vector.extract_strided_slice %153 {offsets = [1, 0, 0], sizes = [16, 16, 4], strides = [1, 1, 1]} : vector<18x18x4xf32> to vector<16x16x4xf32>
    %174 = vector.shape_cast %173 : vector<16x16x4xf32> to vector<256x4xf32>
    %175 = vector.extract_strided_slice %172 {offsets = [0, 0], sizes = [4, 128], strides = [1, 1]} : vector<12x128xf32> to vector<4x128xf32>
    %cst_100 = arith.constant dense<0.000000e+00> : vector<256x128xf32>
    %176 = tpu.matmul %174, %175, %cst_100 {dimension_numbers = #tpu.dot_dimension_numbers<[1], [0], [0], [1], [0, 0, 1, 1], [], []>} : vector<256x4xf32>, vector<4x128xf32>, vector<256x128xf32> -> vector<256x128xf32>
    %177 = arith.addf %170, %176 : vector<256x128xf32>
    %178 = vector.extract_strided_slice %153 {offsets = [1, 1, 0], sizes = [16, 16, 4], strides = [1, 1, 1]} : vector<18x18x4xf32> to vector<16x16x4xf32>
    %179 = vector.shape_cast %178 : vector<16x16x4xf32> to vector<256x4xf32>
    %180 = vector.extract_strided_slice %172 {offsets = [4, 0], sizes = [4, 128], strides = [1, 1]} : vector<12x128xf32> to vector<4x128xf32>
    %cst_101 = arith.constant dense<0.000000e+00> : vector<256x128xf32>
    %181 = tpu.matmul %179, %180, %cst_101 {dimension_numbers = #tpu.dot_dimension_numbers<[1], [0], [0], [1], [0, 0, 1, 1], [], []>} : vector<256x4xf32>, vector<4x128xf32>, vector<256x128xf32> -> vector<256x128xf32>
    %182 = arith.addf %177, %181 : vector<256x128xf32>
    %183 = vector.extract_strided_slice %153 {offsets = [1, 2, 0], sizes = [16, 16, 4], strides = [1, 1, 1]} : vector<18x18x4xf32> to vector<16x16x4xf32>
    %184 = vector.shape_cast %183 : vector<16x16x4xf32> to vector<256x4xf32>
    %185 = vector.extract_strided_slice %172 {offsets = [8, 0], sizes = [4, 128], strides = [1, 1]} : vector<12x128xf32> to vector<4x128xf32>
    %cst_102 = arith.constant dense<0.000000e+00> : vector<256x128xf32>
    %186 = tpu.matmul %184, %185, %cst_102 {dimension_numbers = #tpu.dot_dimension_numbers<[1], [0], [0], [1], [0, 0, 1, 1], [], []>} : vector<256x4xf32>, vector<4x128xf32>, vector<256x128xf32> -> vector<256x128xf32>
    %187 = arith.addf %182, %186 : vector<256x128xf32>
    %c2_103 = arith.constant 2 : index
    %c0_104 = arith.constant 0 : index
    %c0_105 = arith.constant 0 : index
    %188 = vector.load %arg8[%c2_103, %c0_104, %c0_105] : memref<3x12x128xf32, #tpu.memory_space<vmem>>, vector<1x12x128xf32>
    %189 = vector.shape_cast %188 : vector<1x12x128xf32> to vector<12x128xf32>
    %190 = vector.extract_strided_slice %153 {offsets = [2, 0, 0], sizes = [16, 16, 4], strides = [1, 1, 1]} : vector<18x18x4xf32> to vector<16x16x4xf32>
    %191 = vector.shape_cast %190 : vector<16x16x4xf32> to vector<256x4xf32>
    %192 = vector.extract_strided_slice %189 {offsets = [0, 0], sizes = [4, 128], strides = [1, 1]} : vector<12x128xf32> to vector<4x128xf32>
    %cst_106 = arith.constant dense<0.000000e+00> : vector<256x128xf32>
    %193 = tpu.matmul %191, %192, %cst_106 {dimension_numbers = #tpu.dot_dimension_numbers<[1], [0], [0], [1], [0, 0, 1, 1], [], []>} : vector<256x4xf32>, vector<4x128xf32>, vector<256x128xf32> -> vector<256x128xf32>
    %194 = arith.addf %187, %193 : vector<256x128xf32>
    %195 = vector.extract_strided_slice %153 {offsets = [2, 1, 0], sizes = [16, 16, 4], strides = [1, 1, 1]} : vector<18x18x4xf32> to vector<16x16x4xf32>
    %196 = vector.shape_cast %195 : vector<16x16x4xf32> to vector<256x4xf32>
    %197 = vector.extract_strided_slice %189 {offsets = [4, 0], sizes = [4, 128], strides = [1, 1]} : vector<12x128xf32> to vector<4x128xf32>
    %cst_107 = arith.constant dense<0.000000e+00> : vector<256x128xf32>
    %198 = tpu.matmul %196, %197, %cst_107 {dimension_numbers = #tpu.dot_dimension_numbers<[1], [0], [0], [1], [0, 0, 1, 1], [], []>} : vector<256x4xf32>, vector<4x128xf32>, vector<256x128xf32> -> vector<256x128xf32>
    %199 = arith.addf %194, %198 : vector<256x128xf32>
    %200 = vector.extract_strided_slice %153 {offsets = [2, 2, 0], sizes = [16, 16, 4], strides = [1, 1, 1]} : vector<18x18x4xf32> to vector<16x16x4xf32>
    %201 = vector.shape_cast %200 : vector<16x16x4xf32> to vector<256x4xf32>
    %202 = vector.extract_strided_slice %189 {offsets = [8, 0], sizes = [4, 128], strides = [1, 1]} : vector<12x128xf32> to vector<4x128xf32>
    %cst_108 = arith.constant dense<0.000000e+00> : vector<256x128xf32>
    %203 = tpu.matmul %201, %202, %cst_108 {dimension_numbers = #tpu.dot_dimension_numbers<[1], [0], [0], [1], [0, 0, 1, 1], [], []>} : vector<256x4xf32>, vector<4x128xf32>, vector<256x128xf32> -> vector<256x128xf32>
    %204 = arith.addf %199, %203 : vector<256x128xf32>
    %205 = vector.broadcast %149 : vector<1x128xf32> to vector<256x128xf32>
    %206 = arith.addf %204, %205 : vector<256x128xf32>
    %cst_109 = arith.constant dense<0.000000e+00> : vector<128xf32>
    %207 = vector.multi_reduction <add>, %206, %cst_109 [0] : vector<256x128xf32> to vector<128xf32>
    %208 = vector.shape_cast %207 : vector<128xf32> to vector<1x128xf32>
    %cst_110 = arith.constant 3.906250e-03 : f32
    %209 = vector.broadcast %cst_110 : f32 to vector<1x128xf32>
    %210 = arith.mulf %208, %209 : vector<1x128xf32>
    %211 = vector.broadcast %210 : vector<1x128xf32> to vector<256x128xf32>
    %212 = arith.subf %206, %211 : vector<256x128xf32>
    %213 = arith.mulf %212, %212 : vector<256x128xf32>
    %cst_111 = arith.constant dense<0.000000e+00> : vector<128xf32>
    %214 = vector.multi_reduction <add>, %213, %cst_111 [0] : vector<256x128xf32> to vector<128xf32>
    %215 = vector.shape_cast %214 : vector<128xf32> to vector<1x128xf32>
    %cst_112 = arith.constant 3.906250e-03 : f32
    %216 = vector.broadcast %cst_112 : f32 to vector<1x128xf32>
    %217 = arith.mulf %215, %216 : vector<1x128xf32>
    %cst_113 = arith.constant 9.99999974E-6 : f32
    %218 = vector.broadcast %cst_113 : f32 to vector<1x128xf32>
    %219 = arith.addf %217, %218 : vector<1x128xf32>
    %220 = math.rsqrt %219 : vector<1x128xf32>
    %221 = vector.broadcast %220 : vector<1x128xf32> to vector<256x128xf32>
    %222 = arith.mulf %212, %221 : vector<256x128xf32>
    %223 = vector.broadcast %150 : vector<1x128xf32> to vector<256x128xf32>
    %224 = arith.mulf %222, %223 : vector<256x128xf32>
    %225 = vector.broadcast %151 : vector<1x128xf32> to vector<256x128xf32>
    %226 = arith.addf %224, %225 : vector<256x128xf32>
    %cst_114 = arith.constant 0.000000e+00 : f32
    %227 = vector.broadcast %cst_114 : f32 to vector<256x128xf32>
    %228 = arith.cmpf ogt, %226, %227 : vector<256x128xf32>
    %cst_115 = arith.constant 1.000000e-01 : f32
    %229 = vector.broadcast %cst_115 : f32 to vector<256x128xf32>
    %230 = arith.mulf %229, %226 : vector<256x128xf32>
    %231 = arith.select %228, %226, %230 : vector<256x128xi1>, vector<256x128xf32>
    %232 = vector.shape_cast %231 : vector<256x128xf32> to vector<16x16x128xf32>
    %c0_116 = arith.constant 0 : index
    %c0_117 = arith.constant 0 : index
    %c0_118 = arith.constant 0 : index
    %c0_119 = arith.constant 0 : index
    %233 = vector.load %arg12[%c0_116, %c0_117, %c0_118, %c0_119] : memref<1x16x16x128xf32, #tpu.memory_space<vmem>>, vector<1x16x16x128xf32>
    %234 = vector.shape_cast %233 : vector<1x16x16x128xf32> to vector<16x16x128xf32>
    %235 = vector.shape_cast %232 : vector<16x16x128xf32> to vector<1x16x16x128xf32>
    tpu.vector_store %arg12[%c0_116, %c0_117, %c0_118, %c0_119], %235 {strides = array<i32>} : memref<1x16x16x128xf32, #tpu.memory_space<vmem>>, vector<1x16x16x128xf32>,
    return
  }
  func.func @transform_0(%arg0: i32) -> (i32, i32, i32, i32) {
    %c0_i32 = arith.constant 0 : i32
    %c0_i32_0 = arith.constant 0 : i32
    %c0_i32_1 = arith.constant 0 : i32
    %c0_i32_2 = arith.constant 0 : i32
    return %arg0, %c0_i32, %c0_i32_0, %c0_i32_1 : i32, i32, i32, i32
  }
  func.func @transform_1(%arg0: i32) -> (i32, i32, i32, i32) {
    %c0_i32 = arith.constant 0 : i32
    %c0_i32_0 = arith.constant 0 : i32
    %c0_i32_1 = arith.constant 0 : i32
    %c0_i32_2 = arith.constant 0 : i32
    return %arg0, %c0_i32, %c0_i32_0, %c0_i32_1 : i32, i32, i32, i32
  }
  func.func @transform_2(%arg0: i32) -> (i32, i32, i32) {
    %c0_i32 = arith.constant 0 : i32
    %c0_i32_0 = arith.constant 0 : i32
    %c0_i32_1 = arith.constant 0 : i32
    %c0_i32_2 = arith.constant 0 : i32
    return %c0_i32, %c0_i32_0, %c0_i32_1 : i32, i32, i32
  }
  func.func @transform_3(%arg0: i32) -> (i32, i32, i32) {
    %c0_i32 = arith.constant 0 : i32
    %c0_i32_0 = arith.constant 0 : i32
    %c0_i32_1 = arith.constant 0 : i32
    %c0_i32_2 = arith.constant 0 : i32
    return %c0_i32, %c0_i32_0, %c0_i32_1 : i32, i32, i32
  }
  func.func @transform_4(%arg0: i32) -> (i32, i32) {
    %c0_i32 = arith.constant 0 : i32
    %c0_i32_0 = arith.constant 0 : i32
    %c0_i32_1 = arith.constant 0 : i32
    return %c0_i32, %c0_i32_0 : i32, i32
  }
  func.func @transform_5(%arg0: i32) -> (i32, i32) {
    %c0_i32 = arith.constant 0 : i32
    %c0_i32_0 = arith.constant 0 : i32
    %c0_i32_1 = arith.constant 0 : i32
    return %c0_i32, %c0_i32_0 : i32, i32
  }
  func.func @transform_6(%arg0: i32) -> (i32, i32) {
    %c0_i32 = arith.constant 0 : i32
    %c0_i32_0 = arith.constant 0 : i32
    %c0_i32_1 = arith.constant 0 : i32
    return %c0_i32, %c0_i32_0 : i32, i32
  }
  func.func @transform_7(%arg0: i32) -> (i32, i32, i32) {
    %c0_i32 = arith.constant 0 : i32
    %c0_i32_0 = arith.constant 0 : i32
    %c0_i32_1 = arith.constant 0 : i32
    %c0_i32_2 = arith.constant 0 : i32
    return %c0_i32, %c0_i32_0, %c0_i32_1 : i32, i32, i32
  }
  func.func @transform_8(%arg0: i32) -> (i32, i32) {
    %c0_i32 = arith.constant 0 : i32
    %c0_i32_0 = arith.constant 0 : i32
    %c0_i32_1 = arith.constant 0 : i32
    return %c0_i32, %c0_i32_0 : i32, i32
  }
  func.func @transform_9(%arg0: i32) -> (i32, i32) {
    %c0_i32 = arith.constant 0 : i32
    %c0_i32_0 = arith.constant 0 : i32
    %c0_i32_1 = arith.constant 0 : i32
    return %c0_i32, %c0_i32_0 : i32, i32
  }
  func.func @transform_10(%arg0: i32) -> (i32, i32) {
    %c0_i32 = arith.constant 0 : i32
    %c0_i32_0 = arith.constant 0 : i32
    %c0_i32_1 = arith.constant 0 : i32
    return %c0_i32, %c0_i32_0 : i32, i32
  }
  func.func @transform_11(%arg0: i32) -> (i32, i32, i32, i32) {
    %c0_i32 = arith.constant 0 : i32
    %c0_i32_0 = arith.constant 0 : i32
    %c0_i32_1 = arith.constant 0 : i32
    %c0_i32_2 = arith.constant 0 : i32
    return %arg0, %c0_i32, %c0_i32_0, %c0_i32_1 : i32, i32, i32, i32
  }
}

</mosaic_0001>

<llo_original>
// kernel: upcat_forward.2
$region0: #{upcat_forward.2}
  #allocation0 [shape = 'u32[]', space=smem, size = 0x4, offset = 0x4, fixed_abs, tag = 'smem constant byte address 0x4 - core index']
  #allocation1 [shape = 'u32[144,128]{1,0:T(1,128)}', space=vmem, size = 0x12000, scoped, tag = 'internal scratch']
  %s0 = inlined_call_operand.vmem [shape: f32[2,8,8,8], index: 0, kind: input, shape index: {}]
  %s1 = inlined_call_operand.vmem [shape: f32[2,8,8], index: 1, kind: input, shape index: {}]
  %s2 = inlined_call_operand.vmem [shape: f32[1,8], index: 2, kind: input, shape index: {}]
  %s3 = inlined_call_operand.vmem [shape: f32[2,8,2,8,8], index: 3, kind: output, shape index: {}]
  %s4 = sld [smem:[#allocation0]]
  $region45: #{upcat_forward.2} parent=0
    _
  %s6 = ssub.s32 1, %s4
  %s7 = scalar_select 0, %s6, %s4
  loop: start=0, step=1, limit=4
  $region2: #{upcat_forward.2} parent=0 // loop_pre_header
    _
  $region3: #{upcat_forward.2} parent=0 // loop_header
    %s9 = sphi 0, %s13
    %p10 = scmp.ge.s32.totalorder %s9, 4
    %s16 = sphi 0, %s28
    %s17 = sphi 0, %s24
    %s18 = sphi 0, %s16
    %s19 = sphi 0, %s17
    %s20 = sphi 0, %s18
    %s21 = sphi 0, %s19
    %s33 = sphi 0, %s35
    %s36 = sphi 0, %s33
    %s37 = sphi 0, %s36
    %s53 = sphi 0, %s37
    %s57 = sphi 0, %s57
    %s59 = sphi 0, %s57
    %s60 = sphi 0, %s59
    %s74 = sphi 0, %s60
    %s78 = sphi 0, %s78
    %s80 = sphi 0, %s78
    %s81 = sphi 0, %s80
    %s95 = sphi 0, %s81
    %s103 = sphi 0, %s105
    %s106 = sphi 0, %s103
    %s107 = sphi 0, %s106
    %s123 = sphi 0, %s107
  $region4: #{upcat_forward.2} parent=0 // loop_header_branch
    %12 = sbr.rel (%p10) target = $region8
  $region5: #{upcat_forward.2} parent=0 // loop_body
    %s14 = ssub.s32 %s9, 1
    %s15 = ssub.s32 %s9, 2
    %s22 = sadd.s32 1, %s17
    %p23 = scmp.ge.s32.totalorder %s22, 1
    %s24 = scalar_select %p23, 0, %s22
    %s25 = sadd.s32 1, %s16
    %s26 = scalar_select %p23, %s25, %s16
    %p27 = scmp.ge.s32.totalorder %s26, 2
    %s28 = scalar_select %p27, 0, %s26
    %s29 = ssub.s32 %s16, %s28
    %s30 = ssub.s32 %s17, %s24
    %s31 = sor.u32 %s29, %s30
    %p32 = scmp.eq.s32.totalorder %s31, 0
    %s34 = sadd.s32 %s33, 1
    %s35 = scalar_select %p32, %s33, %s34
    %p38 = pneg %p32
    %p39 = scmp.eq.s32.totalorder %s9, 1
    %p40 = por %p38, %p39
    %p41 = scmp.ne.s32.totalorder %s33, %s36
    %p42 = scmp.eq.s32.totalorder %s9, 0
    %p43 = por %p41, %p42
    %p44 = scmp.ne.s32.totalorder %s33, %s36
    %p45 = scmp.eq.s32.totalorder %s14, 1
    %p46 = por %p44, %p45
    %p47 = scmp.ne.s32.totalorder %s36, %s37
    %p48 = scmp.eq.s32.totalorder %s14, 0
    %p49 = por %p47, %p48
    %p50 = scmp.ne.s32.totalorder %s36, %s37
    %p51 = scmp.eq.s32.totalorder %s15, 1
    %p52 = por %p50, %p51
    %p54 = scmp.ne.s32.totalorder %s37, %s53
    %p55 = scmp.eq.s32.totalorder %s15, 0
    %p56 = por %p54, %p55
    %s58 = sadd.s32 %s57, 1
    %p61 = scmp.eq.s32.totalorder %s9, 1
    %p62 = scmp.ne.s32.totalorder %s57, %s59
    %p63 = scmp.eq.s32.totalorder %s9, 0
    %p64 = por %p62, %p63
    %p65 = scmp.ne.s32.totalorder %s57, %s59
    %p66 = scmp.eq.s32.totalorder %s14, 1
    %p67 = por %p65, %p66
    %p68 = scmp.ne.s32.totalorder %s59, %s60
    %p69 = scmp.eq.s32.totalorder %s14, 0
    %p70 = por %p68, %p69
    %p71 = scmp.ne.s32.totalorder %s59, %s60
    %p72 = scmp.eq.s32.totalorder %s15, 1
    %p73 = por %p71, %p72
    %p75 = scmp.ne.s32.totalorder %s60, %s74
    %p76 = scmp.eq.s32.totalorder %s15, 0
    %p77 = por %p75, %p76
    %s79 = sadd.s32 %s78, 1
    %p82 = scmp.eq.s32.totalorder %s9, 1
    %p83 = scmp.ne.s32.totalorder %s78, %s80
    %p84 = scmp.eq.s32.totalorder %s9, 0
    %p85 = por %p83, %p84
    %p86 = scmp.ne.s32.totalorder %s78, %s80
    %p87 = scmp.eq.s32.totalorder %s14, 1
    %p88 = por %p86, %p87
    %p89 = scmp.ne.s32.totalorder %s80, %s81
    %p90 = scmp.eq.s32.totalorder %s14, 0
    %p91 = por %p89, %p90
    %p92 = scmp.ne.s32.totalorder %s80, %s81
    %p93 = scmp.eq.s32.totalorder %s15, 1
    %p94 = por %p92, %p93
    %p96 = scmp.ne.s32.totalorder %s81, %s95
    %p97 = scmp.eq.s32.totalorder %s15, 0
    %p98 = por %p96, %p97
    %s99 = ssub.s32 %s16, %s28
    %s100 = ssub.s32 %s17, %s24
    %s101 = sor.u32 %s99, %s100
    %p102 = scmp.eq.s32.totalorder %s101, 0
    %s104 = sadd.s32 %s103, 1
    %s105 = scalar_select %p102, %s103, %s104
    %p108 = pneg %p102
    %p109 = scmp.eq.s32.totalorder %s9, 1
    %p110 = por %p108, %p109
    %p111 = scmp.ne.s32.totalorder %s103, %s106
    %p112 = scmp.eq.s32.totalorder %s9, 0
    %p113 = por %p111, %p112
    %p114 = scmp.ne.s32.totalorder %s103, %s106
    %p115 = scmp.eq.s32.totalorder %s14, 1
    %p116 = por %p114, %p115
    %p117 = scmp.ne.s32.totalorder %s106, %s107
    %p118 = scmp.eq.s32.totalorder %s14, 0
    %p119 = por %p117, %p118
    %p120 = scmp.ne.s32.totalorder %s106, %s107
    %p121 = scmp.eq.s32.totalorder %s15, 1
    %p122 = por %p120, %p121
    %p124 = scmp.ne.s32.totalorder %s107, %s123
    %p125 = scmp.eq.s32.totalorder %s15, 0
    %p126 = por %p124, %p125
    %p127 = scmp.le.s32.totalorder 1, %s9
    %p128 = scmp.lt.s32.totalorder %s9, 3
    %p129 = pnand %p127, %p128
    %p130 = pneg %p129
    // Predicated region
    $region9: #{upcat_forward.2} parent=5 // pred_check
      _
    $region10: #{upcat_forward.2} parent=5 // pred_check_branch
      %132 = sbr.rel (%p129) target = $region12
    $region11: #{upcat_forward.2} parent=5 // pred_region
      %s133 = ssub.s32 %s9, 1
      // Predicated region
      $region13: #{upcat_forward.2} parent=11 // pred_check
        %p134 = pneg %p70
      $region14: #{upcat_forward.2} parent=11 // pred_check_branch
        %136 = sbr.rel (%p134) target = $region16
      $region15: #{upcat_forward.2} parent=11 // pred_region
        _
      $region16: #{upcat_forward.2} parent=11 // pred_fallthru
        _
      // Predicated region
      $region17: #{upcat_forward.2} parent=11 // pred_check
        %p137 = pneg %p91
      $region18: #{upcat_forward.2} parent=11 // pred_check_branch
        %139 = sbr.rel (%p137) target = $region20
      $region19: #{upcat_forward.2} parent=11 // pred_region
        _
      $region20: #{upcat_forward.2} parent=11 // pred_fallthru
        _
    $region12: #{upcat_forward.2} parent=5 // pred_fallthru
      _
    %p140 = scmp.lt.s32.totalorder %s9, 2
    // Predicated region
    $region21: #{upcat_forward.2} parent=5 // pred_check
      %p141 = pneg %p140
    $region22: #{upcat_forward.2} parent=5 // pred_check_branch
      %143 = sbr.rel (%p141) target = $region24
    $region23: #{upcat_forward.2} parent=5 // pred_region
      // Predicated region
      $region25: #{upcat_forward.2} parent=23 // pred_check
        %p144 = pneg %p43
      $region26: #{upcat_forward.2} parent=23 // pred_check_branch
        %146 = sbr.rel (%p144) target = $region28
      $region27: #{upcat_forward.2} parent=23 // pred_region
        %s147 = smul.u32 8, %s17
        %p148 = scmp.lt.s32.totalorder %s16, 1
        %s149 = scalar_select %p148, %s16, 1
        %p150 = scmp.lt.s32.totalorder %s147, 7
        %s151 = scalar_select %p150, %s147, 7
        %s152 = smul.addr %s149, 8
        %s153 = sadd.s32 %s151, %s152
        %s154 = smul.addr %s153, 8
        %s155 = scalar_lea.vmem %s0, %s154
        %s156 = smul.u32 8, %s17
      $region28: #{upcat_forward.2} parent=23 // pred_fallthru
        _
    $region24: #{upcat_forward.2} parent=5 // pred_fallthru
      _
    %p157 = scmp.le.s32.totalorder 1, %s9
    %p158 = scmp.lt.s32.totalorder %s9, 3
    %p159 = pnand %p157, %p158
    %p160 = pneg %p159
    // Predicated region
    $region29: #{upcat_forward.2} parent=5 // pred_check
      _
    $region30: #{upcat_forward.2} parent=5 // pred_check_branch
      %162 = sbr.rel (%p159) target = $region32
    $region31: #{upcat_forward.2} parent=5 // pred_region
      %s163 = ssub.s32 %s9, 1
      %s164 = smul.u32 8, %s19
      %p165 = scmp.lt.s32.totalorder %s18, 1
      %s166 = scalar_select %p165, %s18, 1
      %p167 = scmp.lt.s32.totalorder %s164, 7
      %s168 = scalar_select %p167, %s164, 7
      %s169 = smul.addr %s166, 8
      %s170 = sadd.s32 %s168, %s169
      %s171 = smul.addr %s170, 8
      %s172 = scalar_lea.vmem %s0, %s171
      %p173 = pneg %p49
      %p174 = pneg %p46
      %p175 = pneg %p70
      %p176 = pneg %p67
      %p177 = pneg %p91
      %p178 = pneg %p88
      %p179 = pneg %p119
      %p180 = pneg %p116
      %s181 = smul.u32 8, %s19
      %p182 = scmp.lt.s32.totalorder %s18, 1
      %s183 = scalar_select %p182, %s18, 1
      %p184 = scmp.lt.s32.totalorder %s181, 7
      %s185 = scalar_select %p184, %s181, 7
      %s186 = smul.addr %s185, 2
      %s187 = smul.addr %s183, 16
      %s188 = sadd.s32 %s186, %s187
      %s189 = smul.addr %s188, 8
      %s190 = scalar_lea.vmem %s3, %s189
      %s191 = smul.u32 8, %s19
      %p192 = scmp.lt.s32.totalorder %s18, 1
      %s193 = scalar_select %p192, %s18, 1
      %p194 = scmp.lt.s32.totalorder %s191, 7
      %s195 = scalar_select %p194, %s191, 7
      %s196 = smul.addr %s193, 8
      %s197 = sadd.s32 %s195, %s196
      %s198 = smul.addr %s197, 8
      %s199 = scalar_lea.vmem %s0, %s198
      %s200 = smul.u32 8, %s19
      %s201 = smul.u32 8, %s19
      %p202 = scmp.lt.s32.totalorder %s18, 1
      %s203 = scalar_select %p202, %s18, 1
      %p204 = scmp.lt.s32.totalorder %s201, 7
      %s205 = scalar_select %p204, %s201, 7
      %s206 = smul.addr %s205, 2
      %s207 = smul.addr %s203, 16
      %s208 = sadd.s32 %s206, %s207
      %s209 = smul.addr %s208, 8
      %s210 = scalar_lea.vmem %s3, %s209
      %s211 = smul.u32 8, %s19
      %v212 = vld [vmem:[%s199] sm:$0xff]
      %v213 = vld [vmem:[%s199 + $0x8] sm:$0xff]
      %v214 = vld [vmem:[%s199 + $0x10] sm:$0xff]
      %v215 = vld [vmem:[%s199 + $0x18] sm:$0xff]
      %v216 = vld [vmem:[%s199 + $0x20] sm:$0xff]
      %v217 = vld [vmem:[%s199 + $0x28] sm:$0xff]
      %v218 = vld [vmem:[%s199 + $0x30] sm:$0xff]
      %v219 = vld [vmem:[%s199 + $0x38] sm:$0xff]
      %v220 = vld [vmem:[%s2] sm:$0x1]
      %v221 = vld [vmem:[%s1] sm:$0xff]
      %v223 = vlaneseq
      %v224 = vshrl.u32 %v223, 7
      %v225 = vsub.s32 0, %v224
      %v226 = vrot.slane %v220, %v225
      %vm228 = vcmask 64512
      %v230 = vsel %vm228, %v212, 0
      %v233 = vsel %vm228, %v213, 0
      %v236 = vsel %vm228, %v214, 0
      %v239 = vsel %vm228, %v215, 0
      %v242 = vsel %vm228, %v216, 0
      %v245 = vsel %vm228, %v217, 0
      %v248 = vsel %vm228, %v218, 0
      %v251 = vsel %vm228, %v219, 0
      %253 = vmatprep.subr.mxu0 0.0
      %254 = vmatpush1.msra.mxu0 %v221
      %255 = vmatprep.subr.mxu0 0.0
      %256 = vmatpush1.msra.mxu0 0.0
      %257 = vmatprep.subr.mxu0 0.0
      %258 = vmatpush1.msra.mxu0 0.0
      %259 = vmatprep.subr.mxu0 0.0
      %260 = vmatpush1.msra.mxu0 0.0
      %261 = vmatprep.subr.mxu0 0.0
      %262 = vmatpush1.msra.mxu0 0.0
      %263 = vmatprep.subr.mxu0 0.0
      %264 = vmatpush1.msra.mxu0 0.0
      %265 = vmatprep.subr.mxu0 0.0
      %266 = vmatpush1.msra.mxu0 0.0
      %267 = vmatprep.subr.mxu0 0.0
      %268 = vmatpush1.msra.mxu0 0.0
      %269 = vmatprep.subr.mxu0 0.0
      %270 = vmatpush1.msra.mxu0 0.0
      %271 = vmatprep.subr.mxu0 0.0
      %272 = vmatpush1.msra.mxu0 0.0
      %273 = vmatprep.subr.mxu0 0.0
      %274 = vmatpush1.msra.mxu0 0.0
      %275 = vmatprep.subr.mxu0 0.0
      %276 = vmatpush1.msra.mxu0 0.0
      %277 = vmatprep.subr.mxu0 0.0
      %278 = vmatpush1.msra.mxu0 0.0
      %279 = vmatprep.subr.mxu0 0.0
      %280 = vmatpush1.msra.mxu0 0.0
      %281 = vmatprep.subr.mxu0 0.0
      %282 = vmatpush1.msra.mxu0 0.0
      %283 = vmatprep.subr.mxu0 0.0
      %284 = vmatpush1.msra.mxu0 0.0
      %285 = vmatprep.subr.mxu0 0.0
      %286 = vmatpush1.msra.mxu0 0.0
      %287 = vmatprep.subr.mxu0 0.0
      %288 = vmatpush1.msra.mxu0 0.0
      %289 = vmatprep.subr.mxu0 0.0
      %290 = vmatpush1.msra.mxu0 0.0
      %291 = vmatprep.subr.mxu0 0.0
      %292 = vmatpush1.msra.mxu0 0.0
      %293 = vmatprep.subr.mxu0 0.0
      %294 = vmatpush1.msra.mxu0 0.0
      %295 = vmatprep.subr.mxu0 0.0
      %296 = vmatpush1.msra.mxu0 0.0
      %297 = vmatprep.subr.mxu0 0.0
      %298 = vmatpush1.msra.mxu0 0.0
      %299 = vmatprep.subr.mxu0 0.0
      %300 = vmatpush1.msra.mxu0 0.0
      %301 = vmatprep.subr.mxu0 0.0
      %302 = vmatpush1.msra.mxu0 0.0
      %303 = vmatprep.subr.mxu0 0.0
      %304 = vmatpush1.msra.mxu0 0.0
      %305 = vmatprep.subr.mxu0 0.0
      %306 = vmatpush1.msra.mxu0 0.0
      %307 = vmatprep.subr.mxu0 0.0
      %308 = vmatpush1.msra.mxu0 0.0
      %309 = vmatprep.subr.mxu0 0.0
      %310 = vmatpush1.msra.mxu0 0.0
      %311 = vmatprep.subr.mxu0 0.0
      %312 = vmatpush1.msra.mxu0 0.0
      %313 = vmatprep.subr.mxu0 0.0
      %314 = vmatpush1.msra.mxu0 0.0
      %315 = vmatprep.subr.mxu0 0.0
      %316 = vmatpush1.msra.mxu0 0.0
      %317 = vmatprep.mubr.f32.mxu0 0.0
      %318 = vmatmul.mubr.f32.gmra.mrb[0].mxu0 %v230
      %v319 = vpop.f32.mrb[0].mxu0
      %v320 = vadd.f32 %v226, %v319
      %v321 = vpop.f32.mrb[0].mxu0
      %322 = vmatprep.mubr.f32.mxu0 0.0
      %323 = vmatmul.mubr.f32.gmra.mrb[0].mxu0 %v233
      %v324 = vpop.f32.mrb[0].mxu0
      %v325 = vadd.f32 %v226, %v324
      %v326 = vpop.f32.mrb[0].mxu0
      %327 = vmatprep.mubr.f32.mxu0 0.0
      %328 = vmatmul.mubr.f32.gmra.mrb[0].mxu0 %v236
      %v329 = vpop.f32.mrb[0].mxu0
      %v330 = vadd.f32 %v226, %v329
      %v331 = vpop.f32.mrb[0].mxu0
      %332 = vmatprep.mubr.f32.mxu0 0.0
      %333 = vmatmul.mubr.f32.gmra.mrb[0].mxu0 %v239
      %v334 = vpop.f32.mrb[0].mxu0
      %v335 = vadd.f32 %v226, %v334
      %v336 = vpop.f32.mrb[0].mxu0
      %337 = vmatprep.mubr.f32.mxu0 0.0
      %338 = vmatmul.mubr.f32.gmra.mrb[0].mxu0 %v242
      %v339 = vpop.f32.mrb[0].mxu0
      %v340 = vadd.f32 %v226, %v339
      %v341 = vpop.f32.mrb[0].mxu0
      %342 = vmatprep.mubr.f32.mxu0 0.0
      %343 = vmatmul.mubr.f32.gmra.mrb[0].mxu0 %v245
      %v344 = vpop.f32.mrb[0].mxu0
      %v345 = vadd.f32 %v226, %v344
      %v346 = vpop.f32.mrb[0].mxu0
      %347 = vmatprep.mubr.f32.mxu0 0.0
      %348 = vmatmul.mubr.f32.gmra.mrb[0].mxu0 %v248
      %v349 = vpop.f32.mrb[0].mxu0
      %v350 = vadd.f32 %v226, %v349
      %v351 = vpop.f32.mrb[0].mxu0
      %352 = vmatprep.mubr.f32.mxu0 0.0
      %353 = vmatmul.mubr.f32.gmra.mrb[0].mxu0 %v251
      %v354 = vpop.f32.mrb[0].mxu0
      %v355 = vadd.f32 %v226, %v354
      %v356 = vpop.f32.mrb[0].mxu0
      %357 = vdwg.mxu0
      %358 = vst.msk [vmem:[%s210] sm:$0xff] %vm228, %v320
      %359 = vst.msk [vmem:[%s210 + $0x10] sm:$0xff] %vm228, %v325
      %360 = vst.msk [vmem:[%s210 + $0x20] sm:$0xff] %vm228, %v330
      %361 = vst.msk [vmem:[%s210 + $0x30] sm:$0xff] %vm228, %v335
      %362 = vst.msk [vmem:[%s210 + $0x40] sm:$0xff] %vm228, %v340
      %363 = vst.msk [vmem:[%s210 + $0x50] sm:$0xff] %vm228, %v345
      %364 = vst.msk [vmem:[%s210 + $0x60] sm:$0xff] %vm228, %v350
      %365 = vst.msk [vmem:[%s210 + $0x70] sm:$0xff] %vm228, %v355
      %s366 = scalar_lea.vmem %s1, 8
      %v367 = vld [vmem:[%s366] sm:$0xff]
      %368 = vmatprep.subr.mxu0 0.0
      %369 = vmatpush1.msra.mxu0 %v367
      %370 = vmatprep.subr.mxu0 0.0
      %371 = vmatpush1.msra.mxu0 0.0
      %372 = vmatprep.subr.mxu0 0.0
      %373 = vmatpush1.msra.mxu0 0.0
      %374 = vmatprep.subr.mxu0 0.0
      %375 = vmatpush1.msra.mxu0 0.0
      %376 = vmatprep.subr.mxu0 0.0
      %377 = vmatpush1.msra.mxu0 0.0
      %378 = vmatprep.subr.mxu0 0.0
      %379 = vmatpush1.msra.mxu0 0.0
      %380 = vmatprep.subr.mxu0 0.0
      %381 = vmatpush1.msra.mxu0 0.0
      %382 = vmatprep.subr.mxu0 0.0
      %383 = vmatpush1.msra.mxu0 0.0
      %384 = vmatprep.subr.mxu0 0.0
      %385 = vmatpush1.msra.mxu0 0.0
      %386 = vmatprep.subr.mxu0 0.0
      %387 = vmatpush1.msra.mxu0 0.0
      %388 = vmatprep.subr.mxu0 0.0
      %389 = vmatpush1.msra.mxu0 0.0
      %390 = vmatprep.subr.mxu0 0.0
      %391 = vmatpush1.msra.mxu0 0.0
      %392 = vmatprep.subr.mxu0 0.0
      %393 = vmatpush1.msra.mxu0 0.0
      %394 = vmatprep.subr.mxu0 0.0
      %395 = vmatpush1.msra.mxu0 0.0
      %396 = vmatprep.subr.mxu0 0.0
      %397 = vmatpush1.msra.mxu0 0.0
      %398 = vmatprep.subr.mxu0 0.0
      %399 = vmatpush1.msra.mxu0 0.0
      %400 = vmatprep.subr.mxu0 0.0
      %401 = vmatpush1.msra.mxu0 0.0
      %402 = vmatprep.subr.mxu0 0.0
      %403 = vmatpush1.msra.mxu0 0.0
      %404 = vmatprep.subr.mxu0 0.0
      %405 = vmatpush1.msra.mxu0 0.0
      %406 = vmatprep.subr.mxu0 0.0
      %407 = vmatpush1.msra.mxu0 0.0
      %408 = vmatprep.subr.mxu0 0.0
      %409 = vmatpush1.msra.mxu0 0.0
      %410 = vmatprep.subr.mxu0 0.0
      %411 = vmatpush1.msra.mxu0 0.0
      %412 = vmatprep.subr.mxu0 0.0
      %413 = vmatpush1.msra.mxu0 0.0
      %414 = vmatprep.subr.mxu0 0.0
      %415 = vmatpush1.msra.mxu0 0.0
      %416 = vmatprep.subr.mxu0 0.0
      %417 = vmatpush1.msra.mxu0 0.0
      %418 = vmatprep.subr.mxu0 0.0
      %419 = vmatpush1.msra.mxu0 0.0
      %420 = vmatprep.subr.mxu0 0.0
      %421 = vmatpush1.msra.mxu0 0.0
      %422 = vmatprep.subr.mxu0 0.0
      %423 = vmatpush1.msra.mxu0 0.0
      %424 = vmatprep.subr.mxu0 0.0
      %425 = vmatpush1.msra.mxu0 0.0
      %426 = vmatprep.subr.mxu0 0.0
      %427 = vmatpush1.msra.mxu0 0.0
      %428 = vmatprep.subr.mxu0 0.0
      %429 = vmatpush1.msra.mxu0 0.0
      %430 = vmatprep.subr.mxu0 0.0
      %431 = vmatpush1.msra.mxu0 0.0
      %432 = vmatprep.mubr.f32.mxu0 0.0
      %433 = vmatmul.mubr.f32.gmra.mrb[0].mxu0 %v230
      %v434 = vpop.f32.mrb[0].mxu0
      %v435 = vadd.f32 %v226, %v434
      %v436 = vpop.f32.mrb[0].mxu0
      %437 = vmatprep.mubr.f32.mxu0 0.0
      %438 = vmatmul.mubr.f32.gmra.mrb[0].mxu0 %v233
      %v439 = vpop.f32.mrb[0].mxu0
      %v440 = vadd.f32 %v226, %v439
      %v441 = vpop.f32.mrb[0].mxu0
      %442 = vmatprep.mubr.f32.mxu0 0.0
      %443 = vmatmul.mubr.f32.gmra.mrb[0].mxu0 %v236
      %v444 = vpop.f32.mrb[0].mxu0
      %v445 = vadd.f32 %v226, %v444
      %v446 = vpop.f32.mrb[0].mxu0
      %447 = vmatprep.mubr.f32.mxu0 0.0
      %448 = vmatmul.mubr.f32.gmra.mrb[0].mxu0 %v239
      %v449 = vpop.f32.mrb[0].mxu0
      %v450 = vadd.f32 %v226, %v449
      %v451 = vpop.f32.mrb[0].mxu0
      %452 = vmatprep.mubr.f32.mxu0 0.0
      %453 = vmatmul.mubr.f32.gmra.mrb[0].mxu0 %v242
      %v454 = vpop.f32.mrb[0].mxu0
      %v455 = vadd.f32 %v226, %v454
      %v456 = vpop.f32.mrb[0].mxu0
      %457 = vmatprep.mubr.f32.mxu0 0.0
      %458 = vmatmul.mubr.f32.gmra.mrb[0].mxu0 %v245
      %v459 = vpop.f32.mrb[0].mxu0
      %v460 = vadd.f32 %v226, %v459
      %v461 = vpop.f32.mrb[0].mxu0
      %462 = vmatprep.mubr.f32.mxu0 0.0
      %463 = vmatmul.mubr.f32.gmra.mrb[0].mxu0 %v248
      %v464 = vpop.f32.mrb[0].mxu0
      %v465 = vadd.f32 %v226, %v464
      %v466 = vpop.f32.mrb[0].mxu0
      %467 = vmatprep.mubr.f32.mxu0 0.0
      %468 = vmatmul.mubr.f32.gmra.mrb[0].mxu0 %v251
      %v469 = vpop.f32.mrb[0].mxu0
      %v470 = vadd.f32 %v226, %v469
      %v471 = vpop.f32.mrb[0].mxu0
      %472 = vdwg.mxu0
      %s473 = scalar_lea.vmem %s210, 8
      %474 = vst.msk [vmem:[%s473] sm:$0xff] %vm228, %v435
      %475 = vst.msk [vmem:[%s473 + $0x10] sm:$0xff] %vm228, %v440
      %476 = vst.msk [vmem:[%s473 + $0x20] sm:$0xff] %vm228, %v445
      %477 = vst.msk [vmem:[%s473 + $0x30] sm:$0xff] %vm228, %v450
      %478 = vst.msk [vmem:[%s473 + $0x40] sm:$0xff] %vm228, %v455
      %479 = vst.msk [vmem:[%s473 + $0x50] sm:$0xff] %vm228, %v460
      %480 = vst.msk [vmem:[%s473 + $0x60] sm:$0xff] %vm228, %v465
      %481 = vst.msk [vmem:[%s473 + $0x70] sm:$0xff] %vm228, %v470
      %s482 = smul.u32 8, %s19
      %p483 = scmp.lt.s32.totalorder %s18, 1
      %s484 = scalar_select %p483, %s18, 1
      %p485 = scmp.lt.s32.totalorder %s482, 7
      %s486 = scalar_select %p485, %s482, 7
      %s487 = smul.addr %s486, 2
      %s488 = smul.addr %s484, 16
      %s489 = sadd.s32 %s487, %s488
      %s490 = smul.addr %s489, 8
      %s491 = scalar_lea.vmem %s3, %s490
      // Predicated region
      $region33: #{upcat_forward.2} parent=31 // pred_check
        %p492 = pneg %p116
      $region34: #{upcat_forward.2} parent=31 // pred_check_branch
        %494 = sbr.rel (%p492) target = $region36
      $region35: #{upcat_forward.2} parent=31 // pred_region
        %s495 = smul.u32 8, %s19
      $region36: #{upcat_forward.2} parent=31 // pred_fallthru
        _
    $region32: #{upcat_forward.2} parent=5 // pred_fallthru
      _
    %p496 = scmp.le.s32.totalorder 2, %s9
    // Predicated region
    $region37: #{upcat_forward.2} parent=5 // pred_check
      %p497 = pneg %p496
    $region38: #{upcat_forward.2} parent=5 // pred_check_branch
      %499 = sbr.rel (%p497) target = $region40
    $region39: #{upcat_forward.2} parent=5 // pred_region
      %s500 = ssub.s32 %s9, 2
      // Predicated region
      $region41: #{upcat_forward.2} parent=39 // pred_check
        %p501 = pneg %p122
      $region42: #{upcat_forward.2} parent=39 // pred_check_branch
        %503 = sbr.rel (%p501) target = $region44
      $region43: #{upcat_forward.2} parent=39 // pred_region
        %s504 = smul.u32 8, %s21
        %p505 = scmp.lt.s32.totalorder %s20, 1
        %s506 = scalar_select %p505, %s20, 1
        %p507 = scmp.lt.s32.totalorder %s504, 7
        %s508 = scalar_select %p507, %s504, 7
        %s509 = smul.addr %s508, 2
        %s510 = smul.addr %s506, 16
        %s511 = sadd.s32 %s509, %s510
        %s512 = smul.addr %s511, 8
        %s513 = scalar_lea.vmem %s3, %s512
      $region44: #{upcat_forward.2} parent=39 // pred_fallthru
        _
    $region40: #{upcat_forward.2} parent=5 // pred_fallthru
      _
  $region6: #{upcat_forward.2} parent=0 // loop_footer
    %s13 = sadd.s32 1, %s9
  $region7: #{upcat_forward.2} parent=0 // loop_footer_branch
    %8 = sbr.rel target = $region3
  $region8: #{upcat_forward.2} parent=0 // loop_exit
    _

// kernel: upcat_forward.3
$region0: #{upcat_forward.3}
  #allocation0 [shape = 'u32[]', space=smem, size = 0x4, offset = 0x4, fixed_abs, tag = 'smem constant byte address 0x4 - core index']
  #allocation1 [shape = 'u32[144,128]{1,0:T(1,128)}', space=vmem, size = 0x12000, scoped, tag = 'internal scratch']
  #allocation2 [shape = 'f32[18,18,4]{2,1,0:T(8,128)}', space=vmem, size = 0x36000, scoped, tag = 'scratch operand']
  #allocation3 [shape = 'f32[18,18,4]{2,1,0:T(8,128)}', space=vmem, size = 0x36000, scoped, tag = 'scratch operand']
  #allocation4 [shape = 'f32[18,18,4]{2,1,0:T(8,128)}', space=vmem, size = 0x36000, scoped, tag = 'scratch operand']
  %s0 = inlined_call_operand.vmem [shape: f32[2,16,16,4], index: 0, kind: input, shape index: {}]
  %s1 = inlined_call_operand.vmem [shape: f32[2,16,16,4], index: 1, kind: input, shape index: {}]
  %s2 = inlined_call_operand.vmem [shape: f32[3,12,4], index: 2, kind: input, shape index: {}]
  %s3 = inlined_call_operand.vmem [shape: f32[3,12,4], index: 3, kind: input, shape index: {}]
  %s4 = inlined_call_operand.vmem [shape: f32[1,4], index: 4, kind: input, shape index: {}]
  %s5 = inlined_call_operand.vmem [shape: f32[1,4], index: 5, kind: input, shape index: {}]
  %s6 = inlined_call_operand.vmem [shape: f32[1,4], index: 6, kind: input, shape index: {}]
  %s7 = inlined_call_operand.vmem [shape: f32[3,12,128], index: 7, kind: input, shape index: {}]
  %s8 = inlined_call_operand.vmem [shape: f32[1,128], index: 8, kind: input, shape index: {}]
  %s9 = inlined_call_operand.vmem [shape: f32[1,128], index: 9, kind: input, shape index: {}]
  %s10 = inlined_call_operand.vmem [shape: f32[1,128], index: 10, kind: input, shape index: {}]
  %s11 = inlined_call_operand.vmem [shape: f32[2,16,16,128], index: 11, kind: output, shape index: {}]
  %s12 = sld [smem:[#allocation0]]
  $region77: #{upcat_forward.3} parent=0
    _
  %s14 = ssub.s32 1, %s12
  %s15 = scalar_select 0, %s14, %s12
  loop: start=0, step=1, limit=4
  $region2: #{upcat_forward.3} parent=0 // loop_pre_header
    _
  $region3: #{upcat_forward.3} parent=0 // loop_header
    %s17 = sphi 0, %s21
    %p18 = scmp.ge.s32.totalorder %s17, 4
    %s27 = sphi 0, %s29
    %s30 = sphi 0, %s27
    %s31 = sphi 0, %s30
    %s47 = sphi 0, %s31
    %s53 = sphi 0, %s55
    %s56 = sphi 0, %s53
    %s57 = sphi 0, %s56
    %s73 = sphi 0, %s57
    %s77 = sphi 0, %s77
    %s79 = sphi 0, %s77
    %s80 = sphi 0, %s79
    %s94 = sphi 0, %s80
    %s98 = sphi 0, %s98
    %s100 = sphi 0, %s98
    %s101 = sphi 0, %s100
    %s115 = sphi 0, %s101
    %s119 = sphi 0, %s119
    %s121 = sphi 0, %s119
    %s122 = sphi 0, %s121
    %s136 = sphi 0, %s122
    %s140 = sphi 0, %s140
    %s142 = sphi 0, %s140
    %s143 = sphi 0, %s142
    %s157 = sphi 0, %s143
    %s161 = sphi 0, %s161
    %s163 = sphi 0, %s161
    %s164 = sphi 0, %s163
    %s178 = sphi 0, %s164
    %s182 = sphi 0, %s182
    %s184 = sphi 0, %s182
    %s185 = sphi 0, %s184
    %s199 = sphi 0, %s185
    %s203 = sphi 0, %s203
    %s205 = sphi 0, %s203
    %s206 = sphi 0, %s205
    %s220 = sphi 0, %s206
    %s224 = sphi 0, %s224
    %s226 = sphi 0, %s224
    %s227 = sphi 0, %s226
    %s241 = sphi 0, %s227
    %s245 = sphi 0, %s245
    %s247 = sphi 0, %s245
    %s248 = sphi 0, %s247
    %s262 = sphi 0, %s248
    %s268 = sphi 0, %s270
    %s271 = sphi 0, %s268
    %s272 = sphi 0, %s271
    %s288 = sphi 0, %s272
  $region4: #{upcat_forward.3} parent=0 // loop_header_branch
    %20 = sbr.rel (%p18) target = $region8
  $region5: #{upcat_forward.3} parent=0 // loop_body
    %s22 = ssub.s32 %s17, 1
    %s23 = ssub.s32 %s17, 2
    %s24 = sadd.s32 %s17, 1
    %s25 = ssub.s32 %s17, %s24
    %p26 = scmp.eq.s32.totalorder %s25, 0
    %s28 = sadd.s32 %s27, 1
    %s29 = scalar_select %p26, %s27, %s28
    %p32 = pneg %p26
    %p33 = scmp.eq.s32.totalorder %s17, 1
    %p34 = por %p32, %p33
    %p35 = scmp.ne.s32.totalorder %s27, %s30
    %p36 = scmp.eq.s32.totalorder %s17, 0
    %p37 = por %p35, %p36
    %p38 = scmp.ne.s32.totalorder %s27, %s30
    %p39 = scmp.eq.s32.totalorder %s22, 1
    %p40 = por %p38, %p39
    %p41 = scmp.ne.s32.totalorder %s30, %s31
    %p42 = scmp.eq.s32.totalorder %s22, 0
    %p43 = por %p41, %p42
    %p44 = scmp.ne.s32.totalorder %s30, %s31
    %p45 = scmp.eq.s32.totalorder %s23, 1
    %p46 = por %p44, %p45
    %p48 = scmp.ne.s32.totalorder %s31, %s47
    %p49 = scmp.eq.s32.totalorder %s23, 0
    %p50 = por %p48, %p49
    %s51 = ssub.s32 %s17, %s24
    %p52 = scmp.eq.s32.totalorder %s51, 0
    %s54 = sadd.s32 %s53, 1
    %s55 = scalar_select %p52, %s53, %s54
    %p58 = pneg %p52
    %p59 = scmp.eq.s32.totalorder %s17, 1
    %p60 = por %p58, %p59
    %p61 = scmp.ne.s32.totalorder %s53, %s56
    %p62 = scmp.eq.s32.totalorder %s17, 0
    %p63 = por %p61, %p62
    %p64 = scmp.ne.s32.totalorder %s53, %s56
    %p65 = scmp.eq.s32.totalorder %s22, 1
    %p66 = por %p64, %p65
    %p67 = scmp.ne.s32.totalorder %s56, %s57
    %p68 = scmp.eq.s32.totalorder %s22, 0
    %p69 = por %p67, %p68
    %p70 = scmp.ne.s32.totalorder %s56, %s57
    %p71 = scmp.eq.s32.totalorder %s23, 1
    %p72 = por %p70, %p71
    %p74 = scmp.ne.s32.totalorder %s57, %s73
    %p75 = scmp.eq.s32.totalorder %s23, 0
    %p76 = por %p74, %p75
    %s78 = sadd.s32 %s77, 1
    %p81 = scmp.eq.s32.totalorder %s17, 1
    %p82 = scmp.ne.s32.totalorder %s77, %s79
    %p83 = scmp.eq.s32.totalorder %s17, 0
    %p84 = por %p82, %p83
    %p85 = scmp.ne.s32.totalorder %s77, %s79
    %p86 = scmp.eq.s32.totalorder %s22, 1
    %p87 = por %p85, %p86
    %p88 = scmp.ne.s32.totalorder %s79, %s80
    %p89 = scmp.eq.s32.totalorder %s22, 0
    %p90 = por %p88, %p89
    %p91 = scmp.ne.s32.totalorder %s79, %s80
    %p92 = scmp.eq.s32.totalorder %s23, 1
    %p93 = por %p91, %p92
    %p95 = scmp.ne.s32.totalorder %s80, %s94
    %p96 = scmp.eq.s32.totalorder %s23, 0
    %p97 = por %p95, %p96
    %s99 = sadd.s32 %s98, 1
    %p102 = scmp.eq.s32.totalorder %s17, 1
    %p103 = scmp.ne.s32.totalorder %s98, %s100
    %p104 = scmp.eq.s32.totalorder %s17, 0
    %p105 = por %p103, %p104
    %p106 = scmp.ne.s32.totalorder %s98, %s100
    %p107 = scmp.eq.s32.totalorder %s22, 1
    %p108 = por %p106, %p107
    %p109 = scmp.ne.s32.totalorder %s100, %s101
    %p110 = scmp.eq.s32.totalorder %s22, 0
    %p111 = por %p109, %p110
    %p112 = scmp.ne.s32.totalorder %s100, %s101
    %p113 = scmp.eq.s32.totalorder %s23, 1
    %p114 = por %p112, %p113
    %p116 = scmp.ne.s32.totalorder %s101, %s115
    %p117 = scmp.eq.s32.totalorder %s23, 0
    %p118 = por %p116, %p117
    %s120 = sadd.s32 %s119, 1
    %p123 = scmp.eq.s32.totalorder %s17, 1
    %p124 = scmp.ne.s32.totalorder %s119, %s121
    %p125 = scmp.eq.s32.totalorder %s17, 0
    %p126 = por %p124, %p125
    %p127 = scmp.ne.s32.totalorder %s119, %s121
    %p128 = scmp.eq.s32.totalorder %s22, 1
    %p129 = por %p127, %p128
    %p130 = scmp.ne.s32.totalorder %s121, %s122
    %p131 = scmp.eq.s32.totalorder %s22, 0
    %p132 = por %p130, %p131
    %p133 = scmp.ne.s32.totalorder %s121, %s122
    %p134 = scmp.eq.s32.totalorder %s23, 1
    %p135 = por %p133, %p134
    %p137 = scmp.ne.s32.totalorder %s122, %s136
    %p138 = scmp.eq.s32.totalorder %s23, 0
    %p139 = por %p137, %p138
    %s141 = sadd.s32 %s140, 1
    %p144 = scmp.eq.s32.totalorder %s17, 1
    %p145 = scmp.ne.s32.totalorder %s140, %s142
    %p146 = scmp.eq.s32.totalorder %s17, 0
    %p147 = por %p145, %p146
    %p148 = scmp.ne.s32.totalorder %s140, %s142
    %p149 = scmp.eq.s32.totalorder %s22, 1
    %p150 = por %p148, %p149
    %p151 = scmp.ne.s32.totalorder %s142, %s143
    %p152 = scmp.eq.s32.totalorder %s22, 0
    %p153 = por %p151, %p152
    %p154 = scmp.ne.s32.totalorder %s142, %s143
    %p155 = scmp.eq.s32.totalorder %s23, 1
    %p156 = por %p154, %p155
    %p158 = scmp.ne.s32.totalorder %s143, %s157
    %p159 = scmp.eq.s32.totalorder %s23, 0
    %p160 = por %p158, %p159
    %s162 = sadd.s32 %s161, 1
    %p165 = scmp.eq.s32.totalorder %s17, 1
    %p166 = scmp.ne.s32.totalorder %s161, %s163
    %p167 = scmp.eq.s32.totalorder %s17, 0
    %p168 = por %p166, %p167
    %p169 = scmp.ne.s32.totalorder %s161, %s163
    %p170 = scmp.eq.s32.totalorder %s22, 1
    %p171 = por %p169, %p170
    %p172 = scmp.ne.s32.totalorder %s163, %s164
    %p173 = scmp.eq.s32.totalorder %s22, 0
    %p174 = por %p172, %p173
    %p175 = scmp.ne.s32.totalorder %s163, %s164
    %p176 = scmp.eq.s32.totalorder %s23, 1
    %p177 = por %p175, %p176
    %p179 = scmp.ne.s32.totalorder %s164, %s178
    %p180 = scmp.eq.s32.totalorder %s23, 0
    %p181 = por %p179, %p180
    %s183 = sadd.s32 %s182, 1
    %p186 = scmp.eq.s32.totalorder %s17, 1
    %p187 = scmp.ne.s32.totalorder %s182, %s184
    %p188 = scmp.eq.s32.totalorder %s17, 0
    %p189 = por %p187, %p188
    %p190 = scmp.ne.s32.totalorder %s182, %s184
    %p191 = scmp.eq.s32.totalorder %s22, 1
    %p192 = por %p190, %p191
    %p193 = scmp.ne.s32.totalorder %s184, %s185
    %p194 = scmp.eq.s32.totalorder %s22, 0
    %p195 = por %p193, %p194
    %p196 = scmp.ne.s32.totalorder %s184, %s185
    %p197 = scmp.eq.s32.totalorder %s23, 1
    %p198 = por %p196, %p197
    %p200 = scmp.ne.s32.totalorder %s185, %s199
    %p201 = scmp.eq.s32.totalorder %s23, 0
    %p202 = por %p200, %p201
    %s204 = sadd.s32 %s203, 1
    %p207 = scmp.eq.s32.totalorder %s17, 1
    %p208 = scmp.ne.s32.totalorder %s203, %s205
    %p209 = scmp.eq.s32.totalorder %s17, 0
    %p210 = por %p208, %p209
    %p211 = scmp.ne.s32.totalorder %s203, %s205
    %p212 = scmp.eq.s32.totalorder %s22, 1
    %p213 = por %p211, %p212
    %p214 = scmp.ne.s32.totalorder %s205, %s206
    %p215 = scmp.eq.s32.totalorder %s22, 0
    %p216 = por %p214, %p215
    %p217 = scmp.ne.s32.totalorder %s205, %s206
    %p218 = scmp.eq.s32.totalorder %s23, 1
    %p219 = por %p217, %p218
    %p221 = scmp.ne.s32.totalorder %s206, %s220
    %p222 = scmp.eq.s32.totalorder %s23, 0
    %p223 = por %p221, %p222
    %s225 = sadd.s32 %s224, 1
    %p228 = scmp.eq.s32.totalorder %s17, 1
    %p229 = scmp.ne.s32.totalorder %s224, %s226
    %p230 = scmp.eq.s32.totalorder %s17, 0
    %p231 = por %p229, %p230
    %p232 = scmp.ne.s32.totalorder %s224, %s226
    %p233 = scmp.eq.s32.totalorder %s22, 1
    %p234 = por %p232, %p233
    %p235 = scmp.ne.s32.totalorder %s226, %s227
    %p236 = scmp.eq.s32.totalorder %s22, 0
    %p237 = por %p235, %p236
    %p238 = scmp.ne.s32.totalorder %s226, %s227
    %p239 = scmp.eq.s32.totalorder %s23, 1
    %p240 = por %p238, %p239
    %p242 = scmp.ne.s32.totalorder %s227, %s241
    %p243 = scmp.eq.s32.totalorder %s23, 0
    %p244 = por %p242, %p243
    %s246 = sadd.s32 %s245, 1
    %p249 = scmp.eq.s32.totalorder %s17, 1
    %p250 = scmp.ne.s32.totalorder %s245, %s247
    %p251 = scmp.eq.s32.totalorder %s17, 0
    %p252 = por %p250, %p251
    %p253 = scmp.ne.s32.totalorder %s245, %s247
    %p254 = scmp.eq.s32.totalorder %s22, 1
    %p255 = por %p253, %p254
    %p256 = scmp.ne.s32.totalorder %s247, %s248
    %p257 = scmp.eq.s32.totalorder %s22, 0
    %p258 = por %p256, %p257
    %p259 = scmp.ne.s32.totalorder %s247, %s248
    %p260 = scmp.eq.s32.totalorder %s23, 1
    %p261 = por %p259, %p260
    %p263 = scmp.ne.s32.totalorder %s248, %s262
    %p264 = scmp.eq.s32.totalorder %s23, 0
    %p265 = por %p263, %p264
    %s266 = ssub.s32 %s17, %s24
    %p267 = scmp.eq.s32.totalorder %s266, 0
    %s269 = sadd.s32 %s268, 1
    %s270 = scalar_select %p267, %s268, %s269
    %p273 = pneg %p267
    %p274 = scmp.eq.s32.totalorder %s17, 1
    %p275 = por %p273, %p274
    %p276 = scmp.ne.s32.totalorder %s268, %s271
    %p277 = scmp.eq.s32.totalorder %s17, 0
    %p278 = por %p276, %p277
    %p279 = scmp.ne.s32.totalorder %s268, %s271
    %p280 = scmp.eq.s32.totalorder %s22, 1
    %p281 = por %p279, %p280
    %p282 = scmp.ne.s32.totalorder %s271, %s272
    %p283 = scmp.eq.s32.totalorder %s22, 0
    %p284 = por %p282, %p283
    %p285 = scmp.ne.s32.totalorder %s271, %s272
    %p286 = scmp.eq.s32.totalorder %s23, 1
    %p287 = por %p285, %p286
    %p289 = scmp.ne.s32.totalorder %s272, %s288
    %p290 = scmp.eq.s32.totalorder %s23, 0
    %p291 = por %p289, %p290
    %p292 = scmp.le.s32.totalorder 1, %s17
    %p293 = scmp.lt.s32.totalorder %s17, 3
    %p294 = pnand %p292, %p293
    %p295 = pneg %p294
    // Predicated region
    $region9: #{upcat_forward.3} parent=5 // pred_check
      _
    $region10: #{upcat_forward.3} parent=5 // pred_check_branch
      %297 = sbr.rel (%p294) target = $region12
    $region11: #{upcat_forward.3} parent=5 // pred_region
      %s298 = ssub.s32 %s17, 1
      // Predicated region
      $region13: #{upcat_forward.3} parent=11 // pred_check
        %p299 = pneg %p90
      $region14: #{upcat_forward.3} parent=11 // pred_check_branch
        %301 = sbr.rel (%p299) target = $region16
      $region15: #{upcat_forward.3} parent=11 // pred_region
        _
      $region16: #{upcat_forward.3} parent=11 // pred_fallthru
        _
      // Predicated region
      $region17: #{upcat_forward.3} parent=11 // pred_check
        %p302 = pneg %p111
      $region18: #{upcat_forward.3} parent=11 // pred_check_branch
        %304 = sbr.rel (%p302) target = $region20
      $region19: #{upcat_forward.3} parent=11 // pred_region
        _
      $region20: #{upcat_forward.3} parent=11 // pred_fallthru
        _
      // Predicated region
      $region21: #{upcat_forward.3} parent=11 // pred_check
        %p305 = pneg %p132
      $region22: #{upcat_forward.3} parent=11 // pred_check_branch
        %307 = sbr.rel (%p305) target = $region24
      $region23: #{upcat_forward.3} parent=11 // pred_region
        _
      $region24: #{upcat_forward.3} parent=11 // pred_fallthru
        _
      // Predicated region
      $region25: #{upcat_forward.3} parent=11 // pred_check
        %p308 = pneg %p153
      $region26: #{upcat_forward.3} parent=11 // pred_check_branch
        %310 = sbr.rel (%p308) target = $region28
      $region27: #{upcat_forward.3} parent=11 // pred_region
        _
      $region28: #{upcat_forward.3} parent=11 // pred_fallthru
        _
      // Predicated region
      $region29: #{upcat_forward.3} parent=11 // pred_check
        %p311 = pneg %p174
      $region30: #{upcat_forward.3} parent=11 // pred_check_branch
        %313 = sbr.rel (%p311) target = $region32
      $region31: #{upcat_forward.3} parent=11 // pred_region
        _
      $region32: #{upcat_forward.3} parent=11 // pred_fallthru
        _
      // Predicated region
      $region33: #{upcat_forward.3} parent=11 // pred_check
        %p314 = pneg %p195
      $region34: #{upcat_forward.3} parent=11 // pred_check_branch
        %316 = sbr.rel (%p314) target = $region36
      $region35: #{upcat_forward.3} parent=11 // pred_region
        _
      $region36: #{upcat_forward.3} parent=11 // pred_fallthru
        _
      // Predicated region
      $region37: #{upcat_forward.3} parent=11 // pred_check
        %p317 = pneg %p216
      $region38: #{upcat_forward.3} parent=11 // pred_check_branch
        %319 = sbr.rel (%p317) target = $region40
      $region39: #{upcat_forward.3} parent=11 // pred_region
        _
      $region40: #{upcat_forward.3} parent=11 // pred_fallthru
        _
      // Predicated region
      $region41: #{upcat_forward.3} parent=11 // pred_check
        %p320 = pneg %p237
      $region42: #{upcat_forward.3} parent=11 // pred_check_branch
        %322 = sbr.rel (%p320) target = $region44
      $region43: #{upcat_forward.3} parent=11 // pred_region
        _
      $region44: #{upcat_forward.3} parent=11 // pred_fallthru
        _
      // Predicated region
      $region45: #{upcat_forward.3} parent=11 // pred_check
        %p323 = pneg %p258
      $region46: #{upcat_forward.3} parent=11 // pred_check_branch
        %325 = sbr.rel (%p323) target = $region48
      $region47: #{upcat_forward.3} parent=11 // pred_region
        _
      $region48: #{upcat_forward.3} parent=11 // pred_fallthru
        _
    $region12: #{upcat_forward.3} parent=5 // pred_fallthru
      _
    %p326 = scmp.lt.s32.totalorder %s17, 2
    // Predicated region
    $region49: #{upcat_forward.3} parent=5 // pred_check
      %p327 = pneg %p326
    $region50: #{upcat_forward.3} parent=5 // pred_check_branch
      %329 = sbr.rel (%p327) target = $region52
    $region51: #{upcat_forward.3} parent=5 // pred_region
      // Predicated region
      $region53: #{upcat_forward.3} parent=51 // pred_check
        %p330 = pneg %p37
      $region54: #{upcat_forward.3} parent=51 // pred_check_branch
        %332 = sbr.rel (%p330) target = $region56
      $region55: #{upcat_forward.3} parent=51 // pred_region
        %p333 = scmp.lt.s32.totalorder %s17, 1
        %s334 = scalar_select %p333, %s17, 1
        %s335 = smul.addr %s334, 32
        %s336 = smul.addr %s335, 8
        %s337 = scalar_lea.vmem %s0, %s336
      $region56: #{upcat_forward.3} parent=51 // pred_fallthru
        _
      // Predicated region
      $region57: #{upcat_forward.3} parent=51 // pred_check
        %p338 = pneg %p63
      $region58: #{upcat_forward.3} parent=51 // pred_check_branch
        %340 = sbr.rel (%p338) target = $region60
      $region59: #{upcat_forward.3} parent=51 // pred_region
        %p341 = scmp.lt.s32.totalorder %s17, 1
        %s342 = scalar_select %p341, %s17, 1
        %s343 = smul.addr %s342, 32
        %s344 = smul.addr %s343, 8
        %s345 = scalar_lea.vmem %s1, %s344
      $region60: #{upcat_forward.3} parent=51 // pred_fallthru
        _
    $region52: #{upcat_forward.3} parent=5 // pred_fallthru
      _
    %p346 = scmp.le.s32.totalorder 1, %s17
    %p347 = scmp.lt.s32.totalorder %s17, 3
    %p348 = pnand %p346, %p347
    %p349 = pneg %p348
    // Predicated region
    $region61: #{upcat_forward.3} parent=5 // pred_check
      _
    $region62: #{upcat_forward.3} parent=5 // pred_check_branch
      %351 = sbr.rel (%p348) target = $region64
    $region63: #{upcat_forward.3} parent=5 // pred_region
      %s352 = ssub.s32 %s17, 1
      %p353 = scmp.lt.s32.totalorder %s22, 1
      %s354 = scalar_select %p353, %s22, 1
      %s355 = smul.addr %s354, 32
      %s356 = smul.addr %s355, 8
      %s357 = scalar_lea.vmem %s0, %s356
      %p358 = pneg %p43
      %p359 = pneg %p40
      %p360 = scmp.lt.s32.totalorder %s22, 1
      %s361 = scalar_select %p360, %s22, 1
      %s362 = smul.addr %s361, 32
      %s363 = smul.addr %s362, 8
      %s364 = scalar_lea.vmem %s1, %s363
      %p365 = pneg %p69
      %p366 = pneg %p66
      %p367 = pneg %p90
      %p368 = pneg %p87
      %p369 = pneg %p111
      %p370 = pneg %p108
      %p371 = pneg %p132
      %p372 = pneg %p129
      %p373 = pneg %p153
      %p374 = pneg %p150
      %p375 = pneg %p174
      %p376 = pneg %p171
      %p377 = pneg %p195
      %p378 = pneg %p192
      %p379 = pneg %p216
      %p380 = pneg %p213
      %p381 = pneg %p237
      %p382 = pneg %p234
      %p383 = pneg %p258
      %p384 = pneg %p255
      %p385 = pneg %p284
      %p386 = pneg %p281
      %p387 = scmp.lt.s32.totalorder %s22, 1
      %s388 = scalar_select %p387, %s22, 1
      %s389 = smul.addr %s388, 32
      %s390 = smul.addr %s389, 8
      %s391 = scalar_lea.vmem %s11, %s390
      %p392 = scmp.lt.s32.totalorder %s22, 1
      %s393 = scalar_select %p392, %s22, 1
      %s394 = smul.addr %s393, 32
      %s395 = smul.addr %s394, 8
      %s396 = scalar_lea.vmem %s0, %s395
      %p397 = scmp.lt.s32.totalorder %s22, 1
      %s398 = scalar_select %p397, %s22, 1
      %s399 = smul.addr %s398, 32
      %s400 = smul.addr %s399, 8
      %s401 = scalar_lea.vmem %s1, %s400
      %p402 = scmp.lt.s32.totalorder %s22, 1
      %s403 = scalar_select %p402, %s22, 1
      %s404 = smul.addr %s403, 32
      %s405 = smul.addr %s404, 8
      %s406 = scalar_lea.vmem %s11, %s405
      %v407 = vld [vmem:[%s396] sm:$0xff]
      %v408 = vld [vmem:[%s396 + $0x8] sm:$0xff]
      %v409 = vld [vmem:[%s396 + $0x10] sm:$0xff]
      %v410 = vld [vmem:[%s396 + $0x18] sm:$0xff]
      %v411 = vld [vmem:[%s396 + $0x20] sm:$0xff]
      %v412 = vld [vmem:[%s396 + $0x28] sm:$0xff]
      %v413 = vld [vmem:[%s396 + $0x30] sm:$0xff]
      %v414 = vld [vmem:[%s396 + $0x38] sm:$0xff]
      %v415 = vld [vmem:[%s396 + $0x40] sm:$0xff]
      %v416 = vld [vmem:[%s396 + $0x48] sm:$0xff]
      %v417 = vld [vmem:[%s396 + $0x50] sm:$0xff]
      %v418 = vld [vmem:[%s396 + $0x58] sm:$0xff]
      %v419 = vld [vmem:[%s396 + $0x60] sm:$0xff]
      %v420 = vld [vmem:[%s396 + $0x68] sm:$0xff]
      %v421 = vld [vmem:[%s396 + $0x70] sm:$0xff]
      %v422 = vld [vmem:[%s396 + $0x78] sm:$0xff]
      %v423 = vld [vmem:[%s396 + $0x80] sm:$0xff]
      %v424 = vld [vmem:[%s396 + $0x88] sm:$0xff]
      %v425 = vld [vmem:[%s396 + $0x90] sm:$0xff]
      %v426 = vld [vmem:[%s396 + $0x98] sm:$0xff]
      %v427 = vld [vmem:[%s396 + $0xa0] sm:$0xff]
      %v428 = vld [vmem:[%s396 + $0xa8] sm:$0xff]
      %v429 = vld [vmem:[%s396 + $0xb0] sm:$0xff]
      %v430 = vld [vmem:[%s396 + $0xb8] sm:$0xff]
      %v431 = vld [vmem:[%s396 + $0xc0] sm:$0xff]
      %v432 = vld [vmem:[%s396 + $0xc8] sm:$0xff]
      %v433 = vld [vmem:[%s396 + $0xd0] sm:$0xff]
      %v434 = vld [vmem:[%s396 + $0xd8] sm:$0xff]
      %v435 = vld [vmem:[%s396 + $0xe0] sm:$0xff]
      %v436 = vld [vmem:[%s396 + $0xe8] sm:$0xff]
      %v437 = vld [vmem:[%s396 + $0xf0] sm:$0xff]
      %v438 = vld [vmem:[%s396 + $0xf8] sm:$0xff]
      %vm439 = vcmask 31744
      %440 = vst.msk [vmem:[#allocation2] sm:$0xff] %vm439, 0.0
      %441 = vst.msk [vmem:[#allocation2 + $0x8] sm:$0xff] %vm439, 0.0
      %vm442 = vcmask 25600
      %443 = vst.msk [vmem:[#allocation2 + $0x10] sm:$0x3] %vm442, 0.0
      %444 = vst.msk [vmem:[#allocation2 + $0x18] sm:$0xff] %vm439, 0.0
      %445 = vst.msk [vmem:[#allocation2 + $0x20] sm:$0xff] %vm439, 0.0
      %446 = vst.msk [vmem:[#allocation2 + $0x28] sm:$0x3] %vm442, 0.0
      %447 = vst.msk [vmem:[#allocation2 + $0x30] sm:$0xff] %vm439, 0.0
      %448 = vst.msk [vmem:[#allocation2 + $0x38] sm:$0xff] %vm439, 0.0
      %449 = vst.msk [vmem:[#allocation2 + $0x40] sm:$0x3] %vm442, 0.0
      %450 = vst.msk [vmem:[#allocation2 + $0x48] sm:$0xff] %vm439, 0.0
      %451 = vst.msk [vmem:[#allocation2 + $0x50] sm:$0xff] %vm439, 0.0
      %452 = vst.msk [vmem:[#allocation2 + $0x58] sm:$0x3] %vm442, 0.0
      %453 = vst.msk [vmem:[#allocation2 + $0x60] sm:$0xff] %vm439, 0.0
      %454 = vst.msk [vmem:[#allocation2 + $0x68] sm:$0xff] %vm439, 0.0
      %455 = vst.msk [vmem:[#allocation2 + $0x70] sm:$0x3] %vm442, 0.0
      %456 = vst.msk [vmem:[#allocation2 + $0x78] sm:$0xff] %vm439, 0.0
      %457 = vst.msk [vmem:[#allocation2 + $0x80] sm:$0xff] %vm439, 0.0
      %458 = vst.msk [vmem:[#allocation2 + $0x88] sm:$0x3] %vm442, 0.0
      %459 = vst.msk [vmem:[#allocation2 + $0x90] sm:$0xff] %vm439, 0.0
      %460 = vst.msk [vmem:[#allocation2 + $0x98] sm:$0xff] %vm439, 0.0
      %461 = vst.msk [vmem:[#allocation2 + $0xa0] sm:$0x3] %vm442, 0.0
      %462 = vst.msk [vmem:[#allocation2 + $0xa8] sm:$0xff] %vm439, 0.0
      %463 = vst.msk [vmem:[#allocation2 + $0xb0] sm:$0xff] %vm439, 0.0
      %464 = vst.msk [vmem:[#allocation2 + $0xb8] sm:$0x3] %vm442, 0.0
      %465 = vst.msk [vmem:[#allocation2 + $0xc0] sm:$0xff] %vm439, 0.0
      %466 = vst.msk [vmem:[#allocation2 + $0xc8] sm:$0xff] %vm439, 0.0
      %467 = vst.msk [vmem:[#allocation2 + $0xd0] sm:$0x3] %vm442, 0.0
      %468 = vst.msk [vmem:[#allocation2 + $0xd8] sm:$0xff] %vm439, 0.0
      %469 = vst.msk [vmem:[#allocation2 + $0xe0] sm:$0xff] %vm439, 0.0
      %470 = vst.msk [vmem:[#allocation2 + $0xe8] sm:$0x3] %vm442, 0.0
      %471 = vst.msk [vmem:[#allocation2 + $0xf0] sm:$0xff] %vm439, 0.0
      %472 = vst.msk [vmem:[#allocation2 + $0xf8] sm:$0xff] %vm439, 0.0
      %473 = vst.msk [vmem:[#allocation2 + $0x100] sm:$0x3] %vm442, 0.0
      %474 = vst.msk [vmem:[#allocation2 + $0x108] sm:$0xff] %vm439, 0.0
      %475 = vst.msk [vmem:[#allocation2 + $0x110] sm:$0xff] %vm439, 0.0
      %476 = vst.msk [vmem:[#allocation2 + $0x118] sm:$0x3] %vm442, 0.0
      %477 = vst.msk [vmem:[#allocation2 + $0x120] sm:$0xff] %vm439, 0.0
      %478 = vst.msk [vmem:[#allocation2 + $0x128] sm:$0xff] %vm439, 0.0
      %479 = vst.msk [vmem:[#allocation2 + $0x130] sm:$0x3] %vm442, 0.0
      %480 = vst.msk [vmem:[#allocation2 + $0x138] sm:$0xff] %vm439, 0.0
      %481 = vst.msk [vmem:[#allocation2 + $0x140] sm:$0xff] %vm439, 0.0
      %482 = vst.msk [vmem:[#allocation2 + $0x148] sm:$0x3] %vm442, 0.0
      %483 = vst.msk [vmem:[#allocation2 + $0x150] sm:$0xff] %vm439, 0.0
      %484 = vst.msk [vmem:[#allocation2 + $0x158] sm:$0xff] %vm439, 0.0
      %485 = vst.msk [vmem:[#allocation2 + $0x160] sm:$0x3] %vm442, 0.0
      %486 = vst.msk [vmem:[#allocation2 + $0x168] sm:$0xff] %vm439, 0.0
      %487 = vst.msk [vmem:[#allocation2 + $0x170] sm:$0xff] %vm439, 0.0
      %488 = vst.msk [vmem:[#allocation2 + $0x178] sm:$0x3] %vm442, 0.0
      %489 = vst.msk [vmem:[#allocation2 + $0x180] sm:$0xff] %vm439, 0.0
      %490 = vst.msk [vmem:[#allocation2 + $0x188] sm:$0xff] %vm439, 0.0
      %491 = vst.msk [vmem:[#allocation2 + $0x190] sm:$0x3] %vm442, 0.0
      %492 = vst.msk [vmem:[#allocation2 + $0x198] sm:$0xff] %vm439, 0.0
      %493 = vst.msk [vmem:[#allocation2 + $0x1a0] sm:$0xff] %vm439, 0.0
      %494 = vst.msk [vmem:[#allocation2 + $0x1a8] sm:$0x3] %vm442, 0.0
      %s495 = scalar_lea.vmem [#allocation2], 24
      %496 = vst.msk [vmem:[%s495 + $0x1] sm:$0xff] %vm439, %v407
      %497 = vst.msk [vmem:[%s495 + $0x9] sm:$0xff] %vm439, %v408
      %498 = vst.msk [vmem:[%s495 + $0x19] sm:$0xff] %vm439, %v409
      %499 = vst.msk [vmem:[%s495 + $0x21] sm:$0xff] %vm439, %v410
      %500 = vst.msk [vmem:[%s495 + $0x31] sm:$0xff] %vm439, %v411
      %501 = vst.msk [vmem:[%s495 + $0x39] sm:$0xff] %vm439, %v412
      %502 = vst.msk [vmem:[%s495 + $0x49] sm:$0xff] %vm439, %v413
      %503 = vst.msk [vmem:[%s495 + $0x51] sm:$0xff] %vm439, %v414
      %504 = vst.msk [vmem:[%s495 + $0x61] sm:$0xff] %vm439, %v415
      %505 = vst.msk [vmem:[%s495 + $0x69] sm:$0xff] %vm439, %v416
      %506 = vst.msk [vmem:[%s495 + $0x79] sm:$0xff] %vm439, %v417
      %507 = vst.msk [vmem:[%s495 + $0x81] sm:$0xff] %vm439, %v418
      %508 = vst.msk [vmem:[%s495 + $0x91] sm:$0xff] %vm439, %v419
      %509 = vst.msk [vmem:[%s495 + $0x99] sm:$0xff] %vm439, %v420
      %510 = vst.msk [vmem:[%s495 + $0xa9] sm:$0xff] %vm439, %v421
      %511 = vst.msk [vmem:[%s495 + $0xb1] sm:$0xff] %vm439, %v422
      %512 = vst.msk [vmem:[%s495 + $0xc1] sm:$0xff] %vm439, %v423
      %513 = vst.msk [vmem:[%s495 + $0xc9] sm:$0xff] %vm439, %v424
      %514 = vst.msk [vmem:[%s495 + $0xd9] sm:$0xff] %vm439, %v425
      %515 = vst.msk [vmem:[%s495 + $0xe1] sm:$0xff] %vm439, %v426
      %516 = vst.msk [vmem:[%s495 + $0xf1] sm:$0xff] %vm439, %v427
      %517 = vst.msk [vmem:[%s495 + $0xf9] sm:$0xff] %vm439, %v428
      %518 = vst.msk [vmem:[%s495 + $0x109] sm:$0xff] %vm439, %v429
      %519 = vst.msk [vmem:[%s495 + $0x111] sm:$0xff] %vm439, %v430
      %520 = vst.msk [vmem:[%s495 + $0x121] sm:$0xff] %vm439, %v431
      %521 = vst.msk [vmem:[%s495 + $0x129] sm:$0xff] %vm439, %v432
      %522 = vst.msk [vmem:[%s495 + $0x139] sm:$0xff] %vm439, %v433
      %523 = vst.msk [vmem:[%s495 + $0x141] sm:$0xff] %vm439, %v434
      %524 = vst.msk [vmem:[%s495 + $0x151] sm:$0xff] %vm439, %v435
      %525 = vst.msk [vmem:[%s495 + $0x159] sm:$0xff] %vm439, %v436
      %526 = vst.msk [vmem:[%s495 + $0x169] sm:$0xff] %vm439, %v437
      %527 = vst.msk [vmem:[%s495 + $0x171] sm:$0xff] %vm439, %v438
      %v528 = vld [vmem:[%s401] sm:$0xff]
      %v529 = vld [vmem:[%s401 + $0x8] sm:$0xff]
      %v530 = vld [vmem:[%s401 + $0x10] sm:$0xff]
      %v531 = vld [vmem:[%s401 + $0x18] sm:$0xff]
      %v532 = vld [vmem:[%s401 + $0x20] sm:$0xff]
      %v533 = vld [vmem:[%s401 + $0x28] sm:$0xff]
      %v534 = vld [vmem:[%s401 + $0x30] sm:$0xff]
      %v535 = vld [vmem:[%s401 + $0x38] sm:$0xff]
      %v536 = vld [vmem:[%s401 + $0x40] sm:$0xff]
      %v537 = vld [vmem:[%s401 + $0x48] sm:$0xff]
      %v538 = vld [vmem:[%s401 + $0x50] sm:$0xff]
      %v539 = vld [vmem:[%s401 + $0x58] sm:$0xff]
      %v540 = vld [vmem:[%s401 + $0x60] sm:$0xff]
      %v541 = vld [vmem:[%s401 + $0x68] sm:$0xff]
      %v542 = vld [vmem:[%s401 + $0x70] sm:$0xff]
      %v543 = vld [vmem:[%s401 + $0x78] sm:$0xff]
      %v544 = vld [vmem:[%s401 + $0x80] sm:$0xff]
      %v545 = vld [vmem:[%s401 + $0x88] sm:$0xff]
      %v546 = vld [vmem:[%s401 + $0x90] sm:$0xff]
      %v547 = vld [vmem:[%s401 + $0x98] sm:$0xff]
      %v548 = vld [vmem:[%s401 + $0xa0] sm:$0xff]
      %v549 = vld [vmem:[%s401 + $0xa8] sm:$0xff]
      %v550 = vld [vmem:[%s401 + $0xb0] sm:$0xff]
      %v551 = vld [vmem:[%s401 + $0xb8] sm:$0xff]
      %v552 = vld [vmem:[%s401 + $0xc0] sm:$0xff]
      %v553 = vld [vmem:[%s401 + $0xc8] sm:$0xff]
      %v554 = vld [vmem:[%s401 + $0xd0] sm:$0xff]
      %v555 = vld [vmem:[%s401 + $0xd8] sm:$0xff]
      %v556 = vld [vmem:[%s401 + $0xe0] sm:$0xff]
      %v557 = vld [vmem:[%s401 + $0xe8] sm:$0xff]
      %v558 = vld [vmem:[%s401 + $0xf0] sm:$0xff]
      %v559 = vld [vmem:[%s401 + $0xf8] sm:$0xff]
      %560 = vst.msk [vmem:[#allocation3] sm:$0xff] %vm439, 0.0
      %561 = vst.msk [vmem:[#allocation3 + $0x8] sm:$0xff] %vm439, 0.0
      %562 = vst.msk [vmem:[#allocation3 + $0x10] sm:$0x3] %vm442, 0.0
      %563 = vst.msk [vmem:[#allocation3 + $0x18] sm:$0xff] %vm439, 0.0
      %564 = vst.msk [vmem:[#allocation3 + $0x20] sm:$0xff] %vm439, 0.0
      %565 = vst.msk [vmem:[#allocation3 + $0x28] sm:$0x3] %vm442, 0.0
      %566 = vst.msk [vmem:[#allocation3 + $0x30] sm:$0xff] %vm439, 0.0
      %567 = vst.msk [vmem:[#allocation3 + $0x38] sm:$0xff] %vm439, 0.0
      %568 = vst.msk [vmem:[#allocation3 + $0x40] sm:$0x3] %vm442, 0.0
      %569 = vst.msk [vmem:[#allocation3 + $0x48] sm:$0xff] %vm439, 0.0
      %570 = vst.msk [vmem:[#allocation3 + $0x50] sm:$0xff] %vm439, 0.0
      %571 = vst.msk [vmem:[#allocation3 + $0x58] sm:$0x3] %vm442, 0.0
      %572 = vst.msk [vmem:[#allocation3 + $0x60] sm:$0xff] %vm439, 0.0
      %573 = vst.msk [vmem:[#allocation3 + $0x68] sm:$0xff] %vm439, 0.0
      %574 = vst.msk [vmem:[#allocation3 + $0x70] sm:$0x3] %vm442, 0.0
      %575 = vst.msk [vmem:[#allocation3 + $0x78] sm:$0xff] %vm439, 0.0
      %576 = vst.msk [vmem:[#allocation3 + $0x80] sm:$0xff] %vm439, 0.0
      %577 = vst.msk [vmem:[#allocation3 + $0x88] sm:$0x3] %vm442, 0.0
      %578 = vst.msk [vmem:[#allocation3 + $0x90] sm:$0xff] %vm439, 0.0
      %579 = vst.msk [vmem:[#allocation3 + $0x98] sm:$0xff] %vm439, 0.0
      %580 = vst.msk [vmem:[#allocation3 + $0xa0] sm:$0x3] %vm442, 0.0
      %581 = vst.msk [vmem:[#allocation3 + $0xa8] sm:$0xff] %vm439, 0.0
      %582 = vst.msk [vmem:[#allocation3 + $0xb0] sm:$0xff] %vm439, 0.0
      %583 = vst.msk [vmem:[#allocation3 + $0xb8] sm:$0x3] %vm442, 0.0
      %584 = vst.msk [vmem:[#allocation3 + $0xc0] sm:$0xff] %vm439, 0.0
      %585 = vst.msk [vmem:[#allocation3 + $0xc8] sm:$0xff] %vm439, 0.0
      %586 = vst.msk [vmem:[#allocation3 + $0xd0] sm:$0x3] %vm442, 0.0
      %587 = vst.msk [vmem:[#allocation3 + $0xd8] sm:$0xff] %vm439, 0.0
      %588 = vst.msk [vmem:[#allocation3 + $0xe0] sm:$0xff] %vm439, 0.0
      %589 = vst.msk [vmem:[#allocation3 + $0xe8] sm:$0x3] %vm442, 0.0
      %590 = vst.msk [vmem:[#allocation3 + $0xf0] sm:$0xff] %vm439, 0.0
      %591 = vst.msk [vmem:[#allocation3 + $0xf8] sm:$0xff] %vm439, 0.0
      %592 = vst.msk [vmem:[#allocation3 + $0x100] sm:$0x3] %vm442, 0.0
      %593 = vst.msk [vmem:[#allocation3 + $0x108] sm:$0xff] %vm439, 0.0
      %594 = vst.msk [vmem:[#allocation3 + $0x110] sm:$0xff] %vm439, 0.0
      %595 = vst.msk [vmem:[#allocation3 + $0x118] sm:$0x3] %vm442, 0.0
      %596 = vst.msk [vmem:[#allocation3 + $0x120] sm:$0xff] %vm439, 0.0
      %597 = vst.msk [vmem:[#allocation3 + $0x128] sm:$0xff] %vm439, 0.0
      %598 = vst.msk [vmem:[#allocation3 + $0x130] sm:$0x3] %vm442, 0.0
      %599 = vst.msk [vmem:[#allocation3 + $0x138] sm:$0xff] %vm439, 0.0
      %600 = vst.msk [vmem:[#allocation3 + $0x140] sm:$0xff] %vm439, 0.0
      %601 = vst.msk [vmem:[#allocation3 + $0x148] sm:$0x3] %vm442, 0.0
      %602 = vst.msk [vmem:[#allocation3 + $0x150] sm:$0xff] %vm439, 0.0
      %603 = vst.msk [vmem:[#allocation3 + $0x158] sm:$0xff] %vm439, 0.0
      %604 = vst.msk [vmem:[#allocation3 + $0x160] sm:$0x3] %vm442, 0.0
      %605 = vst.msk [vmem:[#allocation3 + $0x168] sm:$0xff] %vm439, 0.0
      %606 = vst.msk [vmem:[#allocation3 + $0x170] sm:$0xff] %vm439, 0.0
      %607 = vst.msk [vmem:[#allocation3 + $0x178] sm:$0x3] %vm442, 0.0
      %608 = vst.msk [vmem:[#allocation3 + $0x180] sm:$0xff] %vm439, 0.0
      %609 = vst.msk [vmem:[#allocation3 + $0x188] sm:$0xff] %vm439, 0.0
      %610 = vst.msk [vmem:[#allocation3 + $0x190] sm:$0x3] %vm442, 0.0
      %611 = vst.msk [vmem:[#allocation3 + $0x198] sm:$0xff] %vm439, 0.0
      %612 = vst.msk [vmem:[#allocation3 + $0x1a0] sm:$0xff] %vm439, 0.0
      %613 = vst.msk [vmem:[#allocation3 + $0x1a8] sm:$0x3] %vm442, 0.0
      %s614 = scalar_lea.vmem [#allocation3], 24
      %615 = vst.msk [vmem:[%s614 + $0x1] sm:$0xff] %vm439, %v528
      %616 = vst.msk [vmem:[%s614 + $0x9] sm:$0xff] %vm439, %v529
      %617 = vst.msk [vmem:[%s614 + $0x19] sm:$0xff] %vm439, %v530
      %618 = vst.msk [vmem:[%s614 + $0x21] sm:$0xff] %vm439, %v531
      %619 = vst.msk [vmem:[%s614 + $0x31] sm:$0xff] %vm439, %v532
      %620 = vst.msk [vmem:[%s614 + $0x39] sm:$0xff] %vm439, %v533
      %621 = vst.msk [vmem:[%s614 + $0x49] sm:$0xff] %vm439, %v534
      %622 = vst.msk [vmem:[%s614 + $0x51] sm:$0xff] %vm439, %v535
      %623 = vst.msk [vmem:[%s614 + $0x61] sm:$0xff] %vm439, %v536
      %624 = vst.msk [vmem:[%s614 + $0x69] sm:$0xff] %vm439, %v537
      %625 = vst.msk [vmem:[%s614 + $0x79] sm:$0xff] %vm439, %v538
      %626 = vst.msk [vmem:[%s614 + $0x81] sm:$0xff] %vm439, %v539
      %627 = vst.msk [vmem:[%s614 + $0x91] sm:$0xff] %vm439, %v540
      %628 = vst.msk [vmem:[%s614 + $0x99] sm:$0xff] %vm439, %v541
      %629 = vst.msk [vmem:[%s614 + $0xa9] sm:$0xff] %vm439, %v542
      %630 = vst.msk [vmem:[%s614 + $0xb1] sm:$0xff] %vm439, %v543
      %631 = vst.msk [vmem:[%s614 + $0xc1] sm:$0xff] %vm439, %v544
      %632 = vst.msk [vmem:[%s614 + $0xc9] sm:$0xff] %vm439, %v545
      %633 = vst.msk [vmem:[%s614 + $0xd9] sm:$0xff] %vm439, %v546
      %634 = vst.msk [vmem:[%s614 + $0xe1] sm:$0xff] %vm439, %v547
      %635 = vst.msk [vmem:[%s614 + $0xf1] sm:$0xff] %vm439, %v548
      %636 = vst.msk [vmem:[%s614 + $0xf9] sm:$0xff] %vm439, %v549
      %637 = vst.msk [vmem:[%s614 + $0x109] sm:$0xff] %vm439, %v550
      %638 = vst.msk [vmem:[%s614 + $0x111] sm:$0xff] %vm439, %v551
      %639 = vst.msk [vmem:[%s614 + $0x121] sm:$0xff] %vm439, %v552
      %640 = vst.msk [vmem:[%s614 + $0x129] sm:$0xff] %vm439, %v553
      %641 = vst.msk [vmem:[%s614 + $0x139] sm:$0xff] %vm439, %v554
      %642 = vst.msk [vmem:[%s614 + $0x141] sm:$0xff] %vm439, %v555
      %643 = vst.msk [vmem:[%s614 + $0x151] sm:$0xff] %vm439, %v556
      %644 = vst.msk [vmem:[%s614 + $0x159] sm:$0xff] %vm439, %v557
      %645 = vst.msk [vmem:[%s614 + $0x169] sm:$0xff] %vm439, %v558
      %646 = vst.msk [vmem:[%s614 + $0x171] sm:$0xff] %vm439, %v559
      %v647 = vld [vmem:[%s4] sm:$0x1]
      %v648 = vld [vmem:[%s5] sm:$0x1]
      %v649 = vld [vmem:[%s6] sm:$0x1]
      %v650 = vld [vmem:[#allocation2] sm:$0xff]
      %v651 = vld [vmem:[#allocation2 + $0x8] sm:$0xff]
      %v652 = vld [vmem:[#allocation2 + $0x10] sm:$0x3]
      %v653 = vld [vmem:[#allocation2 + $0x18] sm:$0xff]
      %v654 = vld [vmem:[#allocation2 + $0x20] sm:$0xff]
      %v655 = vld [vmem:[#allocation2 + $0x28] sm:$0x3]
      %v656 = vld [vmem:[#allocation2 + $0x30] sm:$0xff]
      %v657 = vld [vmem:[#allocation2 + $0x38] sm:$0xff]
      %v658 = vld [vmem:[#allocation2 + $0x40] sm:$0x3]
      %v659 = vld [vmem:[#allocation2 + $0x48] sm:$0xff]
      %v660 = vld [vmem:[#allocation2 + $0x50] sm:$0xff]
      %v661 = vld [vmem:[#allocation2 + $0x58] sm:$0x3]
      %v662 = vld [vmem:[#allocation2 + $0x60] sm:$0xff]
      %v663 = vld [vmem:[#allocation2 + $0x68] sm:$0xff]
      %v664 = vld [vmem:[#allocation2 + $0x70] sm:$0x3]
      %v665 = vld [vmem:[#allocation2 + $0x78] sm:$0xff]
      %v666 = vld [vmem:[#allocation2 + $0x80] sm:$0xff]
      %v667 = vld [vmem:[#allocation2 + $0x88] sm:$0x3]
      %v668 = vld [vmem:[#allocation2 + $0x90] sm:$0xff]
      %v669 = vld [vmem:[#allocation2 + $0x98] sm:$0xff]
      %v670 = vld [vmem:[#allocation2 + $0xa0] sm:$0x3]
      %v671 = vld [vmem:[#allocation2 + $0xa8] sm:$0xff]
      %v672 = vld [vmem:[#allocation2 + $0xb0] sm:$0xff]
      %v673 = vld [vmem:[#allocation2 + $0xb8] sm:$0x3]
      %v674 = vld [vmem:[#allocation2 + $0xc0] sm:$0xff]
      %v675 = vld [vmem:[#allocation2 + $0xc8] sm:$0xff]
      %v676 = vld [vmem:[#allocation2 + $0xd0] sm:$0x3]
      %v677 = vld [vmem:[#allocation2 + $0xd8] sm:$0xff]
      %v678 = vld [vmem:[#allocation2 + $0xe0] sm:$0xff]
      %v679 = vld [vmem:[#allocation2 + $0xe8] sm:$0x3]
      %v680 = vld [vmem:[#allocation2 + $0xf0] sm:$0xff]
      %v681 = vld [vmem:[#allocation2 + $0xf8] sm:$0xff]
      %v682 = vld [vmem:[#allocation2 + $0x100] sm:$0x3]
      %v683 = vld [vmem:[#allocation2 + $0x108] sm:$0xff]
      %v684 = vld [vmem:[#allocation2 + $0x110] sm:$0xff]
      %v685 = vld [vmem:[#allocation2 + $0x118] sm:$0x3]
      %v686 = vld [vmem:[#allocation2 + $0x120] sm:$0xff]
      %v687 = vld [vmem:[#allocation2 + $0x128] sm:$0xff]
      %v688 = vld [vmem:[#allocation2 + $0x130] sm:$0x3]
      %v689 = vld [vmem:[#allocation2 + $0x138] sm:$0xff]
      %v690 = vld [vmem:[#allocation2 + $0x140] sm:$0xff]
      %v691 = vld [vmem:[#allocation2 + $0x148] sm:$0x3]
      %v692 = vld [vmem:[#allocation2 + $0x150] sm:$0xff]
      %v693 = vld [vmem:[#allocation2 + $0x158] sm:$0xff]
      %v694 = vld [vmem:[#allocation2 + $0x160] sm:$0x3]
      %v695 = vld [vmem:[#allocation2 + $0x168] sm:$0xff]
      %v696 = vld [vmem:[#allocation2 + $0x170] sm:$0xff]
      %v697 = vld [vmem:[#allocation2 + $0x178] sm:$0x3]
      %v698 = vld [vmem:[#allocation2 + $0x180] sm:$0xff]
      %v699 = vld [vmem:[#allocation2 + $0x188] sm:$0xff]
      %v700 = vld [vmem:[#allocation2 + $0x190] sm:$0x3]
      %v701 = vld [vmem:[#allocation2 + $0x198] sm:$0xff]
      %v702 = vld [vmem:[#allocation2 + $0x1a0] sm:$0xff]
      %v703 = vld [vmem:[#allocation2 + $0x1a8] sm:$0x3]
      %v704 = vld [vmem:[%s2] sm:$0xff]
      %v705 = vld [vmem:[%s2 + $0x8] sm:$0xf]
      %vm754 = vcmask 1046528
      %v755 = vrot.slane %v650, 1
      %v756 = vrot.slane %v651, 1
      %v757 = vsel %vm754, %v755, %v756
      %v758 = vrot.slane %v652, 1
      %v759 = vsel %vm754, %v756, %v758
      %v760 = vrot.slane %v653, 1
      %v761 = vrot.slane %v654, 1
      %v762 = vsel %vm754, %v760, %v761
      %v763 = vrot.slane %v655, 1
      %v764 = vsel %vm754, %v761, %v763
      %v765 = vrot.slane %v656, 1
      %v766 = vrot.slane %v657, 1
      %v767 = vsel %vm754, %v765, %v766
      %v768 = vrot.slane %v658, 1
      %v769 = vsel %vm754, %v766, %v768
      %v770 = vrot.slane %v659, 1
      %v771 = vrot.slane %v660, 1
      %v772 = vsel %vm754, %v770, %v771
      %v773 = vrot.slane %v661, 1
      %v774 = vsel %vm754, %v771, %v773
      %v775 = vrot.slane %v662, 1
      %v776 = vrot.slane %v663, 1
      %v777 = vsel %vm754, %v775, %v776
      %v778 = vrot.slane %v664, 1
      %v779 = vsel %vm754, %v776, %v778
      %v780 = vrot.slane %v665, 1
      %v781 = vrot.slane %v666, 1
      %v782 = vsel %vm754, %v780, %v781
      %v783 = vrot.slane %v667, 1
      %v784 = vsel %vm754, %v781, %v783
      %v785 = vrot.slane %v668, 1
      %v786 = vrot.slane %v669, 1
      %v787 = vsel %vm754, %v785, %v786
      %v788 = vrot.slane %v670, 1
      %v789 = vsel %vm754, %v786, %v788
      %v790 = vrot.slane %v671, 1
      %v791 = vrot.slane %v672, 1
      %v792 = vsel %vm754, %v790, %v791
      %v793 = vrot.slane %v673, 1
      %v794 = vsel %vm754, %v791, %v793
      %v795 = vrot.slane %v674, 1
      %v796 = vrot.slane %v675, 1
      %v797 = vsel %vm754, %v795, %v796
      %v798 = vrot.slane %v676, 1
      %v799 = vsel %vm754, %v796, %v798
      %v800 = vrot.slane %v677, 1
      %v801 = vrot.slane %v678, 1
      %v802 = vsel %vm754, %v800, %v801
      %v803 = vrot.slane %v679, 1
      %v804 = vsel %vm754, %v801, %v803
      %v805 = vrot.slane %v680, 1
      %v806 = vrot.slane %v681, 1
      %v807 = vsel %vm754, %v805, %v806
      %v808 = vrot.slane %v682, 1
      %v809 = vsel %vm754, %v806, %v808
      %v810 = vrot.slane %v683, 1
      %v811 = vrot.slane %v684, 1
      %v812 = vsel %vm754, %v810, %v811
      %v813 = vrot.slane %v685, 1
      %v814 = vsel %vm754, %v811, %v813
      %v815 = vrot.slane %v686, 1
      %v816 = vrot.slane %v687, 1
      %v817 = vsel %vm754, %v815, %v816
      %v818 = vrot.slane %v688, 1
      %v819 = vsel %vm754, %v816, %v818
      %v820 = vrot.slane %v689, 1
      %v821 = vrot.slane %v690, 1
      %v822 = vsel %vm754, %v820, %v821
      %v823 = vrot.slane %v691, 1
      %v824 = vsel %vm754, %v821, %v823
      %v825 = vrot.slane %v692, 1
      %v826 = vrot.slane %v693, 1
      %v827 = vsel %vm754, %v825, %v826
      %v828 = vrot.slane %v694, 1
      %v829 = vsel %vm754, %v826, %v828
      %v830 = vrot.slane %v695, 1
      %v831 = vrot.slane %v696, 1
      %v832 = vsel %vm754, %v830, %v831
      %v833 = vrot.slane %v697, 1
      %v834 = vsel %vm754, %v831, %v833
      %v836 = vrot.slane %v704, 4
      %v837 = vsel %vm439, %v757, 0
      %v839 = vsel %vm439, %v759, 0
      %v841 = vsel %vm439, %v762, 0
      %v843 = vsel %vm439, %v764, 0
      %v845 = vsel %vm439, %v767, 0
      %v847 = vsel %vm439, %v769, 0
      %v849 = vsel %vm439, %v772, 0
      %v851 = vsel %vm439, %v774, 0
      %v853 = vsel %vm439, %v777, 0
      %v855 = vsel %vm439, %v779, 0
      %v857 = vsel %vm439, %v782, 0
      %v859 = vsel %vm439, %v784, 0
      %v861 = vsel %vm439, %v787, 0
      %v863 = vsel %vm439, %v789, 0
      %v865 = vsel %vm439, %v792, 0
      %v867 = vsel %vm439, %v794, 0
      %v869 = vsel %vm439, %v797, 0
      %v871 = vsel %vm439, %v799, 0
      %v873 = vsel %vm439, %v802, 0
      %v875 = vsel %vm439, %v804, 0
      %v877 = vsel %vm439, %v807, 0
      %v879 = vsel %vm439, %v809, 0
      %v881 = vsel %vm439, %v812, 0
      %v883 = vsel %vm439, %v814, 0
      %v885 = vsel %vm439, %v817, 0
      %v887 = vsel %vm439, %v819, 0
      %v889 = vsel %vm439, %v822, 0
      %v891 = vsel %vm439, %v824, 0
      %v893 = vsel %vm439, %v827, 0
      %v895 = vsel %vm439, %v829, 0
      %v897 = vsel %vm439, %v832, 0
      %v899 = vsel %vm439, %v834, 0
      %vm901 = vcmask 1043456
      %v902 = vsel %vm901, %v836, 0
      %904 = vmatprep.subr.mxu0 0.0
      %905 = vmatpush1.msra.mxu0 %v902
      %906 = vmatprep.subr.mxu0 0.0
      %907 = vmatpush1.msra.mxu0 0.0
      %908 = vmatprep.subr.mxu0 0.0
      %909 = vmatpush1.msra.mxu0 0.0
      %910 = vmatprep.subr.mxu0 0.0
      %911 = vmatpush1.msra.mxu0 0.0
      %912 = vmatprep.subr.mxu0 0.0
      %913 = vmatpush1.msra.mxu0 0.0
      %914 = vmatprep.subr.mxu0 0.0
      %915 = vmatpush1.msra.mxu0 0.0
      %916 = vmatprep.subr.mxu0 0.0
      %917 = vmatpush1.msra.mxu0 0.0
      %918 = vmatprep.subr.mxu0 0.0
      %919 = vmatpush1.msra.mxu0 0.0
      %920 = vmatprep.subr.mxu0 0.0
      %921 = vmatpush1.msra.mxu0 0.0
      %922 = vmatprep.subr.mxu0 0.0
      %923 = vmatpush1.msra.mxu0 0.0
      %924 = vmatprep.subr.mxu0 0.0
      %925 = vmatpush1.msra.mxu0 0.0
      %926 = vmatprep.subr.mxu0 0.0
      %927 = vmatpush1.msra.mxu0 0.0
      %928 = vmatprep.subr.mxu0 0.0
      %929 = vmatpush1.msra.mxu0 0.0
      %930 = vmatprep.subr.mxu0 0.0
      %931 = vmatpush1.msra.mxu0 0.0
      %932 = vmatprep.subr.mxu0 0.0
      %933 = vmatpush1.msra.mxu0 0.0
      %934 = vmatprep.subr.mxu0 0.0
      %935 = vmatpush1.msra.mxu0 0.0
      %936 = vmatprep.subr.mxu0 0.0
      %937 = vmatpush1.msra.mxu0 0.0
      %938 = vmatprep.subr.mxu0 0.0
      %939 = vmatpush1.msra.mxu0 0.0
      %940 = vmatprep.subr.mxu0 0.0
      %941 = vmatpush1.msra.mxu0 0.0
      %942 = vmatprep.subr.mxu0 0.0
      %943 = vmatpush1.msra.mxu0 0.0
      %944 = vmatprep.subr.mxu0 0.0
      %945 = vmatpush1.msra.mxu0 0.0
      %946 = vmatprep.subr.mxu0 0.0
      %947 = vmatpush1.msra.mxu0 0.0
      %948 = vmatprep.subr.mxu0 0.0
      %949 = vmatpush1.msra.mxu0 0.0
      %950 = vmatprep.subr.mxu0 0.0
      %951 = vmatpush1.msra.mxu0 0.0
      %952 = vmatprep.subr.mxu0 0.0
      %953 = vmatpush1.msra.mxu0 0.0
      %954 = vmatprep.subr.mxu0 0.0
      %955 = vmatpush1.msra.mxu0 0.0
      %956 = vmatprep.subr.mxu0 0.0
      %957 = vmatpush1.msra.mxu0 0.0
      %958 = vmatprep.subr.mxu0 0.0
      %959 = vmatpush1.msra.mxu0 0.0
      %960 = vmatprep.subr.mxu0 0.0
      %961 = vmatpush1.msra.mxu0 0.0
      %962 = vmatprep.subr.mxu0 0.0
      %963 = vmatpush1.msra.mxu0 0.0
      %964 = vmatprep.subr.mxu0 0.0
      %965 = vmatpush1.msra.mxu0 0.0
      %966 = vmatprep.subr.mxu0 0.0
      %967 = vmatpush1.msra.mxu0 0.0
      %968 = vmatprep.mubr.f32.mxu0 0.0
      %969 = vmatmul.mubr.f32.gmra.mrb[0].mxu0 %v837
      %v970 = vpop.f32.mrb[0].mxu0
      %v971 = vadd.f32 0.0, %v970
      %v972 = vpop.f32.mrb[0].mxu0
      %973 = vmatprep.mubr.f32.mxu0 0.0
      %974 = vmatmul.mubr.f32.gmra.mrb[0].mxu0 %v839
      %v975 = vpop.f32.mrb[0].mxu0
      %v976 = vadd.f32 0.0, %v975
      %v977 = vpop.f32.mrb[0].mxu0
      %978 = vmatprep.mubr.f32.mxu0 0.0
      %979 = vmatmul.mubr.f32.gmra.mrb[0].mxu0 %v841
      %v980 = vpop.f32.mrb[0].mxu0
      %v981 = vadd.f32 0.0, %v980
      %v982 = vpop.f32.mrb[0].mxu0
      %983 = vmatprep.mubr.f32.mxu0 0.0
      %984 = vmatmul.mubr.f32.gmra.mrb[0].mxu0 %v843
      %v985 = vpop.f32.mrb[0].mxu0
      %v986 = vadd.f32 0.0, %v985
      %v987 = vpop.f32.mrb[0].mxu0
      %988 = vmatprep.mubr.f32.mxu0 0.0
      %989 = vmatmul.mubr.f32.gmra.mrb[0].mxu0 %v845
      %v990 = vpop.f32.mrb[0].mxu0
      %v991 = vadd.f32 0.0, %v990
      %v992 = vpop.f32.mrb[0].mxu0
      %993 = vmatprep.mubr.f32.mxu0 0.0
      %994 = vmatmul.mubr.f32.gmra.mrb[0].mxu0 %v847
      %v995 = vpop.f32.mrb[0].mxu0
      %v996 = vadd.f32 0.0, %v995
      %v997 = vpop.f32.mrb[0].mxu0
      %998 = vmatprep.mubr.f32.mxu0 0.0
      %999 = vmatmul.mubr.f32.gmra.mrb[0].mxu0 %v849
      %v1000 = vpop.f32.mrb[0].mxu0
      %v1001 = vadd.f32 0.0, %v1000
      %v1002 = vpop.f32.mrb[0].mxu0
      %1003 = vmatprep.mubr.f32.mxu0 0.0
      %1004 = vmatmul.mubr.f32.gmra.mrb[0].mxu0 %v851
      %v1005 = vpop.f32.mrb[0].mxu0
      %v1006 = vadd.f32 0.0, %v1005
      %v1007 = vpop.f32.mrb[0].mxu0
      %1008 = vmatprep.mubr.f32.mxu0 0.0
      %1009 = vmatmul.mubr.f32.gmra.mrb[0].mxu0 %v853
      %v1010 = vpop.f32.mrb[0].mxu0
      %v1011 = vadd.f32 0.0, %v1010
      %v1012 = vpop.f32.mrb[0].mxu0
      %1013 = vmatprep.mubr.f32.mxu0 0.0
      %1014 = vmatmul.mubr.f32.gmra.mrb[0].mxu0 %v855
      %v1015 = vpop.f32.mrb[0].mxu0
      %v1016 = vadd.f32 0.0, %v1015
      %v1017 = vpop.f32.mrb[0].mxu0
      %1018 = vmatprep.mubr.f32.mxu0 0.0
      %1019 = vmatmul.mubr.f32.gmra.mrb[0].mxu0 %v857
      %v1020 = vpop.f32.mrb[0].mxu0
      %v1021 = vadd.f32 0.0, %v1020
      %v1022 = vpop.f32.mrb[0].mxu0
      %1023 = vmatprep.mubr.f32.mxu0 0.0
      %1024 = vmatmul.mubr.f32.gmra.mrb[0].mxu0 %v859
      %v1025 = vpop.f32.mrb[0].mxu0
      %v1026 = vadd.f32 0.0, %v1025
      %v1027 = vpop.f32.mrb[0].mxu0
      %1028 = vmatprep.mubr.f32.mxu0 0.0
      %1029 = vmatmul.mubr.f32.gmra.mrb[0].mxu0 %v861
      %v1030 = vpop.f32.mrb[0].mxu0
      %v1031 = vadd.f32 0.0, %v1030
      %v1032 = vpop.f32.mrb[0].mxu0
      %1033 = vmatprep.mubr.f32.mxu0 0.0
      %1034 = vmatmul.mubr.f32.gmra.mrb[0].mxu0 %v863
      %v1035 = vpop.f32.mrb[0].mxu0
      %v1036 = vadd.f32 0.0, %v1035
      %v1037 = vpop.f32.mrb[0].mxu0
      %1038 = vmatprep.mubr.f32.mxu0 0.0
      %1039 = vmatmul.mubr.f32.gmra.mrb[0].mxu0 %v865
      %v1040 = vpop.f32.mrb[0].mxu0
      %v1041 = vadd.f32 0.0, %v1040
      %v1042 = vpop.f32.mrb[0].mxu0
      %1043 = vmatprep.mubr.f32.mxu0 0.0
      %1044 = vmatmul.mubr.f32.gmra.mrb[0].mxu0 %v867
      %v1045 = vpop.f32.mrb[0].mxu0
      %v1046 = vadd.f32 0.0, %v1045
      %v1047 = vpop.f32.mrb[0].mxu0
      %1048 = vmatprep.mubr.f32.mxu0 0.0
      %1049 = vmatmul.mubr.f32.gmra.mrb[0].mxu0 %v869
      %v1050 = vpop.f32.mrb[0].mxu0
      %v1051 = vadd.f32 0.0, %v1050
      %v1052 = vpop.f32.mrb[0].mxu0
      %1053 = vmatprep.mubr.f32.mxu0 0.0
      %1054 = vmatmul.mubr.f32.gmra.mrb[0].mxu0 %v871
      %v1055 = vpop.f32.mrb[0].mxu0
      %v1056 = vadd.f32 0.0, %v1055
      %v1057 = vpop.f32.mrb[0].mxu0
      %1058 = vmatprep.mubr.f32.mxu0 0.0
      %1059 = vmatmul.mubr.f32.gmra.mrb[0].mxu0 %v873
      %v1060 = vpop.f32.mrb[0].mxu0
      %v1061 = vadd.f32 0.0, %v1060
      %v1062 = vpop.f32.mrb[0].mxu0
      %1063 = vmatprep.mubr.f32.mxu0 0.0
      %1064 = vmatmul.mubr.f32.gmra.mrb[0].mxu0 %v875
      %v1065 = vpop.f32.mrb[0].mxu0
      %v1066 = vadd.f32 0.0, %v1065
      %v1067 = vpop.f32.mrb[0].mxu0
      %1068 = vmatprep.mubr.f32.mxu0 0.0
      %1069 = vmatmul.mubr.f32.gmra.mrb[0].mxu0 %v877
      %v1070 = vpop.f32.mrb[0].mxu0
      %v1071 = vadd.f32 0.0, %v1070
      %v1072 = vpop.f32.mrb[0].mxu0
      %1073 = vmatprep.mubr.f32.mxu0 0.0
      %1074 = vmatmul.mubr.f32.gmra.mrb[0].mxu0 %v879
      %v1075 = vpop.f32.mrb[0].mxu0
      %v1076 = vadd.f32 0.0, %v1075
      %v1077 = vpop.f32.mrb[0].mxu0
      %1078 = vmatprep.mubr.f32.mxu0 0.0
      %1079 = vmatmul.mubr.f32.gmra.mrb[0].mxu0 %v881
      %v1080 = vpop.f32.mrb[0].mxu0
      %v1081 = vadd.f32 0.0, %v1080
      %v1082 = vpop.f32.mrb[0].mxu0
      %1083 = vmatprep.mubr.f32.mxu0 0.0
      %1084 = vmatmul.mubr.f32.gmra.mrb[0].mxu0 %v883
      %v1085 = vpop.f32.mrb[0].mxu0
      %v1086 = vadd.f32 0.0, %v1085
      %v1087 = vpop.f32.mrb[0].mxu0
      %1088 = vmatprep.mubr.f32.mxu0 0.0
      %1089 = vmatmul.mubr.f32.gmra.mrb[0].mxu0 %v885
      %v1090 = vpop.f32.mrb[0].mxu0
      %v1091 = vadd.f32 0.0, %v1090
      %v1092 = vpop.f32.mrb[0].mxu0
      %1093 = vmatprep.mubr.f32.mxu0 0.0
      %1094 = vmatmul.mubr.f32.gmra.mrb[0].mxu0 %v887
      %v1095 = vpop.f32.mrb[0].mxu0
      %v1096 = vadd.f32 0.0, %v1095
      %v1097 = vpop.f32.mrb[0].mxu0
      %1098 = vmatprep.mubr.f32.mxu0 0.0
      %1099 = vmatmul.mubr.f32.gmra.mrb[0].mxu0 %v889
      %v1100 = vpop.f32.mrb[0].mxu0
      %v1101 = vadd.f32 0.0, %v1100
      %v1102 = vpop.f32.mrb[0].mxu0
      %1103 = vmatprep.mubr.f32.mxu0 0.0
      %1104 = vmatmul.mubr.f32.gmra.mrb[0].mxu0 %v891
      %v1105 = vpop.f32.mrb[0].mxu0
      %v1106 = vadd.f32 0.0, %v1105
      %v1107 = vpop.f32.mrb[0].mxu0
      %1108 = vmatprep.mubr.f32.mxu0 0.0
      %1109 = vmatmul.mubr.f32.gmra.mrb[0].mxu0 %v893
      %v1110 = vpop.f32.mrb[0].mxu0
      %v1111 = vadd.f32 0.0, %v1110
      %v1112 = vpop.f32.mrb[0].mxu0
      %1113 = vmatprep.mubr.f32.mxu0 0.0
      %1114 = vmatmul.mubr.f32.gmra.mrb[0].mxu0 %v895
      %v1115 = vpop.f32.mrb[0].mxu0
      %v1116 = vadd.f32 0.0, %v1115
      %v1117 = vpop.f32.mrb[0].mxu0
      %1118 = vmatprep.mubr.f32.mxu0 0.0
      %1119 = vmatmul.mubr.f32.gmra.mrb[0].mxu0 %v897
      %v1120 = vpop.f32.mrb[0].mxu0
      %v1121 = vadd.f32 0.0, %v1120
      %v1122 = vpop.f32.mrb[0].mxu0
      %1123 = vmatprep.mubr.f32.mxu0 0.0
      %1124 = vmatmul.mubr.f32.gmra.mrb[0].mxu0 %v899
      %v1125 = vpop.f32.mrb[0].mxu0
      %v1126 = vadd.f32 0.0, %v1125
      %v1127 = vpop.f32.mrb[0].mxu0
      %1128 = vdwg.mxu0
      %v1129 = vsel %vm439, %v650, 0
      %v1131 = vsel %vm439, %v651, 0
      %v1133 = vsel %vm439, %v653, 0
      %v1135 = vsel %vm439, %v654, 0
      %v1137 = vsel %vm439, %v656, 0
      %v1139 = vsel %vm439, %v657, 0
      %v1141 = vsel %vm439, %v659, 0
      %v1143 = vsel %vm439, %v660, 0
      %v1145 = vsel %vm439, %v662, 0
      %v1147 = vsel %vm439, %v663, 0
      %v1149 = vsel %vm439, %v665, 0
      %v1151 = vsel %vm439, %v666, 0
      %v1153 = vsel %vm439, %v668, 0
      %v1155 = vsel %vm439, %v669, 0
      %v1157 = vsel %vm439, %v671, 0
      %v1159 = vsel %vm439, %v672, 0
      %v1161 = vsel %vm439, %v674, 0
      %v1163 = vsel %vm439, %v675, 0
      %v1165 = vsel %vm439, %v677, 0
      %v1167 = vsel %vm439, %v678, 0
      %v1169 = vsel %vm439, %v680, 0
      %v1171 = vsel %vm439, %v681, 0
      %v1173 = vsel %vm439, %v683, 0
      %v1175 = vsel %vm439, %v684, 0
      %v1177 = vsel %vm439, %v686, 0
      %v1179 = vsel %vm439, %v687, 0
      %v1181 = vsel %vm439, %v689, 0
      %v1183 = vsel %vm439, %v690, 0
      %v1185 = vsel %vm439, %v692, 0
      %v1187 = vsel %vm439, %v693, 0
      %v1189 = vsel %vm439, %v695, 0
      %v1191 = vsel %vm439, %v696, 0
      %v1193 = vsel %vm901, %v704, 0
      %1195 = vmatprep.subr.mxu0 0.0
      %1196 = vmatpush1.msra.mxu0 %v1193
      %1197 = vmatprep.subr.mxu0 0.0
      %1198 = vmatpush1.msra.mxu0 0.0
      %1199 = vmatprep.subr.mxu0 0.0
      %1200 = vmatpush1.msra.mxu0 0.0
      %1201 = vmatprep.subr.mxu0 0.0
      %1202 = vmatpush1.msra.mxu0 0.0
      %1203 = vmatprep.subr.mxu0 0.0
      %1204 = vmatpush1.msra.mxu0 0.0
      %1205 = vmatprep.subr.mxu0 0.0
      %1206 = vmatpush1.msra.mxu0 0.0
      %1207 = vmatprep.subr.mxu0 0.0
      %1208 = vmatpush1.msra.mxu0 0.0
      %1209 = vmatprep.subr.mxu0 0.0
      %1210 = vmatpush1.msra.mxu0 0.0
      %1211 = vmatprep.subr.mxu0 0.0
      %1212 = vmatpush1.msra.mxu0 0.0
      %1213 = vmatprep.subr.mxu0 0.0
      %1214 = vmatpush1.msra.mxu0 0.0
      %1215 = vmatprep.subr.mxu0 0.0
      %1216 = vmatpush1.msra.mxu0 0.0
      %1217 = vmatprep.subr.mxu0 0.0
      %1218 = vmatpush1.msra.mxu0 0.0
      %1219 = vmatprep.subr.mxu0 0.0
      %1220 = vmatpush1.msra.mxu0 0.0
      %1221 = vmatprep.subr.mxu0 0.0
      %1222 = vmatpush1.msra.mxu0 0.0
      %1223 = vmatprep.subr.mxu0 0.0
      %1224 = vmatpush1.msra.mxu0 0.0
      %1225 = vmatprep.subr.mxu0 0.0
      %1226 = vmatpush1.msra.mxu0 0.0
      %1227 = vmatprep.subr.mxu0 0.0
      %1228 = vmatpush1.msra.mxu0 0.0
      %1229 = vmatprep.subr.mxu0 0.0
      %1230 = vmatpush1.msra.mxu0 0.0
      %1231 = vmatprep.subr.mxu0 0.0
      %1232 = vmatpush1.msra.mxu0 0.0
      %1233 = vmatprep.subr.mxu0 0.0
      %1234 = vmatpush1.msra.mxu0 0.0
      %1235 = vmatprep.subr.mxu0 0.0
      %1236 = vmatpush1.msra.mxu0 0.0
      %1237 = vmatprep.subr.mxu0 0.0
      %1238 = vmatpush1.msra.mxu0 0.0
      %1239 = vmatprep.subr.mxu0 0.0
      %1240 = vmatpush1.msra.mxu0 0.0
      %1241 = vmatprep.subr.mxu0 0.0
      %1242 = vmatpush1.msra.mxu0 0.0
      %1243 = vmatprep.subr.mxu0 0.0
      %1244 = vmatpush1.msra.mxu0 0.0
      %1245 = vmatprep.subr.mxu0 0.0
      %1246 = vmatpush1.msra.mxu0 0.0
      %1247 = vmatprep.subr.mxu0 0.0
      %1248 = vmatpush1.msra.mxu0 0.0
      %1249 = vmatprep.subr.mxu0 0.0
      %1250 = vmatpush1.msra.mxu0 0.0
      %1251 = vmatprep.subr.mxu0 0.0
      %1252 = vmatpush1.msra.mxu0 0.0
      %1253 = vmatprep.subr.mxu0 0.0
      %1254 = vmatpush1.msra.mxu0 0.0
      %1255 = vmatprep.subr.mxu0 0.0
      %1256 = vmatpush1.msra.mxu0 0.0
      %1257 = vmatprep.subr.mxu0 0.0
      %1258 = vmatpush1.msra.mxu0 0.0
      %1259 = vmatprep.mubr.f32.mxu0 0.0
      %1260 = vmatmul.mubr.f32.gmra.mrb[0].mxu0 %v1129
      %v1261 = vpop.f32.mrb[0].mxu0
      %v1262 = vadd.f32 %v971, %v1261
      %v1263 = vpop.f32.mrb[0].mxu0
      %1264 = vmatprep.mubr.f32.mxu0 0.0
      %1265 = vmatmul.mubr.f32.gmra.mrb[0].mxu0 %v1131
      %v1266 = vpop.f32.mrb[0].mxu0
      %v1267 = vadd.f32 %v976, %v1266
      %v1268 = vpop.f32.mrb[0].mxu0
      %1269 = vmatprep.mubr.f32.mxu0 0.0
      %1270 = vmatmul.mubr.f32.gmra.mrb[0].mxu0 %v1133
      %v1271 = vpop.f32.mrb[0].mxu0
      %v1272 = vadd.f32 %v981, %v1271
      %v1273 = vpop.f32.mrb[0].mxu0
      %1274 = vmatprep.mubr.f32.mxu0 0.0
      %1275 = vmatmul.mubr.f32.gmra.mrb[0].mxu0 %v1135
      %v1276 = vpop.f32.mrb[0].mxu0
      %v1277 = vadd.f32 %v986, %v1276
      %v1278 = vpop.f32.mrb[0].mxu0
      %1279 = vmatprep.mubr.f32.mxu0 0.0
      %1280 = vmatmul.mubr.f32.gmra.mrb[0].mxu0 %v1137
      %v1281 = vpop.f32.mrb[0].mxu0
      %v1282 = vadd.f32 %v991, %v1281
      %v1283 = vpop.f32.mrb[0].mxu0
      %1284 = vmatprep.mubr.f32.mxu0 0.0
      %1285 = vmatmul.mubr.f32.gmra.mrb[0].mxu0 %v1139
      %v1286 = vpop.f32.mrb[0].mxu0
      %v1287 = vadd.f32 %v996, %v1286
      %v1288 = vpop.f32.mrb[0].mxu0
      %1289 = vmatprep.mubr.f32.mxu0 0.0
      %1290 = vmatmul.mubr.f32.gmra.mrb[0].mxu0 %v1141
      %v1291 = vpop.f32.mrb[0].mxu0
      %v1292 = vadd.f32 %v1001, %v1291
      %v1293 = vpop.f32.mrb[0].mxu0
      %1294 = vmatprep.mubr.f32.mxu0 0.0
      %1295 = vmatmul.mubr.f32.gmra.mrb[0].mxu0 %v1143
      %v1296 = vpop.f32.mrb[0].mxu0
      %v1297 = vadd.f32 %v1006, %v1296
      %v1298 = vpop.f32.mrb[0].mxu0
      %1299 = vmatprep.mubr.f32.mxu0 0.0
      %1300 = vmatmul.mubr.f32.gmra.mrb[0].mxu0 %v1145
      %v1301 = vpop.f32.mrb[0].mxu0
      %v1302 = vadd.f32 %v1011, %v1301
      %v1303 = vpop.f32.mrb[0].mxu0
      %1304 = vmatprep.mubr.f32.mxu0 0.0
      %1305 = vmatmul.mubr.f32.gmra.mrb[0].mxu0 %v1147
      %v1306 = vpop.f32.mrb[0].mxu0
      %v1307 = vadd.f32 %v1016, %v1306
      %v1308 = vpop.f32.mrb[0].mxu0
      %1309 = vmatprep.mubr.f32.mxu0 0.0
      %1310 = vmatmul.mubr.f32.gmra.mrb[0].mxu0 %v1149
      %v1311 = vpop.f32.mrb[0].mxu0
      %v1312 = vadd.f32 %v1021, %v1311
      %v1313 = vpop.f32.mrb[0].mxu0
      %1314 = vmatprep.mubr.f32.mxu0 0.0
      %1315 = vmatmul.mubr.f32.gmra.mrb[0].mxu0 %v1151
      %v1316 = vpop.f32.mrb[0].mxu0
      %v1317 = vadd.f32 %v1026, %v1316
      %v1318 = vpop.f32.mrb[0].mxu0
      %1319 = vmatprep.mubr.f32.mxu0 0.0
      %1320 = vmatmul.mubr.f32.gmra.mrb[0].mxu0 %v1153
      %v1321 = vpop.f32.mrb[0].mxu0
      %v1322 = vadd.f32 %v1031, %v1321
      %v1323 = vpop.f32.mrb[0].mxu0
      %1324 = vmatprep.mubr.f32.mxu0 0.0
      %1325 = vmatmul.mubr.f32.gmra.mrb[0].mxu0 %v1155
      %v1326 = vpop.f32.mrb[0].mxu0
      %v1327 = vadd.f32 %v1036, %v1326
      %v1328 = vpop.f32.mrb[0].mxu0
      %1329 = vmatprep.mubr.f32.mxu0 0.0
      %1330 = vmatmul.mubr.f32.gmra.mrb[0].mxu0 %v1157
      %v1331 = vpop.f32.mrb[0].mxu0
      %v1332 = vadd.f32 %v1041, %v1331
      %v1333 = vpop.f32.mrb[0].mxu0
      %1334 = vmatprep.mubr.f32.mxu0 0.0
      %1335 = vmatmul.mubr.f32.gmra.mrb[0].mxu0 %v1159
      %v1336 = vpop.f32.mrb[0].mxu0
      %v1337 = vadd.f32 %v1046, %v1336
      %v1338 = vpop.f32.mrb[0].mxu0
      %1339 = vmatprep.mubr.f32.mxu0 0.0
      %1340 = vmatmul.mubr.f32.gmra.mrb[0].mxu0 %v1161
      %v1341 = vpop.f32.mrb[0].mxu0
      %v1342 = vadd.f32 %v1051, %v1341
      %v1343 = vpop.f32.mrb[0].mxu0
      %1344 = vmatprep.mubr.f32.mxu0 0.0
      %1345 = vmatmul.mubr.f32.gmra.mrb[0].mxu0 %v1163
      %v1346 = vpop.f32.mrb[0].mxu0
      %v1347 = vadd.f32 %v1056, %v1346
      %v1348 = vpop.f32.mrb[0].mxu0
      %1349 = vmatprep.mubr.f32.mxu0 0.0
      %1350 = vmatmul.mubr.f32.gmra.mrb[0].mxu0 %v1165
      %v1351 = vpop.f32.mrb[0].mxu0
      %v1352 = vadd.f32 %v1061, %v1351
      %v1353 = vpop.f32.mrb[0].mxu0
      %1354 = vmatprep.mubr.f32.mxu0 0.0
      %1355 = vmatmul.mubr.f32.gmra.mrb[0].mxu0 %v1167
      %v1356 = vpop.f32.mrb[0].mxu0
      %v1357 = vadd.f32 %v1066, %v1356
      %v1358 = vpop.f32.mrb[0].mxu0
      %1359 = vmatprep.mubr.f32.mxu0 0.0
      %1360 = vmatmul.mubr.f32.gmra.mrb[0].mxu0 %v1169
      %v1361 = vpop.f32.mrb[0].mxu0
      %v1362 = vadd.f32 %v1071, %v1361
      %v1363 = vpop.f32.mrb[0].mxu0
      %1364 = vmatprep.mubr.f32.mxu0 0.0
      %1365 = vmatmul.mubr.f32.gmra.mrb[0].mxu0 %v1171
      %v1366 = vpop.f32.mrb[0].mxu0
      %v1367 = vadd.f32 %v1076, %v1366
      %v1368 = vpop.f32.mrb[0].mxu0
      %1369 = vmatprep.mubr.f32.mxu0 0.0
      %1370 = vmatmul.mubr.f32.gmra.mrb[0].mxu0 %v1173
      %v1371 = vpop.f32.mrb[0].mxu0
      %v1372 = vadd.f32 %v1081, %v1371
      %v1373 = vpop.f32.mrb[0].mxu0
      %1374 = vmatprep.mubr.f32.mxu0 0.0
      %1375 = vmatmul.mubr.f32.gmra.mrb[0].mxu0 %v1175
      %v1376 = vpop.f32.mrb[0].mxu0
      %v1377 = vadd.f32 %v1086, %v1376
      %v1378 = vpop.f32.mrb[0].mxu0
      %1379 = vmatprep.mubr.f32.mxu0 0.0
      %1380 = vmatmul.mubr.f32.gmra.mrb[0].mxu0 %v1177
      %v1381 = vpop.f32.mrb[0].mxu0
      %v1382 = vadd.f32 %v1091, %v1381
      %v1383 = vpop.f32.mrb[0].mxu0
      %1384 = vmatprep.mubr.f32.mxu0 0.0
      %1385 = vmatmul.mubr.f32.gmra.mrb[0].mxu0 %v1179
      %v1386 = vpop.f32.mrb[0].mxu0
      %v1387 = vadd.f32 %v1096, %v1386
      %v1388 = vpop.f32.mrb[0].mxu0
      %1389 = vmatprep.mubr.f32.mxu0 0.0
      %1390 = vmatmul.mubr.f32.gmra.mrb[0].mxu0 %v1181
      %v1391 = vpop.f32.mrb[0].mxu0
      %v1392 = vadd.f32 %v1101, %v1391
      %v1393 = vpop.f32.mrb[0].mxu0
      %1394 = vmatprep.mubr.f32.mxu0 0.0
      %1395 = vmatmul.mubr.f32.gmra.mrb[0].mxu0 %v1183
      %v1396 = vpop.f32.mrb[0].mxu0
      %v1397 = vadd.f32 %v1106, %v1396
      %v1398 = vpop.f32.mrb[0].mxu0
      %1399 = vmatprep.mubr.f32.mxu0 0.0
      %1400 = vmatmul.mubr.f32.gmra.mrb[0].mxu0 %v1185
      %v1401 = vpop.f32.mrb[0].mxu0
      %v1402 = vadd.f32 %v1111, %v1401
      %v1403 = vpop.f32.mrb[0].mxu0
      %1404 = vmatprep.mubr.f32.mxu0 0.0
      %1405 = vmatmul.mubr.f32.gmra.mrb[0].mxu0 %v1187
      %v1406 = vpop.f32.mrb[0].mxu0
      %v1407 = vadd.f32 %v1116, %v1406
      %v1408 = vpop.f32.mrb[0].mxu0
      %1409 = vmatprep.mubr.f32.mxu0 0.0
      %1410 = vmatmul.mubr.f32.gmra.mrb[0].mxu0 %v1189
      %v1411 = vpop.f32.mrb[0].mxu0
      %v1412 = vadd.f32 %v1121, %v1411
      %v1413 = vpop.f32.mrb[0].mxu0
      %1414 = vmatprep.mubr.f32.mxu0 0.0
      %1415 = vmatmul.mubr.f32.gmra.mrb[0].mxu0 %v1191
      %v1416 = vpop.f32.mrb[0].mxu0
      %v1417 = vadd.f32 %v1126, %v1416
      %v1418 = vpop.f32.mrb[0].mxu0
      %1419 = vdwg.mxu0
      %vm1420 = vcmask 1045504
      %v1421 = vrot.slane %v650, 2
      %v1422 = vrot.slane %v651, 2
      %v1423 = vsel %vm1420, %v1421, %v1422
      %v1424 = vrot.slane %v652, 2
      %v1425 = vsel %vm1420, %v1422, %v1424
      %v1426 = vrot.slane %v653, 2
      %v1427 = vrot.slane %v654, 2
      %v1428 = vsel %vm1420, %v1426, %v1427
      %v1429 = vrot.slane %v655, 2
      %v1430 = vsel %vm1420, %v1427, %v1429
      %v1431 = vrot.slane %v656, 2
      %v1432 = vrot.slane %v657, 2
      %v1433 = vsel %vm1420, %v1431, %v1432
      %v1434 = vrot.slane %v658, 2
      %v1435 = vsel %vm1420, %v1432, %v1434
      %v1436 = vrot.slane %v659, 2
      %v1437 = vrot.slane %v660, 2
      %v1438 = vsel %vm1420, %v1436, %v1437
      %v1439 = vrot.slane %v661, 2
      %v1440 = vsel %vm1420, %v1437, %v1439
      %v1441 = vrot.slane %v662, 2
      %v1442 = vrot.slane %v663, 2
      %v1443 = vsel %vm1420, %v1441, %v1442
      %v1444 = vrot.slane %v664, 2
      %v1445 = vsel %vm1420, %v1442, %v1444
      %v1446 = vrot.slane %v665, 2
      %v1447 = vrot.slane %v666, 2
      %v1448 = vsel %vm1420, %v1446, %v1447
      %v1449 = vrot.slane %v667, 2
      %v1450 = vsel %vm1420, %v1447, %v1449
      %v1451 = vrot.slane %v668, 2
      %v1452 = vrot.slane %v669, 2
      %v1453 = vsel %vm1420, %v1451, %v1452
      %v1454 = vrot.slane %v670, 2
      %v1455 = vsel %vm1420, %v1452, %v1454
      %v1456 = vrot.slane %v671, 2
      %v1457 = vrot.slane %v672, 2
      %v1458 = vsel %vm1420, %v1456, %v1457
      %v1459 = vrot.slane %v673, 2
      %v1460 = vsel %vm1420, %v1457, %v1459
      %v1461 = vrot.slane %v674, 2
      %v1462 = vrot.slane %v675, 2
      %v1463 = vsel %vm1420, %v1461, %v1462
      %v1464 = vrot.slane %v676, 2
      %v1465 = vsel %vm1420, %v1462, %v1464
      %v1466 = vrot.slane %v677, 2
      %v1467 = vrot.slane %v678, 2
      %v1468 = vsel %vm1420, %v1466, %v1467
      %v1469 = vrot.slane %v679, 2
      %v1470 = vsel %vm1420, %v1467, %v1469
      %v1471 = vrot.slane %v680, 2
      %v1472 = vrot.slane %v681, 2
      %v1473 = vsel %vm1420, %v1471, %v1472
      %v1474 = vrot.slane %v682, 2
      %v1475 = vsel %vm1420, %v1472, %v1474
      %v1476 = vrot.slane %v683, 2
      %v1477 = vrot.slane %v684, 2
      %v1478 = vsel %vm1420, %v1476, %v1477
      %v1479 = vrot.slane %v685, 2
      %v1480 = vsel %vm1420, %v1477, %v1479
      %v1481 = vrot.slane %v686, 2
      %v1482 = vrot.slane %v687, 2
      %v1483 = vsel %vm1420, %v1481, %v1482
      %v1484 = vrot.slane %v688, 2
      %v1485 = vsel %vm1420, %v1482, %v1484
      %v1486 = vrot.slane %v689, 2
      %v1487 = vrot.slane %v690, 2
      %v1488 = vsel %vm1420, %v1486, %v1487
      %v1489 = vrot.slane %v691, 2
      %v1490 = vsel %vm1420, %v1487, %v1489
      %v1491 = vrot.slane %v692, 2
      %v1492 = vrot.slane %v693, 2
      %v1493 = vsel %vm1420, %v1491, %v1492
      %v1494 = vrot.slane %v694, 2
      %v1495 = vsel %vm1420, %v1492, %v1494
      %v1496 = vrot.slane %v695, 2
      %v1497 = vrot.slane %v696, 2
      %v1498 = vsel %vm1420, %v1496, %v1497
      %v1499 = vrot.slane %v697, 2
      %v1500 = vsel %vm1420, %v1497, %v1499
      %v1501 = vsel %vm439, %v1423, 0
      %v1503 = vsel %vm439, %v1425, 0
      %v1505 = vsel %vm439, %v1428, 0
      %v1507 = vsel %vm439, %v1430, 0
      %v1509 = vsel %vm439, %v1433, 0
      %v1511 = vsel %vm439, %v1435, 0
      %v1513 = vsel %vm439, %v1438, 0
      %v1515 = vsel %vm439, %v1440, 0
      %v1517 = vsel %vm439, %v1443, 0
      %v1519 = vsel %vm439, %v1445, 0
      %v1521 = vsel %vm439, %v1448, 0
      %v1523 = vsel %vm439, %v1450, 0
      %v1525 = vsel %vm439, %v1453, 0
      %v1527 = vsel %vm439, %v1455, 0
      %v1529 = vsel %vm439, %v1458, 0
      %v1531 = vsel %vm439, %v1460, 0
      %v1533 = vsel %vm439, %v1463, 0
      %v1535 = vsel %vm439, %v1465, 0
      %v1537 = vsel %vm439, %v1468, 0
      %v1539 = vsel %vm439, %v1470, 0
      %v1541 = vsel %vm439, %v1473, 0
      %v1543 = vsel %vm439, %v1475, 0
      %v1545 = vsel %vm439, %v1478, 0
      %v1547 = vsel %vm439, %v1480, 0
      %v1549 = vsel %vm439, %v1483, 0
      %v1551 = vsel %vm439, %v1485, 0
      %v1553 = vsel %vm439, %v1488, 0
      %v1555 = vsel %vm439, %v1490, 0
      %v1557 = vsel %vm439, %v1493, 0
      %v1559 = vsel %vm439, %v1495, 0
      %v1561 = vsel %vm439, %v1498, 0
      %v1563 = vsel %vm439, %v1500, 0
      %v1566 = vsel %vm901, %v705, 0
      %1568 = vmatprep.subr.mxu0 0.0
      %1569 = vmatpush1.msra.mxu0 %v1566
      %1570 = vmatprep.subr.mxu0 0.0
      %1571 = vmatpush1.msra.mxu0 0.0
      %1572 = vmatprep.subr.mxu0 0.0
      %1573 = vmatpush1.msra.mxu0 0.0
      %1574 = vmatprep.subr.mxu0 0.0
      %1575 = vmatpush1.msra.mxu0 0.0
      %1576 = vmatprep.subr.mxu0 0.0
      %1577 = vmatpush1.msra.mxu0 0.0
      %1578 = vmatprep.subr.mxu0 0.0
      %1579 = vmatpush1.msra.mxu0 0.0
      %1580 = vmatprep.subr.mxu0 0.0
      %1581 = vmatpush1.msra.mxu0 0.0
      %1582 = vmatprep.subr.mxu0 0.0
      %1583 = vmatpush1.msra.mxu0 0.0
      %1584 = vmatprep.subr.mxu0 0.0
      %1585 = vmatpush1.msra.mxu0 0.0
      %1586 = vmatprep.subr.mxu0 0.0
      %1587 = vmatpush1.msra.mxu0 0.0
      %1588 = vmatprep.subr.mxu0 0.0
      %1589 = vmatpush1.msra.mxu0 0.0
      %1590 = vmatprep.subr.mxu0 0.0
      %1591 = vmatpush1.msra.mxu0 0.0
      %1592 = vmatprep.subr.mxu0 0.0
      %1593 = vmatpush1.msra.mxu0 0.0
      %1594 = vmatprep.subr.mxu0 0.0
      %1595 = vmatpush1.msra.mxu0 0.0
      %1596 = vmatprep.subr.mxu0 0.0
      %1597 = vmatpush1.msra.mxu0 0.0
      %1598 = vmatprep.subr.mxu0 0.0
      %1599 = vmatpush1.msra.mxu0 0.0
      %1600 = vmatprep.subr.mxu0 0.0
      %1601 = vmatpush1.msra.mxu0 0.0
      %1602 = vmatprep.subr.mxu0 0.0
      %1603 = vmatpush1.msra.mxu0 0.0
      %1604 = vmatprep.subr.mxu0 0.0
      %1605 = vmatpush1.msra.mxu0 0.0
      %1606 = vmatprep.subr.mxu0 0.0
      %1607 = vmatpush1.msra.mxu0 0.0
      %1608 = vmatprep.subr.mxu0 0.0
      %1609 = vmatpush1.msra.mxu0 0.0
      %1610 = vmatprep.subr.mxu0 0.0
      %1611 = vmatpush1.msra.mxu0 0.0
      %1612 = vmatprep.subr.mxu0 0.0
      %1613 = vmatpush1.msra.mxu0 0.0
      %1614 = vmatprep.subr.mxu0 0.0
      %1615 = vmatpush1.msra.mxu0 0.0
      %1616 = vmatprep.subr.mxu0 0.0
      %1617 = vmatpush1.msra.mxu0 0.0
      %1618 = vmatprep.subr.mxu0 0.0
      %1619 = vmatpush1.msra.mxu0 0.0
      %1620 = vmatprep.subr.mxu0 0.0
      %1621 = vmatpush1.msra.mxu0 0.0
      %1622 = vmatprep.subr.mxu0 0.0
      %1623 = vmatpush1.msra.mxu0 0.0
      %1624 = vmatprep.subr.mxu0 0.0
      %1625 = vmatpush1.msra.mxu0 0.0
      %1626 = vmatprep.subr.mxu0 0.0
      %1627 = vmatpush1.msra.mxu0 0.0
      %1628 = vmatprep.subr.mxu0 0.0
      %1629 = vmatpush1.msra.mxu0 0.0
      %1630 = vmatprep.subr.mxu0 0.0
      %1631 = vmatpush1.msra.mxu0 0.0
      %1632 = vmatprep.mubr.f32.mxu0 0.0
      %1633 = vmatmul.mubr.f32.gmra.mrb[0].mxu0 %v1501
      %v1634 = vpop.f32.mrb[0].mxu0
      %v1635 = vadd.f32 0.0, %v1634
      %v1636 = vpop.f32.mrb[0].mxu0
      %1637 = vmatprep.mubr.f32.mxu0 0.0
      %1638 = vmatmul.mubr.f32.gmra.mrb[0].mxu0 %v1503
      %v1639 = vpop.f32.mrb[0].mxu0
      %v1640 = vadd.f32 0.0, %v1639
      %v1641 = vpop.f32.mrb[0].mxu0
      %1642 = vmatprep.mubr.f32.mxu0 0.0
      %1643 = vmatmul.mubr.f32.gmra.mrb[0].mxu0 %v1505
      %v1644 = vpop.f32.mrb[0].mxu0
      %v1645 = vadd.f32 0.0, %v1644
      %v1646 = vpop.f32.mrb[0].mxu0
      %1647 = vmatprep.mubr.f32.mxu0 0.0
      %1648 = vmatmul.mubr.f32.gmra.mrb[0].mxu0 %v1507
      %v1649 = vpop.f32.mrb[0].mxu0
      %v1650 = vadd.f32 0.0, %v1649
      %v1651 = vpop.f32.mrb[0].mxu0
      %1652 = vmatprep.mubr.f32.mxu0 0.0
      %1653 = vmatmul.mubr.f32.gmra.mrb[0].mxu0 %v1509
      %v1654 = vpop.f32.mrb[0].mxu0
      %v1655 = vadd.f32 0.0, %v1654
      %v1656 = vpop.f32.mrb[0].mxu0
      %1657 = vmatprep.mubr.f32.mxu0 0.0
      %1658 = vmatmul.mubr.f32.gmra.mrb[0].mxu0 %v1511
      %v1659 = vpop.f32.mrb[0].mxu0
      %v1660 = vadd.f32 0.0, %v1659
      %v1661 = vpop.f32.mrb[0].mxu0
      %1662 = vmatprep.mubr.f32.mxu0 0.0
      %1663 = vmatmul.mubr.f32.gmra.mrb[0].mxu0 %v1513
      %v1664 = vpop.f32.mrb[0].mxu0
      %v1665 = vadd.f32 0.0, %v1664
      %v1666 = vpop.f32.mrb[0].mxu0
      %1667 = vmatprep.mubr.f32.mxu0 0.0
      %1668 = vmatmul.mubr.f32.gmra.mrb[0].mxu0 %v1515
      %v1669 = vpop.f32.mrb[0].mxu0
      %v1670 = vadd.f32 0.0, %v1669
      %v1671 = vpop.f32.mrb[0].mxu0
      %1672 = vmatprep.mubr.f32.mxu0 0.0
      %1673 = vmatmul.mubr.f32.gmra.mrb[0].mxu0 %v1517
      %v1674 = vpop.f32.mrb[0].mxu0
      %v1675 = vadd.f32 0.0, %v1674
      %v1676 = vpop.f32.mrb[0].mxu0
      %1677 = vmatprep.mubr.f32.mxu0 0.0
      %1678 = vmatmul.mubr.f32.gmra.mrb[0].mxu0 %v1519
      %v1679 = vpop.f32.mrb[0].mxu0
      %v1680 = vadd.f32 0.0, %v1679
      %v1681 = vpop.f32.mrb[0].mxu0
      %1682 = vmatprep.mubr.f32.mxu0 0.0
      %1683 = vmatmul.mubr.f32.gmra.mrb[0].mxu0 %v1521
      %v1684 = vpop.f32.mrb[0].mxu0
      %v1685 = vadd.f32 0.0, %v1684
      %v1686 = vpop.f32.mrb[0].mxu0
      %1687 = vmatprep.mubr.f32.mxu0 0.0
      %1688 = vmatmul.mubr.f32.gmra.mrb[0].mxu0 %v1523
      %v1689 = vpop.f32.mrb[0].mxu0
      %v1690 = vadd.f32 0.0, %v1689
      %v1691 = vpop.f32.mrb[0].mxu0
      %1692 = vmatprep.mubr.f32.mxu0 0.0
      %1693 = vmatmul.mubr.f32.gmra.mrb[0].mxu0 %v1525
      %v1694 = vpop.f32.mrb[0].mxu0
      %v1695 = vadd.f32 0.0, %v1694
      %v1696 = vpop.f32.mrb[0].mxu0
      %1697 = vmatprep.mubr.f32.mxu0 0.0
      %1698 = vmatmul.mubr.f32.gmra.mrb[0].mxu0 %v1527
      %v1699 = vpop.f32.mrb[0].mxu0
      %v1700 = vadd.f32 0.0, %v1699
      %v1701 = vpop.f32.mrb[0].mxu0
      %1702 = vmatprep.mubr.f32.mxu0 0.0
      %1703 = vmatmul.mubr.f32.gmra.mrb[0].mxu0 %v1529
      %v1704 = vpop.f32.mrb[0].mxu0
      %v1705 = vadd.f32 0.0, %v1704
      %v1706 = vpop.f32.mrb[0].mxu0
      %1707 = vmatprep.mubr.f32.mxu0 0.0
      %1708 = vmatmul.mubr.f32.gmra.mrb[0].mxu0 %v1531
      %v1709 = vpop.f32.mrb[0].mxu0
      %v1710 = vadd.f32 0.0, %v1709
      %v1711 = vpop.f32.mrb[0].mxu0
      %1712 = vmatprep.mubr.f32.mxu0 0.0
      %1713 = vmatmul.mubr.f32.gmra.mrb[0].mxu0 %v1533
      %v1714 = vpop.f32.mrb[0].mxu0
      %v1715 = vadd.f32 0.0, %v1714
      %v1716 = vpop.f32.mrb[0].mxu0
      %1717 = vmatprep.mubr.f32.mxu0 0.0
      %1718 = vmatmul.mubr.f32.gmra.mrb[0].mxu0 %v1535
      %v1719 = vpop.f32.mrb[0].mxu0
      %v1720 = vadd.f32 0.0, %v1719
      %v1721 = vpop.f32.mrb[0].mxu0
      %1722 = vmatprep.mubr.f32.mxu0 0.0
      %1723 = vmatmul.mubr.f32.gmra.mrb[0].mxu0 %v1537
      %v1724 = vpop.f32.mrb[0].mxu0
      %v1725 = vadd.f32 0.0, %v1724
      %v1726 = vpop.f32.mrb[0].mxu0
      %1727 = vmatprep.mubr.f32.mxu0 0.0
      %1728 = vmatmul.mubr.f32.gmra.mrb[0].mxu0 %v1539
      %v1729 = vpop.f32.mrb[0].mxu0
      %v1730 = vadd.f32 0.0, %v1729
      %v1731 = vpop.f32.mrb[0].mxu0
      %1732 = vmatprep.mubr.f32.mxu0 0.0
      %1733 = vmatmul.mubr.f32.gmra.mrb[0].mxu0 %v1541
      %v1734 = vpop.f32.mrb[0].mxu0
      %v1735 = vadd.f32 0.0, %v1734
      %v1736 = vpop.f32.mrb[0].mxu0
      %1737 = vmatprep.mubr.f32.mxu0 0.0
      %1738 = vmatmul.mubr.f32.gmra.mrb[0].mxu0 %v1543
      %v1739 = vpop.f32.mrb[0].mxu0
      %v1740 = vadd.f32 0.0, %v1739
      %v1741 = vpop.f32.mrb[0].mxu0
      %1742 = vmatprep.mubr.f32.mxu0 0.0
      %1743 = vmatmul.mubr.f32.gmra.mrb[0].mxu0 %v1545
      %v1744 = vpop.f32.mrb[0].mxu0
      %v1745 = vadd.f32 0.0, %v1744
      %v1746 = vpop.f32.mrb[0].mxu0
      %1747 = vmatprep.mubr.f32.mxu0 0.0
      %1748 = vmatmul.mubr.f32.gmra.mrb[0].mxu0 %v1547
      %v1749 = vpop.f32.mrb[0].mxu0
      %v1750 = vadd.f32 0.0, %v1749
      %v1751 = vpop.f32.mrb[0].mxu0
      %1752 = vmatprep.mubr.f32.mxu0 0.0
      %1753 = vmatmul.mubr.f32.gmra.mrb[0].mxu0 %v1549
      %v1754 = vpop.f32.mrb[0].mxu0
      %v1755 = vadd.f32 0.0, %v1754
      %v1756 = vpop.f32.mrb[0].mxu0
      %1757 = vmatprep.mubr.f32.mxu0 0.0
      %1758 = vmatmul.mubr.f32.gmra.mrb[0].mxu0 %v1551
      %v1759 = vpop.f32.mrb[0].mxu0
      %v1760 = vadd.f32 0.0, %v1759
      %v1761 = vpop.f32.mrb[0].mxu0
      %1762 = vmatprep.mubr.f32.mxu0 0.0
      %1763 = vmatmul.mubr.f32.gmra.mrb[0].mxu0 %v1553
      %v1764 = vpop.f32.mrb[0].mxu0
      %v1765 = vadd.f32 0.0, %v1764
      %v1766 = vpop.f32.mrb[0].mxu0
      %1767 = vmatprep.mubr.f32.mxu0 0.0
      %1768 = vmatmul.mubr.f32.gmra.mrb[0].mxu0 %v1555
      %v1769 = vpop.f32.mrb[0].mxu0
      %v1770 = vadd.f32 0.0, %v1769
      %v1771 = vpop.f32.mrb[0].mxu0
      %1772 = vmatprep.mubr.f32.mxu0 0.0
      %1773 = vmatmul.mubr.f32.gmra.mrb[0].mxu0 %v1557
      %v1774 = vpop.f32.mrb[0].mxu0
      %v1775 = vadd.f32 0.0, %v1774
      %v1776 = vpop.f32.mrb[0].mxu0
      %1777 = vmatprep.mubr.f32.mxu0 0.0
      %1778 = vmatmul.mubr.f32.gmra.mrb[0].mxu0 %v1559
      %v1779 = vpop.f32.mrb[0].mxu0
      %v1780 = vadd.f32 0.0, %v1779
      %v1781 = vpop.f32.mrb[0].mxu0
      %1782 = vmatprep.mubr.f32.mxu0 0.0
      %1783 = vmatmul.mubr.f32.gmra.mrb[0].mxu0 %v1561
      %v1784 = vpop.f32.mrb[0].mxu0
      %v1785 = vadd.f32 0.0, %v1784
      %v1786 = vpop.f32.mrb[0].mxu0
      %1787 = vmatprep.mubr.f32.mxu0 0.0
      %1788 = vmatmul.mubr.f32.gmra.mrb[0].mxu0 %v1563
      %v1789 = vpop.f32.mrb[0].mxu0
      %v1790 = vadd.f32 0.0, %v1789
      %v1791 = vpop.f32.mrb[0].mxu0
      %1792 = vdwg.mxu0
      %v1793 = vadd.f32 %v1262, %v1635
      %v1794 = vadd.f32 %v1267, %v1640
      %v1795 = vadd.f32 %v1272, %v1645
      %v1796 = vadd.f32 %v1277, %v1650
      %v1797 = vadd.f32 %v1282, %v1655
      %v1798 = vadd.f32 %v1287, %v1660
      %v1799 = vadd.f32 %v1292, %v1665
      %v1800 = vadd.f32 %v1297, %v1670
      %v1801 = vadd.f32 %v1302, %v1675
      %v1802 = vadd.f32 %v1307, %v1680
      %v1803 = vadd.f32 %v1312, %v1685
      %v1804 = vadd.f32 %v1317, %v1690
      %v1805 = vadd.f32 %v1322, %v1695
      %v1806 = vadd.f32 %v1327, %v1700
      %v1807 = vadd.f32 %v1332, %v1705
      %v1808 = vadd.f32 %v1337, %v1710
      %v1809 = vadd.f32 %v1342, %v1715
      %v1810 = vadd.f32 %v1347, %v1720
      %v1811 = vadd.f32 %v1352, %v1725
      %v1812 = vadd.f32 %v1357, %v1730
      %v1813 = vadd.f32 %v1362, %v1735
      %v1814 = vadd.f32 %v1367, %v1740
      %v1815 = vadd.f32 %v1372, %v1745
      %v1816 = vadd.f32 %v1377, %v1750
      %v1817 = vadd.f32 %v1382, %v1755
      %v1818 = vadd.f32 %v1387, %v1760
      %v1819 = vadd.f32 %v1392, %v1765
      %v1820 = vadd.f32 %v1397, %v1770
      %v1821 = vadd.f32 %v1402, %v1775
      %v1822 = vadd.f32 %v1407, %v1780
      %v1823 = vadd.f32 %v1412, %v1785
      %v1824 = vadd.f32 %v1417, %v1790
      %s1825 = scalar_lea.vmem %s2, 16
      %v1826 = vld [vmem:[%s1825] sm:$0xff]
      %v1827 = vld [vmem:[%s1825 + $0x8] sm:$0xf]
      %v1829 = vsel %vm439, %v698, 0
      %v1832 = vsel %vm439, %v699, 0
      %v1835 = vsel %vm901, %v1826, 0
      %1837 = vmatprep.subr.mxu0 0.0
      %1838 = vmatpush1.msra.mxu0 %v1835
      %1839 = vmatprep.subr.mxu0 0.0
      %1840 = vmatpush1.msra.mxu0 0.0
      %1841 = vmatprep.subr.mxu0 0.0
      %1842 = vmatpush1.msra.mxu0 0.0
      %1843 = vmatprep.subr.mxu0 0.0
      %1844 = vmatpush1.msra.mxu0 0.0
      %1845 = vmatprep.subr.mxu0 0.0
      %1846 = vmatpush1.msra.mxu0 0.0
      %1847 = vmatprep.subr.mxu0 0.0
      %1848 = vmatpush1.msra.mxu0 0.0
      %1849 = vmatprep.subr.mxu0 0.0
      %1850 = vmatpush1.msra.mxu0 0.0
      %1851 = vmatprep.subr.mxu0 0.0
      %1852 = vmatpush1.msra.mxu0 0.0
      %1853 = vmatprep.subr.mxu0 0.0
      %1854 = vmatpush1.msra.mxu0 0.0
      %1855 = vmatprep.subr.mxu0 0.0
      %1856 = vmatpush1.msra.mxu0 0.0
      %1857 = vmatprep.subr.mxu0 0.0
      %1858 = vmatpush1.msra.mxu0 0.0
      %1859 = vmatprep.subr.mxu0 0.0
      %1860 = vmatpush1.msra.mxu0 0.0
      %1861 = vmatprep.subr.mxu0 0.0
      %1862 = vmatpush1.msra.mxu0 0.0
      %1863 = vmatprep.subr.mxu0 0.0
      %1864 = vmatpush1.msra.mxu0 0.0
      %1865 = vmatprep.subr.mxu0 0.0
      %1866 = vmatpush1.msra.mxu0 0.0
      %1867 = vmatprep.subr.mxu0 0.0
      %1868 = vmatpush1.msra.mxu0 0.0
      %1869 = vmatprep.subr.mxu0 0.0
      %1870 = vmatpush1.msra.mxu0 0.0
      %1871 = vmatprep.subr.mxu0 0.0
      %1872 = vmatpush1.msra.mxu0 0.0
      %1873 = vmatprep.subr.mxu0 0.0
      %1874 = vmatpush1.msra.mxu0 0.0
      %1875 = vmatprep.subr.mxu0 0.0
      %1876 = vmatpush1.msra.mxu0 0.0
      %1877 = vmatprep.subr.mxu0 0.0
      %1878 = vmatpush1.msra.mxu0 0.0
      %1879 = vmatprep.subr.mxu0 0.0
      %1880 = vmatpush1.msra.mxu0 0.0
      %1881 = vmatprep.subr.mxu0 0.0
      %1882 = vmatpush1.msra.mxu0 0.0
      %1883 = vmatprep.subr.mxu0 0.0
      %1884 = vmatpush1.msra.mxu0 0.0
      %1885 = vmatprep.subr.mxu0 0.0
      %1886 = vmatpush1.msra.mxu0 0.0
      %1887 = vmatprep.subr.mxu0 0.0
      %1888 = vmatpush1.msra.mxu0 0.0
      %1889 = vmatprep.subr.mxu0 0.0
      %1890 = vmatpush1.msra.mxu0 0.0
      %1891 = vmatprep.subr.mxu0 0.0
      %1892 = vmatpush1.msra.mxu0 0.0
      %1893 = vmatprep.subr.mxu0 0.0
      %1894 = vmatpush1.msra.mxu0 0.0
      %1895 = vmatprep.subr.mxu0 0.0
      %1896 = vmatpush1.msra.mxu0 0.0
      %1897 = vmatprep.subr.mxu0 0.0
      %1898 = vmatpush1.msra.mxu0 0.0
      %1899 = vmatprep.subr.mxu0 0.0
      %1900 = vmatpush1.msra.mxu0 0.0
      %1901 = vmatprep.mubr.f32.mxu0 0.0
      %1902 = vmatmul.mubr.f32.gmra.mrb[0].mxu0 %v1133
      %v1903 = vpop.f32.mrb[0].mxu0
      %v1904 = vadd.f32 0.0, %v1903
      %v1905 = vpop.f32.mrb[0].mxu0
      %1906 = vmatprep.mubr.f32.mxu0 0.0
      %1907 = vmatmul.mubr.f32.gmra.mrb[0].mxu0 %v1135
      %v1908 = vpop.f32.mrb[0].mxu0
      %v1909 = vadd.f32 0.0, %v1908
      %v1910 = vpop.f32.mrb[0].mxu0
      %1911 = vmatprep.mubr.f32.mxu0 0.0
      %1912 = vmatmul.mubr.f32.gmra.mrb[0].mxu0 %v1137
      %v1913 = vpop.f32.mrb[0].mxu0
      %v1914 = vadd.f32 0.0, %v1913
      %v1915 = vpop.f32.mrb[0].mxu0
      %1916 = vmatprep.mubr.f32.mxu0 0.0
      %1917 = vmatmul.mubr.f32.gmra.mrb[0].mxu0 %v1139
      %v1918 = vpop.f32.mrb[0].mxu0
      %v1919 = vadd.f32 0.0, %v1918
      %v1920 = vpop.f32.mrb[0].mxu0
      %1921 = vmatprep.mubr.f32.mxu0 0.0
      %1922 = vmatmul.mubr.f32.gmra.mrb[0].mxu0 %v1141
      %v1923 = vpop.f32.mrb[0].mxu0
      %v1924 = vadd.f32 0.0, %v1923
      %v1925 = vpop.f32.mrb[0].mxu0
      %1926 = vmatprep.mubr.f32.mxu0 0.0
      %1927 = vmatmul.mubr.f32.gmra.mrb[0].mxu0 %v1143
      %v1928 = vpop.f32.mrb[0].mxu0
      %v1929 = vadd.f32 0.0, %v1928
      %v1930 = vpop.f32.mrb[0].mxu0
      %1931 = vmatprep.mubr.f32.mxu0 0.0
      %1932 = vmatmul.mubr.f32.gmra.mrb[0].mxu0 %v1145
      %v1933 = vpop.f32.mrb[0].mxu0
      %v1934 = vadd.f32 0.0, %v1933
      %v1935 = vpop.f32.mrb[0].mxu0
      %1936 = vmatprep.mubr.f32.mxu0 0.0
      %1937 = vmatmul.mubr.f32.gmra.mrb[0].mxu0 %v1147
      %v1938 = vpop.f32.mrb[0].mxu0
      %v1939 = vadd.f32 0.0, %v1938
      %v1940 = vpop.f32.mrb[0].mxu0
      %1941 = vmatprep.mubr.f32.mxu0 0.0
      %1942 = vmatmul.mubr.f32.gmra.mrb[0].mxu0 %v1149
      %v1943 = vpop.f32.mrb[0].mxu0
      %v1944 = vadd.f32 0.0, %v1943
      %v1945 = vpop.f32.mrb[0].mxu0
      %1946 = vmatprep.mubr.f32.mxu0 0.0
      %1947 = vmatmul.mubr.f32.gmra.mrb[0].mxu0 %v1151
      %v1948 = vpop.f32.mrb[0].mxu0
      %v1949 = vadd.f32 0.0, %v1948
      %v1950 = vpop.f32.mrb[0].mxu0
      %1951 = vmatprep.mubr.f32.mxu0 0.0
      %1952 = vmatmul.mubr.f32.gmra.mrb[0].mxu0 %v1153
      %v1953 = vpop.f32.mrb[0].mxu0
      %v1954 = vadd.f32 0.0, %v1953
      %v1955 = vpop.f32.mrb[0].mxu0
      %1956 = vmatprep.mubr.f32.mxu0 0.0
      %1957 = vmatmul.mubr.f32.gmra.mrb[0].mxu0 %v1155
      %v1958 = vpop.f32.mrb[0].mxu0
      %v1959 = vadd.f32 0.0, %v1958
      %v1960 = vpop.f32.mrb[0].mxu0
      %1961 = vmatprep.mubr.f32.mxu0 0.0
      %1962 = vmatmul.mubr.f32.gmra.mrb[0].mxu0 %v1157
      %v1963 = vpop.f32.mrb[0].mxu0
      %v1964 = vadd.f32 0.0, %v1963
      %v1965 = vpop.f32.mrb[0].mxu0
      %1966 = vmatprep.mubr.f32.mxu0 0.0
      %1967 = vmatmul.mubr.f32.gmra.mrb[0].mxu0 %v1159
      %v1968 = vpop.f32.mrb[0].mxu0
      %v1969 = vadd.f32 0.0, %v1968
      %v1970 = vpop.f32.mrb[0].mxu0
      %1971 = vmatprep.mubr.f32.mxu0 0.0
      %1972 = vmatmul.mubr.f32.gmra.mrb[0].mxu0 %v1161
      %v1973 = vpop.f32.mrb[0].mxu0
      %v1974 = vadd.f32 0.0, %v1973
      %v1975 = vpop.f32.mrb[0].mxu0
      %1976 = vmatprep.mubr.f32.mxu0 0.0
      %1977 = vmatmul.mubr.f32.gmra.mrb[0].mxu0 %v1163
      %v1978 = vpop.f32.mrb[0].mxu0
      %v1979 = vadd.f32 0.0, %v1978
      %v1980 = vpop.f32.mrb[0].mxu0
      %1981 = vmatprep.mubr.f32.mxu0 0.0
      %1982 = vmatmul.mubr.f32.gmra.mrb[0].mxu0 %v1165
      %v1983 = vpop.f32.mrb[0].mxu0
      %v1984 = vadd.f32 0.0, %v1983
      %v1985 = vpop.f32.mrb[0].mxu0
      %1986 = vmatprep.mubr.f32.mxu0 0.0
      %1987 = vmatmul.mubr.f32.gmra.mrb[0].mxu0 %v1167
      %v1988 = vpop.f32.mrb[0].mxu0
      %v1989 = vadd.f32 0.0, %v1988
      %v1990 = vpop.f32.mrb[0].mxu0
      %1991 = vmatprep.mubr.f32.mxu0 0.0
      %1992 = vmatmul.mubr.f32.gmra.mrb[0].mxu0 %v1169
      %v1993 = vpop.f32.mrb[0].mxu0
      %v1994 = vadd.f32 0.0, %v1993
      %v1995 = vpop.f32.mrb[0].mxu0
      %1996 = vmatprep.mubr.f32.mxu0 0.0
      %1997 = vmatmul.mubr.f32.gmra.mrb[0].mxu0 %v1171
      %v1998 = vpop.f32.mrb[0].mxu0
      %v1999 = vadd.f32 0.0, %v1998
      %v2000 = vpop.f32.mrb[0].mxu0
      %2001 = vmatprep.mubr.f32.mxu0 0.0
      %2002 = vmatmul.mubr.f32.gmra.mrb[0].mxu0 %v1173
      %v2003 = vpop.f32.mrb[0].mxu0
      %v2004 = vadd.f32 0.0, %v2003
      %v2005 = vpop.f32.mrb[0].mxu0
      %2006 = vmatprep.mubr.f32.mxu0 0.0
      %2007 = vmatmul.mubr.f32.gmra.mrb[0].mxu0 %v1175
      %v2008 = vpop.f32.mrb[0].mxu0
      %v2009 = vadd.f32 0.0, %v2008
      %v2010 = vpop.f32.mrb[0].mxu0
      %2011 = vmatprep.mubr.f32.mxu0 0.0
      %2012 = vmatmul.mubr.f32.gmra.mrb[0].mxu0 %v1177
      %v2013 = vpop.f32.mrb[0].mxu0
      %v2014 = vadd.f32 0.0, %v2013
      %v2015 = vpop.f32.mrb[0].mxu0
      %2016 = vmatprep.mubr.f32.mxu0 0.0
      %2017 = vmatmul.mubr.f32.gmra.mrb[0].mxu0 %v1179
      %v2018 = vpop.f32.mrb[0].mxu0
      %v2019 = vadd.f32 0.0, %v2018
      %v2020 = vpop.f32.mrb[0].mxu0
      %2021 = vmatprep.mubr.f32.mxu0 0.0
      %2022 = vmatmul.mubr.f32.gmra.mrb[0].mxu0 %v1181
      %v2023 = vpop.f32.mrb[0].mxu0
      %v2024 = vadd.f32 0.0, %v2023
      %v2025 = vpop.f32.mrb[0].mxu0
      %2026 = vmatprep.mubr.f32.mxu0 0.0
      %2027 = vmatmul.mubr.f32.gmra.mrb[0].mxu0 %v1183
      %v2028 = vpop.f32.mrb[0].mxu0
      %v2029 = vadd.f32 0.0, %v2028
      %v2030 = vpop.f32.mrb[0].mxu0
      %2031 = vmatprep.mubr.f32.mxu0 0.0
      %2032 = vmatmul.mubr.f32.gmra.mrb[0].mxu0 %v1185
      %v2033 = vpop.f32.mrb[0].mxu0
      %v2034 = vadd.f32 0.0, %v2033
      %v2035 = vpop.f32.mrb[0].mxu0
      %2036 = vmatprep.mubr.f32.mxu0 0.0
      %2037 = vmatmul.mubr.f32.gmra.mrb[0].mxu0 %v1187
      %v2038 = vpop.f32.mrb[0].mxu0
      %v2039 = vadd.f32 0.0, %v2038
      %v2040 = vpop.f32.mrb[0].mxu0
      %2041 = vmatprep.mubr.f32.mxu0 0.0
      %2042 = vmatmul.mubr.f32.gmra.mrb[0].mxu0 %v1189
      %v2043 = vpop.f32.mrb[0].mxu0
      %v2044 = vadd.f32 0.0, %v2043
      %v2045 = vpop.f32.mrb[0].mxu0
      %2046 = vmatprep.mubr.f32.mxu0 0.0
      %2047 = vmatmul.mubr.f32.gmra.mrb[0].mxu0 %v1191
      %v2048 = vpop.f32.mrb[0].mxu0
      %v2049 = vadd.f32 0.0, %v2048
      %v2050 = vpop.f32.mrb[0].mxu0
      %2051 = vmatprep.mubr.f32.mxu0 0.0
      %2052 = vmatmul.mubr.f32.gmra.mrb[0].mxu0 %v1829
      %v2053 = vpop.f32.mrb[0].mxu0
      %v2054 = vadd.f32 0.0, %v2053
      %v2055 = vpop.f32.mrb[0].mxu0
      %2056 = vmatprep.mubr.f32.mxu0 0.0
      %2057 = vmatmul.mubr.f32.gmra.mrb[0].mxu0 %v1832
      %v2058 = vpop.f32.mrb[0].mxu0
      %v2059 = vadd.f32 0.0, %v2058
      %v2060 = vpop.f32.mrb[0].mxu0
      %2061 = vdwg.mxu0
      %v2062 = vadd.f32 %v1793, %v1904
      %v2063 = vadd.f32 %v1794, %v1909
      %v2064 = vadd.f32 %v1795, %v1914
      %v2065 = vadd.f32 %v1796, %v1919
      %v2066 = vadd.f32 %v1797, %v1924
      %v2067 = vadd.f32 %v1798, %v1929
      %v2068 = vadd.f32 %v1799, %v1934
      %v2069 = vadd.f32 %v1800, %v1939
      %v2070 = vadd.f32 %v1801, %v1944
      %v2071 = vadd.f32 %v1802, %v1949
      %v2072 = vadd.f32 %v1803, %v1954
      %v2073 = vadd.f32 %v1804, %v1959
      %v2074 = vadd.f32 %v1805, %v1964
      %v2075 = vadd.f32 %v1806, %v1969
      %v2076 = vadd.f32 %v1807, %v1974
      %v2077 = vadd.f32 %v1808, %v1979
      %v2078 = vadd.f32 %v1809, %v1984
      %v2079 = vadd.f32 %v1810, %v1989
      %v2080 = vadd.f32 %v1811, %v1994
      %v2081 = vadd.f32 %v1812, %v1999
      %v2082 = vadd.f32 %v1813, %v2004
      %v2083 = vadd.f32 %v1814, %v2009
      %v2084 = vadd.f32 %v1815, %v2014
      %v2085 = vadd.f32 %v1816, %v2019
      %v2086 = vadd.f32 %v1817, %v2024
      %v2087 = vadd.f32 %v1818, %v2029
      %v2088 = vadd.f32 %v1819, %v2034
      %v2089 = vadd.f32 %v1820, %v2039
      %v2090 = vadd.f32 %v1821, %v2044
      %v2091 = vadd.f32 %v1822, %v2049
      %v2092 = vadd.f32 %v1823, %v2054
      %v2093 = vadd.f32 %v1824, %v2059
      %v2095 = vrot.slane %v698, 1
      %v2096 = vrot.slane %v699, 1
      %v2097 = vsel %vm754, %v2095, %v2096
      %v2098 = vrot.slane %v700, 1
      %v2099 = vsel %vm754, %v2096, %v2098
      %v2100 = vrot.slane %v1826, 4
      %v2101 = vsel %vm439, %v2097, 0
      %v2103 = vsel %vm439, %v2099, 0
      %v2105 = vsel %vm901, %v2100, 0
      %2107 = vmatprep.subr.mxu0 0.0
      %2108 = vmatpush1.msra.mxu0 %v2105
      %2109 = vmatprep.subr.mxu0 0.0
      %2110 = vmatpush1.msra.mxu0 0.0
      %2111 = vmatprep.subr.mxu0 0.0
      %2112 = vmatpush1.msra.mxu0 0.0
      %2113 = vmatprep.subr.mxu0 0.0
      %2114 = vmatpush1.msra.mxu0 0.0
      %2115 = vmatprep.subr.mxu0 0.0
      %2116 = vmatpush1.msra.mxu0 0.0
      %2117 = vmatprep.subr.mxu0 0.0
      %2118 = vmatpush1.msra.mxu0 0.0
      %2119 = vmatprep.subr.mxu0 0.0
      %2120 = vmatpush1.msra.mxu0 0.0
      %2121 = vmatprep.subr.mxu0 0.0
      %2122 = vmatpush1.msra.mxu0 0.0
      %2123 = vmatprep.subr.mxu0 0.0
      %2124 = vmatpush1.msra.mxu0 0.0
      %2125 = vmatprep.subr.mxu0 0.0
      %2126 = vmatpush1.msra.mxu0 0.0
      %2127 = vmatprep.subr.mxu0 0.0
      %2128 = vmatpush1.msra.mxu0 0.0
      %2129 = vmatprep.subr.mxu0 0.0
      %2130 = vmatpush1.msra.mxu0 0.0
      %2131 = vmatprep.subr.mxu0 0.0
      %2132 = vmatpush1.msra.mxu0 0.0
      %2133 = vmatprep.subr.mxu0 0.0
      %2134 = vmatpush1.msra.mxu0 0.0
      %2135 = vmatprep.subr.mxu0 0.0
      %2136 = vmatpush1.msra.mxu0 0.0
      %2137 = vmatprep.subr.mxu0 0.0
      %2138 = vmatpush1.msra.mxu0 0.0
      %2139 = vmatprep.subr.mxu0 0.0
      %2140 = vmatpush1.msra.mxu0 0.0
      %2141 = vmatprep.subr.mxu0 0.0
      %2142 = vmatpush1.msra.mxu0 0.0
      %2143 = vmatprep.subr.mxu0 0.0
      %2144 = vmatpush1.msra.mxu0 0.0
      %2145 = vmatprep.subr.mxu0 0.0
      %2146 = vmatpush1.msra.mxu0 0.0
      %2147 = vmatprep.subr.mxu0 0.0
      %2148 = vmatpush1.msra.mxu0 0.0
      %2149 = vmatprep.subr.mxu0 0.0
      %2150 = vmatpush1.msra.mxu0 0.0
      %2151 = vmatprep.subr.mxu0 0.0
      %2152 = vmatpush1.msra.mxu0 0.0
      %2153 = vmatprep.subr.mxu0 0.0
      %2154 = vmatpush1.msra.mxu0 0.0
      %2155 = vmatprep.subr.mxu0 0.0
      %2156 = vmatpush1.msra.mxu0 0.0
      %2157 = vmatprep.subr.mxu0 0.0
      %2158 = vmatpush1.msra.mxu0 0.0
      %2159 = vmatprep.subr.mxu0 0.0
      %2160 = vmatpush1.msra.mxu0 0.0
      %2161 = vmatprep.subr.mxu0 0.0
      %2162 = vmatpush1.msra.mxu0 0.0
      %2163 = vmatprep.subr.mxu0 0.0
      %2164 = vmatpush1.msra.mxu0 0.0
      %2165 = vmatprep.subr.mxu0 0.0
      %2166 = vmatpush1.msra.mxu0 0.0
      %2167 = vmatprep.subr.mxu0 0.0
      %2168 = vmatpush1.msra.mxu0 0.0
      %2169 = vmatprep.subr.mxu0 0.0
      %2170 = vmatpush1.msra.mxu0 0.0
      %2171 = vmatprep.mubr.f32.mxu0 0.0
      %2172 = vmatmul.mubr.f32.gmra.mrb[0].mxu0 %v841
      %v2173 = vpop.f32.mrb[0].mxu0
      %v2174 = vadd.f32 0.0, %v2173
      %v2175 = vpop.f32.mrb[0].mxu0
      %2176 = vmatprep.mubr.f32.mxu0 0.0
      %2177 = vmatmul.mubr.f32.gmra.mrb[0].mxu0 %v843
      %v2178 = vpop.f32.mrb[0].mxu0
      %v2179 = vadd.f32 0.0, %v2178
      %v2180 = vpop.f32.mrb[0].mxu0
      %2181 = vmatprep.mubr.f32.mxu0 0.0
      %2182 = vmatmul.mubr.f32.gmra.mrb[0].mxu0 %v845
      %v2183 = vpop.f32.mrb[0].mxu0
      %v2184 = vadd.f32 0.0, %v2183
      %v2185 = vpop.f32.mrb[0].mxu0
      %2186 = vmatprep.mubr.f32.mxu0 0.0
      %2187 = vmatmul.mubr.f32.gmra.mrb[0].mxu0 %v847
      %v2188 = vpop.f32.mrb[0].mxu0
      %v2189 = vadd.f32 0.0, %v2188
      %v2190 = vpop.f32.mrb[0].mxu0
      %2191 = vmatprep.mubr.f32.mxu0 0.0
      %2192 = vmatmul.mubr.f32.gmra.mrb[0].mxu0 %v849
      %v2193 = vpop.f32.mrb[0].mxu0
      %v2194 = vadd.f32 0.0, %v2193
      %v2195 = vpop.f32.mrb[0].mxu0
      %2196 = vmatprep.mubr.f32.mxu0 0.0
      %2197 = vmatmul.mubr.f32.gmra.mrb[0].mxu0 %v851
      %v2198 = vpop.f32.mrb[0].mxu0
      %v2199 = vadd.f32 0.0, %v2198
      %v2200 = vpop.f32.mrb[0].mxu0
      %2201 = vmatprep.mubr.f32.mxu0 0.0
      %2202 = vmatmul.mubr.f32.gmra.mrb[0].mxu0 %v853
      %v2203 = vpop.f32.mrb[0].mxu0
      %v2204 = vadd.f32 0.0, %v2203
      %v2205 = vpop.f32.mrb[0].mxu0
      %2206 = vmatprep.mubr.f32.mxu0 0.0
      %2207 = vmatmul.mubr.f32.gmra.mrb[0].mxu0 %v855
      %v2208 = vpop.f32.mrb[0].mxu0
      %v2209 = vadd.f32 0.0, %v2208
      %v2210 = vpop.f32.mrb[0].mxu0
      %2211 = vmatprep.mubr.f32.mxu0 0.0
      %2212 = vmatmul.mubr.f32.gmra.mrb[0].mxu0 %v857
      %v2213 = vpop.f32.mrb[0].mxu0
      %v2214 = vadd.f32 0.0, %v2213
      %v2215 = vpop.f32.mrb[0].mxu0
      %2216 = vmatprep.mubr.f32.mxu0 0.0
      %2217 = vmatmul.mubr.f32.gmra.mrb[0].mxu0 %v859
      %v2218 = vpop.f32.mrb[0].mxu0
      %v2219 = vadd.f32 0.0, %v2218
      %v2220 = vpop.f32.mrb[0].mxu0
      %2221 = vmatprep.mubr.f32.mxu0 0.0
      %2222 = vmatmul.mubr.f32.gmra.mrb[0].mxu0 %v861
      %v2223 = vpop.f32.mrb[0].mxu0
      %v2224 = vadd.f32 0.0, %v2223
      %v2225 = vpop.f32.mrb[0].mxu0
      %2226 = vmatprep.mubr.f32.mxu0 0.0
      %2227 = vmatmul.mubr.f32.gmra.mrb[0].mxu0 %v863
      %v2228 = vpop.f32.mrb[0].mxu0
      %v2229 = vadd.f32 0.0, %v2228
      %v2230 = vpop.f32.mrb[0].mxu0
      %2231 = vmatprep.mubr.f32.mxu0 0.0
      %2232 = vmatmul.mubr.f32.gmra.mrb[0].mxu0 %v865
      %v2233 = vpop.f32.mrb[0].mxu0
      %v2234 = vadd.f32 0.0, %v2233
      %v2235 = vpop.f32.mrb[0].mxu0
      %2236 = vmatprep.mubr.f32.mxu0 0.0
      %2237 = vmatmul.mubr.f32.gmra.mrb[0].mxu0 %v867
      %v2238 = vpop.f32.mrb[0].mxu0
      %v2239 = vadd.f32 0.0, %v2238
      %v2240 = vpop.f32.mrb[0].mxu0
      %2241 = vmatprep.mubr.f32.mxu0 0.0
      %2242 = vmatmul.mubr.f32.gmra.mrb[0].mxu0 %v869
      %v2243 = vpop.f32.mrb[0].mxu0
      %v2244 = vadd.f32 0.0, %v2243
      %v2245 = vpop.f32.mrb[0].mxu0
      %2246 = vmatprep.mubr.f32.mxu0 0.0
      %2247 = vmatmul.mubr.f32.gmra.mrb[0].mxu0 %v871
      %v2248 = vpop.f32.mrb[0].mxu0
      %v2249 = vadd.f32 0.0, %v2248
      %v2250 = vpop.f32.mrb[0].mxu0
      %2251 = vmatprep.mubr.f32.mxu0 0.0
      %2252 = vmatmul.mubr.f32.gmra.mrb[0].mxu0 %v873
      %v2253 = vpop.f32.mrb[0].mxu0
      %v2254 = vadd.f32 0.0, %v2253
      %v2255 = vpop.f32.mrb[0].mxu0
      %2256 = vmatprep.mubr.f32.mxu0 0.0
      %2257 = vmatmul.mubr.f32.gmra.mrb[0].mxu0 %v875
      %v2258 = vpop.f32.mrb[0].mxu0
      %v2259 = vadd.f32 0.0, %v2258
      %v2260 = vpop.f32.mrb[0].mxu0
      %2261 = vmatprep.mubr.f32.mxu0 0.0
      %2262 = vmatmul.mubr.f32.gmra.mrb[0].mxu0 %v877
      %v2263 = vpop.f32.mrb[0].mxu0
      %v2264 = vadd.f32 0.0, %v2263
      %v2265 = vpop.f32.mrb[0].mxu0
      %2266 = vmatprep.mubr.f32.mxu0 0.0
      %2267 = vmatmul.mubr.f32.gmra.mrb[0].mxu0 %v879
      %v2268 = vpop.f32.mrb[0].mxu0
      %v2269 = vadd.f32 0.0, %v2268
      %v2270 = vpop.f32.mrb[0].mxu0
      %2271 = vmatprep.mubr.f32.mxu0 0.0
      %2272 = vmatmul.mubr.f32.gmra.mrb[0].mxu0 %v881
      %v2273 = vpop.f32.mrb[0].mxu0
      %v2274 = vadd.f32 0.0, %v2273
      %v2275 = vpop.f32.mrb[0].mxu0
      %2276 = vmatprep.mubr.f32.mxu0 0.0
      %2277 = vmatmul.mubr.f32.gmra.mrb[0].mxu0 %v883
      %v2278 = vpop.f32.mrb[0].mxu0
      %v2279 = vadd.f32 0.0, %v2278
      %v2280 = vpop.f32.mrb[0].mxu0
      %2281 = vmatprep.mubr.f32.mxu0 0.0
      %2282 = vmatmul.mubr.f32.gmra.mrb[0].mxu0 %v885
      %v2283 = vpop.f32.mrb[0].mxu0
      %v2284 = vadd.f32 0.0, %v2283
      %v2285 = vpop.f32.mrb[0].mxu0
      %2286 = vmatprep.mubr.f32.mxu0 0.0
      %2287 = vmatmul.mubr.f32.gmra.mrb[0].mxu0 %v887
      %v2288 = vpop.f32.mrb[0].mxu0
      %v2289 = vadd.f32 0.0, %v2288
      %v2290 = vpop.f32.mrb[0].mxu0
      %2291 = vmatprep.mubr.f32.mxu0 0.0
      %2292 = vmatmul.mubr.f32.gmra.mrb[0].mxu0 %v889
      %v2293 = vpop.f32.mrb[0].mxu0
      %v2294 = vadd.f32 0.0, %v2293
      %v2295 = vpop.f32.mrb[0].mxu0
      %2296 = vmatprep.mubr.f32.mxu0 0.0
      %2297 = vmatmul.mubr.f32.gmra.mrb[0].mxu0 %v891
      %v2298 = vpop.f32.mrb[0].mxu0
      %v2299 = vadd.f32 0.0, %v2298
      %v2300 = vpop.f32.mrb[0].mxu0
      %2301 = vmatprep.mubr.f32.mxu0 0.0
      %2302 = vmatmul.mubr.f32.gmra.mrb[0].mxu0 %v893
      %v2303 = vpop.f32.mrb[0].mxu0
      %v2304 = vadd.f32 0.0, %v2303
      %v2305 = vpop.f32.mrb[0].mxu0
      %2306 = vmatprep.mubr.f32.mxu0 0.0
      %2307 = vmatmul.mubr.f32.gmra.mrb[0].mxu0 %v895
      %v2308 = vpop.f32.mrb[0].mxu0
      %v2309 = vadd.f32 0.0, %v2308
      %v2310 = vpop.f32.mrb[0].mxu0
      %2311 = vmatprep.mubr.f32.mxu0 0.0
      %2312 = vmatmul.mubr.f32.gmra.mrb[0].mxu0 %v897
      %v2313 = vpop.f32.mrb[0].mxu0
      %v2314 = vadd.f32 0.0, %v2313
      %v2315 = vpop.f32.mrb[0].mxu0
      %2316 = vmatprep.mubr.f32.mxu0 0.0
      %2317 = vmatmul.mubr.f32.gmra.mrb[0].mxu0 %v899
      %v2318 = vpop.f32.mrb[0].mxu0
      %v2319 = vadd.f32 0.0, %v2318
      %v2320 = vpop.f32.mrb[0].mxu0
      %2321 = vmatprep.mubr.f32.mxu0 0.0
      %2322 = vmatmul.mubr.f32.gmra.mrb[0].mxu0 %v2101
      %v2323 = vpop.f32.mrb[0].mxu0
      %v2324 = vadd.f32 0.0, %v2323
      %v2325 = vpop.f32.mrb[0].mxu0
      %2326 = vmatprep.mubr.f32.mxu0 0.0
      %2327 = vmatmul.mubr.f32.gmra.mrb[0].mxu0 %v2103
      %v2328 = vpop.f32.mrb[0].mxu0
      %v2329 = vadd.f32 0.0, %v2328
      %v2330 = vpop.f32.mrb[0].mxu0
      %2331 = vdwg.mxu0
      %v2332 = vadd.f32 %v2062, %v2174
      %v2333 = vadd.f32 %v2063, %v2179
      %v2334 = vadd.f32 %v2064, %v2184
      %v2335 = vadd.f32 %v2065, %v2189
      %v2336 = vadd.f32 %v2066, %v2194
      %v2337 = vadd.f32 %v2067, %v2199
      %v2338 = vadd.f32 %v2068, %v2204
      %v2339 = vadd.f32 %v2069, %v2209
      %v2340 = vadd.f32 %v2070, %v2214
      %v2341 = vadd.f32 %v2071, %v2219
      %v2342 = vadd.f32 %v2072, %v2224
      %v2343 = vadd.f32 %v2073, %v2229
      %v2344 = vadd.f32 %v2074, %v2234
      %v2345 = vadd.f32 %v2075, %v2239
      %v2346 = vadd.f32 %v2076, %v2244
      %v2347 = vadd.f32 %v2077, %v2249
      %v2348 = vadd.f32 %v2078, %v2254
      %v2349 = vadd.f32 %v2079, %v2259
      %v2350 = vadd.f32 %v2080, %v2264
      %v2351 = vadd.f32 %v2081, %v2269
      %v2352 = vadd.f32 %v2082, %v2274
      %v2353 = vadd.f32 %v2083, %v2279
      %v2354 = vadd.f32 %v2084, %v2284
      %v2355 = vadd.f32 %v2085, %v2289
      %v2356 = vadd.f32 %v2086, %v2294
      %v2357 = vadd.f32 %v2087, %v2299
      %v2358 = vadd.f32 %v2088, %v2304
      %v2359 = vadd.f32 %v2089, %v2309
      %v2360 = vadd.f32 %v2090, %v2314
      %v2361 = vadd.f32 %v2091, %v2319
      %v2362 = vadd.f32 %v2092, %v2324
      %v2363 = vadd.f32 %v2093, %v2329
      %v2364 = vrot.slane %v698, 2
      %v2365 = vrot.slane %v699, 2
      %v2366 = vsel %vm1420, %v2364, %v2365
      %v2367 = vrot.slane %v700, 2
      %v2368 = vsel %vm1420, %v2365, %v2367
      %v2369 = vsel %vm439, %v2366, 0
      %v2371 = vsel %vm439, %v2368, 0
      %v2374 = vsel %vm901, %v1827, 0
      %2376 = vmatprep.subr.mxu0 0.0
      %2377 = vmatpush1.msra.mxu0 %v2374
      %2378 = vmatprep.subr.mxu0 0.0
      %2379 = vmatpush1.msra.mxu0 0.0
      %2380 = vmatprep.subr.mxu0 0.0
      %2381 = vmatpush1.msra.mxu0 0.0
      %2382 = vmatprep.subr.mxu0 0.0
      %2383 = vmatpush1.msra.mxu0 0.0
      %2384 = vmatprep.subr.mxu0 0.0
      %2385 = vmatpush1.msra.mxu0 0.0
      %2386 = vmatprep.subr.mxu0 0.0
      %2387 = vmatpush1.msra.mxu0 0.0
      %2388 = vmatprep.subr.mxu0 0.0
      %2389 = vmatpush1.msra.mxu0 0.0
      %2390 = vmatprep.subr.mxu0 0.0
      %2391 = vmatpush1.msra.mxu0 0.0
      %2392 = vmatprep.subr.mxu0 0.0
      %2393 = vmatpush1.msra.mxu0 0.0
      %2394 = vmatprep.subr.mxu0 0.0
      %2395 = vmatpush1.msra.mxu0 0.0
      %2396 = vmatprep.subr.mxu0 0.0
      %2397 = vmatpush1.msra.mxu0 0.0
      %2398 = vmatprep.subr.mxu0 0.0
      %2399 = vmatpush1.msra.mxu0 0.0
      %2400 = vmatprep.subr.mxu0 0.0
      %2401 = vmatpush1.msra.mxu0 0.0
      %2402 = vmatprep.subr.mxu0 0.0
      %2403 = vmatpush1.msra.mxu0 0.0
      %2404 = vmatprep.subr.mxu0 0.0
      %2405 = vmatpush1.msra.mxu0 0.0
      %2406 = vmatprep.subr.mxu0 0.0
      %2407 = vmatpush1.msra.mxu0 0.0
      %2408 = vmatprep.subr.mxu0 0.0
      %2409 = vmatpush1.msra.mxu0 0.0
      %2410 = vmatprep.subr.mxu0 0.0
      %2411 = vmatpush1.msra.mxu0 0.0
      %2412 = vmatprep.subr.mxu0 0.0
      %2413 = vmatpush1.msra.mxu0 0.0
      %2414 = vmatprep.subr.mxu0 0.0
      %2415 = vmatpush1.msra.mxu0 0.0
      %2416 = vmatprep.subr.mxu0 0.0
      %2417 = vmatpush1.msra.mxu0 0.0
      %2418 = vmatprep.subr.mxu0 0.0
      %2419 = vmatpush1.msra.mxu0 0.0
      %2420 = vmatprep.subr.mxu0 0.0
      %2421 = vmatpush1.msra.mxu0 0.0
      %2422 = vmatprep.subr.mxu0 0.0
      %2423 = vmatpush1.msra.mxu0 0.0
      %2424 = vmatprep.subr.mxu0 0.0
      %2425 = vmatpush1.msra.mxu0 0.0
      %2426 = vmatprep.subr.mxu0 0.0
      %2427 = vmatpush1.msra.mxu0 0.0
      %2428 = vmatprep.subr.mxu0 0.0
      %2429 = vmatpush1.msra.mxu0 0.0
      %2430 = vmatprep.subr.mxu0 0.0
      %2431 = vmatpush1.msra.mxu0 0.0
      %2432 = vmatprep.subr.mxu0 0.0
      %2433 = vmatpush1.msra.mxu0 0.0
      %2434 = vmatprep.subr.mxu0 0.0
      %2435 = vmatpush1.msra.mxu0 0.0
      %2436 = vmatprep.subr.mxu0 0.0
      %2437 = vmatpush1.msra.mxu0 0.0
      %2438 = vmatprep.subr.mxu0 0.0
      %2439 = vmatpush1.msra.mxu0 0.0
      %2440 = vmatprep.mubr.f32.mxu0 0.0
      %2441 = vmatmul.mubr.f32.gmra.mrb[0].mxu0 %v1505
      %v2442 = vpop.f32.mrb[0].mxu0
      %v2443 = vadd.f32 0.0, %v2442
      %v2444 = vpop.f32.mrb[0].mxu0
      %2445 = vmatprep.mubr.f32.mxu0 0.0
      %2446 = vmatmul.mubr.f32.gmra.mrb[0].mxu0 %v1507
      %v2447 = vpop.f32.mrb[0].mxu0
      %v2448 = vadd.f32 0.0, %v2447
      %v2449 = vpop.f32.mrb[0].mxu0
      %2450 = vmatprep.mubr.f32.mxu0 0.0
      %2451 = vmatmul.mubr.f32.gmra.mrb[0].mxu0 %v1509
      %v2452 = vpop.f32.mrb[0].mxu0
      %v2453 = vadd.f32 0.0, %v2452
      %v2454 = vpop.f32.mrb[0].mxu0
      %2455 = vmatprep.mubr.f32.mxu0 0.0
      %2456 = vmatmul.mubr.f32.gmra.mrb[0].mxu0 %v1511
      %v2457 = vpop.f32.mrb[0].mxu0
      %v2458 = vadd.f32 0.0, %v2457
      %v2459 = vpop.f32.mrb[0].mxu0
      %2460 = vmatprep.mubr.f32.mxu0 0.0
      %2461 = vmatmul.mubr.f32.gmra.mrb[0].mxu0 %v1513
      %v2462 = vpop.f32.mrb[0].mxu0
      %v2463 = vadd.f32 0.0, %v2462
      %v2464 = vpop.f32.mrb[0].mxu0
      %2465 = vmatprep.mubr.f32.mxu0 0.0
      %2466 = vmatmul.mubr.f32.gmra.mrb[0].mxu0 %v1515
      %v2467 = vpop.f32.mrb[0].mxu0
      %v2468 = vadd.f32 0.0, %v2467
      %v2469 = vpop.f32.mrb[0].mxu0
      %2470 = vmatprep.mubr.f32.mxu0 0.0
      %2471 = vmatmul.mubr.f32.gmra.mrb[0].mxu0 %v1517
      %v2472 = vpop.f32.mrb[0].mxu0
      %v2473 = vadd.f32 0.0, %v2472
      %v2474 = vpop.f32.mrb[0].mxu0
      %2475 = vmatprep.mubr.f32.mxu0 0.0
      %2476 = vmatmul.mubr.f32.gmra.mrb[0].mxu0 %v1519
      %v2477 = vpop.f32.mrb[0].mxu0
      %v2478 = vadd.f32 0.0, %v2477
      %v2479 = vpop.f32.mrb[0].mxu0
      %2480 = vmatprep.mubr.f32.mxu0 0.0
      %2481 = vmatmul.mubr.f32.gmra.mrb[0].mxu0 %v1521
      %v2482 = vpop.f32.mrb[0].mxu0
      %v2483 = vadd.f32 0.0, %v2482
      %v2484 = vpop.f32.mrb[0].mxu0
      %2485 = vmatprep.mubr.f32.mxu0 0.0
      %2486 = vmatmul.mubr.f32.gmra.mrb[0].mxu0 %v1523
      %v2487 = vpop.f32.mrb[0].mxu0
      %v2488 = vadd.f32 0.0, %v2487
      %v2489 = vpop.f32.mrb[0].mxu0
      %2490 = vmatprep.mubr.f32.mxu0 0.0
      %2491 = vmatmul.mubr.f32.gmra.mrb[0].mxu0 %v1525
      %v2492 = vpop.f32.mrb[0].mxu0
      %v2493 = vadd.f32 0.0, %v2492
      %v2494 = vpop.f32.mrb[0].mxu0
      %2495 = vmatprep.mubr.f32.mxu0 0.0
      %2496 = vmatmul.mubr.f32.gmra.mrb[0].mxu0 %v1527
      %v2497 = vpop.f32.mrb[0].mxu0
      %v2498 = vadd.f32 0.0, %v2497
      %v2499 = vpop.f32.mrb[0].mxu0
      %2500 = vmatprep.mubr.f32.mxu0 0.0
      %2501 = vmatmul.mubr.f32.gmra.mrb[0].mxu0 %v1529
      %v2502 = vpop.f32.mrb[0].mxu0
      %v2503 = vadd.f32 0.0, %v2502
      %v2504 = vpop.f32.mrb[0].mxu0
      %2505 = vmatprep.mubr.f32.mxu0 0.0
      %2506 = vmatmul.mubr.f32.gmra.mrb[0].mxu0 %v1531
      %v2507 = vpop.f32.mrb[0].mxu0
      %v2508 = vadd.f32 0.0, %v2507
      %v2509 = vpop.f32.mrb[0].mxu0
      %2510 = vmatprep.mubr.f32.mxu0 0.0
      %2511 = vmatmul.mubr.f32.gmra.mrb[0].mxu0 %v1533
      %v2512 = vpop.f32.mrb[0].mxu0
      %v2513 = vadd.f32 0.0, %v2512
      %v2514 = vpop.f32.mrb[0].mxu0
      %2515 = vmatprep.mubr.f32.mxu0 0.0
      %2516 = vmatmul.mubr.f32.gmra.mrb[0].mxu0 %v1535
      %v2517 = vpop.f32.mrb[0].mxu0
      %v2518 = vadd.f32 0.0, %v2517
      %v2519 = vpop.f32.mrb[0].mxu0
      %2520 = vmatprep.mubr.f32.mxu0 0.0
      %2521 = vmatmul.mubr.f32.gmra.mrb[0].mxu0 %v1537
      %v2522 = vpop.f32.mrb[0].mxu0
      %v2523 = vadd.f32 0.0, %v2522
      %v2524 = vpop.f32.mrb[0].mxu0
      %2525 = vmatprep.mubr.f32.mxu0 0.0
      %2526 = vmatmul.mubr.f32.gmra.mrb[0].mxu0 %v1539
      %v2527 = vpop.f32.mrb[0].mxu0
      %v2528 = vadd.f32 0.0, %v2527
      %v2529 = vpop.f32.mrb[0].mxu0
      %2530 = vmatprep.mubr.f32.mxu0 0.0
      %2531 = vmatmul.mubr.f32.gmra.mrb[0].mxu0 %v1541
      %v2532 = vpop.f32.mrb[0].mxu0
      %v2533 = vadd.f32 0.0, %v2532
      %v2534 = vpop.f32.mrb[0].mxu0
      %2535 = vmatprep.mubr.f32.mxu0 0.0
      %2536 = vmatmul.mubr.f32.gmra.mrb[0].mxu0 %v1543
      %v2537 = vpop.f32.mrb[0].mxu0
      %v2538 = vadd.f32 0.0, %v2537
      %v2539 = vpop.f32.mrb[0].mxu0
      %2540 = vmatprep.mubr.f32.mxu0 0.0
      %2541 = vmatmul.mubr.f32.gmra.mrb[0].mxu0 %v1545
      %v2542 = vpop.f32.mrb[0].mxu0
      %v2543 = vadd.f32 0.0, %v2542
      %v2544 = vpop.f32.mrb[0].mxu0
      %2545 = vmatprep.mubr.f32.mxu0 0.0
      %2546 = vmatmul.mubr.f32.gmra.mrb[0].mxu0 %v1547
      %v2547 = vpop.f32.mrb[0].mxu0
      %v2548 = vadd.f32 0.0, %v2547
      %v2549 = vpop.f32.mrb[0].mxu0
      %2550 = vmatprep.mubr.f32.mxu0 0.0
      %2551 = vmatmul.mubr.f32.gmra.mrb[0].mxu0 %v1549
      %v2552 = vpop.f32.mrb[0].mxu0
      %v2553 = vadd.f32 0.0, %v2552
      %v2554 = vpop.f32.mrb[0].mxu0
      %2555 = vmatprep.mubr.f32.mxu0 0.0
      %2556 = vmatmul.mubr.f32.gmra.mrb[0].mxu0 %v1551
      %v2557 = vpop.f32.mrb[0].mxu0
      %v2558 = vadd.f32 0.0, %v2557
      %v2559 = vpop.f32.mrb[0].mxu0
      %2560 = vmatprep.mubr.f32.mxu0 0.0
      %2561 = vmatmul.mubr.f32.gmra.mrb[0].mxu0 %v1553
      %v2562 = vpop.f32.mrb[0].mxu0
      %v2563 = vadd.f32 0.0, %v2562
      %v2564 = vpop.f32.mrb[0].mxu0
      %2565 = vmatprep.mubr.f32.mxu0 0.0
      %2566 = vmatmul.mubr.f32.gmra.mrb[0].mxu0 %v1555
      %v2567 = vpop.f32.mrb[0].mxu0
      %v2568 = vadd.f32 0.0, %v2567
      %v2569 = vpop.f32.mrb[0].mxu0
      %2570 = vmatprep.mubr.f32.mxu0 0.0
      %2571 = vmatmul.mubr.f32.gmra.mrb[0].mxu0 %v1557
      %v2572 = vpop.f32.mrb[0].mxu0
      %v2573 = vadd.f32 0.0, %v2572
      %v2574 = vpop.f32.mrb[0].mxu0
      %2575 = vmatprep.mubr.f32.mxu0 0.0
      %2576 = vmatmul.mubr.f32.gmra.mrb[0].mxu0 %v1559
      %v2577 = vpop.f32.mrb[0].mxu0
      %v2578 = vadd.f32 0.0, %v2577
      %v2579 = vpop.f32.mrb[0].mxu0
      %2580 = vmatprep.mubr.f32.mxu0 0.0
      %2581 = vmatmul.mubr.f32.gmra.mrb[0].mxu0 %v1561
      %v2582 = vpop.f32.mrb[0].mxu0
      %v2583 = vadd.f32 0.0, %v2582
      %v2584 = vpop.f32.mrb[0].mxu0
      %2585 = vmatprep.mubr.f32.mxu0 0.0
      %2586 = vmatmul.mubr.f32.gmra.mrb[0].mxu0 %v1563
      %v2587 = vpop.f32.mrb[0].mxu0
      %v2588 = vadd.f32 0.0, %v2587
      %v2589 = vpop.f32.mrb[0].mxu0
      %2590 = vmatprep.mubr.f32.mxu0 0.0
      %2591 = vmatmul.mubr.f32.gmra.mrb[0].mxu0 %v2369
      %v2592 = vpop.f32.mrb[0].mxu0
      %v2593 = vadd.f32 0.0, %v2592
      %v2594 = vpop.f32.mrb[0].mxu0
      %2595 = vmatprep.mubr.f32.mxu0 0.0
      %2596 = vmatmul.mubr.f32.gmra.mrb[0].mxu0 %v2371
      %v2597 = vpop.f32.mrb[0].mxu0
      %v2598 = vadd.f32 0.0, %v2597
      %v2599 = vpop.f32.mrb[0].mxu0
      %2600 = vdwg.mxu0
      %v2601 = vadd.f32 %v2332, %v2443
      %v2602 = vadd.f32 %v2333, %v2448
      %v2603 = vadd.f32 %v2334, %v2453
      %v2604 = vadd.f32 %v2335, %v2458
      %v2605 = vadd.f32 %v2336, %v2463
      %v2606 = vadd.f32 %v2337, %v2468
      %v2607 = vadd.f32 %v2338, %v2473
      %v2608 = vadd.f32 %v2339, %v2478
      %v2609 = vadd.f32 %v2340, %v2483
      %v2610 = vadd.f32 %v2341, %v2488
      %v2611 = vadd.f32 %v2342, %v2493
      %v2612 = vadd.f32 %v2343, %v2498
      %v2613 = vadd.f32 %v2344, %v2503
      %v2614 = vadd.f32 %v2345, %v2508
      %v2615 = vadd.f32 %v2346, %v2513
      %v2616 = vadd.f32 %v2347, %v2518
      %v2617 = vadd.f32 %v2348, %v2523
      %v2618 = vadd.f32 %v2349, %v2528
      %v2619 = vadd.f32 %v2350, %v2533
      %v2620 = vadd.f32 %v2351, %v2538
      %v2621 = vadd.f32 %v2352, %v2543
      %v2622 = vadd.f32 %v2353, %v2548
      %v2623 = vadd.f32 %v2354, %v2553
      %v2624 = vadd.f32 %v2355, %v2558
      %v2625 = vadd.f32 %v2356, %v2563
      %v2626 = vadd.f32 %v2357, %v2568
      %v2627 = vadd.f32 %v2358, %v2573
      %v2628 = vadd.f32 %v2359, %v2578
      %v2629 = vadd.f32 %v2360, %v2583
      %v2630 = vadd.f32 %v2361, %v2588
      %v2631 = vadd.f32 %v2362, %v2593
      %v2632 = vadd.f32 %v2363, %v2598
      %s2633 = scalar_lea.vmem %s2, 32
      %v2634 = vld [vmem:[%s2633] sm:$0xff]
      %v2635 = vld [vmem:[%s2633 + $0x8] sm:$0xf]
      %v2637 = vsel %vm439, %v701, 0
      %v2640 = vsel %vm439, %v702, 0
      %v2643 = vsel %vm901, %v2634, 0
      %2645 = vmatprep.subr.mxu0 0.0
      %2646 = vmatpush1.msra.mxu0 %v2643
      %2647 = vmatprep.subr.mxu0 0.0
      %2648 = vmatpush1.msra.mxu0 0.0
      %2649 = vmatprep.subr.mxu0 0.0
      %2650 = vmatpush1.msra.mxu0 0.0
      %2651 = vmatprep.subr.mxu0 0.0
      %2652 = vmatpush1.msra.mxu0 0.0
      %2653 = vmatprep.subr.mxu0 0.0
      %2654 = vmatpush1.msra.mxu0 0.0
      %2655 = vmatprep.subr.mxu0 0.0
      %2656 = vmatpush1.msra.mxu0 0.0
      %2657 = vmatprep.subr.mxu0 0.0
      %2658 = vmatpush1.msra.mxu0 0.0
      %2659 = vmatprep.subr.mxu0 0.0
      %2660 = vmatpush1.msra.mxu0 0.0
      %2661 = vmatprep.subr.mxu0 0.0
      %2662 = vmatpush1.msra.mxu0 0.0
      %2663 = vmatprep.subr.mxu0 0.0
      %2664 = vmatpush1.msra.mxu0 0.0
      %2665 = vmatprep.subr.mxu0 0.0
      %2666 = vmatpush1.msra.mxu0 0.0
      %2667 = vmatprep.subr.mxu0 0.0
      %2668 = vmatpush1.msra.mxu0 0.0
      %2669 = vmatprep.subr.mxu0 0.0
      %2670 = vmatpush1.msra.mxu0 0.0
      %2671 = vmatprep.subr.mxu0 0.0
      %2672 = vmatpush1.msra.mxu0 0.0
      %2673 = vmatprep.subr.mxu0 0.0
      %2674 = vmatpush1.msra.mxu0 0.0
      %2675 = vmatprep.subr.mxu0 0.0
      %2676 = vmatpush1.msra.mxu0 0.0
      %2677 = vmatprep.subr.mxu0 0.0
      %2678 = vmatpush1.msra.mxu0 0.0
      %2679 = vmatprep.subr.mxu0 0.0
      %2680 = vmatpush1.msra.mxu0 0.0
      %2681 = vmatprep.subr.mxu0 0.0
      %2682 = vmatpush1.msra.mxu0 0.0
      %2683 = vmatprep.subr.mxu0 0.0
      %2684 = vmatpush1.msra.mxu0 0.0
      %2685 = vmatprep.subr.mxu0 0.0
      %2686 = vmatpush1.msra.mxu0 0.0
      %2687 = vmatprep.subr.mxu0 0.0
      %2688 = vmatpush1.msra.mxu0 0.0
      %2689 = vmatprep.subr.mxu0 0.0
      %2690 = vmatpush1.msra.mxu0 0.0
      %2691 = vmatprep.subr.mxu0 0.0
      %2692 = vmatpush1.msra.mxu0 0.0
      %2693 = vmatprep.subr.mxu0 0.0
      %2694 = vmatpush1.msra.mxu0 0.0
      %2695 = vmatprep.subr.mxu0 0.0
      %2696 = vmatpush1.msra.mxu0 0.0
      %2697 = vmatprep.subr.mxu0 0.0
      %2698 = vmatpush1.msra.mxu0 0.0
      %2699 = vmatprep.subr.mxu0 0.0
      %2700 = vmatpush1.msra.mxu0 0.0
      %2701 = vmatprep.subr.mxu0 0.0
      %2702 = vmatpush1.msra.mxu0 0.0
      %2703 = vmatprep.subr.mxu0 0.0
      %2704 = vmatpush1.msra.mxu0 0.0
      %2705 = vmatprep.subr.mxu0 0.0
      %2706 = vmatpush1.msra.mxu0 0.0
      %2707 = vmatprep.subr.mxu0 0.0
      %2708 = vmatpush1.msra.mxu0 0.0
      %2709 = vmatprep.mubr.f32.mxu0 0.0
      %2710 = vmatmul.mubr.f32.gmra.mrb[0].mxu0 %v1137
      %v2711 = vpop.f32.mrb[0].mxu0
      %v2712 = vadd.f32 0.0, %v2711
      %v2713 = vpop.f32.mrb[0].mxu0
      %2714 = vmatprep.mubr.f32.mxu0 0.0
      %2715 = vmatmul.mubr.f32.gmra.mrb[0].mxu0 %v1139
      %v2716 = vpop.f32.mrb[0].mxu0
      %v2717 = vadd.f32 0.0, %v2716
      %v2718 = vpop.f32.mrb[0].mxu0
      %2719 = vmatprep.mubr.f32.mxu0 0.0
      %2720 = vmatmul.mubr.f32.gmra.mrb[0].mxu0 %v1141
      %v2721 = vpop.f32.mrb[0].mxu0
      %v2722 = vadd.f32 0.0, %v2721
      %v2723 = vpop.f32.mrb[0].mxu0
      %2724 = vmatprep.mubr.f32.mxu0 0.0
      %2725 = vmatmul.mubr.f32.gmra.mrb[0].mxu0 %v1143
      %v2726 = vpop.f32.mrb[0].mxu0
      %v2727 = vadd.f32 0.0, %v2726
      %v2728 = vpop.f32.mrb[0].mxu0
      %2729 = vmatprep.mubr.f32.mxu0 0.0
      %2730 = vmatmul.mubr.f32.gmra.mrb[0].mxu0 %v1145
      %v2731 = vpop.f32.mrb[0].mxu0
      %v2732 = vadd.f32 0.0, %v2731
      %v2733 = vpop.f32.mrb[0].mxu0
      %2734 = vmatprep.mubr.f32.mxu0 0.0
      %2735 = vmatmul.mubr.f32.gmra.mrb[0].mxu0 %v1147
      %v2736 = vpop.f32.mrb[0].mxu0
      %v2737 = vadd.f32 0.0, %v2736
      %v2738 = vpop.f32.mrb[0].mxu0
      %2739 = vmatprep.mubr.f32.mxu0 0.0
      %2740 = vmatmul.mubr.f32.gmra.mrb[0].mxu0 %v1149
      %v2741 = vpop.f32.mrb[0].mxu0
      %v2742 = vadd.f32 0.0, %v2741
      %v2743 = vpop.f32.mrb[0].mxu0
      %2744 = vmatprep.mubr.f32.mxu0 0.0
      %2745 = vmatmul.mubr.f32.gmra.mrb[0].mxu0 %v1151
      %v2746 = vpop.f32.mrb[0].mxu0
      %v2747 = vadd.f32 0.0, %v2746
      %v2748 = vpop.f32.mrb[0].mxu0
      %2749 = vmatprep.mubr.f32.mxu0 0.0
      %2750 = vmatmul.mubr.f32.gmra.mrb[0].mxu0 %v1153
      %v2751 = vpop.f32.mrb[0].mxu0
      %v2752 = vadd.f32 0.0, %v2751
      %v2753 = vpop.f32.mrb[0].mxu0
      %2754 = vmatprep.mubr.f32.mxu0 0.0
      %2755 = vmatmul.mubr.f32.gmra.mrb[0].mxu0 %v1155
      %v2756 = vpop.f32.mrb[0].mxu0
      %v2757 = vadd.f32 0.0, %v2756
      %v2758 = vpop.f32.mrb[0].mxu0
      %2759 = vmatprep.mubr.f32.mxu0 0.0
      %2760 = vmatmul.mubr.f32.gmra.mrb[0].mxu0 %v1157
      %v2761 = vpop.f32.mrb[0].mxu0
      %v2762 = vadd.f32 0.0, %v2761
      %v2763 = vpop.f32.mrb[0].mxu0
      %2764 = vmatprep.mubr.f32.mxu0 0.0
      %2765 = vmatmul.mubr.f32.gmra.mrb[0].mxu0 %v1159
      %v2766 = vpop.f32.mrb[0].mxu0
      %v2767 = vadd.f32 0.0, %v2766
      %v2768 = vpop.f32.mrb[0].mxu0
      %2769 = vmatprep.mubr.f32.mxu0 0.0
      %2770 = vmatmul.mubr.f32.gmra.mrb[0].mxu0 %v1161
      %v2771 = vpop.f32.mrb[0].mxu0
      %v2772 = vadd.f32 0.0, %v2771
      %v2773 = vpop.f32.mrb[0].mxu0
      %2774 = vmatprep.mubr.f32.mxu0 0.0
      %2775 = vmatmul.mubr.f32.gmra.mrb[0].mxu0 %v1163
      %v2776 = vpop.f32.mrb[0].mxu0
      %v2777 = vadd.f32 0.0, %v2776
      %v2778 = vpop.f32.mrb[0].mxu0
      %2779 = vmatprep.mubr.f32.mxu0 0.0
      %2780 = vmatmul.mubr.f32.gmra.mrb[0].mxu0 %v1165
      %v2781 = vpop.f32.mrb[0].mxu0
      %v2782 = vadd.f32 0.0, %v2781
      %v2783 = vpop.f32.mrb[0].mxu0
      %2784 = vmatprep.mubr.f32.mxu0 0.0
      %2785 = vmatmul.mubr.f32.gmra.mrb[0].mxu0 %v1167
      %v2786 = vpop.f32.mrb[0].mxu0
      %v2787 = vadd.f32 0.0, %v2786
      %v2788 = vpop.f32.mrb[0].mxu0
      %2789 = vmatprep.mubr.f32.mxu0 0.0
      %2790 = vmatmul.mubr.f32.gmra.mrb[0].mxu0 %v1169
      %v2791 = vpop.f32.mrb[0].mxu0
      %v2792 = vadd.f32 0.0, %v2791
      %v2793 = vpop.f32.mrb[0].mxu0
      %2794 = vmatprep.mubr.f32.mxu0 0.0
      %2795 = vmatmul.mubr.f32.gmra.mrb[0].mxu0 %v1171
      %v2796 = vpop.f32.mrb[0].mxu0
      %v2797 = vadd.f32 0.0, %v2796
      %v2798 = vpop.f32.mrb[0].mxu0
      %2799 = vmatprep.mubr.f32.mxu0 0.0
      %2800 = vmatmul.mubr.f32.gmra.mrb[0].mxu0 %v1173
      %v2801 = vpop.f32.mrb[0].mxu0
      %v2802 = vadd.f32 0.0, %v2801
      %v2803 = vpop.f32.mrb[0].mxu0
      %2804 = vmatprep.mubr.f32.mxu0 0.0
      %2805 = vmatmul.mubr.f32.gmra.mrb[0].mxu0 %v1175
      %v2806 = vpop.f32.mrb[0].mxu0
      %v2807 = vadd.f32 0.0, %v2806
      %v2808 = vpop.f32.mrb[0].mxu0
      %2809 = vmatprep.mubr.f32.mxu0 0.0
      %2810 = vmatmul.mubr.f32.gmra.mrb[0].mxu0 %v1177
      %v2811 = vpop.f32.mrb[0].mxu0
      %v2812 = vadd.f32 0.0, %v2811
      %v2813 = vpop.f32.mrb[0].mxu0
      %2814 = vmatprep.mubr.f32.mxu0 0.0
      %2815 = vmatmul.mubr.f32.gmra.mrb[0].mxu0 %v1179
      %v2816 = vpop.f32.mrb[0].mxu0
      %v2817 = vadd.f32 0.0, %v2816
      %v2818 = vpop.f32.mrb[0].mxu0
      %2819 = vmatprep.mubr.f32.mxu0 0.0
      %2820 = vmatmul.mubr.f32.gmra.mrb[0].mxu0 %v1181
      %v2821 = vpop.f32.mrb[0].mxu0
      %v2822 = vadd.f32 0.0, %v2821
      %v2823 = vpop.f32.mrb[0].mxu0
      %2824 = vmatprep.mubr.f32.mxu0 0.0
      %2825 = vmatmul.mubr.f32.gmra.mrb[0].mxu0 %v1183
      %v2826 = vpop.f32.mrb[0].mxu0
      %v2827 = vadd.f32 0.0, %v2826
      %v2828 = vpop.f32.mrb[0].mxu0
      %2829 = vmatprep.mubr.f32.mxu0 0.0
      %2830 = vmatmul.mubr.f32.gmra.mrb[0].mxu0 %v1185
      %v2831 = vpop.f32.mrb[0].mxu0
      %v2832 = vadd.f32 0.0, %v2831
      %v2833 = vpop.f32.mrb[0].mxu0
      %2834 = vmatprep.mubr.f32.mxu0 0.0
      %2835 = vmatmul.mubr.f32.gmra.mrb[0].mxu0 %v1187
      %v2836 = vpop.f32.mrb[0].mxu0
      %v2837 = vadd.f32 0.0, %v2836
      %v2838 = vpop.f32.mrb[0].mxu0
      %2839 = vmatprep.mubr.f32.mxu0 0.0
      %2840 = vmatmul.mubr.f32.gmra.mrb[0].mxu0 %v1189
      %v2841 = vpop.f32.mrb[0].mxu0
      %v2842 = vadd.f32 0.0, %v2841
      %v2843 = vpop.f32.mrb[0].mxu0
      %2844 = vmatprep.mubr.f32.mxu0 0.0
      %2845 = vmatmul.mubr.f32.gmra.mrb[0].mxu0 %v1191
      %v2846 = vpop.f32.mrb[0].mxu0
      %v2847 = vadd.f32 0.0, %v2846
      %v2848 = vpop.f32.mrb[0].mxu0
      %2849 = vmatprep.mubr.f32.mxu0 0.0
      %2850 = vmatmul.mubr.f32.gmra.mrb[0].mxu0 %v1829
      %v2851 = vpop.f32.mrb[0].mxu0
      %v2852 = vadd.f32 0.0, %v2851
      %v2853 = vpop.f32.mrb[0].mxu0
      %2854 = vmatprep.mubr.f32.mxu0 0.0
      %2855 = vmatmul.mubr.f32.gmra.mrb[0].mxu0 %v1832
      %v2856 = vpop.f32.mrb[0].mxu0
      %v2857 = vadd.f32 0.0, %v2856
      %v2858 = vpop.f32.mrb[0].mxu0
      %2859 = vmatprep.mubr.f32.mxu0 0.0
      %2860 = vmatmul.mubr.f32.gmra.mrb[0].mxu0 %v2637
      %v2861 = vpop.f32.mrb[0].mxu0
      %v2862 = vadd.f32 0.0, %v2861
      %v2863 = vpop.f32.mrb[0].mxu0
      %2864 = vmatprep.mubr.f32.mxu0 0.0
      %2865 = vmatmul.mubr.f32.gmra.mrb[0].mxu0 %v2640
      %v2866 = vpop.f32.mrb[0].mxu0
      %v2867 = vadd.f32 0.0, %v2866
      %v2868 = vpop.f32.mrb[0].mxu0
      %2869 = vdwg.mxu0
      %v2870 = vadd.f32 %v2601, %v2712
      %v2871 = vadd.f32 %v2602, %v2717
      %v2872 = vadd.f32 %v2603, %v2722
      %v2873 = vadd.f32 %v2604, %v2727
      %v2874 = vadd.f32 %v2605, %v2732
      %v2875 = vadd.f32 %v2606, %v2737
      %v2876 = vadd.f32 %v2607, %v2742
      %v2877 = vadd.f32 %v2608, %v2747
      %v2878 = vadd.f32 %v2609, %v2752
      %v2879 = vadd.f32 %v2610, %v2757
      %v2880 = vadd.f32 %v2611, %v2762
      %v2881 = vadd.f32 %v2612, %v2767
      %v2882 = vadd.f32 %v2613, %v2772
      %v2883 = vadd.f32 %v2614, %v2777
      %v2884 = vadd.f32 %v2615, %v2782
      %v2885 = vadd.f32 %v2616, %v2787
      %v2886 = vadd.f32 %v2617, %v2792
      %v2887 = vadd.f32 %v2618, %v2797
      %v2888 = vadd.f32 %v2619, %v2802
      %v2889 = vadd.f32 %v2620, %v2807
      %v2890 = vadd.f32 %v2621, %v2812
      %v2891 = vadd.f32 %v2622, %v2817
      %v2892 = vadd.f32 %v2623, %v2822
      %v2893 = vadd.f32 %v2624, %v2827
      %v2894 = vadd.f32 %v2625, %v2832
      %v2895 = vadd.f32 %v2626, %v2837
      %v2896 = vadd.f32 %v2627, %v2842
      %v2897 = vadd.f32 %v2628, %v2847
      %v2898 = vadd.f32 %v2629, %v2852
      %v2899 = vadd.f32 %v2630, %v2857
      %v2900 = vadd.f32 %v2631, %v2862
      %v2901 = vadd.f32 %v2632, %v2867
      %v2903 = vrot.slane %v701, 1
      %v2904 = vrot.slane %v702, 1
      %v2905 = vsel %vm754, %v2903, %v2904
      %v2906 = vrot.slane %v703, 1
      %v2907 = vsel %vm754, %v2904, %v2906
      %v2908 = vrot.slane %v2634, 4
      %v2909 = vsel %vm439, %v2905, 0
      %v2911 = vsel %vm439, %v2907, 0
      %v2913 = vsel %vm901, %v2908, 0
      %2915 = vmatprep.subr.mxu0 0.0
      %2916 = vmatpush1.msra.mxu0 %v2913
      %2917 = vmatprep.subr.mxu0 0.0
      %2918 = vmatpush1.msra.mxu0 0.0
      %2919 = vmatprep.subr.mxu0 0.0
      %2920 = vmatpush1.msra.mxu0 0.0
      %2921 = vmatprep.subr.mxu0 0.0
      %2922 = vmatpush1.msra.mxu0 0.0
      %2923 = vmatprep.subr.mxu0 0.0
      %2924 = vmatpush1.msra.mxu0 0.0
      %2925 = vmatprep.subr.mxu0 0.0
      %2926 = vmatpush1.msra.mxu0 0.0
      %2927 = vmatprep.subr.mxu0 0.0
      %2928 = vmatpush1.msra.mxu0 0.0
      %2929 = vmatprep.subr.mxu0 0.0
      %2930 = vmatpush1.msra.mxu0 0.0
      %2931 = vmatprep.subr.mxu0 0.0
      %2932 = vmatpush1.msra.mxu0 0.0
      %2933 = vmatprep.subr.mxu0 0.0
      %2934 = vmatpush1.msra.mxu0 0.0
      %2935 = vmatprep.subr.mxu0 0.0
      %2936 = vmatpush1.msra.mxu0 0.0
      %2937 = vmatprep.subr.mxu0 0.0
      %2938 = vmatpush1.msra.mxu0 0.0
      %2939 = vmatprep.subr.mxu0 0.0
      %2940 = vmatpush1.msra.mxu0 0.0
      %2941 = vmatprep.subr.mxu0 0.0
      %2942 = vmatpush1.msra.mxu0 0.0
      %2943 = vmatprep.subr.mxu0 0.0
      %2944 = vmatpush1.msra.mxu0 0.0
      %2945 = vmatprep.subr.mxu0 0.0
      %2946 = vmatpush1.msra.mxu0 0.0
      %2947 = vmatprep.subr.mxu0 0.0
      %2948 = vmatpush1.msra.mxu0 0.0
      %2949 = vmatprep.subr.mxu0 0.0
      %2950 = vmatpush1.msra.mxu0 0.0
      %2951 = vmatprep.subr.mxu0 0.0
      %2952 = vmatpush1.msra.mxu0 0.0
      %2953 = vmatprep.subr.mxu0 0.0
      %2954 = vmatpush1.msra.mxu0 0.0
      %2955 = vmatprep.subr.mxu0 0.0
      %2956 = vmatpush1.msra.mxu0 0.0
      %2957 = vmatprep.subr.mxu0 0.0
      %2958 = vmatpush1.msra.mxu0 0.0
      %2959 = vmatprep.subr.mxu0 0.0
      %2960 = vmatpush1.msra.mxu0 0.0
      %2961 = vmatprep.subr.mxu0 0.0
      %2962 = vmatpush1.msra.mxu0 0.0
      %2963 = vmatprep.subr.mxu0 0.0
      %2964 = vmatpush1.msra.mxu0 0.0
      %2965 = vmatprep.subr.mxu0 0.0
      %2966 = vmatpush1.msra.mxu0 0.0
      %2967 = vmatprep.subr.mxu0 0.0
      %2968 = vmatpush1.msra.mxu0 0.0
      %2969 = vmatprep.subr.mxu0 0.0
      %2970 = vmatpush1.msra.mxu0 0.0
      %2971 = vmatprep.subr.mxu0 0.0
      %2972 = vmatpush1.msra.mxu0 0.0
      %2973 = vmatprep.subr.mxu0 0.0
      %2974 = vmatpush1.msra.mxu0 0.0
      %2975 = vmatprep.subr.mxu0 0.0
      %2976 = vmatpush1.msra.mxu0 0.0
      %2977 = vmatprep.subr.mxu0 0.0
      %2978 = vmatpush1.msra.mxu0 0.0
      %2979 = vmatprep.mubr.f32.mxu0 0.0
      %2980 = vmatmul.mubr.f32.gmra.mrb[0].mxu0 %v845
      %v2981 = vpop.f32.mrb[0].mxu0
      %v2982 = vadd.f32 0.0, %v2981
      %v2983 = vpop.f32.mrb[0].mxu0
      %2984 = vmatprep.mubr.f32.mxu0 0.0
      %2985 = vmatmul.mubr.f32.gmra.mrb[0].mxu0 %v847
      %v2986 = vpop.f32.mrb[0].mxu0
      %v2987 = vadd.f32 0.0, %v2986
      %v2988 = vpop.f32.mrb[0].mxu0
      %2989 = vmatprep.mubr.f32.mxu0 0.0
      %2990 = vmatmul.mubr.f32.gmra.mrb[0].mxu0 %v849
      %v2991 = vpop.f32.mrb[0].mxu0
      %v2992 = vadd.f32 0.0, %v2991
      %v2993 = vpop.f32.mrb[0].mxu0
      %2994 = vmatprep.mubr.f32.mxu0 0.0
      %2995 = vmatmul.mubr.f32.gmra.mrb[0].mxu0 %v851
      %v2996 = vpop.f32.mrb[0].mxu0
      %v2997 = vadd.f32 0.0, %v2996
      %v2998 = vpop.f32.mrb[0].mxu0
      %2999 = vmatprep.mubr.f32.mxu0 0.0
      %3000 = vmatmul.mubr.f32.gmra.mrb[0].mxu0 %v853
      %v3001 = vpop.f32.mrb[0].mxu0
      %v3002 = vadd.f32 0.0, %v3001
      %v3003 = vpop.f32.mrb[0].mxu0
      %3004 = vmatprep.mubr.f32.mxu0 0.0
      %3005 = vmatmul.mubr.f32.gmra.mrb[0].mxu0 %v855
      %v3006 = vpop.f32.mrb[0].mxu0
      %v3007 = vadd.f32 0.0, %v3006
      %v3008 = vpop.f32.mrb[0].mxu0
      %3009 = vmatprep.mubr.f32.mxu0 0.0
      %3010 = vmatmul.mubr.f32.gmra.mrb[0].mxu0 %v857
      %v3011 = vpop.f32.mrb[0].mxu0
      %v3012 = vadd.f32 0.0, %v3011
      %v3013 = vpop.f32.mrb[0].mxu0
      %3014 = vmatprep.mubr.f32.mxu0 0.0
      %3015 = vmatmul.mubr.f32.gmra.mrb[0].mxu0 %v859
      %v3016 = vpop.f32.mrb[0].mxu0
      %v3017 = vadd.f32 0.0, %v3016
      %v3018 = vpop.f32.mrb[0].mxu0
      %3019 = vmatprep.mubr.f32.mxu0 0.0
      %3020 = vmatmul.mubr.f32.gmra.mrb[0].mxu0 %v861
      %v3021 = vpop.f32.mrb[0].mxu0
      %v3022 = vadd.f32 0.0, %v3021
      %v3023 = vpop.f32.mrb[0].mxu0
      %3024 = vmatprep.mubr.f32.mxu0 0.0
      %3025 = vmatmul.mubr.f32.gmra.mrb[0].mxu0 %v863
      %v3026 = vpop.f32.mrb[0].mxu0
      %v3027 = vadd.f32 0.0, %v3026
      %v3028 = vpop.f32.mrb[0].mxu0
      %3029 = vmatprep.mubr.f32.mxu0 0.0
      %3030 = vmatmul.mubr.f32.gmra.mrb[0].mxu0 %v865
      %v3031 = vpop.f32.mrb[0].mxu0
      %v3032 = vadd.f32 0.0, %v3031
      %v3033 = vpop.f32.mrb[0].mxu0
      %3034 = vmatprep.mubr.f32.mxu0 0.0
      %3035 = vmatmul.mubr.f32.gmra.mrb[0].mxu0 %v867
      %v3036 = vpop.f32.mrb[0].mxu0
      %v3037 = vadd.f32 0.0, %v3036
      %v3038 = vpop.f32.mrb[0].mxu0
      %3039 = vmatprep.mubr.f32.mxu0 0.0
      %3040 = vmatmul.mubr.f32.gmra.mrb[0].mxu0 %v869
      %v3041 = vpop.f32.mrb[0].mxu0
      %v3042 = vadd.f32 0.0, %v3041
      %v3043 = vpop.f32.mrb[0].mxu0
      %3044 = vmatprep.mubr.f32.mxu0 0.0
      %3045 = vmatmul.mubr.f32.gmra.mrb[0].mxu0 %v871
      %v3046 = vpop.f32.mrb[0].mxu0
      %v3047 = vadd.f32 0.0, %v3046
      %v3048 = vpop.f32.mrb[0].mxu0
      %3049 = vmatprep.mubr.f32.mxu0 0.0
      %3050 = vmatmul.mubr.f32.gmra.mrb[0].mxu0 %v873
      %v3051 = vpop.f32.mrb[0].mxu0
      %v3052 = vadd.f32 0.0, %v3051
      %v3053 = vpop.f32.mrb[0].mxu0
      %3054 = vmatprep.mubr.f32.mxu0 0.0
      %3055 = vmatmul.mubr.f32.gmra.mrb[0].mxu0 %v875
      %v3056 = vpop.f32.mrb[0].mxu0
      %v3057 = vadd.f32 0.0, %v3056
      %v3058 = vpop.f32.mrb[0].mxu0
      %3059 = vmatprep.mubr.f32.mxu0 0.0
      %3060 = vmatmul.mubr.f32.gmra.mrb[0].mxu0 %v877
      %v3061 = vpop.f32.mrb[0].mxu0
      %v3062 = vadd.f32 0.0, %v3061
      %v3063 = vpop.f32.mrb[0].mxu0
      %3064 = vmatprep.mubr.f32.mxu0 0.0
      %3065 = vmatmul.mubr.f32.gmra.mrb[0].mxu0 %v879
      %v3066 = vpop.f32.mrb[0].mxu0
      %v3067 = vadd.f32 0.0, %v3066
      %v3068 = vpop.f32.mrb[0].mxu0
      %3069 = vmatprep.mubr.f32.mxu0 0.0
      %3070 = vmatmul.mubr.f32.gmra.mrb[0].mxu0 %v881
      %v3071 = vpop.f32.mrb[0].mxu0
      %v3072 = vadd.f32 0.0, %v3071
      %v3073 = vpop.f32.mrb[0].mxu0
      %3074 = vmatprep.mubr.f32.mxu0 0.0
      %3075 = vmatmul.mubr.f32.gmra.mrb[0].mxu0 %v883
      %v3076 = vpop.f32.mrb[0].mxu0
      %v3077 = vadd.f32 0.0, %v3076
      %v3078 = vpop.f32.mrb[0].mxu0
      %3079 = vmatprep.mubr.f32.mxu0 0.0
      %3080 = vmatmul.mubr.f32.gmra.mrb[0].mxu0 %v885
      %v3081 = vpop.f32.mrb[0].mxu0
      %v3082 = vadd.f32 0.0, %v3081
      %v3083 = vpop.f32.mrb[0].mxu0
      %3084 = vmatprep.mubr.f32.mxu0 0.0
      %3085 = vmatmul.mubr.f32.gmra.mrb[0].mxu0 %v887
      %v3086 = vpop.f32.mrb[0].mxu0
      %v3087 = vadd.f32 0.0, %v3086
      %v3088 = vpop.f32.mrb[0].mxu0
      %3089 = vmatprep.mubr.f32.mxu0 0.0
      %3090 = vmatmul.mubr.f32.gmra.mrb[0].mxu0 %v889
      %v3091 = vpop.f32.mrb[0].mxu0
      %v3092 = vadd.f32 0.0, %v3091
      %v3093 = vpop.f32.mrb[0].mxu0
      %3094 = vmatprep.mubr.f32.mxu0 0.0
      %3095 = vmatmul.mubr.f32.gmra.mrb[0].mxu0 %v891
      %v3096 = vpop.f32.mrb[0].mxu0
      %v3097 = vadd.f32 0.0, %v3096
      %v3098 = vpop.f32.mrb[0].mxu0
      %3099 = vmatprep.mubr.f32.mxu0 0.0
      %3100 = vmatmul.mubr.f32.gmra.mrb[0].mxu0 %v893
      %v3101 = vpop.f32.mrb[0].mxu0
      %v3102 = vadd.f32 0.0, %v3101
      %v3103 = vpop.f32.mrb[0].mxu0
      %3104 = vmatprep.mubr.f32.mxu0 0.0
      %3105 = vmatmul.mubr.f32.gmra.mrb[0].mxu0 %v895
      %v3106 = vpop.f32.mrb[0].mxu0
      %v3107 = vadd.f32 0.0, %v3106
      %v3108 = vpop.f32.mrb[0].mxu0
      %3109 = vmatprep.mubr.f32.mxu0 0.0
      %3110 = vmatmul.mubr.f32.gmra.mrb[0].mxu0 %v897
      %v3111 = vpop.f32.mrb[0].mxu0
      %v3112 = vadd.f32 0.0, %v3111
      %v3113 = vpop.f32.mrb[0].mxu0
      %3114 = vmatprep.mubr.f32.mxu0 0.0
      %3115 = vmatmul.mubr.f32.gmra.mrb[0].mxu0 %v899
      %v3116 = vpop.f32.mrb[0].mxu0
      %v3117 = vadd.f32 0.0, %v3116
      %v3118 = vpop.f32.mrb[0].mxu0
      %3119 = vmatprep.mubr.f32.mxu0 0.0
      %3120 = vmatmul.mubr.f32.gmra.mrb[0].mxu0 %v2101
      %v3121 = vpop.f32.mrb[0].mxu0
      %v3122 = vadd.f32 0.0, %v3121
      %v3123 = vpop.f32.mrb[0].mxu0
      %3124 = vmatprep.mubr.f32.mxu0 0.0
      %3125 = vmatmul.mubr.f32.gmra.mrb[0].mxu0 %v2103
      %v3126 = vpop.f32.mrb[0].mxu0
      %v3127 = vadd.f32 0.0, %v3126
      %v3128 = vpop.f32.mrb[0].mxu0
      %3129 = vmatprep.mubr.f32.mxu0 0.0
      %3130 = vmatmul.mubr.f32.gmra.mrb[0].mxu0 %v2909
      %v3131 = vpop.f32.mrb[0].mxu0
      %v3132 = vadd.f32 0.0, %v3131
      %v3133 = vpop.f32.mrb[0].mxu0
      %3134 = vmatprep.mubr.f32.mxu0 0.0
      %3135 = vmatmul.mubr.f32.gmra.mrb[0].mxu0 %v2911
      %v3136 = vpop.f32.mrb[0].mxu0
      %v3137 = vadd.f32 0.0, %v3136
      %v3138 = vpop.f32.mrb[0].mxu0
      %3139 = vdwg.mxu0
      %v3140 = vadd.f32 %v2870, %v2982
      %v3141 = vadd.f32 %v2871, %v2987
      %v3142 = vadd.f32 %v2872, %v2992
      %v3143 = vadd.f32 %v2873, %v2997
      %v3144 = vadd.f32 %v2874, %v3002
      %v3145 = vadd.f32 %v2875, %v3007
      %v3146 = vadd.f32 %v2876, %v3012
      %v3147 = vadd.f32 %v2877, %v3017
      %v3148 = vadd.f32 %v2878, %v3022
      %v3149 = vadd.f32 %v2879, %v3027
      %v3150 = vadd.f32 %v2880, %v3032
      %v3151 = vadd.f32 %v2881, %v3037
      %v3152 = vadd.f32 %v2882, %v3042
      %v3153 = vadd.f32 %v2883, %v3047
      %v3154 = vadd.f32 %v2884, %v3052
      %v3155 = vadd.f32 %v2885, %v3057
      %v3156 = vadd.f32 %v2886, %v3062
      %v3157 = vadd.f32 %v2887, %v3067
      %v3158 = vadd.f32 %v2888, %v3072
      %v3159 = vadd.f32 %v2889, %v3077
      %v3160 = vadd.f32 %v2890, %v3082
      %v3161 = vadd.f32 %v2891, %v3087
      %v3162 = vadd.f32 %v2892, %v3092
      %v3163 = vadd.f32 %v2893, %v3097
      %v3164 = vadd.f32 %v2894, %v3102
      %v3165 = vadd.f32 %v2895, %v3107
      %v3166 = vadd.f32 %v2896, %v3112
      %v3167 = vadd.f32 %v2897, %v3117
      %v3168 = vadd.f32 %v2898, %v3122
      %v3169 = vadd.f32 %v2899, %v3127
      %v3170 = vadd.f32 %v2900, %v3132
      %v3171 = vadd.f32 %v2901, %v3137
      %v3172 = vrot.slane %v701, 2
      %v3173 = vrot.slane %v702, 2
      %v3174 = vsel %vm1420, %v3172, %v3173
      %v3175 = vrot.slane %v703, 2
      %v3176 = vsel %vm1420, %v3173, %v3175
      %v3177 = vsel %vm439, %v3174, 0
      %v3179 = vsel %vm439, %v3176, 0
      %v3182 = vsel %vm901, %v2635, 0
      %3184 = vmatprep.subr.mxu0 0.0
      %3185 = vmatpush1.msra.mxu0 %v3182
      %3186 = vmatprep.subr.mxu0 0.0
      %3187 = vmatpush1.msra.mxu0 0.0
      %3188 = vmatprep.subr.mxu0 0.0
      %3189 = vmatpush1.msra.mxu0 0.0
      %3190 = vmatprep.subr.mxu0 0.0
      %3191 = vmatpush1.msra.mxu0 0.0
      %3192 = vmatprep.subr.mxu0 0.0
      %3193 = vmatpush1.msra.mxu0 0.0
      %3194 = vmatprep.subr.mxu0 0.0
      %3195 = vmatpush1.msra.mxu0 0.0
      %3196 = vmatprep.subr.mxu0 0.0
      %3197 = vmatpush1.msra.mxu0 0.0
      %3198 = vmatprep.subr.mxu0 0.0
      %3199 = vmatpush1.msra.mxu0 0.0
      %3200 = vmatprep.subr.mxu0 0.0
      %3201 = vmatpush1.msra.mxu0 0.0
      %3202 = vmatprep.subr.mxu0 0.0
      %3203 = vmatpush1.msra.mxu0 0.0
      %3204 = vmatprep.subr.mxu0 0.0
      %3205 = vmatpush1.msra.mxu0 0.0
      %3206 = vmatprep.subr.mxu0 0.0
      %3207 = vmatpush1.msra.mxu0 0.0
      %3208 = vmatprep.subr.mxu0 0.0
      %3209 = vmatpush1.msra.mxu0 0.0
      %3210 = vmatprep.subr.mxu0 0.0
      %3211 = vmatpush1.msra.mxu0 0.0
      %3212 = vmatprep.subr.mxu0 0.0
      %3213 = vmatpush1.msra.mxu0 0.0
      %3214 = vmatprep.subr.mxu0 0.0
      %3215 = vmatpush1.msra.mxu0 0.0
      %3216 = vmatprep.subr.mxu0 0.0
      %3217 = vmatpush1.msra.mxu0 0.0
      %3218 = vmatprep.subr.mxu0 0.0
      %3219 = vmatpush1.msra.mxu0 0.0
      %3220 = vmatprep.subr.mxu0 0.0
      %3221 = vmatpush1.msra.mxu0 0.0
      %3222 = vmatprep.subr.mxu0 0.0
      %3223 = vmatpush1.msra.mxu0 0.0
      %3224 = vmatprep.subr.mxu0 0.0
      %3225 = vmatpush1.msra.mxu0 0.0
      %3226 = vmatprep.subr.mxu0 0.0
      %3227 = vmatpush1.msra.mxu0 0.0
      %3228 = vmatprep.subr.mxu0 0.0
      %3229 = vmatpush1.msra.mxu0 0.0
      %3230 = vmatprep.subr.mxu0 0.0
      %3231 = vmatpush1.msra.mxu0 0.0
      %3232 = vmatprep.subr.mxu0 0.0
      %3233 = vmatpush1.msra.mxu0 0.0
      %3234 = vmatprep.subr.mxu0 0.0
      %3235 = vmatpush1.msra.mxu0 0.0
      %3236 = vmatprep.subr.mxu0 0.0
      %3237 = vmatpush1.msra.mxu0 0.0
      %3238 = vmatprep.subr.mxu0 0.0
      %3239 = vmatpush1.msra.mxu0 0.0
      %3240 = vmatprep.subr.mxu0 0.0
      %3241 = vmatpush1.msra.mxu0 0.0
      %3242 = vmatprep.subr.mxu0 0.0
      %3243 = vmatpush1.msra.mxu0 0.0
      %3244 = vmatprep.subr.mxu0 0.0
      %3245 = vmatpush1.msra.mxu0 0.0
      %3246 = vmatprep.subr.mxu0 0.0
      %3247 = vmatpush1.msra.mxu0 0.0
      %3248 = vmatprep.mubr.f32.mxu0 0.0
      %3249 = vmatmul.mubr.f32.gmra.mrb[0].mxu0 %v1509
      %v3250 = vpop.f32.mrb[0].mxu0
      %v3251 = vadd.f32 0.0, %v3250
      %v3252 = vpop.f32.mrb[0].mxu0
      %3253 = vmatprep.mubr.f32.mxu0 0.0
      %3254 = vmatmul.mubr.f32.gmra.mrb[0].mxu0 %v1511
      %v3255 = vpop.f32.mrb[0].mxu0
      %v3256 = vadd.f32 0.0, %v3255
      %v3257 = vpop.f32.mrb[0].mxu0
      %3258 = vmatprep.mubr.f32.mxu0 0.0
      %3259 = vmatmul.mubr.f32.gmra.mrb[0].mxu0 %v1513
      %v3260 = vpop.f32.mrb[0].mxu0
      %v3261 = vadd.f32 0.0, %v3260
      %v3262 = vpop.f32.mrb[0].mxu0
      %3263 = vmatprep.mubr.f32.mxu0 0.0
      %3264 = vmatmul.mubr.f32.gmra.mrb[0].mxu0 %v1515
      %v3265 = vpop.f32.mrb[0].mxu0
      %v3266 = vadd.f32 0.0, %v3265
      %v3267 = vpop.f32.mrb[0].mxu0
      %3268 = vmatprep.mubr.f32.mxu0 0.0
      %3269 = vmatmul.mubr.f32.gmra.mrb[0].mxu0 %v1517
      %v3270 = vpop.f32.mrb[0].mxu0
      %v3271 = vadd.f32 0.0, %v3270
      %v3272 = vpop.f32.mrb[0].mxu0
      %3273 = vmatprep.mubr.f32.mxu0 0.0
      %3274 = vmatmul.mubr.f32.gmra.mrb[0].mxu0 %v1519
      %v3275 = vpop.f32.mrb[0].mxu0
      %v3276 = vadd.f32 0.0, %v3275
      %v3277 = vpop.f32.mrb[0].mxu0
      %3278 = vmatprep.mubr.f32.mxu0 0.0
      %3279 = vmatmul.mubr.f32.gmra.mrb[0].mxu0 %v1521
      %v3280 = vpop.f32.mrb[0].mxu0
      %v3281 = vadd.f32 0.0, %v3280
      %v3282 = vpop.f32.mrb[0].mxu0
      %3283 = vmatprep.mubr.f32.mxu0 0.0
      %3284 = vmatmul.mubr.f32.gmra.mrb[0].mxu0 %v1523
      %v3285 = vpop.f32.mrb[0].mxu0
      %v3286 = vadd.f32 0.0, %v3285
      %v3287 = vpop.f32.mrb[0].mxu0
      %3288 = vmatprep.mubr.f32.mxu0 0.0
      %3289 = vmatmul.mubr.f32.gmra.mrb[0].mxu0 %v1525
      %v3290 = vpop.f32.mrb[0].mxu0
      %v3291 = vadd.f32 0.0, %v3290
      %v3292 = vpop.f32.mrb[0].mxu0
      %3293 = vmatprep.mubr.f32.mxu0 0.0
      %3294 = vmatmul.mubr.f32.gmra.mrb[0].mxu0 %v1527
      %v3295 = vpop.f32.mrb[0].mxu0
      %v3296 = vadd.f32 0.0, %v3295
      %v3297 = vpop.f32.mrb[0].mxu0
      %3298 = vmatprep.mubr.f32.mxu0 0.0
      %3299 = vmatmul.mubr.f32.gmra.mrb[0].mxu0 %v1529
      %v3300 = vpop.f32.mrb[0].mxu0
      %v3301 = vadd.f32 0.0, %v3300
      %v3302 = vpop.f32.mrb[0].mxu0
      %3303 = vmatprep.mubr.f32.mxu0 0.0
      %3304 = vmatmul.mubr.f32.gmra.mrb[0].mxu0 %v1531
      %v3305 = vpop.f32.mrb[0].mxu0
      %v3306 = vadd.f32 0.0, %v3305
      %v3307 = vpop.f32.mrb[0].mxu0
      %3308 = vmatprep.mubr.f32.mxu0 0.0
      %3309 = vmatmul.mubr.f32.gmra.mrb[0].mxu0 %v1533
      %v3310 = vpop.f32.mrb[0].mxu0
      %v3311 = vadd.f32 0.0, %v3310
      %v3312 = vpop.f32.mrb[0].mxu0
      %3313 = vmatprep.mubr.f32.mxu0 0.0
      %3314 = vmatmul.mubr.f32.gmra.mrb[0].mxu0 %v1535
      %v3315 = vpop.f32.mrb[0].mxu0
      %v3316 = vadd.f32 0.0, %v3315
      %v3317 = vpop.f32.mrb[0].mxu0
      %3318 = vmatprep.mubr.f32.mxu0 0.0
      %3319 = vmatmul.mubr.f32.gmra.mrb[0].mxu0 %v1537
      %v3320 = vpop.f32.mrb[0].mxu0
      %v3321 = vadd.f32 0.0, %v3320
      %v3322 = vpop.f32.mrb[0].mxu0
      %3323 = vmatprep.mubr.f32.mxu0 0.0
      %3324 = vmatmul.mubr.f32.gmra.mrb[0].mxu0 %v1539
      %v3325 = vpop.f32.mrb[0].mxu0
      %v3326 = vadd.f32 0.0, %v3325
      %v3327 = vpop.f32.mrb[0].mxu0
      %3328 = vmatprep.mubr.f32.mxu0 0.0
      %3329 = vmatmul.mubr.f32.gmra.mrb[0].mxu0 %v1541
      %v3330 = vpop.f32.mrb[0].mxu0
      %v3331 = vadd.f32 0.0, %v3330
      %v3332 = vpop.f32.mrb[0].mxu0
      %3333 = vmatprep.mubr.f32.mxu0 0.0
      %3334 = vmatmul.mubr.f32.gmra.mrb[0].mxu0 %v1543
      %v3335 = vpop.f32.mrb[0].mxu0
      %v3336 = vadd.f32 0.0, %v3335
      %v3337 = vpop.f32.mrb[0].mxu0
      %3338 = vmatprep.mubr.f32.mxu0 0.0
      %3339 = vmatmul.mubr.f32.gmra.mrb[0].mxu0 %v1545
      %v3340 = vpop.f32.mrb[0].mxu0
      %v3341 = vadd.f32 0.0, %v3340
      %v3342 = vpop.f32.mrb[0].mxu0
      %3343 = vmatprep.mubr.f32.mxu0 0.0
      %3344 = vmatmul.mubr.f32.gmra.mrb[0].mxu0 %v1547
      %v3345 = vpop.f32.mrb[0].mxu0
      %v3346 = vadd.f32 0.0, %v3345
      %v3347 = vpop.f32.mrb[0].mxu0
      %3348 = vmatprep.mubr.f32.mxu0 0.0
      %3349 = vmatmul.mubr.f32.gmra.mrb[0].mxu0 %v1549
      %v3350 = vpop.f32.mrb[0].mxu0
      %v3351 = vadd.f32 0.0, %v3350
      %v3352 = vpop.f32.mrb[0].mxu0
      %3353 = vmatprep.mubr.f32.mxu0 0.0
      %3354 = vmatmul.mubr.f32.gmra.mrb[0].mxu0 %v1551
      %v3355 = vpop.f32.mrb[0].mxu0
      %v3356 = vadd.f32 0.0, %v3355
      %v3357 = vpop.f32.mrb[0].mxu0
      %3358 = vmatprep.mubr.f32.mxu0 0.0
      %3359 = vmatmul.mubr.f32.gmra.mrb[0].mxu0 %v1553
      %v3360 = vpop.f32.mrb[0].mxu0
      %v3361 = vadd.f32 0.0, %v3360
      %v3362 = vpop.f32.mrb[0].mxu0
      %3363 = vmatprep.mubr.f32.mxu0 0.0
      %3364 = vmatmul.mubr.f32.gmra.mrb[0].mxu0 %v1555
      %v3365 = vpop.f32.mrb[0].mxu0
      %v3366 = vadd.f32 0.0, %v3365
      %v3367 = vpop.f32.mrb[0].mxu0
      %3368 = vmatprep.mubr.f32.mxu0 0.0
      %3369 = vmatmul.mubr.f32.gmra.mrb[0].mxu0 %v1557
      %v3370 = vpop.f32.mrb[0].mxu0
      %v3371 = vadd.f32 0.0, %v3370
      %v3372 = vpop.f32.mrb[0].mxu0
      %3373 = vmatprep.mubr.f32.mxu0 0.0
      %3374 = vmatmul.mubr.f32.gmra.mrb[0].mxu0 %v1559
      %v3375 = vpop.f32.mrb[0].mxu0
      %v3376 = vadd.f32 0.0, %v3375
      %v3377 = vpop.f32.mrb[0].mxu0
      %3378 = vmatprep.mubr.f32.mxu0 0.0
      %3379 = vmatmul.mubr.f32.gmra.mrb[0].mxu0 %v1561
      %v3380 = vpop.f32.mrb[0].mxu0
      %v3381 = vadd.f32 0.0, %v3380
      %v3382 = vpop.f32.mrb[0].mxu0
      %3383 = vmatprep.mubr.f32.mxu0 0.0
      %3384 = vmatmul.mubr.f32.gmra.mrb[0].mxu0 %v1563
      %v3385 = vpop.f32.mrb[0].mxu0
      %v3386 = vadd.f32 0.0, %v3385
      %v3387 = vpop.f32.mrb[0].mxu0
      %3388 = vmatprep.mubr.f32.mxu0 0.0
      %3389 = vmatmul.mubr.f32.gmra.mrb[0].mxu0 %v2369
      %v3390 = vpop.f32.mrb[0].mxu0
      %v3391 = vadd.f32 0.0, %v3390
      %v3392 = vpop.f32.mrb[0].mxu0
      %3393 = vmatprep.mubr.f32.mxu0 0.0
      %3394 = vmatmul.mubr.f32.gmra.mrb[0].mxu0 %v2371
      %v3395 = vpop.f32.mrb[0].mxu0
      %v3396 = vadd.f32 0.0, %v3395
      %v3397 = vpop.f32.mrb[0].mxu0
      %3398 = vmatprep.mubr.f32.mxu0 0.0
      %3399 = vmatmul.mubr.f32.gmra.mrb[0].mxu0 %v3177
      %v3400 = vpop.f32.mrb[0].mxu0
      %v3401 = vadd.f32 0.0, %v3400
      %v3402 = vpop.f32.mrb[0].mxu0
      %3403 = vmatprep.mubr.f32.mxu0 0.0
      %3404 = vmatmul.mubr.f32.gmra.mrb[0].mxu0 %v3179
      %v3405 = vpop.f32.mrb[0].mxu0
      %v3406 = vadd.f32 0.0, %v3405
      %v3407 = vpop.f32.mrb[0].mxu0
      %3408 = vdwg.mxu0
      %v3409 = vadd.f32 %v3140, %v3251
      %v3410 = vadd.f32 %v3141, %v3256
      %v3411 = vadd.f32 %v3142, %v3261
      %v3412 = vadd.f32 %v3143, %v3266
      %v3413 = vadd.f32 %v3144, %v3271
      %v3414 = vadd.f32 %v3145, %v3276
      %v3415 = vadd.f32 %v3146, %v3281
      %v3416 = vadd.f32 %v3147, %v3286
      %v3417 = vadd.f32 %v3148, %v3291
      %v3418 = vadd.f32 %v3149, %v3296
      %v3419 = vadd.f32 %v3150, %v3301
      %v3420 = vadd.f32 %v3151, %v3306
      %v3421 = vadd.f32 %v3152, %v3311
      %v3422 = vadd.f32 %v3153, %v3316
      %v3423 = vadd.f32 %v3154, %v3321
      %v3424 = vadd.f32 %v3155, %v3326
      %v3425 = vadd.f32 %v3156, %v3331
      %v3426 = vadd.f32 %v3157, %v3336
      %v3427 = vadd.f32 %v3158, %v3341
      %v3428 = vadd.f32 %v3159, %v3346
      %v3429 = vadd.f32 %v3160, %v3351
      %v3430 = vadd.f32 %v3161, %v3356
      %v3431 = vadd.f32 %v3162, %v3361
      %v3432 = vadd.f32 %v3163, %v3366
      %v3433 = vadd.f32 %v3164, %v3371
      %v3434 = vadd.f32 %v3165, %v3376
      %v3435 = vadd.f32 %v3166, %v3381
      %v3436 = vadd.f32 %v3167, %v3386
      %v3437 = vadd.f32 %v3168, %v3391
      %v3438 = vadd.f32 %v3169, %v3396
      %v3439 = vadd.f32 %v3170, %v3401
      %v3440 = vadd.f32 %v3171, %v3406
      %v3441 = vld [vmem:[#allocation3] sm:$0xff]
      %v3442 = vld [vmem:[#allocation3 + $0x8] sm:$0xff]
      %v3443 = vld [vmem:[#allocation3 + $0x10] sm:$0x3]
      %v3444 = vld [vmem:[#allocation3 + $0x18] sm:$0xff]
      %v3445 = vld [vmem:[#allocation3 + $0x20] sm:$0xff]
      %v3446 = vld [vmem:[#allocation3 + $0x28] sm:$0x3]
      %v3447 = vld [vmem:[#allocation3 + $0x30] sm:$0xff]
      %v3448 = vld [vmem:[#allocation3 + $0x38] sm:$0xff]
      %v3449 = vld [vmem:[#allocation3 + $0x40] sm:$0x3]
      %v3450 = vld [vmem:[#allocation3 + $0x48] sm:$0xff]
      %v3451 = vld [vmem:[#allocation3 + $0x50] sm:$0xff]
      %v3452 = vld [vmem:[#allocation3 + $0x58] sm:$0x3]
      %v3453 = vld [vmem:[#allocation3 + $0x60] sm:$0xff]
      %v3454 = vld [vmem:[#allocation3 + $0x68] sm:$0xff]
      %v3455 = vld [vmem:[#allocation3 + $0x70] sm:$0x3]
      %v3456 = vld [vmem:[#allocation3 + $0x78] sm:$0xff]
      %v3457 = vld [vmem:[#allocation3 + $0x80] sm:$0xff]
      %v3458 = vld [vmem:[#allocation3 + $0x88] sm:$0x3]
      %v3459 = vld [vmem:[#allocation3 + $0x90] sm:$0xff]
      %v3460 = vld [vmem:[#allocation3 + $0x98] sm:$0xff]
      %v3461 = vld [vmem:[#allocation3 + $0xa0] sm:$0x3]
      %v3462 = vld [vmem:[#allocation3 + $0xa8] sm:$0xff]
      %v3463 = vld [vmem:[#allocation3 + $0xb0] sm:$0xff]
      %v3464 = vld [vmem:[#allocation3 + $0xb8] sm:$0x3]
      %v3465 = vld [vmem:[#allocation3 + $0xc0] sm:$0xff]
      %v3466 = vld [vmem:[#allocation3 + $0xc8] sm:$0xff]
      %v3467 = vld [vmem:[#allocation3 + $0xd0] sm:$0x3]
      %v3468 = vld [vmem:[#allocation3 + $0xd8] sm:$0xff]
      %v3469 = vld [vmem:[#allocation3 + $0xe0] sm:$0xff]
      %v3470 = vld [vmem:[#allocation3 + $0xe8] sm:$0x3]
      %v3471 = vld [vmem:[#allocation3 + $0xf0] sm:$0xff]
      %v3472 = vld [vmem:[#allocation3 + $0xf8] sm:$0xff]
      %v3473 = vld [vmem:[#allocation3 + $0x100] sm:$0x3]
      %v3474 = vld [vmem:[#allocation3 + $0x108] sm:$0xff]
      %v3475 = vld [vmem:[#allocation3 + $0x110] sm:$0xff]
      %v3476 = vld [vmem:[#allocation3 + $0x118] sm:$0x3]
      %v3477 = vld [vmem:[#allocation3 + $0x120] sm:$0xff]
      %v3478 = vld [vmem:[#allocation3 + $0x128] sm:$0xff]
      %v3479 = vld [vmem:[#allocation3 + $0x130] sm:$0x3]
      %v3480 = vld [vmem:[#allocation3 + $0x138] sm:$0xff]
      %v3481 = vld [vmem:[#allocation3 + $0x140] sm:$0xff]
      %v3482 = vld [vmem:[#allocation3 + $0x148] sm:$0x3]
      %v3483 = vld [vmem:[#allocation3 + $0x150] sm:$0xff]
      %v3484 = vld [vmem:[#allocation3 + $0x158] sm:$0xff]
      %v3485 = vld [vmem:[#allocation3 + $0x160] sm:$0x3]
      %v3486 = vld [vmem:[#allocation3 + $0x168] sm:$0xff]
      %v3487 = vld [vmem:[#allocation3 + $0x170] sm:$0xff]
      %v3488 = vld [vmem:[#allocation3 + $0x178] sm:$0x3]
      %v3489 = vld [vmem:[#allocation3 + $0x180] sm:$0xff]
      %v3490 = vld [vmem:[#allocation3 + $0x188] sm:$0xff]
      %v3491 = vld [vmem:[#allocation3 + $0x190] sm:$0x3]
      %v3492 = vld [vmem:[#allocation3 + $0x198] sm:$0xff]
      %v3493 = vld [vmem:[#allocation3 + $0x1a0] sm:$0xff]
      %v3494 = vld [vmem:[#allocation3 + $0x1a8] sm:$0x3]
      %v3495 = vld [vmem:[%s3] sm:$0xff]
      %v3496 = vld [vmem:[%s3 + $0x8] sm:$0xf]
      %v3498 = vsel %vm439, %v3441, 0
      %v3501 = vsel %vm439, %v3442, 0
      %v3504 = vsel %vm439, %v3444, 0
      %v3507 = vsel %vm439, %v3445, 0
      %v3510 = vsel %vm439, %v3447, 0
      %v3513 = vsel %vm439, %v3448, 0
      %v3516 = vsel %vm439, %v3450, 0
      %v3519 = vsel %vm439, %v3451, 0
      %v3522 = vsel %vm439, %v3453, 0
      %v3525 = vsel %vm439, %v3454, 0
      %v3528 = vsel %vm439, %v3456, 0
      %v3531 = vsel %vm439, %v3457, 0
      %v3534 = vsel %vm439, %v3459, 0
      %v3537 = vsel %vm439, %v3460, 0
      %v3540 = vsel %vm439, %v3462, 0
      %v3543 = vsel %vm439, %v3463, 0
      %v3546 = vsel %vm439, %v3465, 0
      %v3549 = vsel %vm439, %v3466, 0
      %v3552 = vsel %vm439, %v3468, 0
      %v3555 = vsel %vm439, %v3469, 0
      %v3558 = vsel %vm439, %v3471, 0
      %v3561 = vsel %vm439, %v3472, 0
      %v3564 = vsel %vm439, %v3474, 0
      %v3567 = vsel %vm439, %v3475, 0
      %v3570 = vsel %vm439, %v3477, 0
      %v3573 = vsel %vm439, %v3478, 0
      %v3576 = vsel %vm439, %v3480, 0
      %v3579 = vsel %vm439, %v3481, 0
      %v3582 = vsel %vm439, %v3483, 0
      %v3585 = vsel %vm439, %v3484, 0
      %v3588 = vsel %vm439, %v3486, 0
      %v3591 = vsel %vm439, %v3487, 0
      %v3594 = vsel %vm901, %v3495, 0
      %3596 = vmatprep.subr.mxu0 0.0
      %3597 = vmatpush1.msra.mxu0 %v3594
      %3598 = vmatprep.subr.mxu0 0.0
      %3599 = vmatpush1.msra.mxu0 0.0
      %3600 = vmatprep.subr.mxu0 0.0
      %3601 = vmatpush1.msra.mxu0 0.0
      %3602 = vmatprep.subr.mxu0 0.0
      %3603 = vmatpush1.msra.mxu0 0.0
      %3604 = vmatprep.subr.mxu0 0.0
      %3605 = vmatpush1.msra.mxu0 0.0
      %3606 = vmatprep.subr.mxu0 0.0
      %3607 = vmatpush1.msra.mxu0 0.0
      %3608 = vmatprep.subr.mxu0 0.0
      %3609 = vmatpush1.msra.mxu0 0.0
      %3610 = vmatprep.subr.mxu0 0.0
      %3611 = vmatpush1.msra.mxu0 0.0
      %3612 = vmatprep.subr.mxu0 0.0
      %3613 = vmatpush1.msra.mxu0 0.0
      %3614 = vmatprep.subr.mxu0 0.0
      %3615 = vmatpush1.msra.mxu0 0.0
      %3616 = vmatprep.subr.mxu0 0.0
      %3617 = vmatpush1.msra.mxu0 0.0
      %3618 = vmatprep.subr.mxu0 0.0
      %3619 = vmatpush1.msra.mxu0 0.0
      %3620 = vmatprep.subr.mxu0 0.0
      %3621 = vmatpush1.msra.mxu0 0.0
      %3622 = vmatprep.subr.mxu0 0.0
      %3623 = vmatpush1.msra.mxu0 0.0
      %3624 = vmatprep.subr.mxu0 0.0
      %3625 = vmatpush1.msra.mxu0 0.0
      %3626 = vmatprep.subr.mxu0 0.0
      %3627 = vmatpush1.msra.mxu0 0.0
      %3628 = vmatprep.subr.mxu0 0.0
      %3629 = vmatpush1.msra.mxu0 0.0
      %3630 = vmatprep.subr.mxu0 0.0
      %3631 = vmatpush1.msra.mxu0 0.0
      %3632 = vmatprep.subr.mxu0 0.0
      %3633 = vmatpush1.msra.mxu0 0.0
      %3634 = vmatprep.subr.mxu0 0.0
      %3635 = vmatpush1.msra.mxu0 0.0
      %3636 = vmatprep.subr.mxu0 0.0
      %3637 = vmatpush1.msra.mxu0 0.0
      %3638 = vmatprep.subr.mxu0 0.0
      %3639 = vmatpush1.msra.mxu0 0.0
      %3640 = vmatprep.subr.mxu0 0.0
      %3641 = vmatpush1.msra.mxu0 0.0
      %3642 = vmatprep.subr.mxu0 0.0
      %3643 = vmatpush1.msra.mxu0 0.0
      %3644 = vmatprep.subr.mxu0 0.0
      %3645 = vmatpush1.msra.mxu0 0.0
      %3646 = vmatprep.subr.mxu0 0.0
      %3647 = vmatpush1.msra.mxu0 0.0
      %3648 = vmatprep.subr.mxu0 0.0
      %3649 = vmatpush1.msra.mxu0 0.0
      %3650 = vmatprep.subr.mxu0 0.0
      %3651 = vmatpush1.msra.mxu0 0.0
      %3652 = vmatprep.subr.mxu0 0.0
      %3653 = vmatpush1.msra.mxu0 0.0
      %3654 = vmatprep.subr.mxu0 0.0
      %3655 = vmatpush1.msra.mxu0 0.0
      %3656 = vmatprep.subr.mxu0 0.0
      %3657 = vmatpush1.msra.mxu0 0.0
      %3658 = vmatprep.subr.mxu0 0.0
      %3659 = vmatpush1.msra.mxu0 0.0
      %3660 = vmatprep.mubr.f32.mxu0 0.0
      %3661 = vmatmul.mubr.f32.gmra.mrb[0].mxu0 %v3498
      %v3662 = vpop.f32.mrb[0].mxu0
      %v3663 = vadd.f32 0.0, %v3662
      %v3664 = vpop.f32.mrb[0].mxu0
      %3665 = vmatprep.mubr.f32.mxu0 0.0
      %3666 = vmatmul.mubr.f32.gmra.mrb[0].mxu0 %v3501
      %v3667 = vpop.f32.mrb[0].mxu0
      %v3668 = vadd.f32 0.0, %v3667
      %v3669 = vpop.f32.mrb[0].mxu0
      %3670 = vmatprep.mubr.f32.mxu0 0.0
      %3671 = vmatmul.mubr.f32.gmra.mrb[0].mxu0 %v3504
      %v3672 = vpop.f32.mrb[0].mxu0
      %v3673 = vadd.f32 0.0, %v3672
      %v3674 = vpop.f32.mrb[0].mxu0
      %3675 = vmatprep.mubr.f32.mxu0 0.0
      %3676 = vmatmul.mubr.f32.gmra.mrb[0].mxu0 %v3507
      %v3677 = vpop.f32.mrb[0].mxu0
      %v3678 = vadd.f32 0.0, %v3677
      %v3679 = vpop.f32.mrb[0].mxu0
      %3680 = vmatprep.mubr.f32.mxu0 0.0
      %3681 = vmatmul.mubr.f32.gmra.mrb[0].mxu0 %v3510
      %v3682 = vpop.f32.mrb[0].mxu0
      %v3683 = vadd.f32 0.0, %v3682
      %v3684 = vpop.f32.mrb[0].mxu0
      %3685 = vmatprep.mubr.f32.mxu0 0.0
      %3686 = vmatmul.mubr.f32.gmra.mrb[0].mxu0 %v3513
      %v3687 = vpop.f32.mrb[0].mxu0
      %v3688 = vadd.f32 0.0, %v3687
      %v3689 = vpop.f32.mrb[0].mxu0
      %3690 = vmatprep.mubr.f32.mxu0 0.0
      %3691 = vmatmul.mubr.f32.gmra.mrb[0].mxu0 %v3516
      %v3692 = vpop.f32.mrb[0].mxu0
      %v3693 = vadd.f32 0.0, %v3692
      %v3694 = vpop.f32.mrb[0].mxu0
      %3695 = vmatprep.mubr.f32.mxu0 0.0
      %3696 = vmatmul.mubr.f32.gmra.mrb[0].mxu0 %v3519
      %v3697 = vpop.f32.mrb[0].mxu0
      %v3698 = vadd.f32 0.0, %v3697
      %v3699 = vpop.f32.mrb[0].mxu0
      %3700 = vmatprep.mubr.f32.mxu0 0.0
      %3701 = vmatmul.mubr.f32.gmra.mrb[0].mxu0 %v3522
      %v3702 = vpop.f32.mrb[0].mxu0
      %v3703 = vadd.f32 0.0, %v3702
      %v3704 = vpop.f32.mrb[0].mxu0
      %3705 = vmatprep.mubr.f32.mxu0 0.0
      %3706 = vmatmul.mubr.f32.gmra.mrb[0].mxu0 %v3525
      %v3707 = vpop.f32.mrb[0].mxu0
      %v3708 = vadd.f32 0.0, %v3707
      %v3709 = vpop.f32.mrb[0].mxu0
      %3710 = vmatprep.mubr.f32.mxu0 0.0
      %3711 = vmatmul.mubr.f32.gmra.mrb[0].mxu0 %v3528
      %v3712 = vpop.f32.mrb[0].mxu0
      %v3713 = vadd.f32 0.0, %v3712
      %v3714 = vpop.f32.mrb[0].mxu0
      %3715 = vmatprep.mubr.f32.mxu0 0.0
      %3716 = vmatmul.mubr.f32.gmra.mrb[0].mxu0 %v3531
      %v3717 = vpop.f32.mrb[0].mxu0
      %v3718 = vadd.f32 0.0, %v3717
      %v3719 = vpop.f32.mrb[0].mxu0
      %3720 = vmatprep.mubr.f32.mxu0 0.0
      %3721 = vmatmul.mubr.f32.gmra.mrb[0].mxu0 %v3534
      %v3722 = vpop.f32.mrb[0].mxu0
      %v3723 = vadd.f32 0.0, %v3722
      %v3724 = vpop.f32.mrb[0].mxu0
      %3725 = vmatprep.mubr.f32.mxu0 0.0
      %3726 = vmatmul.mubr.f32.gmra.mrb[0].mxu0 %v3537
      %v3727 = vpop.f32.mrb[0].mxu0
      %v3728 = vadd.f32 0.0, %v3727
      %v3729 = vpop.f32.mrb[0].mxu0
      %3730 = vmatprep.mubr.f32.mxu0 0.0
      %3731 = vmatmul.mubr.f32.gmra.mrb[0].mxu0 %v3540
      %v3732 = vpop.f32.mrb[0].mxu0
      %v3733 = vadd.f32 0.0, %v3732
      %v3734 = vpop.f32.mrb[0].mxu0
      %3735 = vmatprep.mubr.f32.mxu0 0.0
      %3736 = vmatmul.mubr.f32.gmra.mrb[0].mxu0 %v3543
      %v3737 = vpop.f32.mrb[0].mxu0
      %v3738 = vadd.f32 0.0, %v3737
      %v3739 = vpop.f32.mrb[0].mxu0
      %3740 = vmatprep.mubr.f32.mxu0 0.0
      %3741 = vmatmul.mubr.f32.gmra.mrb[0].mxu0 %v3546
      %v3742 = vpop.f32.mrb[0].mxu0
      %v3743 = vadd.f32 0.0, %v3742
      %v3744 = vpop.f32.mrb[0].mxu0
      %3745 = vmatprep.mubr.f32.mxu0 0.0
      %3746 = vmatmul.mubr.f32.gmra.mrb[0].mxu0 %v3549
      %v3747 = vpop.f32.mrb[0].mxu0
      %v3748 = vadd.f32 0.0, %v3747
      %v3749 = vpop.f32.mrb[0].mxu0
      %3750 = vmatprep.mubr.f32.mxu0 0.0
      %3751 = vmatmul.mubr.f32.gmra.mrb[0].mxu0 %v3552
      %v3752 = vpop.f32.mrb[0].mxu0
      %v3753 = vadd.f32 0.0, %v3752
      %v3754 = vpop.f32.mrb[0].mxu0
      %3755 = vmatprep.mubr.f32.mxu0 0.0
      %3756 = vmatmul.mubr.f32.gmra.mrb[0].mxu0 %v3555
      %v3757 = vpop.f32.mrb[0].mxu0
      %v3758 = vadd.f32 0.0, %v3757
      %v3759 = vpop.f32.mrb[0].mxu0
      %3760 = vmatprep.mubr.f32.mxu0 0.0
      %3761 = vmatmul.mubr.f32.gmra.mrb[0].mxu0 %v3558
      %v3762 = vpop.f32.mrb[0].mxu0
      %v3763 = vadd.f32 0.0, %v3762
      %v3764 = vpop.f32.mrb[0].mxu0
      %3765 = vmatprep.mubr.f32.mxu0 0.0
      %3766 = vmatmul.mubr.f32.gmra.mrb[0].mxu0 %v3561
      %v3767 = vpop.f32.mrb[0].mxu0
      %v3768 = vadd.f32 0.0, %v3767
      %v3769 = vpop.f32.mrb[0].mxu0
      %3770 = vmatprep.mubr.f32.mxu0 0.0
      %3771 = vmatmul.mubr.f32.gmra.mrb[0].mxu0 %v3564
      %v3772 = vpop.f32.mrb[0].mxu0
      %v3773 = vadd.f32 0.0, %v3772
      %v3774 = vpop.f32.mrb[0].mxu0
      %3775 = vmatprep.mubr.f32.mxu0 0.0
      %3776 = vmatmul.mubr.f32.gmra.mrb[0].mxu0 %v3567
      %v3777 = vpop.f32.mrb[0].mxu0
      %v3778 = vadd.f32 0.0, %v3777
      %v3779 = vpop.f32.mrb[0].mxu0
      %3780 = vmatprep.mubr.f32.mxu0 0.0
      %3781 = vmatmul.mubr.f32.gmra.mrb[0].mxu0 %v3570
      %v3782 = vpop.f32.mrb[0].mxu0
      %v3783 = vadd.f32 0.0, %v3782
      %v3784 = vpop.f32.mrb[0].mxu0
      %3785 = vmatprep.mubr.f32.mxu0 0.0
      %3786 = vmatmul.mubr.f32.gmra.mrb[0].mxu0 %v3573
      %v3787 = vpop.f32.mrb[0].mxu0
      %v3788 = vadd.f32 0.0, %v3787
      %v3789 = vpop.f32.mrb[0].mxu0
      %3790 = vmatprep.mubr.f32.mxu0 0.0
      %3791 = vmatmul.mubr.f32.gmra.mrb[0].mxu0 %v3576
      %v3792 = vpop.f32.mrb[0].mxu0
      %v3793 = vadd.f32 0.0, %v3792
      %v3794 = vpop.f32.mrb[0].mxu0
      %3795 = vmatprep.mubr.f32.mxu0 0.0
      %3796 = vmatmul.mubr.f32.gmra.mrb[0].mxu0 %v3579
      %v3797 = vpop.f32.mrb[0].mxu0
      %v3798 = vadd.f32 0.0, %v3797
      %v3799 = vpop.f32.mrb[0].mxu0
      %3800 = vmatprep.mubr.f32.mxu0 0.0
      %3801 = vmatmul.mubr.f32.gmra.mrb[0].mxu0 %v3582
      %v3802 = vpop.f32.mrb[0].mxu0
      %v3803 = vadd.f32 0.0, %v3802
      %v3804 = vpop.f32.mrb[0].mxu0
      %3805 = vmatprep.mubr.f32.mxu0 0.0
      %3806 = vmatmul.mubr.f32.gmra.mrb[0].mxu0 %v3585
      %v3807 = vpop.f32.mrb[0].mxu0
      %v3808 = vadd.f32 0.0, %v3807
      %v3809 = vpop.f32.mrb[0].mxu0
      %3810 = vmatprep.mubr.f32.mxu0 0.0
      %3811 = vmatmul.mubr.f32.gmra.mrb[0].mxu0 %v3588
      %v3812 = vpop.f32.mrb[0].mxu0
      %v3813 = vadd.f32 0.0, %v3812
      %v3814 = vpop.f32.mrb[0].mxu0
      %3815 = vmatprep.mubr.f32.mxu0 0.0
      %3816 = vmatmul.mubr.f32.gmra.mrb[0].mxu0 %v3591
      %v3817 = vpop.f32.mrb[0].mxu0
      %v3818 = vadd.f32 0.0, %v3817
      %v3819 = vpop.f32.mrb[0].mxu0
      %3820 = vdwg.mxu0
      %v3821 = vadd.f32 %v3409, %v3663
      %v3822 = vadd.f32 %v3410, %v3668
      %v3823 = vadd.f32 %v3411, %v3673
      %v3824 = vadd.f32 %v3412, %v3678
      %v3825 = vadd.f32 %v3413, %v3683
      %v3826 = vadd.f32 %v3414, %v3688
      %v3827 = vadd.f32 %v3415, %v3693
      %v3828 = vadd.f32 %v3416, %v3698
      %v3829 = vadd.f32 %v3417, %v3703
      %v3830 = vadd.f32 %v3418, %v3708
      %v3831 = vadd.f32 %v3419, %v3713
      %v3832 = vadd.f32 %v3420, %v3718
      %v3833 = vadd.f32 %v3421, %v3723
      %v3834 = vadd.f32 %v3422, %v3728
      %v3835 = vadd.f32 %v3423, %v3733
      %v3836 = vadd.f32 %v3424, %v3738
      %v3837 = vadd.f32 %v3425, %v3743
      %v3838 = vadd.f32 %v3426, %v3748
      %v3839 = vadd.f32 %v3427, %v3753
      %v3840 = vadd.f32 %v3428, %v3758
      %v3841 = vadd.f32 %v3429, %v3763
      %v3842 = vadd.f32 %v3430, %v3768
      %v3843 = vadd.f32 %v3431, %v3773
      %v3844 = vadd.f32 %v3432, %v3778
      %v3845 = vadd.f32 %v3433, %v3783
      %v3846 = vadd.f32 %v3434, %v3788
      %v3847 = vadd.f32 %v3435, %v3793
      %v3848 = vadd.f32 %v3436, %v3798
      %v3849 = vadd.f32 %v3437, %v3803
      %v3850 = vadd.f32 %v3438, %v3808
      %v3851 = vadd.f32 %v3439, %v3813
      %v3852 = vadd.f32 %v3440, %v3818
      %v3869 = vrot.slane %v3441, 1
      %v3870 = vrot.slane %v3442, 1
      %v3871 = vsel %vm754, %v3869, %v3870
      %v3872 = vrot.slane %v3443, 1
      %v3873 = vsel %vm754, %v3870, %v3872
      %v3874 = vrot.slane %v3444, 1
      %v3875 = vrot.slane %v3445, 1
      %v3876 = vsel %vm754, %v3874, %v3875
      %v3877 = vrot.slane %v3446, 1
      %v3878 = vsel %vm754, %v3875, %v3877
      %v3879 = vrot.slane %v3447, 1
      %v3880 = vrot.slane %v3448, 1
      %v3881 = vsel %vm754, %v3879, %v3880
      %v3882 = vrot.slane %v3449, 1
      %v3883 = vsel %vm754, %v3880, %v3882
      %v3884 = vrot.slane %v3450, 1
      %v3885 = vrot.slane %v3451, 1
      %v3886 = vsel %vm754, %v3884, %v3885
      %v3887 = vrot.slane %v3452, 1
      %v3888 = vsel %vm754, %v3885, %v3887
      %v3889 = vrot.slane %v3453, 1
      %v3890 = vrot.slane %v3454, 1
      %v3891 = vsel %vm754, %v3889, %v3890
      %v3892 = vrot.slane %v3455, 1
      %v3893 = vsel %vm754, %v3890, %v3892
      %v3894 = vrot.slane %v3456, 1
      %v3895 = vrot.slane %v3457, 1
      %v3896 = vsel %vm754, %v3894, %v3895
      %v3897 = vrot.slane %v3458, 1
      %v3898 = vsel %vm754, %v3895, %v3897
      %v3899 = vrot.slane %v3459, 1
      %v3900 = vrot.slane %v3460, 1
      %v3901 = vsel %vm754, %v3899, %v3900
      %v3902 = vrot.slane %v3461, 1
      %v3903 = vsel %vm754, %v3900, %v3902
      %v3904 = vrot.slane %v3462, 1
      %v3905 = vrot.slane %v3463, 1
      %v3906 = vsel %vm754, %v3904, %v3905
      %v3907 = vrot.slane %v3464, 1
      %v3908 = vsel %vm754, %v3905, %v3907
      %v3909 = vrot.slane %v3465, 1
      %v3910 = vrot.slane %v3466, 1
      %v3911 = vsel %vm754, %v3909, %v3910
      %v3912 = vrot.slane %v3467, 1
      %v3913 = vsel %vm754, %v3910, %v3912
      %v3914 = vrot.slane %v3468, 1
      %v3915 = vrot.slane %v3469, 1
      %v3916 = vsel %vm754, %v3914, %v3915
      %v3917 = vrot.slane %v3470, 1
      %v3918 = vsel %vm754, %v3915, %v3917
      %v3919 = vrot.slane %v3471, 1
      %v3920 = vrot.slane %v3472, 1
      %v3921 = vsel %vm754, %v3919, %v3920
      %v3922 = vrot.slane %v3473, 1
      %v3923 = vsel %vm754, %v3920, %v3922
      %v3924 = vrot.slane %v3474, 1
      %v3925 = vrot.slane %v3475, 1
      %v3926 = vsel %vm754, %v3924, %v3925
      %v3927 = vrot.slane %v3476, 1
      %v3928 = vsel %vm754, %v3925, %v3927
      %v3929 = vrot.slane %v3477, 1
      %v3930 = vrot.slane %v3478, 1
      %v3931 = vsel %vm754, %v3929, %v3930
      %v3932 = vrot.slane %v3479, 1
      %v3933 = vsel %vm754, %v3930, %v3932
      %v3934 = vrot.slane %v3480, 1
      %v3935 = vrot.slane %v3481, 1
      %v3936 = vsel %vm754, %v3934, %v3935
      %v3937 = vrot.slane %v3482, 1
      %v3938 = vsel %vm754, %v3935, %v3937
      %v3939 = vrot.slane %v3483, 1
      %v3940 = vrot.slane %v3484, 1
      %v3941 = vsel %vm754, %v3939, %v3940
      %v3942 = vrot.slane %v3485, 1
      %v3943 = vsel %vm754, %v3940, %v3942
      %v3944 = vrot.slane %v3486, 1
      %v3945 = vrot.slane %v3487, 1
      %v3946 = vsel %vm754, %v3944, %v3945
      %v3947 = vrot.slane %v3488, 1
      %v3948 = vsel %vm754, %v3945, %v3947
      %v3949 = vrot.slane %v3495, 4
      %v3950 = vsel %vm439, %v3871, 0
      %v3952 = vsel %vm439, %v3873, 0
      %v3954 = vsel %vm439, %v3876, 0
      %v3956 = vsel %vm439, %v3878, 0
      %v3958 = vsel %vm439, %v3881, 0
      %v3960 = vsel %vm439, %v3883, 0
      %v3962 = vsel %vm439, %v3886, 0
      %v3964 = vsel %vm439, %v3888, 0
      %v3966 = vsel %vm439, %v3891, 0
      %v3968 = vsel %vm439, %v3893, 0
      %v3970 = vsel %vm439, %v3896, 0
      %v3972 = vsel %vm439, %v3898, 0
      %v3974 = vsel %vm439, %v3901, 0
      %v3976 = vsel %vm439, %v3903, 0
      %v3978 = vsel %vm439, %v3906, 0
      %v3980 = vsel %vm439, %v3908, 0
      %v3982 = vsel %vm439, %v3911, 0
      %v3984 = vsel %vm439, %v3913, 0
      %v3986 = vsel %vm439, %v3916, 0
      %v3988 = vsel %vm439, %v3918, 0
      %v3990 = vsel %vm439, %v3921, 0
      %v3992 = vsel %vm439, %v3923, 0
      %v3994 = vsel %vm439, %v3926, 0
      %v3996 = vsel %vm439, %v3928, 0
      %v3998 = vsel %vm439, %v3931, 0
      %v4000 = vsel %vm439, %v3933, 0
      %v4002 = vsel %vm439, %v3936, 0
      %v4004 = vsel %vm439, %v3938, 0
      %v4006 = vsel %vm439, %v3941, 0
      %v4008 = vsel %vm439, %v3943, 0
      %v4010 = vsel %vm439, %v3946, 0
      %v4012 = vsel %vm439, %v3948, 0
      %v4014 = vsel %vm901, %v3949, 0
      %4016 = vmatprep.subr.mxu0 0.0
      %4017 = vmatpush1.msra.mxu0 %v4014
      %4018 = vmatprep.subr.mxu0 0.0
      %4019 = vmatpush1.msra.mxu0 0.0
      %4020 = vmatprep.subr.mxu0 0.0
      %4021 = vmatpush1.msra.mxu0 0.0
      %4022 = vmatprep.subr.mxu0 0.0
      %4023 = vmatpush1.msra.mxu0 0.0
      %4024 = vmatprep.subr.mxu0 0.0
      %4025 = vmatpush1.msra.mxu0 0.0
      %4026 = vmatprep.subr.mxu0 0.0
      %4027 = vmatpush1.msra.mxu0 0.0
      %4028 = vmatprep.subr.mxu0 0.0
      %4029 = vmatpush1.msra.mxu0 0.0
      %4030 = vmatprep.subr.mxu0 0.0
      %4031 = vmatpush1.msra.mxu0 0.0
      %4032 = vmatprep.subr.mxu0 0.0
      %4033 = vmatpush1.msra.mxu0 0.0
      %4034 = vmatprep.subr.mxu0 0.0
      %4035 = vmatpush1.msra.mxu0 0.0
      %4036 = vmatprep.subr.mxu0 0.0
      %4037 = vmatpush1.msra.mxu0 0.0
      %4038 = vmatprep.subr.mxu0 0.0
      %4039 = vmatpush1.msra.mxu0 0.0
      %4040 = vmatprep.subr.mxu0 0.0
      %4041 = vmatpush1.msra.mxu0 0.0
      %4042 = vmatprep.subr.mxu0 0.0
      %4043 = vmatpush1.msra.mxu0 0.0
      %4044 = vmatprep.subr.mxu0 0.0
      %4045 = vmatpush1.msra.mxu0 0.0
      %4046 = vmatprep.subr.mxu0 0.0
      %4047 = vmatpush1.msra.mxu0 0.0
      %4048 = vmatprep.subr.mxu0 0.0
      %4049 = vmatpush1.msra.mxu0 0.0
      %4050 = vmatprep.subr.mxu0 0.0
      %4051 = vmatpush1.msra.mxu0 0.0
      %4052 = vmatprep.subr.mxu0 0.0
      %4053 = vmatpush1.msra.mxu0 0.0
      %4054 = vmatprep.subr.mxu0 0.0
      %4055 = vmatpush1.msra.mxu0 0.0
      %4056 = vmatprep.subr.mxu0 0.0
      %4057 = vmatpush1.msra.mxu0 0.0
      %4058 = vmatprep.subr.mxu0 0.0
      %4059 = vmatpush1.msra.mxu0 0.0
      %4060 = vmatprep.subr.mxu0 0.0
      %4061 = vmatpush1.msra.mxu0 0.0
      %4062 = vmatprep.subr.mxu0 0.0
      %4063 = vmatpush1.msra.mxu0 0.0
      %4064 = vmatprep.subr.mxu0 0.0
      %4065 = vmatpush1.msra.mxu0 0.0
      %4066 = vmatprep.subr.mxu0 0.0
      %4067 = vmatpush1.msra.mxu0 0.0
      %4068 = vmatprep.subr.mxu0 0.0
      %4069 = vmatpush1.msra.mxu0 0.0
      %4070 = vmatprep.subr.mxu0 0.0
      %4071 = vmatpush1.msra.mxu0 0.0
      %4072 = vmatprep.subr.mxu0 0.0
      %4073 = vmatpush1.msra.mxu0 0.0
      %4074 = vmatprep.subr.mxu0 0.0
      %4075 = vmatpush1.msra.mxu0 0.0
      %4076 = vmatprep.subr.mxu0 0.0
      %4077 = vmatpush1.msra.mxu0 0.0
      %4078 = vmatprep.subr.mxu0 0.0
      %4079 = vmatpush1.msra.mxu0 0.0
      %4080 = vmatprep.mubr.f32.mxu0 0.0
      %4081 = vmatmul.mubr.f32.gmra.mrb[0].mxu0 %v3950
      %v4082 = vpop.f32.mrb[0].mxu0
      %v4083 = vadd.f32 0.0, %v4082
      %v4084 = vpop.f32.mrb[0].mxu0
      %4085 = vmatprep.mubr.f32.mxu0 0.0
      %4086 = vmatmul.mubr.f32.gmra.mrb[0].mxu0 %v3952
      %v4087 = vpop.f32.mrb[0].mxu0
      %v4088 = vadd.f32 0.0, %v4087
      %v4089 = vpop.f32.mrb[0].mxu0
      %4090 = vmatprep.mubr.f32.mxu0 0.0
      %4091 = vmatmul.mubr.f32.gmra.mrb[0].mxu0 %v3954
      %v4092 = vpop.f32.mrb[0].mxu0
      %v4093 = vadd.f32 0.0, %v4092
      %v4094 = vpop.f32.mrb[0].mxu0
      %4095 = vmatprep.mubr.f32.mxu0 0.0
      %4096 = vmatmul.mubr.f32.gmra.mrb[0].mxu0 %v3956
      %v4097 = vpop.f32.mrb[0].mxu0
      %v4098 = vadd.f32 0.0, %v4097
      %v4099 = vpop.f32.mrb[0].mxu0
      %4100 = vmatprep.mubr.f32.mxu0 0.0
      %4101 = vmatmul.mubr.f32.gmra.mrb[0].mxu0 %v3958
      %v4102 = vpop.f32.mrb[0].mxu0
      %v4103 = vadd.f32 0.0, %v4102
      %v4104 = vpop.f32.mrb[0].mxu0
      %4105 = vmatprep.mubr.f32.mxu0 0.0
      %4106 = vmatmul.mubr.f32.gmra.mrb[0].mxu0 %v3960
      %v4107 = vpop.f32.mrb[0].mxu0
      %v4108 = vadd.f32 0.0, %v4107
      %v4109 = vpop.f32.mrb[0].mxu0
      %4110 = vmatprep.mubr.f32.mxu0 0.0
      %4111 = vmatmul.mubr.f32.gmra.mrb[0].mxu0 %v3962
      %v4112 = vpop.f32.mrb[0].mxu0
      %v4113 = vadd.f32 0.0, %v4112
      %v4114 = vpop.f32.mrb[0].mxu0
      %4115 = vmatprep.mubr.f32.mxu0 0.0
      %4116 = vmatmul.mubr.f32.gmra.mrb[0].mxu0 %v3964
      %v4117 = vpop.f32.mrb[0].mxu0
      %v4118 = vadd.f32 0.0, %v4117
      %v4119 = vpop.f32.mrb[0].mxu0
      %4120 = vmatprep.mubr.f32.mxu0 0.0
      %4121 = vmatmul.mubr.f32.gmra.mrb[0].mxu0 %v3966
      %v4122 = vpop.f32.mrb[0].mxu0
      %v4123 = vadd.f32 0.0, %v4122
      %v4124 = vpop.f32.mrb[0].mxu0
      %4125 = vmatprep.mubr.f32.mxu0 0.0
      %4126 = vmatmul.mubr.f32.gmra.mrb[0].mxu0 %v3968
      %v4127 = vpop.f32.mrb[0].mxu0
      %v4128 = vadd.f32 0.0, %v4127
      %v4129 = vpop.f32.mrb[0].mxu0
      %4130 = vmatprep.mubr.f32.mxu0 0.0
      %4131 = vmatmul.mubr.f32.gmra.mrb[0].mxu0 %v3970
      %v4132 = vpop.f32.mrb[0].mxu0
      %v4133 = vadd.f32 0.0, %v4132
      %v4134 = vpop.f32.mrb[0].mxu0
      %4135 = vmatprep.mubr.f32.mxu0 0.0
      %4136 = vmatmul.mubr.f32.gmra.mrb[0].mxu0 %v3972
      %v4137 = vpop.f32.mrb[0].mxu0
      %v4138 = vadd.f32 0.0, %v4137
      %v4139 = vpop.f32.mrb[0].mxu0
      %4140 = vmatprep.mubr.f32.mxu0 0.0
      %4141 = vmatmul.mubr.f32.gmra.mrb[0].mxu0 %v3974
      %v4142 = vpop.f32.mrb[0].mxu0
      %v4143 = vadd.f32 0.0, %v4142
      %v4144 = vpop.f32.mrb[0].mxu0
      %4145 = vmatprep.mubr.f32.mxu0 0.0
      %4146 = vmatmul.mubr.f32.gmra.mrb[0].mxu0 %v3976
      %v4147 = vpop.f32.mrb[0].mxu0
      %v4148 = vadd.f32 0.0, %v4147
      %v4149 = vpop.f32.mrb[0].mxu0
      %4150 = vmatprep.mubr.f32.mxu0 0.0
      %4151 = vmatmul.mubr.f32.gmra.mrb[0].mxu0 %v3978
      %v4152 = vpop.f32.mrb[0].mxu0
      %v4153 = vadd.f32 0.0, %v4152
      %v4154 = vpop.f32.mrb[0].mxu0
      %4155 = vmatprep.mubr.f32.mxu0 0.0
      %4156 = vmatmul.mubr.f32.gmra.mrb[0].mxu0 %v3980
      %v4157 = vpop.f32.mrb[0].mxu0
      %v4158 = vadd.f32 0.0, %v4157
      %v4159 = vpop.f32.mrb[0].mxu0
      %4160 = vmatprep.mubr.f32.mxu0 0.0
      %4161 = vmatmul.mubr.f32.gmra.mrb[0].mxu0 %v3982
      %v4162 = vpop.f32.mrb[0].mxu0
      %v4163 = vadd.f32 0.0, %v4162
      %v4164 = vpop.f32.mrb[0].mxu0
      %4165 = vmatprep.mubr.f32.mxu0 0.0
      %4166 = vmatmul.mubr.f32.gmra.mrb[0].mxu0 %v3984
      %v4167 = vpop.f32.mrb[0].mxu0
      %v4168 = vadd.f32 0.0, %v4167
      %v4169 = vpop.f32.mrb[0].mxu0
      %4170 = vmatprep.mubr.f32.mxu0 0.0
      %4171 = vmatmul.mubr.f32.gmra.mrb[0].mxu0 %v3986
      %v4172 = vpop.f32.mrb[0].mxu0
      %v4173 = vadd.f32 0.0, %v4172
      %v4174 = vpop.f32.mrb[0].mxu0
      %4175 = vmatprep.mubr.f32.mxu0 0.0
      %4176 = vmatmul.mubr.f32.gmra.mrb[0].mxu0 %v3988
      %v4177 = vpop.f32.mrb[0].mxu0
      %v4178 = vadd.f32 0.0, %v4177
      %v4179 = vpop.f32.mrb[0].mxu0
      %4180 = vmatprep.mubr.f32.mxu0 0.0
      %4181 = vmatmul.mubr.f32.gmra.mrb[0].mxu0 %v3990
      %v4182 = vpop.f32.mrb[0].mxu0
      %v4183 = vadd.f32 0.0, %v4182
      %v4184 = vpop.f32.mrb[0].mxu0
      %4185 = vmatprep.mubr.f32.mxu0 0.0
      %4186 = vmatmul.mubr.f32.gmra.mrb[0].mxu0 %v3992
      %v4187 = vpop.f32.mrb[0].mxu0
      %v4188 = vadd.f32 0.0, %v4187
      %v4189 = vpop.f32.mrb[0].mxu0
      %4190 = vmatprep.mubr.f32.mxu0 0.0
      %4191 = vmatmul.mubr.f32.gmra.mrb[0].mxu0 %v3994
      %v4192 = vpop.f32.mrb[0].mxu0
      %v4193 = vadd.f32 0.0, %v4192
      %v4194 = vpop.f32.mrb[0].mxu0
      %4195 = vmatprep.mubr.f32.mxu0 0.0
      %4196 = vmatmul.mubr.f32.gmra.mrb[0].mxu0 %v3996
      %v4197 = vpop.f32.mrb[0].mxu0
      %v4198 = vadd.f32 0.0, %v4197
      %v4199 = vpop.f32.mrb[0].mxu0
      %4200 = vmatprep.mubr.f32.mxu0 0.0
      %4201 = vmatmul.mubr.f32.gmra.mrb[0].mxu0 %v3998
      %v4202 = vpop.f32.mrb[0].mxu0
      %v4203 = vadd.f32 0.0, %v4202
      %v4204 = vpop.f32.mrb[0].mxu0
      %4205 = vmatprep.mubr.f32.mxu0 0.0
      %4206 = vmatmul.mubr.f32.gmra.mrb[0].mxu0 %v4000
      %v4207 = vpop.f32.mrb[0].mxu0
      %v4208 = vadd.f32 0.0, %v4207
      %v4209 = vpop.f32.mrb[0].mxu0
      %4210 = vmatprep.mubr.f32.mxu0 0.0
      %4211 = vmatmul.mubr.f32.gmra.mrb[0].mxu0 %v4002
      %v4212 = vpop.f32.mrb[0].mxu0
      %v4213 = vadd.f32 0.0, %v4212
      %v4214 = vpop.f32.mrb[0].mxu0
      %4215 = vmatprep.mubr.f32.mxu0 0.0
      %4216 = vmatmul.mubr.f32.gmra.mrb[0].mxu0 %v4004
      %v4217 = vpop.f32.mrb[0].mxu0
      %v4218 = vadd.f32 0.0, %v4217
      %v4219 = vpop.f32.mrb[0].mxu0
      %4220 = vmatprep.mubr.f32.mxu0 0.0
      %4221 = vmatmul.mubr.f32.gmra.mrb[0].mxu0 %v4006
      %v4222 = vpop.f32.mrb[0].mxu0
      %v4223 = vadd.f32 0.0, %v4222
      %v4224 = vpop.f32.mrb[0].mxu0
      %4225 = vmatprep.mubr.f32.mxu0 0.0
      %4226 = vmatmul.mubr.f32.gmra.mrb[0].mxu0 %v4008
      %v4227 = vpop.f32.mrb[0].mxu0
      %v4228 = vadd.f32 0.0, %v4227
      %v4229 = vpop.f32.mrb[0].mxu0
      %4230 = vmatprep.mubr.f32.mxu0 0.0
      %4231 = vmatmul.mubr.f32.gmra.mrb[0].mxu0 %v4010
      %v4232 = vpop.f32.mrb[0].mxu0
      %v4233 = vadd.f32 0.0, %v4232
      %v4234 = vpop.f32.mrb[0].mxu0
      %4235 = vmatprep.mubr.f32.mxu0 0.0
      %4236 = vmatmul.mubr.f32.gmra.mrb[0].mxu0 %v4012
      %v4237 = vpop.f32.mrb[0].mxu0
      %v4238 = vadd.f32 0.0, %v4237
      %v4239 = vpop.f32.mrb[0].mxu0
      %4240 = vdwg.mxu0
      %v4241 = vadd.f32 %v3821, %v4083
      %v4242 = vadd.f32 %v3822, %v4088
      %v4243 = vadd.f32 %v3823, %v4093
      %v4244 = vadd.f32 %v3824, %v4098
      %v4245 = vadd.f32 %v3825, %v4103
      %v4246 = vadd.f32 %v3826, %v4108
      %v4247 = vadd.f32 %v3827, %v4113
      %v4248 = vadd.f32 %v3828, %v4118
      %v4249 = vadd.f32 %v3829, %v4123
      %v4250 = vadd.f32 %v3830, %v4128
      %v4251 = vadd.f32 %v3831, %v4133
      %v4252 = vadd.f32 %v3832, %v4138
      %v4253 = vadd.f32 %v3833, %v4143
      %v4254 = vadd.f32 %v3834, %v4148
      %v4255 = vadd.f32 %v3835, %v4153
      %v4256 = vadd.f32 %v3836, %v4158
      %v4257 = vadd.f32 %v3837, %v4163
      %v4258 = vadd.f32 %v3838, %v4168
      %v4259 = vadd.f32 %v3839, %v4173
      %v4260 = vadd.f32 %v3840, %v4178
      %v4261 = vadd.f32 %v3841, %v4183
      %v4262 = vadd.f32 %v3842, %v4188
      %v4263 = vadd.f32 %v3843, %v4193
      %v4264 = vadd.f32 %v3844, %v4198
      %v4265 = vadd.f32 %v3845, %v4203
      %v4266 = vadd.f32 %v3846, %v4208
      %v4267 = vadd.f32 %v3847, %v4213
      %v4268 = vadd.f32 %v3848, %v4218
      %v4269 = vadd.f32 %v3849, %v4223
      %v4270 = vadd.f32 %v3850, %v4228
      %v4271 = vadd.f32 %v3851, %v4233
      %v4272 = vadd.f32 %v3852, %v4238
      %v4273 = vrot.slane %v3441, 2
      %v4274 = vrot.slane %v3442, 2
      %v4275 = vsel %vm1420, %v4273, %v4274
      %v4276 = vrot.slane %v3443, 2
      %v4277 = vsel %vm1420, %v4274, %v4276
      %v4278 = vrot.slane %v3444, 2
      %v4279 = vrot.slane %v3445, 2
      %v4280 = vsel %vm1420, %v4278, %v4279
      %v4281 = vrot.slane %v3446, 2
      %v4282 = vsel %vm1420, %v4279, %v4281
      %v4283 = vrot.slane %v3447, 2
      %v4284 = vrot.slane %v3448, 2
      %v4285 = vsel %vm1420, %v4283, %v4284
      %v4286 = vrot.slane %v3449, 2
      %v4287 = vsel %vm1420, %v4284, %v4286
      %v4288 = vrot.slane %v3450, 2
      %v4289 = vrot.slane %v3451, 2
      %v4290 = vsel %vm1420, %v4288, %v4289
      %v4291 = vrot.slane %v3452, 2
      %v4292 = vsel %vm1420, %v4289, %v4291
      %v4293 = vrot.slane %v3453, 2
      %v4294 = vrot.slane %v3454, 2
      %v4295 = vsel %vm1420, %v4293, %v4294
      %v4296 = vrot.slane %v3455, 2
      %v4297 = vsel %vm1420, %v4294, %v4296
      %v4298 = vrot.slane %v3456, 2
      %v4299 = vrot.slane %v3457, 2
      %v4300 = vsel %vm1420, %v4298, %v4299
      %v4301 = vrot.slane %v3458, 2
      %v4302 = vsel %vm1420, %v4299, %v4301
      %v4303 = vrot.slane %v3459, 2
      %v4304 = vrot.slane %v3460, 2
      %v4305 = vsel %vm1420, %v4303, %v4304
      %v4306 = vrot.slane %v3461, 2
      %v4307 = vsel %vm1420, %v4304, %v4306
      %v4308 = vrot.slane %v3462, 2
      %v4309 = vrot.slane %v3463, 2
      %v4310 = vsel %vm1420, %v4308, %v4309
      %v4311 = vrot.slane %v3464, 2
      %v4312 = vsel %vm1420, %v4309, %v4311
      %v4313 = vrot.slane %v3465, 2
      %v4314 = vrot.slane %v3466, 2
      %v4315 = vsel %vm1420, %v4313, %v4314
      %v4316 = vrot.slane %v3467, 2
      %v4317 = vsel %vm1420, %v4314, %v4316
      %v4318 = vrot.slane %v3468, 2
      %v4319 = vrot.slane %v3469, 2
      %v4320 = vsel %vm1420, %v4318, %v4319
      %v4321 = vrot.slane %v3470, 2
      %v4322 = vsel %vm1420, %v4319, %v4321
      %v4323 = vrot.slane %v3471, 2
      %v4324 = vrot.slane %v3472, 2
      %v4325 = vsel %vm1420, %v4323, %v4324
      %v4326 = vrot.slane %v3473, 2
      %v4327 = vsel %vm1420, %v4324, %v4326
      %v4328 = vrot.slane %v3474, 2
      %v4329 = vrot.slane %v3475, 2
      %v4330 = vsel %vm1420, %v4328, %v4329
      %v4331 = vrot.slane %v3476, 2
      %v4332 = vsel %vm1420, %v4329, %v4331
      %v4333 = vrot.slane %v3477, 2
      %v4334 = vrot.slane %v3478, 2
      %v4335 = vsel %vm1420, %v4333, %v4334
      %v4336 = vrot.slane %v3479, 2
      %v4337 = vsel %vm1420, %v4334, %v4336
      %v4338 = vrot.slane %v3480, 2
      %v4339 = vrot.slane %v3481, 2
      %v4340 = vsel %vm1420, %v4338, %v4339
      %v4341 = vrot.slane %v3482, 2
      %v4342 = vsel %vm1420, %v4339, %v4341
      %v4343 = vrot.slane %v3483, 2
      %v4344 = vrot.slane %v3484, 2
      %v4345 = vsel %vm1420, %v4343, %v4344
      %v4346 = vrot.slane %v3485, 2
      %v4347 = vsel %vm1420, %v4344, %v4346
      %v4348 = vrot.slane %v3486, 2
      %v4349 = vrot.slane %v3487, 2
      %v4350 = vsel %vm1420, %v4348, %v4349
      %v4351 = vrot.slane %v3488, 2
      %v4352 = vsel %vm1420, %v4349, %v4351
      %v4353 = vsel %vm439, %v4275, 0
      %v4355 = vsel %vm439, %v4277, 0
      %v4357 = vsel %vm439, %v4280, 0
      %v4359 = vsel %vm439, %v4282, 0
      %v4361 = vsel %vm439, %v4285, 0
      %v4363 = vsel %vm439, %v4287, 0
      %v4365 = vsel %vm439, %v4290, 0
      %v4367 = vsel %vm439, %v4292, 0
      %v4369 = vsel %vm439, %v4295, 0
      %v4371 = vsel %vm439, %v4297, 0
      %v4373 = vsel %vm439, %v4300, 0
      %v4375 = vsel %vm439, %v4302, 0
      %v4377 = vsel %vm439, %v4305, 0
      %v4379 = vsel %vm439, %v4307, 0
      %v4381 = vsel %vm439, %v4310, 0
      %v4383 = vsel %vm439, %v4312, 0
      %v4385 = vsel %vm439, %v4315, 0
      %v4387 = vsel %vm439, %v4317, 0
      %v4389 = vsel %vm439, %v4320, 0
      %v4391 = vsel %vm439, %v4322, 0
      %v4393 = vsel %vm439, %v4325, 0
      %v4395 = vsel %vm439, %v4327, 0
      %v4397 = vsel %vm439, %v4330, 0
      %v4399 = vsel %vm439, %v4332, 0
      %v4401 = vsel %vm439, %v4335, 0
      %v4403 = vsel %vm439, %v4337, 0
      %v4405 = vsel %vm439, %v4340, 0
      %v4407 = vsel %vm439, %v4342, 0
      %v4409 = vsel %vm439, %v4345, 0
      %v4411 = vsel %vm439, %v4347, 0
      %v4413 = vsel %vm439, %v4350, 0
      %v4415 = vsel %vm439, %v4352, 0
      %v4418 = vsel %vm901, %v3496, 0
      %4420 = vmatprep.subr.mxu0 0.0
      %4421 = vmatpush1.msra.mxu0 %v4418
      %4422 = vmatprep.subr.mxu0 0.0
      %4423 = vmatpush1.msra.mxu0 0.0
      %4424 = vmatprep.subr.mxu0 0.0
      %4425 = vmatpush1.msra.mxu0 0.0
      %4426 = vmatprep.subr.mxu0 0.0
      %4427 = vmatpush1.msra.mxu0 0.0
      %4428 = vmatprep.subr.mxu0 0.0
      %4429 = vmatpush1.msra.mxu0 0.0
      %4430 = vmatprep.subr.mxu0 0.0
      %4431 = vmatpush1.msra.mxu0 0.0
      %4432 = vmatprep.subr.mxu0 0.0
      %4433 = vmatpush1.msra.mxu0 0.0
      %4434 = vmatprep.subr.mxu0 0.0
      %4435 = vmatpush1.msra.mxu0 0.0
      %4436 = vmatprep.subr.mxu0 0.0
      %4437 = vmatpush1.msra.mxu0 0.0
      %4438 = vmatprep.subr.mxu0 0.0
      %4439 = vmatpush1.msra.mxu0 0.0
      %4440 = vmatprep.subr.mxu0 0.0
      %4441 = vmatpush1.msra.mxu0 0.0
      %4442 = vmatprep.subr.mxu0 0.0
      %4443 = vmatpush1.msra.mxu0 0.0
      %4444 = vmatprep.subr.mxu0 0.0
      %4445 = vmatpush1.msra.mxu0 0.0
      %4446 = vmatprep.subr.mxu0 0.0
      %4447 = vmatpush1.msra.mxu0 0.0
      %4448 = vmatprep.subr.mxu0 0.0
      %4449 = vmatpush1.msra.mxu0 0.0
      %4450 = vmatprep.subr.mxu0 0.0
      %4451 = vmatpush1.msra.mxu0 0.0
      %4452 = vmatprep.subr.mxu0 0.0
      %4453 = vmatpush1.msra.mxu0 0.0
      %4454 = vmatprep.subr.mxu0 0.0
      %4455 = vmatpush1.msra.mxu0 0.0
      %4456 = vmatprep.subr.mxu0 0.0
      %4457 = vmatpush1.msra.mxu0 0.0
      %4458 = vmatprep.subr.mxu0 0.0
      %4459 = vmatpush1.msra.mxu0 0.0
      %4460 = vmatprep.subr.mxu0 0.0
      %4461 = vmatpush1.msra.mxu0 0.0
      %4462 = vmatprep.subr.mxu0 0.0
      %4463 = vmatpush1.msra.mxu0 0.0
      %4464 = vmatprep.subr.mxu0 0.0
      %4465 = vmatpush1.msra.mxu0 0.0
      %4466 = vmatprep.subr.mxu0 0.0
      %4467 = vmatpush1.msra.mxu0 0.0
      %4468 = vmatprep.subr.mxu0 0.0
      %4469 = vmatpush1.msra.mxu0 0.0
      %4470 = vmatprep.subr.mxu0 0.0
      %4471 = vmatpush1.msra.mxu0 0.0
      %4472 = vmatprep.subr.mxu0 0.0
      %4473 = vmatpush1.msra.mxu0 0.0
      %4474 = vmatprep.subr.mxu0 0.0
      %4475 = vmatpush1.msra.mxu0 0.0
      %4476 = vmatprep.subr.mxu0 0.0
      %4477 = vmatpush1.msra.mxu0 0.0
      %4478 = vmatprep.subr.mxu0 0.0
      %4479 = vmatpush1.msra.mxu0 0.0
      %4480 = vmatprep.subr.mxu0 0.0
      %4481 = vmatpush1.msra.mxu0 0.0
      %4482 = vmatprep.subr.mxu0 0.0
      %4483 = vmatpush1.msra.mxu0 0.0
      %4484 = vmatprep.mubr.f32.mxu0 0.0
      %4485 = vmatmul.mubr.f32.gmra.mrb[0].mxu0 %v4353
      %v4486 = vpop.f32.mrb[0].mxu0
      %v4487 = vadd.f32 0.0, %v4486
      %v4488 = vpop.f32.mrb[0].mxu0
      %4489 = vmatprep.mubr.f32.mxu0 0.0
      %4490 = vmatmul.mubr.f32.gmra.mrb[0].mxu0 %v4355
      %v4491 = vpop.f32.mrb[0].mxu0
      %v4492 = vadd.f32 0.0, %v4491
      %v4493 = vpop.f32.mrb[0].mxu0
      %4494 = vmatprep.mubr.f32.mxu0 0.0
      %4495 = vmatmul.mubr.f32.gmra.mrb[0].mxu0 %v4357
      %v4496 = vpop.f32.mrb[0].mxu0
      %v4497 = vadd.f32 0.0, %v4496
      %v4498 = vpop.f32.mrb[0].mxu0
      %4499 = vmatprep.mubr.f32.mxu0 0.0
      %4500 = vmatmul.mubr.f32.gmra.mrb[0].mxu0 %v4359
      %v4501 = vpop.f32.mrb[0].mxu0
      %v4502 = vadd.f32 0.0, %v4501
      %v4503 = vpop.f32.mrb[0].mxu0
      %4504 = vmatprep.mubr.f32.mxu0 0.0
      %4505 = vmatmul.mubr.f32.gmra.mrb[0].mxu0 %v4361
      %v4506 = vpop.f32.mrb[0].mxu0
      %v4507 = vadd.f32 0.0, %v4506
      %v4508 = vpop.f32.mrb[0].mxu0
      %4509 = vmatprep.mubr.f32.mxu0 0.0
      %4510 = vmatmul.mubr.f32.gmra.mrb[0].mxu0 %v4363
      %v4511 = vpop.f32.mrb[0].mxu0
      %v4512 = vadd.f32 0.0, %v4511
      %v4513 = vpop.f32.mrb[0].mxu0
      %4514 = vmatprep.mubr.f32.mxu0 0.0
      %4515 = vmatmul.mubr.f32.gmra.mrb[0].mxu0 %v4365
      %v4516 = vpop.f32.mrb[0].mxu0
      %v4517 = vadd.f32 0.0, %v4516
      %v4518 = vpop.f32.mrb[0].mxu0
      %4519 = vmatprep.mubr.f32.mxu0 0.0
      %4520 = vmatmul.mubr.f32.gmra.mrb[0].mxu0 %v4367
      %v4521 = vpop.f32.mrb[0].mxu0
      %v4522 = vadd.f32 0.0, %v4521
      %v4523 = vpop.f32.mrb[0].mxu0
      %4524 = vmatprep.mubr.f32.mxu0 0.0
      %4525 = vmatmul.mubr.f32.gmra.mrb[0].mxu0 %v4369
      %v4526 = vpop.f32.mrb[0].mxu0
      %v4527 = vadd.f32 0.0, %v4526
      %v4528 = vpop.f32.mrb[0].mxu0
      %4529 = vmatprep.mubr.f32.mxu0 0.0
      %4530 = vmatmul.mubr.f32.gmra.mrb[0].mxu0 %v4371
      %v4531 = vpop.f32.mrb[0].mxu0
      %v4532 = vadd.f32 0.0, %v4531
      %v4533 = vpop.f32.mrb[0].mxu0
      %4534 = vmatprep.mubr.f32.mxu0 0.0
      %4535 = vmatmul.mubr.f32.gmra.mrb[0].mxu0 %v4373
      %v4536 = vpop.f32.mrb[0].mxu0
      %v4537 = vadd.f32 0.0, %v4536
      %v4538 = vpop.f32.mrb[0].mxu0
      %4539 = vmatprep.mubr.f32.mxu0 0.0
      %4540 = vmatmul.mubr.f32.gmra.mrb[0].mxu0 %v4375
      %v4541 = vpop.f32.mrb[0].mxu0
      %v4542 = vadd.f32 0.0, %v4541
      %v4543 = vpop.f32.mrb[0].mxu0
      %4544 = vmatprep.mubr.f32.mxu0 0.0
      %4545 = vmatmul.mubr.f32.gmra.mrb[0].mxu0 %v4377
      %v4546 = vpop.f32.mrb[0].mxu0
      %v4547 = vadd.f32 0.0, %v4546
      %v4548 = vpop.f32.mrb[0].mxu0
      %4549 = vmatprep.mubr.f32.mxu0 0.0
      %4550 = vmatmul.mubr.f32.gmra.mrb[0].mxu0 %v4379
      %v4551 = vpop.f32.mrb[0].mxu0
      %v4552 = vadd.f32 0.0, %v4551
      %v4553 = vpop.f32.mrb[0].mxu0
      %4554 = vmatprep.mubr.f32.mxu0 0.0
      %4555 = vmatmul.mubr.f32.gmra.mrb[0].mxu0 %v4381
      %v4556 = vpop.f32.mrb[0].mxu0
      %v4557 = vadd.f32 0.0, %v4556
      %v4558 = vpop.f32.mrb[0].mxu0
      %4559 = vmatprep.mubr.f32.mxu0 0.0
      %4560 = vmatmul.mubr.f32.gmra.mrb[0].mxu0 %v4383
      %v4561 = vpop.f32.mrb[0].mxu0
      %v4562 = vadd.f32 0.0, %v4561
      %v4563 = vpop.f32.mrb[0].mxu0
      %4564 = vmatprep.mubr.f32.mxu0 0.0
      %4565 = vmatmul.mubr.f32.gmra.mrb[0].mxu0 %v4385
      %v4566 = vpop.f32.mrb[0].mxu0
      %v4567 = vadd.f32 0.0, %v4566
      %v4568 = vpop.f32.mrb[0].mxu0
      %4569 = vmatprep.mubr.f32.mxu0 0.0
      %4570 = vmatmul.mubr.f32.gmra.mrb[0].mxu0 %v4387
      %v4571 = vpop.f32.mrb[0].mxu0
      %v4572 = vadd.f32 0.0, %v4571
      %v4573 = vpop.f32.mrb[0].mxu0
      %4574 = vmatprep.mubr.f32.mxu0 0.0
      %4575 = vmatmul.mubr.f32.gmra.mrb[0].mxu0 %v4389
      %v4576 = vpop.f32.mrb[0].mxu0
      %v4577 = vadd.f32 0.0, %v4576
      %v4578 = vpop.f32.mrb[0].mxu0
      %4579 = vmatprep.mubr.f32.mxu0 0.0
      %4580 = vmatmul.mubr.f32.gmra.mrb[0].mxu0 %v4391
      %v4581 = vpop.f32.mrb[0].mxu0
      %v4582 = vadd.f32 0.0, %v4581
      %v4583 = vpop.f32.mrb[0].mxu0
      %4584 = vmatprep.mubr.f32.mxu0 0.0
      %4585 = vmatmul.mubr.f32.gmra.mrb[0].mxu0 %v4393
      %v4586 = vpop.f32.mrb[0].mxu0
      %v4587 = vadd.f32 0.0, %v4586
      %v4588 = vpop.f32.mrb[0].mxu0
      %4589 = vmatprep.mubr.f32.mxu0 0.0
      %4590 = vmatmul.mubr.f32.gmra.mrb[0].mxu0 %v4395
      %v4591 = vpop.f32.mrb[0].mxu0
      %v4592 = vadd.f32 0.0, %v4591
      %v4593 = vpop.f32.mrb[0].mxu0
      %4594 = vmatprep.mubr.f32.mxu0 0.0
      %4595 = vmatmul.mubr.f32.gmra.mrb[0].mxu0 %v4397
      %v4596 = vpop.f32.mrb[0].mxu0
      %v4597 = vadd.f32 0.0, %v4596
      %v4598 = vpop.f32.mrb[0].mxu0
      %4599 = vmatprep.mubr.f32.mxu0 0.0
      %4600 = vmatmul.mubr.f32.gmra.mrb[0].mxu0 %v4399
      %v4601 = vpop.f32.mrb[0].mxu0
      %v4602 = vadd.f32 0.0, %v4601
      %v4603 = vpop.f32.mrb[0].mxu0
      %4604 = vmatprep.mubr.f32.mxu0 0.0
      %4605 = vmatmul.mubr.f32.gmra.mrb[0].mxu0 %v4401
      %v4606 = vpop.f32.mrb[0].mxu0
      %v4607 = vadd.f32 0.0, %v4606
      %v4608 = vpop.f32.mrb[0].mxu0
      %4609 = vmatprep.mubr.f32.mxu0 0.0
      %4610 = vmatmul.mubr.f32.gmra.mrb[0].mxu0 %v4403
      %v4611 = vpop.f32.mrb[0].mxu0
      %v4612 = vadd.f32 0.0, %v4611
      %v4613 = vpop.f32.mrb[0].mxu0
      %4614 = vmatprep.mubr.f32.mxu0 0.0
      %4615 = vmatmul.mubr.f32.gmra.mrb[0].mxu0 %v4405
      %v4616 = vpop.f32.mrb[0].mxu0
      %v4617 = vadd.f32 0.0, %v4616
      %v4618 = vpop.f32.mrb[0].mxu0
      %4619 = vmatprep.mubr.f32.mxu0 0.0
      %4620 = vmatmul.mubr.f32.gmra.mrb[0].mxu0 %v4407
      %v4621 = vpop.f32.mrb[0].mxu0
      %v4622 = vadd.f32 0.0, %v4621
      %v4623 = vpop.f32.mrb[0].mxu0
      %4624 = vmatprep.mubr.f32.mxu0 0.0
      %4625 = vmatmul.mubr.f32.gmra.mrb[0].mxu0 %v4409
      %v4626 = vpop.f32.mrb[0].mxu0
      %v4627 = vadd.f32 0.0, %v4626
      %v4628 = vpop.f32.mrb[0].mxu0
      %4629 = vmatprep.mubr.f32.mxu0 0.0
      %4630 = vmatmul.mubr.f32.gmra.mrb[0].mxu0 %v4411
      %v4631 = vpop.f32.mrb[0].mxu0
      %v4632 = vadd.f32 0.0, %v4631
      %v4633 = vpop.f32.mrb[0].mxu0
      %4634 = vmatprep.mubr.f32.mxu0 0.0
      %4635 = vmatmul.mubr.f32.gmra.mrb[0].mxu0 %v4413
      %v4636 = vpop.f32.mrb[0].mxu0
      %v4637 = vadd.f32 0.0, %v4636
      %v4638 = vpop.f32.mrb[0].mxu0
      %4639 = vmatprep.mubr.f32.mxu0 0.0
      %4640 = vmatmul.mubr.f32.gmra.mrb[0].mxu0 %v4415
      %v4641 = vpop.f32.mrb[0].mxu0
      %v4642 = vadd.f32 0.0, %v4641
      %v4643 = vpop.f32.mrb[0].mxu0
      %4644 = vdwg.mxu0
      %v4645 = vadd.f32 %v4241, %v4487
      %v4646 = vadd.f32 %v4242, %v4492
      %v4647 = vadd.f32 %v4243, %v4497
      %v4648 = vadd.f32 %v4244, %v4502
      %v4649 = vadd.f32 %v4245, %v4507
      %v4650 = vadd.f32 %v4246, %v4512
      %v4651 = vadd.f32 %v4247, %v4517
      %v4652 = vadd.f32 %v4248, %v4522
      %v4653 = vadd.f32 %v4249, %v4527
      %v4654 = vadd.f32 %v4250, %v4532
      %v4655 = vadd.f32 %v4251, %v4537
      %v4656 = vadd.f32 %v4252, %v4542
      %v4657 = vadd.f32 %v4253, %v4547
      %v4658 = vadd.f32 %v4254, %v4552
      %v4659 = vadd.f32 %v4255, %v4557
      %v4660 = vadd.f32 %v4256, %v4562
      %v4661 = vadd.f32 %v4257, %v4567
      %v4662 = vadd.f32 %v4258, %v4572
      %v4663 = vadd.f32 %v4259, %v4577
      %v4664 = vadd.f32 %v4260, %v4582
      %v4665 = vadd.f32 %v4261, %v4587
      %v4666 = vadd.f32 %v4262, %v4592
      %v4667 = vadd.f32 %v4263, %v4597
      %v4668 = vadd.f32 %v4264, %v4602
      %v4669 = vadd.f32 %v4265, %v4607
      %v4670 = vadd.f32 %v4266, %v4612
      %v4671 = vadd.f32 %v4267, %v4617
      %v4672 = vadd.f32 %v4268, %v4622
      %v4673 = vadd.f32 %v4269, %v4627
      %v4674 = vadd.f32 %v4270, %v4632
      %v4675 = vadd.f32 %v4271, %v4637
      %v4676 = vadd.f32 %v4272, %v4642
      %s4677 = scalar_lea.vmem %s3, 16
      %v4678 = vld [vmem:[%s4677] sm:$0xff]
      %v4679 = vld [vmem:[%s4677 + $0x8] sm:$0xf]
      %v4681 = vsel %vm439, %v3489, 0
      %v4684 = vsel %vm439, %v3490, 0
      %v4687 = vsel %vm901, %v4678, 0
      %4689 = vmatprep.subr.mxu0 0.0
      %4690 = vmatpush1.msra.mxu0 %v4687
      %4691 = vmatprep.subr.mxu0 0.0
      %4692 = vmatpush1.msra.mxu0 0.0
      %4693 = vmatprep.subr.mxu0 0.0
      %4694 = vmatpush1.msra.mxu0 0.0
      %4695 = vmatprep.subr.mxu0 0.0
      %4696 = vmatpush1.msra.mxu0 0.0
      %4697 = vmatprep.subr.mxu0 0.0
      %4698 = vmatpush1.msra.mxu0 0.0
      %4699 = vmatprep.subr.mxu0 0.0
      %4700 = vmatpush1.msra.mxu0 0.0
      %4701 = vmatprep.subr.mxu0 0.0
      %4702 = vmatpush1.msra.mxu0 0.0
      %4703 = vmatprep.subr.mxu0 0.0
      %4704 = vmatpush1.msra.mxu0 0.0
      %4705 = vmatprep.subr.mxu0 0.0
      %4706 = vmatpush1.msra.mxu0 0.0
      %4707 = vmatprep.subr.mxu0 0.0
      %4708 = vmatpush1.msra.mxu0 0.0
      %4709 = vmatprep.subr.mxu0 0.0
      %4710 = vmatpush1.msra.mxu0 0.0
      %4711 = vmatprep.subr.mxu0 0.0
      %4712 = vmatpush1.msra.mxu0 0.0
      %4713 = vmatprep.subr.mxu0 0.0
      %4714 = vmatpush1.msra.mxu0 0.0
      %4715 = vmatprep.subr.mxu0 0.0
      %4716 = vmatpush1.msra.mxu0 0.0
      %4717 = vmatprep.subr.mxu0 0.0
      %4718 = vmatpush1.msra.mxu0 0.0
      %4719 = vmatprep.subr.mxu0 0.0
      %4720 = vmatpush1.msra.mxu0 0.0
      %4721 = vmatprep.subr.mxu0 0.0
      %4722 = vmatpush1.msra.mxu0 0.0
      %4723 = vmatprep.subr.mxu0 0.0
      %4724 = vmatpush1.msra.mxu0 0.0
      %4725 = vmatprep.subr.mxu0 0.0
      %4726 = vmatpush1.msra.mxu0 0.0
      %4727 = vmatprep.subr.mxu0 0.0
      %4728 = vmatpush1.msra.mxu0 0.0
      %4729 = vmatprep.subr.mxu0 0.0
      %4730 = vmatpush1.msra.mxu0 0.0
      %4731 = vmatprep.subr.mxu0 0.0
      %4732 = vmatpush1.msra.mxu0 0.0
      %4733 = vmatprep.subr.mxu0 0.0
      %4734 = vmatpush1.msra.mxu0 0.0
      %4735 = vmatprep.subr.mxu0 0.0
      %4736 = vmatpush1.msra.mxu0 0.0
      %4737 = vmatprep.subr.mxu0 0.0
      %4738 = vmatpush1.msra.mxu0 0.0
      %4739 = vmatprep.subr.mxu0 0.0
      %4740 = vmatpush1.msra.mxu0 0.0
      %4741 = vmatprep.subr.mxu0 0.0
      %4742 = vmatpush1.msra.mxu0 0.0
      %4743 = vmatprep.subr.mxu0 0.0
      %4744 = vmatpush1.msra.mxu0 0.0
      %4745 = vmatprep.subr.mxu0 0.0
      %4746 = vmatpush1.msra.mxu0 0.0
      %4747 = vmatprep.subr.mxu0 0.0
      %4748 = vmatpush1.msra.mxu0 0.0
      %4749 = vmatprep.subr.mxu0 0.0
      %4750 = vmatpush1.msra.mxu0 0.0
      %4751 = vmatprep.subr.mxu0 0.0
      %4752 = vmatpush1.msra.mxu0 0.0
      %4753 = vmatprep.mubr.f32.mxu0 0.0
      %4754 = vmatmul.mubr.f32.gmra.mrb[0].mxu0 %v3504
      %v4755 = vpop.f32.mrb[0].mxu0
      %v4756 = vadd.f32 0.0, %v4755
      %v4757 = vpop.f32.mrb[0].mxu0
      %4758 = vmatprep.mubr.f32.mxu0 0.0
      %4759 = vmatmul.mubr.f32.gmra.mrb[0].mxu0 %v3507
      %v4760 = vpop.f32.mrb[0].mxu0
      %v4761 = vadd.f32 0.0, %v4760
      %v4762 = vpop.f32.mrb[0].mxu0
      %4763 = vmatprep.mubr.f32.mxu0 0.0
      %4764 = vmatmul.mubr.f32.gmra.mrb[0].mxu0 %v3510
      %v4765 = vpop.f32.mrb[0].mxu0
      %v4766 = vadd.f32 0.0, %v4765
      %v4767 = vpop.f32.mrb[0].mxu0
      %4768 = vmatprep.mubr.f32.mxu0 0.0
      %4769 = vmatmul.mubr.f32.gmra.mrb[0].mxu0 %v3513
      %v4770 = vpop.f32.mrb[0].mxu0
      %v4771 = vadd.f32 0.0, %v4770
      %v4772 = vpop.f32.mrb[0].mxu0
      %4773 = vmatprep.mubr.f32.mxu0 0.0
      %4774 = vmatmul.mubr.f32.gmra.mrb[0].mxu0 %v3516
      %v4775 = vpop.f32.mrb[0].mxu0
      %v4776 = vadd.f32 0.0, %v4775
      %v4777 = vpop.f32.mrb[0].mxu0
      %4778 = vmatprep.mubr.f32.mxu0 0.0
      %4779 = vmatmul.mubr.f32.gmra.mrb[0].mxu0 %v3519
      %v4780 = vpop.f32.mrb[0].mxu0
      %v4781 = vadd.f32 0.0, %v4780
      %v4782 = vpop.f32.mrb[0].mxu0
      %4783 = vmatprep.mubr.f32.mxu0 0.0
      %4784 = vmatmul.mubr.f32.gmra.mrb[0].mxu0 %v3522
      %v4785 = vpop.f32.mrb[0].mxu0
      %v4786 = vadd.f32 0.0, %v4785
      %v4787 = vpop.f32.mrb[0].mxu0
      %4788 = vmatprep.mubr.f32.mxu0 0.0
      %4789 = vmatmul.mubr.f32.gmra.mrb[0].mxu0 %v3525
      %v4790 = vpop.f32.mrb[0].mxu0
      %v4791 = vadd.f32 0.0, %v4790
      %v4792 = vpop.f32.mrb[0].mxu0
      %4793 = vmatprep.mubr.f32.mxu0 0.0
      %4794 = vmatmul.mubr.f32.gmra.mrb[0].mxu0 %v3528
      %v4795 = vpop.f32.mrb[0].mxu0
      %v4796 = vadd.f32 0.0, %v4795
      %v4797 = vpop.f32.mrb[0].mxu0
      %4798 = vmatprep.mubr.f32.mxu0 0.0
      %4799 = vmatmul.mubr.f32.gmra.mrb[0].mxu0 %v3531
      %v4800 = vpop.f32.mrb[0].mxu0
      %v4801 = vadd.f32 0.0, %v4800
      %v4802 = vpop.f32.mrb[0].mxu0
      %4803 = vmatprep.mubr.f32.mxu0 0.0
      %4804 = vmatmul.mubr.f32.gmra.mrb[0].mxu0 %v3534
      %v4805 = vpop.f32.mrb[0].mxu0
      %v4806 = vadd.f32 0.0, %v4805
      %v4807 = vpop.f32.mrb[0].mxu0
      %4808 = vmatprep.mubr.f32.mxu0 0.0
      %4809 = vmatmul.mubr.f32.gmra.mrb[0].mxu0 %v3537
      %v4810 = vpop.f32.mrb[0].mxu0
      %v4811 = vadd.f32 0.0, %v4810
      %v4812 = vpop.f32.mrb[0].mxu0
      %4813 = vmatprep.mubr.f32.mxu0 0.0
      %4814 = vmatmul.mubr.f32.gmra.mrb[0].mxu0 %v3540
      %v4815 = vpop.f32.mrb[0].mxu0
      %v4816 = vadd.f32 0.0, %v4815
      %v4817 = vpop.f32.mrb[0].mxu0
      %4818 = vmatprep.mubr.f32.mxu0 0.0
      %4819 = vmatmul.mubr.f32.gmra.mrb[0].mxu0 %v3543
      %v4820 = vpop.f32.mrb[0].mxu0
      %v4821 = vadd.f32 0.0, %v4820
      %v4822 = vpop.f32.mrb[0].mxu0
      %4823 = vmatprep.mubr.f32.mxu0 0.0
      %4824 = vmatmul.mubr.f32.gmra.mrb[0].mxu0 %v3546
      %v4825 = vpop.f32.mrb[0].mxu0
      %v4826 = vadd.f32 0.0, %v4825
      %v4827 = vpop.f32.mrb[0].mxu0
      %4828 = vmatprep.mubr.f32.mxu0 0.0
      %4829 = vmatmul.mubr.f32.gmra.mrb[0].mxu0 %v3549
      %v4830 = vpop.f32.mrb[0].mxu0
      %v4831 = vadd.f32 0.0, %v4830
      %v4832 = vpop.f32.mrb[0].mxu0
      %4833 = vmatprep.mubr.f32.mxu0 0.0
      %4834 = vmatmul.mubr.f32.gmra.mrb[0].mxu0 %v3552
      %v4835 = vpop.f32.mrb[0].mxu0
      %v4836 = vadd.f32 0.0, %v4835
      %v4837 = vpop.f32.mrb[0].mxu0
      %4838 = vmatprep.mubr.f32.mxu0 0.0
      %4839 = vmatmul.mubr.f32.gmra.mrb[0].mxu0 %v3555
      %v4840 = vpop.f32.mrb[0].mxu0
      %v4841 = vadd.f32 0.0, %v4840
      %v4842 = vpop.f32.mrb[0].mxu0
      %4843 = vmatprep.mubr.f32.mxu0 0.0
      %4844 = vmatmul.mubr.f32.gmra.mrb[0].mxu0 %v3558
      %v4845 = vpop.f32.mrb[0].mxu0
      %v4846 = vadd.f32 0.0, %v4845
      %v4847 = vpop.f32.mrb[0].mxu0
      %4848 = vmatprep.mubr.f32.mxu0 0.0
      %4849 = vmatmul.mubr.f32.gmra.mrb[0].mxu0 %v3561
      %v4850 = vpop.f32.mrb[0].mxu0
      %v4851 = vadd.f32 0.0, %v4850
      %v4852 = vpop.f32.mrb[0].mxu0
      %4853 = vmatprep.mubr.f32.mxu0 0.0
      %4854 = vmatmul.mubr.f32.gmra.mrb[0].mxu0 %v3564
      %v4855 = vpop.f32.mrb[0].mxu0
      %v4856 = vadd.f32 0.0, %v4855
      %v4857 = vpop.f32.mrb[0].mxu0
      %4858 = vmatprep.mubr.f32.mxu0 0.0
      %4859 = vmatmul.mubr.f32.gmra.mrb[0].mxu0 %v3567
      %v4860 = vpop.f32.mrb[0].mxu0
      %v4861 = vadd.f32 0.0, %v4860
      %v4862 = vpop.f32.mrb[0].mxu0
      %4863 = vmatprep.mubr.f32.mxu0 0.0
      %4864 = vmatmul.mubr.f32.gmra.mrb[0].mxu0 %v3570
      %v4865 = vpop.f32.mrb[0].mxu0
      %v4866 = vadd.f32 0.0, %v4865
      %v4867 = vpop.f32.mrb[0].mxu0
      %4868 = vmatprep.mubr.f32.mxu0 0.0
      %4869 = vmatmul.mubr.f32.gmra.mrb[0].mxu0 %v3573
      %v4870 = vpop.f32.mrb[0].mxu0
      %v4871 = vadd.f32 0.0, %v4870
      %v4872 = vpop.f32.mrb[0].mxu0
      %4873 = vmatprep.mubr.f32.mxu0 0.0
      %4874 = vmatmul.mubr.f32.gmra.mrb[0].mxu0 %v3576
      %v4875 = vpop.f32.mrb[0].mxu0
      %v4876 = vadd.f32 0.0, %v4875
      %v4877 = vpop.f32.mrb[0].mxu0
      %4878 = vmatprep.mubr.f32.mxu0 0.0
      %4879 = vmatmul.mubr.f32.gmra.mrb[0].mxu0 %v3579
      %v4880 = vpop.f32.mrb[0].mxu0
      %v4881 = vadd.f32 0.0, %v4880
      %v4882 = vpop.f32.mrb[0].mxu0
      %4883 = vmatprep.mubr.f32.mxu0 0.0
      %4884 = vmatmul.mubr.f32.gmra.mrb[0].mxu0 %v3582
      %v4885 = vpop.f32.mrb[0].mxu0
      %v4886 = vadd.f32 0.0, %v4885
      %v4887 = vpop.f32.mrb[0].mxu0
      %4888 = vmatprep.mubr.f32.mxu0 0.0
      %4889 = vmatmul.mubr.f32.gmra.mrb[0].mxu0 %v3585
      %v4890 = vpop.f32.mrb[0].mxu0
      %v4891 = vadd.f32 0.0, %v4890
      %v4892 = vpop.f32.mrb[0].mxu0
      %4893 = vmatprep.mubr.f32.mxu0 0.0
      %4894 = vmatmul.mubr.f32.gmra.mrb[0].mxu0 %v3588
      %v4895 = vpop.f32.mrb[0].mxu0
      %v4896 = vadd.f32 0.0, %v4895
      %v4897 = vpop.f32.mrb[0].mxu0
      %4898 = vmatprep.mubr.f32.mxu0 0.0
      %4899 = vmatmul.mubr.f32.gmra.mrb[0].mxu0 %v3591
      %v4900 = vpop.f32.mrb[0].mxu0
      %v4901 = vadd.f32 0.0, %v4900
      %v4902 = vpop.f32.mrb[0].mxu0
      %4903 = vmatprep.mubr.f32.mxu0 0.0
      %4904 = vmatmul.mubr.f32.gmra.mrb[0].mxu0 %v4681
      %v4905 = vpop.f32.mrb[0].mxu0
      %v4906 = vadd.f32 0.0, %v4905
      %v4907 = vpop.f32.mrb[0].mxu0
      %4908 = vmatprep.mubr.f32.mxu0 0.0
      %4909 = vmatmul.mubr.f32.gmra.mrb[0].mxu0 %v4684
      %v4910 = vpop.f32.mrb[0].mxu0
      %v4911 = vadd.f32 0.0, %v4910
      %v4912 = vpop.f32.mrb[0].mxu0
      %4913 = vdwg.mxu0
      %v4914 = vadd.f32 %v4645, %v4756
      %v4915 = vadd.f32 %v4646, %v4761
      %v4916 = vadd.f32 %v4647, %v4766
      %v4917 = vadd.f32 %v4648, %v4771
      %v4918 = vadd.f32 %v4649, %v4776
      %v4919 = vadd.f32 %v4650, %v4781
      %v4920 = vadd.f32 %v4651, %v4786
      %v4921 = vadd.f32 %v4652, %v4791
      %v4922 = vadd.f32 %v4653, %v4796
      %v4923 = vadd.f32 %v4654, %v4801
      %v4924 = vadd.f32 %v4655, %v4806
      %v4925 = vadd.f32 %v4656, %v4811
      %v4926 = vadd.f32 %v4657, %v4816
      %v4927 = vadd.f32 %v4658, %v4821
      %v4928 = vadd.f32 %v4659, %v4826
      %v4929 = vadd.f32 %v4660, %v4831
      %v4930 = vadd.f32 %v4661, %v4836
      %v4931 = vadd.f32 %v4662, %v4841
      %v4932 = vadd.f32 %v4663, %v4846
      %v4933 = vadd.f32 %v4664, %v4851
      %v4934 = vadd.f32 %v4665, %v4856
      %v4935 = vadd.f32 %v4666, %v4861
      %v4936 = vadd.f32 %v4667, %v4866
      %v4937 = vadd.f32 %v4668, %v4871
      %v4938 = vadd.f32 %v4669, %v4876
      %v4939 = vadd.f32 %v4670, %v4881
      %v4940 = vadd.f32 %v4671, %v4886
      %v4941 = vadd.f32 %v4672, %v4891
      %v4942 = vadd.f32 %v4673, %v4896
      %v4943 = vadd.f32 %v4674, %v4901
      %v4944 = vadd.f32 %v4675, %v4906
      %v4945 = vadd.f32 %v4676, %v4911
      %v4947 = vrot.slane %v3489, 1
      %v4948 = vrot.slane %v3490, 1
      %v4949 = vsel %vm754, %v4947, %v4948
      %v4950 = vrot.slane %v3491, 1
      %v4951 = vsel %vm754, %v4948, %v4950
      %v4952 = vrot.slane %v4678, 4
      %v4953 = vsel %vm439, %v4949, 0
      %v4955 = vsel %vm439, %v4951, 0
      %v4957 = vsel %vm901, %v4952, 0
      %4959 = vmatprep.subr.mxu0 0.0
      %4960 = vmatpush1.msra.mxu0 %v4957
      %4961 = vmatprep.subr.mxu0 0.0
      %4962 = vmatpush1.msra.mxu0 0.0
      %4963 = vmatprep.subr.mxu0 0.0
      %4964 = vmatpush1.msra.mxu0 0.0
      %4965 = vmatprep.subr.mxu0 0.0
      %4966 = vmatpush1.msra.mxu0 0.0
      %4967 = vmatprep.subr.mxu0 0.0
      %4968 = vmatpush1.msra.mxu0 0.0
      %4969 = vmatprep.subr.mxu0 0.0
      %4970 = vmatpush1.msra.mxu0 0.0
      %4971 = vmatprep.subr.mxu0 0.0
      %4972 = vmatpush1.msra.mxu0 0.0
      %4973 = vmatprep.subr.mxu0 0.0
      %4974 = vmatpush1.msra.mxu0 0.0
      %4975 = vmatprep.subr.mxu0 0.0
      %4976 = vmatpush1.msra.mxu0 0.0
      %4977 = vmatprep.subr.mxu0 0.0
      %4978 = vmatpush1.msra.mxu0 0.0
      %4979 = vmatprep.subr.mxu0 0.0
      %4980 = vmatpush1.msra.mxu0 0.0
      %4981 = vmatprep.subr.mxu0 0.0
      %4982 = vmatpush1.msra.mxu0 0.0
      %4983 = vmatprep.subr.mxu0 0.0
      %4984 = vmatpush1.msra.mxu0 0.0
      %4985 = vmatprep.subr.mxu0 0.0
      %4986 = vmatpush1.msra.mxu0 0.0
      %4987 = vmatprep.subr.mxu0 0.0
      %4988 = vmatpush1.msra.mxu0 0.0
      %4989 = vmatprep.subr.mxu0 0.0
      %4990 = vmatpush1.msra.mxu0 0.0
      %4991 = vmatprep.subr.mxu0 0.0
      %4992 = vmatpush1.msra.mxu0 0.0
      %4993 = vmatprep.subr.mxu0 0.0
      %4994 = vmatpush1.msra.mxu0 0.0
      %4995 = vmatprep.subr.mxu0 0.0
      %4996 = vmatpush1.msra.mxu0 0.0
      %4997 = vmatprep.subr.mxu0 0.0
      %4998 = vmatpush1.msra.mxu0 0.0
      %4999 = vmatprep.subr.mxu0 0.0
      %5000 = vmatpush1.msra.mxu0 0.0
      %5001 = vmatprep.subr.mxu0 0.0
      %5002 = vmatpush1.msra.mxu0 0.0
      %5003 = vmatprep.subr.mxu0 0.0
      %5004 = vmatpush1.msra.mxu0 0.0
      %5005 = vmatprep.subr.mxu0 0.0
      %5006 = vmatpush1.msra.mxu0 0.0
      %5007 = vmatprep.subr.mxu0 0.0
      %5008 = vmatpush1.msra.mxu0 0.0
      %5009 = vmatprep.subr.mxu0 0.0
      %5010 = vmatpush1.msra.mxu0 0.0
      %5011 = vmatprep.subr.mxu0 0.0
      %5012 = vmatpush1.msra.mxu0 0.0
      %5013 = vmatprep.subr.mxu0 0.0
      %5014 = vmatpush1.msra.mxu0 0.0
      %5015 = vmatprep.subr.mxu0 0.0
      %5016 = vmatpush1.msra.mxu0 0.0
      %5017 = vmatprep.subr.mxu0 0.0
      %5018 = vmatpush1.msra.mxu0 0.0
      %5019 = vmatprep.subr.mxu0 0.0
      %5020 = vmatpush1.msra.mxu0 0.0
      %5021 = vmatprep.subr.mxu0 0.0
      %5022 = vmatpush1.msra.mxu0 0.0
      %5023 = vmatprep.mubr.f32.mxu0 0.0
      %5024 = vmatmul.mubr.f32.gmra.mrb[0].mxu0 %v3954
      %v5025 = vpop.f32.mrb[0].mxu0
      %v5026 = vadd.f32 0.0, %v5025
      %v5027 = vpop.f32.mrb[0].mxu0
      %5028 = vmatprep.mubr.f32.mxu0 0.0
      %5029 = vmatmul.mubr.f32.gmra.mrb[0].mxu0 %v3956
      %v5030 = vpop.f32.mrb[0].mxu0
      %v5031 = vadd.f32 0.0, %v5030
      %v5032 = vpop.f32.mrb[0].mxu0
      %5033 = vmatprep.mubr.f32.mxu0 0.0
      %5034 = vmatmul.mubr.f32.gmra.mrb[0].mxu0 %v3958
      %v5035 = vpop.f32.mrb[0].mxu0
      %v5036 = vadd.f32 0.0, %v5035
      %v5037 = vpop.f32.mrb[0].mxu0
      %5038 = vmatprep.mubr.f32.mxu0 0.0
      %5039 = vmatmul.mubr.f32.gmra.mrb[0].mxu0 %v3960
      %v5040 = vpop.f32.mrb[0].mxu0
      %v5041 = vadd.f32 0.0, %v5040
      %v5042 = vpop.f32.mrb[0].mxu0
      %5043 = vmatprep.mubr.f32.mxu0 0.0
      %5044 = vmatmul.mubr.f32.gmra.mrb[0].mxu0 %v3962
      %v5045 = vpop.f32.mrb[0].mxu0
      %v5046 = vadd.f32 0.0, %v5045
      %v5047 = vpop.f32.mrb[0].mxu0
      %5048 = vmatprep.mubr.f32.mxu0 0.0
      %5049 = vmatmul.mubr.f32.gmra.mrb[0].mxu0 %v3964
      %v5050 = vpop.f32.mrb[0].mxu0
      %v5051 = vadd.f32 0.0, %v5050
      %v5052 = vpop.f32.mrb[0].mxu0
      %5053 = vmatprep.mubr.f32.mxu0 0.0
      %5054 = vmatmul.mubr.f32.gmra.mrb[0].mxu0 %v3966
      %v5055 = vpop.f32.mrb[0].mxu0
      %v5056 = vadd.f32 0.0, %v5055
      %v5057 = vpop.f32.mrb[0].mxu0
      %5058 = vmatprep.mubr.f32.mxu0 0.0
      %5059 = vmatmul.mubr.f32.gmra.mrb[0].mxu0 %v3968
      %v5060 = vpop.f32.mrb[0].mxu0
      %v5061 = vadd.f32 0.0, %v5060
      %v5062 = vpop.f32.mrb[0].mxu0
      %5063 = vmatprep.mubr.f32.mxu0 0.0
      %5064 = vmatmul.mubr.f32.gmra.mrb[0].mxu0 %v3970
      %v5065 = vpop.f32.mrb[0].mxu0
      %v5066 = vadd.f32 0.0, %v5065
      %v5067 = vpop.f32.mrb[0].mxu0
      %5068 = vmatprep.mubr.f32.mxu0 0.0
      %5069 = vmatmul.mubr.f32.gmra.mrb[0].mxu0 %v3972
      %v5070 = vpop.f32.mrb[0].mxu0
      %v5071 = vadd.f32 0.0, %v5070
      %v5072 = vpop.f32.mrb[0].mxu0
      %5073 = vmatprep.mubr.f32.mxu0 0.0
      %5074 = vmatmul.mubr.f32.gmra.mrb[0].mxu0 %v3974
      %v5075 = vpop.f32.mrb[0].mxu0
      %v5076 = vadd.f32 0.0, %v5075
      %v5077 = vpop.f32.mrb[0].mxu0
      %5078 = vmatprep.mubr.f32.mxu0 0.0
      %5079 = vmatmul.mubr.f32.gmra.mrb[0].mxu0 %v3976
      %v5080 = vpop.f32.mrb[0].mxu0
      %v5081 = vadd.f32 0.0, %v5080
      %v5082 = vpop.f32.mrb[0].mxu0
      %5083 = vmatprep.mubr.f32.mxu0 0.0
      %5084 = vmatmul.mubr.f32.gmra.mrb[0].mxu0 %v3978
      %v5085 = vpop.f32.mrb[0].mxu0
      %v5086 = vadd.f32 0.0, %v5085
      %v5087 = vpop.f32.mrb[0].mxu0
      %5088 = vmatprep.mubr.f32.mxu0 0.0
      %5089 = vmatmul.mubr.f32.gmra.mrb[0].mxu0 %v3980
      %v5090 = vpop.f32.mrb[0].mxu0
      %v5091 = vadd.f32 0.0, %v5090
      %v5092 = vpop.f32.mrb[0].mxu0
      %5093 = vmatprep.mubr.f32.mxu0 0.0
      %5094 = vmatmul.mubr.f32.gmra.mrb[0].mxu0 %v3982
      %v5095 = vpop.f32.mrb[0].mxu0
      %v5096 = vadd.f32 0.0, %v5095
      %v5097 = vpop.f32.mrb[0].mxu0
      %5098 = vmatprep.mubr.f32.mxu0 0.0
      %5099 = vmatmul.mubr.f32.gmra.mrb[0].mxu0 %v3984
      %v5100 = vpop.f32.mrb[0].mxu0
      %v5101 = vadd.f32 0.0, %v5100
      %v5102 = vpop.f32.mrb[0].mxu0
      %5103 = vmatprep.mubr.f32.mxu0 0.0
      %5104 = vmatmul.mubr.f32.gmra.mrb[0].mxu0 %v3986
      %v5105 = vpop.f32.mrb[0].mxu0
      %v5106 = vadd.f32 0.0, %v5105
      %v5107 = vpop.f32.mrb[0].mxu0
      %5108 = vmatprep.mubr.f32.mxu0 0.0
      %5109 = vmatmul.mubr.f32.gmra.mrb[0].mxu0 %v3988
      %v5110 = vpop.f32.mrb[0].mxu0
      %v5111 = vadd.f32 0.0, %v5110
      %v5112 = vpop.f32.mrb[0].mxu0
      %5113 = vmatprep.mubr.f32.mxu0 0.0
      %5114 = vmatmul.mubr.f32.gmra.mrb[0].mxu0 %v3990
      %v5115 = vpop.f32.mrb[0].mxu0
      %v5116 = vadd.f32 0.0, %v5115
      %v5117 = vpop.f32.mrb[0].mxu0
      %5118 = vmatprep.mubr.f32.mxu0 0.0
      %5119 = vmatmul.mubr.f32.gmra.mrb[0].mxu0 %v3992
      %v5120 = vpop.f32.mrb[0].mxu0
      %v5121 = vadd.f32 0.0, %v5120
      %v5122 = vpop.f32.mrb[0].mxu0
      %5123 = vmatprep.mubr.f32.mxu0 0.0
      %5124 = vmatmul.mubr.f32.gmra.mrb[0].mxu0 %v3994
      %v5125 = vpop.f32.mrb[0].mxu0
      %v5126 = vadd.f32 0.0, %v5125
      %v5127 = vpop.f32.mrb[0].mxu0
      %5128 = vmatprep.mubr.f32.mxu0 0.0
      %5129 = vmatmul.mubr.f32.gmra.mrb[0].mxu0 %v3996
      %v5130 = vpop.f32.mrb[0].mxu0
      %v5131 = vadd.f32 0.0, %v5130
      %v5132 = vpop.f32.mrb[0].mxu0
      %5133 = vmatprep.mubr.f32.mxu0 0.0
      %5134 = vmatmul.mubr.f32.gmra.mrb[0].mxu0 %v3998
      %v5135 = vpop.f32.mrb[0].mxu0
      %v5136 = vadd.f32 0.0, %v5135
      %v5137 = vpop.f32.mrb[0].mxu0
      %5138 = vmatprep.mubr.f32.mxu0 0.0
      %5139 = vmatmul.mubr.f32.gmra.mrb[0].mxu0 %v4000
      %v5140 = vpop.f32.mrb[0].mxu0
      %v5141 = vadd.f32 0.0, %v5140
      %v5142 = vpop.f32.mrb[0].mxu0
      %5143 = vmatprep.mubr.f32.mxu0 0.0
      %5144 = vmatmul.mubr.f32.gmra.mrb[0].mxu0 %v4002
      %v5145 = vpop.f32.mrb[0].mxu0
      %v5146 = vadd.f32 0.0, %v5145
      %v5147 = vpop.f32.mrb[0].mxu0
      %5148 = vmatprep.mubr.f32.mxu0 0.0
      %5149 = vmatmul.mubr.f32.gmra.mrb[0].mxu0 %v4004
      %v5150 = vpop.f32.mrb[0].mxu0
      %v5151 = vadd.f32 0.0, %v5150
      %v5152 = vpop.f32.mrb[0].mxu0
      %5153 = vmatprep.mubr.f32.mxu0 0.0
      %5154 = vmatmul.mubr.f32.gmra.mrb[0].mxu0 %v4006
      %v5155 = vpop.f32.mrb[0].mxu0
      %v5156 = vadd.f32 0.0, %v5155
      %v5157 = vpop.f32.mrb[0].mxu0
      %5158 = vmatprep.mubr.f32.mxu0 0.0
      %5159 = vmatmul.mubr.f32.gmra.mrb[0].mxu0 %v4008
      %v5160 = vpop.f32.mrb[0].mxu0
      %v5161 = vadd.f32 0.0, %v5160
      %v5162 = vpop.f32.mrb[0].mxu0
      %5163 = vmatprep.mubr.f32.mxu0 0.0
      %5164 = vmatmul.mubr.f32.gmra.mrb[0].mxu0 %v4010
      %v5165 = vpop.f32.mrb[0].mxu0
      %v5166 = vadd.f32 0.0, %v5165
      %v5167 = vpop.f32.mrb[0].mxu0
      %5168 = vmatprep.mubr.f32.mxu0 0.0
      %5169 = vmatmul.mubr.f32.gmra.mrb[0].mxu0 %v4012
      %v5170 = vpop.f32.mrb[0].mxu0
      %v5171 = vadd.f32 0.0, %v5170
      %v5172 = vpop.f32.mrb[0].mxu0
      %5173 = vmatprep.mubr.f32.mxu0 0.0
      %5174 = vmatmul.mubr.f32.gmra.mrb[0].mxu0 %v4953
      %v5175 = vpop.f32.mrb[0].mxu0
      %v5176 = vadd.f32 0.0, %v5175
      %v5177 = vpop.f32.mrb[0].mxu0
      %5178 = vmatprep.mubr.f32.mxu0 0.0
      %5179 = vmatmul.mubr.f32.gmra.mrb[0].mxu0 %v4955
      %v5180 = vpop.f32.mrb[0].mxu0
      %v5181 = vadd.f32 0.0, %v5180
      %v5182 = vpop.f32.mrb[0].mxu0
      %5183 = vdwg.mxu0
      %v5184 = vadd.f32 %v4914, %v5026
      %v5185 = vadd.f32 %v4915, %v5031
      %v5186 = vadd.f32 %v4916, %v5036
      %v5187 = vadd.f32 %v4917, %v5041
      %v5188 = vadd.f32 %v4918, %v5046
      %v5189 = vadd.f32 %v4919, %v5051
      %v5190 = vadd.f32 %v4920, %v5056
      %v5191 = vadd.f32 %v4921, %v5061
      %v5192 = vadd.f32 %v4922, %v5066
      %v5193 = vadd.f32 %v4923, %v5071
      %v5194 = vadd.f32 %v4924, %v5076
      %v5195 = vadd.f32 %v4925, %v5081
      %v5196 = vadd.f32 %v4926, %v5086
      %v5197 = vadd.f32 %v4927, %v5091
      %v5198 = vadd.f32 %v4928, %v5096
      %v5199 = vadd.f32 %v4929, %v5101
      %v5200 = vadd.f32 %v4930, %v5106
      %v5201 = vadd.f32 %v4931, %v5111
      %v5202 = vadd.f32 %v4932, %v5116
      %v5203 = vadd.f32 %v4933, %v5121
      %v5204 = vadd.f32 %v4934, %v5126
      %v5205 = vadd.f32 %v4935, %v5131
      %v5206 = vadd.f32 %v4936, %v5136
      %v5207 = vadd.f32 %v4937, %v5141
      %v5208 = vadd.f32 %v4938, %v5146
      %v5209 = vadd.f32 %v4939, %v5151
      %v5210 = vadd.f32 %v4940, %v5156
      %v5211 = vadd.f32 %v4941, %v5161
      %v5212 = vadd.f32 %v4942, %v5166
      %v5213 = vadd.f32 %v4943, %v5171
      %v5214 = vadd.f32 %v4944, %v5176
      %v5215 = vadd.f32 %v4945, %v5181
      %v5216 = vrot.slane %v3489, 2
      %v5217 = vrot.slane %v3490, 2
      %v5218 = vsel %vm1420, %v5216, %v5217
      %v5219 = vrot.slane %v3491, 2
      %v5220 = vsel %vm1420, %v5217, %v5219
      %v5221 = vsel %vm439, %v5218, 0
      %v5223 = vsel %vm439, %v5220, 0
      %v5226 = vsel %vm901, %v4679, 0
      %5228 = vmatprep.subr.mxu0 0.0
      %5229 = vmatpush1.msra.mxu0 %v5226
      %5230 = vmatprep.subr.mxu0 0.0
      %5231 = vmatpush1.msra.mxu0 0.0
      %5232 = vmatprep.subr.mxu0 0.0
      %5233 = vmatpush1.msra.mxu0 0.0
      %5234 = vmatprep.subr.mxu0 0.0
      %5235 = vmatpush1.msra.mxu0 0.0
      %5236 = vmatprep.subr.mxu0 0.0
      %5237 = vmatpush1.msra.mxu0 0.0
      %5238 = vmatprep.subr.mxu0 0.0
      %5239 = vmatpush1.msra.mxu0 0.0
      %5240 = vmatprep.subr.mxu0 0.0
      %5241 = vmatpush1.msra.mxu0 0.0
      %5242 = vmatprep.subr.mxu0 0.0
      %5243 = vmatpush1.msra.mxu0 0.0
      %5244 = vmatprep.subr.mxu0 0.0
      %5245 = vmatpush1.msra.mxu0 0.0
      %5246 = vmatprep.subr.mxu0 0.0
      %5247 = vmatpush1.msra.mxu0 0.0
      %5248 = vmatprep.subr.mxu0 0.0
      %5249 = vmatpush1.msra.mxu0 0.0
      %5250 = vmatprep.subr.mxu0 0.0
      %5251 = vmatpush1.msra.mxu0 0.0
      %5252 = vmatprep.subr.mxu0 0.0
      %5253 = vmatpush1.msra.mxu0 0.0
      %5254 = vmatprep.subr.mxu0 0.0
      %5255 = vmatpush1.msra.mxu0 0.0
      %5256 = vmatprep.subr.mxu0 0.0
      %5257 = vmatpush1.msra.mxu0 0.0
      %5258 = vmatprep.subr.mxu0 0.0
      %5259 = vmatpush1.msra.mxu0 0.0
      %5260 = vmatprep.subr.mxu0 0.0
      %5261 = vmatpush1.msra.mxu0 0.0
      %5262 = vmatprep.subr.mxu0 0.0
      %5263 = vmatpush1.msra.mxu0 0.0
      %5264 = vmatprep.subr.mxu0 0.0
      %5265 = vmatpush1.msra.mxu0 0.0
      %5266 = vmatprep.subr.mxu0 0.0
      %5267 = vmatpush1.msra.mxu0 0.0
      %5268 = vmatprep.subr.mxu0 0.0
      %5269 = vmatpush1.msra.mxu0 0.0
      %5270 = vmatprep.subr.mxu0 0.0
      %5271 = vmatpush1.msra.mxu0 0.0
      %5272 = vmatprep.subr.mxu0 0.0
      %5273 = vmatpush1.msra.mxu0 0.0
      %5274 = vmatprep.subr.mxu0 0.0
      %5275 = vmatpush1.msra.mxu0 0.0
      %5276 = vmatprep.subr.mxu0 0.0
      %5277 = vmatpush1.msra.mxu0 0.0
      %5278 = vmatprep.subr.mxu0 0.0
      %5279 = vmatpush1.msra.mxu0 0.0
      %5280 = vmatprep.subr.mxu0 0.0
      %5281 = vmatpush1.msra.mxu0 0.0
      %5282 = vmatprep.subr.mxu0 0.0
      %5283 = vmatpush1.msra.mxu0 0.0
      %5284 = vmatprep.subr.mxu0 0.0
      %5285 = vmatpush1.msra.mxu0 0.0
      %5286 = vmatprep.subr.mxu0 0.0
      %5287 = vmatpush1.msra.mxu0 0.0
      %5288 = vmatprep.subr.mxu0 0.0
      %5289 = vmatpush1.msra.mxu0 0.0
      %5290 = vmatprep.subr.mxu0 0.0
      %5291 = vmatpush1.msra.mxu0 0.0
      %5292 = vmatprep.mubr.f32.mxu0 0.0
      %5293 = vmatmul.mubr.f32.gmra.mrb[0].mxu0 %v4357
      %v5294 = vpop.f32.mrb[0].mxu0
      %v5295 = vadd.f32 0.0, %v5294
      %v5296 = vpop.f32.mrb[0].mxu0
      %5297 = vmatprep.mubr.f32.mxu0 0.0
      %5298 = vmatmul.mubr.f32.gmra.mrb[0].mxu0 %v4359
      %v5299 = vpop.f32.mrb[0].mxu0
      %v5300 = vadd.f32 0.0, %v5299
      %v5301 = vpop.f32.mrb[0].mxu0
      %5302 = vmatprep.mubr.f32.mxu0 0.0
      %5303 = vmatmul.mubr.f32.gmra.mrb[0].mxu0 %v4361
      %v5304 = vpop.f32.mrb[0].mxu0
      %v5305 = vadd.f32 0.0, %v5304
      %v5306 = vpop.f32.mrb[0].mxu0
      %5307 = vmatprep.mubr.f32.mxu0 0.0
      %5308 = vmatmul.mubr.f32.gmra.mrb[0].mxu0 %v4363
      %v5309 = vpop.f32.mrb[0].mxu0
      %v5310 = vadd.f32 0.0, %v5309
      %v5311 = vpop.f32.mrb[0].mxu0
      %5312 = vmatprep.mubr.f32.mxu0 0.0
      %5313 = vmatmul.mubr.f32.gmra.mrb[0].mxu0 %v4365
      %v5314 = vpop.f32.mrb[0].mxu0
      %v5315 = vadd.f32 0.0, %v5314
      %v5316 = vpop.f32.mrb[0].mxu0
      %5317 = vmatprep.mubr.f32.mxu0 0.0
      %5318 = vmatmul.mubr.f32.gmra.mrb[0].mxu0 %v4367
      %v5319 = vpop.f32.mrb[0].mxu0
      %v5320 = vadd.f32 0.0, %v5319
      %v5321 = vpop.f32.mrb[0].mxu0
      %5322 = vmatprep.mubr.f32.mxu0 0.0
      %5323 = vmatmul.mubr.f32.gmra.mrb[0].mxu0 %v4369
      %v5324 = vpop.f32.mrb[0].mxu0
      %v5325 = vadd.f32 0.0, %v5324
      %v5326 = vpop.f32.mrb[0].mxu0
      %5327 = vmatprep.mubr.f32.mxu0 0.0
      %5328 = vmatmul.mubr.f32.gmra.mrb[0].mxu0 %v4371
      %v5329 = vpop.f32.mrb[0].mxu0
      %v5330 = vadd.f32 0.0, %v5329
      %v5331 = vpop.f32.mrb[0].mxu0
      %5332 = vmatprep.mubr.f32.mxu0 0.0
      %5333 = vmatmul.mubr.f32.gmra.mrb[0].mxu0 %v4373
      %v5334 = vpop.f32.mrb[0].mxu0
      %v5335 = vadd.f32 0.0, %v5334
      %v5336 = vpop.f32.mrb[0].mxu0
      %5337 = vmatprep.mubr.f32.mxu0 0.0
      %5338 = vmatmul.mubr.f32.gmra.mrb[0].mxu0 %v4375
      %v5339 = vpop.f32.mrb[0].mxu0
      %v5340 = vadd.f32 0.0, %v5339
      %v5341 = vpop.f32.mrb[0].mxu0
      %5342 = vmatprep.mubr.f32.mxu0 0.0
      %5343 = vmatmul.mubr.f32.gmra.mrb[0].mxu0 %v4377
      %v5344 = vpop.f32.mrb[0].mxu0
      %v5345 = vadd.f32 0.0, %v5344
      %v5346 = vpop.f32.mrb[0].mxu0
      %5347 = vmatprep.mubr.f32.mxu0 0.0
      %5348 = vmatmul.mubr.f32.gmra.mrb[0].mxu0 %v4379
      %v5349 = vpop.f32.mrb[0].mxu0
      %v5350 = vadd.f32 0.0, %v5349
      %v5351 = vpop.f32.mrb[0].mxu0
      %5352 = vmatprep.mubr.f32.mxu0 0.0
      %5353 = vmatmul.mubr.f32.gmra.mrb[0].mxu0 %v4381
      %v5354 = vpop.f32.mrb[0].mxu0
      %v5355 = vadd.f32 0.0, %v5354
      %v5356 = vpop.f32.mrb[0].mxu0
      %5357 = vmatprep.mubr.f32.mxu0 0.0
      %5358 = vmatmul.mubr.f32.gmra.mrb[0].mxu0 %v4383
      %v5359 = vpop.f32.mrb[0].mxu0
      %v5360 = vadd.f32 0.0, %v5359
      %v5361 = vpop.f32.mrb[0].mxu0
      %5362 = vmatprep.mubr.f32.mxu0 0.0
      %5363 = vmatmul.mubr.f32.gmra.mrb[0].mxu0 %v4385
      %v5364 = vpop.f32.mrb[0].mxu0
      %v5365 = vadd.f32 0.0, %v5364
      %v5366 = vpop.f32.mrb[0].mxu0
      %5367 = vmatprep.mubr.f32.mxu0 0.0
      %5368 = vmatmul.mubr.f32.gmra.mrb[0].mxu0 %v4387
      %v5369 = vpop.f32.mrb[0].mxu0
      %v5370 = vadd.f32 0.0, %v5369
      %v5371 = vpop.f32.mrb[0].mxu0
      %5372 = vmatprep.mubr.f32.mxu0 0.0
      %5373 = vmatmul.mubr.f32.gmra.mrb[0].mxu0 %v4389
      %v5374 = vpop.f32.mrb[0].mxu0
      %v5375 = vadd.f32 0.0, %v5374
      %v5376 = vpop.f32.mrb[0].mxu0
      %5377 = vmatprep.mubr.f32.mxu0 0.0
      %5378 = vmatmul.mubr.f32.gmra.mrb[0].mxu0 %v4391
      %v5379 = vpop.f32.mrb[0].mxu0
      %v5380 = vadd.f32 0.0, %v5379
      %v5381 = vpop.f32.mrb[0].mxu0
      %5382 = vmatprep.mubr.f32.mxu0 0.0
      %5383 = vmatmul.mubr.f32.gmra.mrb[0].mxu0 %v4393
      %v5384 = vpop.f32.mrb[0].mxu0
      %v5385 = vadd.f32 0.0, %v5384
      %v5386 = vpop.f32.mrb[0].mxu0
      %5387 = vmatprep.mubr.f32.mxu0 0.0
      %5388 = vmatmul.mubr.f32.gmra.mrb[0].mxu0 %v4395
      %v5389 = vpop.f32.mrb[0].mxu0
      %v5390 = vadd.f32 0.0, %v5389
      %v5391 = vpop.f32.mrb[0].mxu0
      %5392 = vmatprep.mubr.f32.mxu0 0.0
      %5393 = vmatmul.mubr.f32.gmra.mrb[0].mxu0 %v4397
      %v5394 = vpop.f32.mrb[0].mxu0
      %v5395 = vadd.f32 0.0, %v5394
      %v5396 = vpop.f32.mrb[0].mxu0
      %5397 = vmatprep.mubr.f32.mxu0 0.0
      %5398 = vmatmul.mubr.f32.gmra.mrb[0].mxu0 %v4399
      %v5399 = vpop.f32.mrb[0].mxu0
      %v5400 = vadd.f32 0.0, %v5399
      %v5401 = vpop.f32.mrb[0].mxu0
      %5402 = vmatprep.mubr.f32.mxu0 0.0
      %5403 = vmatmul.mubr.f32.gmra.mrb[0].mxu0 %v4401
      %v5404 = vpop.f32.mrb[0].mxu0
      %v5405 = vadd.f32 0.0, %v5404
      %v5406 = vpop.f32.mrb[0].mxu0
      %5407 = vmatprep.mubr.f32.mxu0 0.0
      %5408 = vmatmul.mubr.f32.gmra.mrb[0].mxu0 %v4403
      %v5409 = vpop.f32.mrb[0].mxu0
      %v5410 = vadd.f32 0.0, %v5409
      %v5411 = vpop.f32.mrb[0].mxu0
      %5412 = vmatprep.mubr.f32.mxu0 0.0
      %5413 = vmatmul.mubr.f32.gmra.mrb[0].mxu0 %v4405
      %v5414 = vpop.f32.mrb[0].mxu0
      %v5415 = vadd.f32 0.0, %v5414
      %v5416 = vpop.f32.mrb[0].mxu0
      %5417 = vmatprep.mubr.f32.mxu0 0.0
      %5418 = vmatmul.mubr.f32.gmra.mrb[0].mxu0 %v4407
      %v5419 = vpop.f32.mrb[0].mxu0
      %v5420 = vadd.f32 0.0, %v5419
      %v5421 = vpop.f32.mrb[0].mxu0
      %5422 = vmatprep.mubr.f32.mxu0 0.0
      %5423 = vmatmul.mubr.f32.gmra.mrb[0].mxu0 %v4409
      %v5424 = vpop.f32.mrb[0].mxu0
      %v5425 = vadd.f32 0.0, %v5424
      %v5426 = vpop.f32.mrb[0].mxu0
      %5427 = vmatprep.mubr.f32.mxu0 0.0
      %5428 = vmatmul.mubr.f32.gmra.mrb[0].mxu0 %v4411
      %v5429 = vpop.f32.mrb[0].mxu0
      %v5430 = vadd.f32 0.0, %v5429
      %v5431 = vpop.f32.mrb[0].mxu0
      %5432 = vmatprep.mubr.f32.mxu0 0.0
      %5433 = vmatmul.mubr.f32.gmra.mrb[0].mxu0 %v4413
      %v5434 = vpop.f32.mrb[0].mxu0
      %v5435 = vadd.f32 0.0, %v5434
      %v5436 = vpop.f32.mrb[0].mxu0
      %5437 = vmatprep.mubr.f32.mxu0 0.0
      %5438 = vmatmul.mubr.f32.gmra.mrb[0].mxu0 %v4415
      %v5439 = vpop.f32.mrb[0].mxu0
      %v5440 = vadd.f32 0.0, %v5439
      %v5441 = vpop.f32.mrb[0].mxu0
      %5442 = vmatprep.mubr.f32.mxu0 0.0
      %5443 = vmatmul.mubr.f32.gmra.mrb[0].mxu0 %v5221
      %v5444 = vpop.f32.mrb[0].mxu0
      %v5445 = vadd.f32 0.0, %v5444
      %v5446 = vpop.f32.mrb[0].mxu0
      %5447 = vmatprep.mubr.f32.mxu0 0.0
      %5448 = vmatmul.mubr.f32.gmra.mrb[0].mxu0 %v5223
      %v5449 = vpop.f32.mrb[0].mxu0
      %v5450 = vadd.f32 0.0, %v5449
      %v5451 = vpop.f32.mrb[0].mxu0
      %5452 = vdwg.mxu0
      %v5453 = vadd.f32 %v5184, %v5295
      %v5454 = vadd.f32 %v5185, %v5300
      %v5455 = vadd.f32 %v5186, %v5305
      %v5456 = vadd.f32 %v5187, %v5310
      %v5457 = vadd.f32 %v5188, %v5315
      %v5458 = vadd.f32 %v5189, %v5320
      %v5459 = vadd.f32 %v5190, %v5325
      %v5460 = vadd.f32 %v5191, %v5330
      %v5461 = vadd.f32 %v5192, %v5335
      %v5462 = vadd.f32 %v5193, %v5340
      %v5463 = vadd.f32 %v5194, %v5345
      %v5464 = vadd.f32 %v5195, %v5350
      %v5465 = vadd.f32 %v5196, %v5355
      %v5466 = vadd.f32 %v5197, %v5360
      %v5467 = vadd.f32 %v5198, %v5365
      %v5468 = vadd.f32 %v5199, %v5370
      %v5469 = vadd.f32 %v5200, %v5375
      %v5470 = vadd.f32 %v5201, %v5380
      %v5471 = vadd.f32 %v5202, %v5385
      %v5472 = vadd.f32 %v5203, %v5390
      %v5473 = vadd.f32 %v5204, %v5395
      %v5474 = vadd.f32 %v5205, %v5400
      %v5475 = vadd.f32 %v5206, %v5405
      %v5476 = vadd.f32 %v5207, %v5410
      %v5477 = vadd.f32 %v5208, %v5415
      %v5478 = vadd.f32 %v5209, %v5420
      %v5479 = vadd.f32 %v5210, %v5425
      %v5480 = vadd.f32 %v5211, %v5430
      %v5481 = vadd.f32 %v5212, %v5435
      %v5482 = vadd.f32 %v5213, %v5440
      %v5483 = vadd.f32 %v5214, %v5445
      %v5484 = vadd.f32 %v5215, %v5450
      %s5485 = scalar_lea.vmem %s3, 32
      %v5486 = vld [vmem:[%s5485] sm:$0xff]
      %v5487 = vld [vmem:[%s5485 + $0x8] sm:$0xf]
      %v5489 = vsel %vm439, %v3492, 0
      %v5492 = vsel %vm439, %v3493, 0
      %v5495 = vsel %vm901, %v5486, 0
      %5497 = vmatprep.subr.mxu0 0.0
      %5498 = vmatpush1.msra.mxu0 %v5495
      %5499 = vmatprep.subr.mxu0 0.0
      %5500 = vmatpush1.msra.mxu0 0.0
      %5501 = vmatprep.subr.mxu0 0.0
      %5502 = vmatpush1.msra.mxu0 0.0
      %5503 = vmatprep.subr.mxu0 0.0
      %5504 = vmatpush1.msra.mxu0 0.0
      %5505 = vmatprep.subr.mxu0 0.0
      %5506 = vmatpush1.msra.mxu0 0.0
      %5507 = vmatprep.subr.mxu0 0.0
      %5508 = vmatpush1.msra.mxu0 0.0
      %5509 = vmatprep.subr.mxu0 0.0
      %5510 = vmatpush1.msra.mxu0 0.0
      %5511 = vmatprep.subr.mxu0 0.0
      %5512 = vmatpush1.msra.mxu0 0.0
      %5513 = vmatprep.subr.mxu0 0.0
      %5514 = vmatpush1.msra.mxu0 0.0
      %5515 = vmatprep.subr.mxu0 0.0
      %5516 = vmatpush1.msra.mxu0 0.0
      %5517 = vmatprep.subr.mxu0 0.0
      %5518 = vmatpush1.msra.mxu0 0.0
      %5519 = vmatprep.subr.mxu0 0.0
      %5520 = vmatpush1.msra.mxu0 0.0
      %5521 = vmatprep.subr.mxu0 0.0
      %5522 = vmatpush1.msra.mxu0 0.0
      %5523 = vmatprep.subr.mxu0 0.0
      %5524 = vmatpush1.msra.mxu0 0.0
      %5525 = vmatprep.subr.mxu0 0.0
      %5526 = vmatpush1.msra.mxu0 0.0
      %5527 = vmatprep.subr.mxu0 0.0
      %5528 = vmatpush1.msra.mxu0 0.0
      %5529 = vmatprep.subr.mxu0 0.0
      %5530 = vmatpush1.msra.mxu0 0.0
      %5531 = vmatprep.subr.mxu0 0.0
      %5532 = vmatpush1.msra.mxu0 0.0
      %5533 = vmatprep.subr.mxu0 0.0
      %5534 = vmatpush1.msra.mxu0 0.0
      %5535 = vmatprep.subr.mxu0 0.0
      %5536 = vmatpush1.msra.mxu0 0.0
      %5537 = vmatprep.subr.mxu0 0.0
      %5538 = vmatpush1.msra.mxu0 0.0
      %5539 = vmatprep.subr.mxu0 0.0
      %5540 = vmatpush1.msra.mxu0 0.0
      %5541 = vmatprep.subr.mxu0 0.0
      %5542 = vmatpush1.msra.mxu0 0.0
      %5543 = vmatprep.subr.mxu0 0.0
      %5544 = vmatpush1.msra.mxu0 0.0
      %5545 = vmatprep.subr.mxu0 0.0
      %5546 = vmatpush1.msra.mxu0 0.0
      %5547 = vmatprep.subr.mxu0 0.0
      %5548 = vmatpush1.msra.mxu0 0.0
      %5549 = vmatprep.subr.mxu0 0.0
      %5550 = vmatpush1.msra.mxu0 0.0
      %5551 = vmatprep.subr.mxu0 0.0
      %5552 = vmatpush1.msra.mxu0 0.0
      %5553 = vmatprep.subr.mxu0 0.0
      %5554 = vmatpush1.msra.mxu0 0.0
      %5555 = vmatprep.subr.mxu0 0.0
      %5556 = vmatpush1.msra.mxu0 0.0
      %5557 = vmatprep.subr.mxu0 0.0
      %5558 = vmatpush1.msra.mxu0 0.0
      %5559 = vmatprep.subr.mxu0 0.0
      %5560 = vmatpush1.msra.mxu0 0.0
      %5561 = vmatprep.mubr.f32.mxu0 0.0
      %5562 = vmatmul.mubr.f32.gmra.mrb[0].mxu0 %v3510
      %v5563 = vpop.f32.mrb[0].mxu0
      %v5564 = vadd.f32 0.0, %v5563
      %v5565 = vpop.f32.mrb[0].mxu0
      %5566 = vmatprep.mubr.f32.mxu0 0.0
      %5567 = vmatmul.mubr.f32.gmra.mrb[0].mxu0 %v3513
      %v5568 = vpop.f32.mrb[0].mxu0
      %v5569 = vadd.f32 0.0, %v5568
      %v5570 = vpop.f32.mrb[0].mxu0
      %5571 = vmatprep.mubr.f32.mxu0 0.0
      %5572 = vmatmul.mubr.f32.gmra.mrb[0].mxu0 %v3516
      %v5573 = vpop.f32.mrb[0].mxu0
      %v5574 = vadd.f32 0.0, %v5573
      %v5575 = vpop.f32.mrb[0].mxu0
      %5576 = vmatprep.mubr.f32.mxu0 0.0
      %5577 = vmatmul.mubr.f32.gmra.mrb[0].mxu0 %v3519
      %v5578 = vpop.f32.mrb[0].mxu0
      %v5579 = vadd.f32 0.0, %v5578
      %v5580 = vpop.f32.mrb[0].mxu0
      %5581 = vmatprep.mubr.f32.mxu0 0.0
      %5582 = vmatmul.mubr.f32.gmra.mrb[0].mxu0 %v3522
      %v5583 = vpop.f32.mrb[0].mxu0
      %v5584 = vadd.f32 0.0, %v5583
      %v5585 = vpop.f32.mrb[0].mxu0
      %5586 = vmatprep.mubr.f32.mxu0 0.0
      %5587 = vmatmul.mubr.f32.gmra.mrb[0].mxu0 %v3525
      %v5588 = vpop.f32.mrb[0].mxu0
      %v5589 = vadd.f32 0.0, %v5588
      %v5590 = vpop.f32.mrb[0].mxu0
      %5591 = vmatprep.mubr.f32.mxu0 0.0
      %5592 = vmatmul.mubr.f32.gmra.mrb[0].mxu0 %v3528
      %v5593 = vpop.f32.mrb[0].mxu0
      %v5594 = vadd.f32 0.0, %v5593
      %v5595 = vpop.f32.mrb[0].mxu0
      %5596 = vmatprep.mubr.f32.mxu0 0.0
      %5597 = vmatmul.mubr.f32.gmra.mrb[0].mxu0 %v3531
      %v5598 = vpop.f32.mrb[0].mxu0
      %v5599 = vadd.f32 0.0, %v5598
      %v5600 = vpop.f32.mrb[0].mxu0
      %5601 = vmatprep.mubr.f32.mxu0 0.0
      %5602 = vmatmul.mubr.f32.gmra.mrb[0].mxu0 %v3534
      %v5603 = vpop.f32.mrb[0].mxu0
      %v5604 = vadd.f32 0.0, %v5603
      %v5605 = vpop.f32.mrb[0].mxu0
      %5606 = vmatprep.mubr.f32.mxu0 0.0
      %5607 = vmatmul.mubr.f32.gmra.mrb[0].mxu0 %v3537
      %v5608 = vpop.f32.mrb[0].mxu0
      %v5609 = vadd.f32 0.0, %v5608
      %v5610 = vpop.f32.mrb[0].mxu0
      %5611 = vmatprep.mubr.f32.mxu0 0.0
      %5612 = vmatmul.mubr.f32.gmra.mrb[0].mxu0 %v3540
      %v5613 = vpop.f32.mrb[0].mxu0
      %v5614 = vadd.f32 0.0, %v5613
      %v5615 = vpop.f32.mrb[0].mxu0
      %5616 = vmatprep.mubr.f32.mxu0 0.0
      %5617 = vmatmul.mubr.f32.gmra.mrb[0].mxu0 %v3543
      %v5618 = vpop.f32.mrb[0].mxu0
      %v5619 = vadd.f32 0.0, %v5618
      %v5620 = vpop.f32.mrb[0].mxu0
      %5621 = vmatprep.mubr.f32.mxu0 0.0
      %5622 = vmatmul.mubr.f32.gmra.mrb[0].mxu0 %v3546
      %v5623 = vpop.f32.mrb[0].mxu0
      %v5624 = vadd.f32 0.0, %v5623
      %v5625 = vpop.f32.mrb[0].mxu0
      %5626 = vmatprep.mubr.f32.mxu0 0.0
      %5627 = vmatmul.mubr.f32.gmra.mrb[0].mxu0 %v3549
      %v5628 = vpop.f32.mrb[0].mxu0
      %v5629 = vadd.f32 0.0, %v5628
      %v5630 = vpop.f32.mrb[0].mxu0
      %5631 = vmatprep.mubr.f32.mxu0 0.0
      %5632 = vmatmul.mubr.f32.gmra.mrb[0].mxu0 %v3552
      %v5633 = vpop.f32.mrb[0].mxu0
      %v5634 = vadd.f32 0.0, %v5633
      %v5635 = vpop.f32.mrb[0].mxu0
      %5636 = vmatprep.mubr.f32.mxu0 0.0
      %5637 = vmatmul.mubr.f32.gmra.mrb[0].mxu0 %v3555
      %v5638 = vpop.f32.mrb[0].mxu0
      %v5639 = vadd.f32 0.0, %v5638
      %v5640 = vpop.f32.mrb[0].mxu0
      %5641 = vmatprep.mubr.f32.mxu0 0.0
      %5642 = vmatmul.mubr.f32.gmra.mrb[0].mxu0 %v3558
      %v5643 = vpop.f32.mrb[0].mxu0
      %v5644 = vadd.f32 0.0, %v5643
      %v5645 = vpop.f32.mrb[0].mxu0
      %5646 = vmatprep.mubr.f32.mxu0 0.0
      %5647 = vmatmul.mubr.f32.gmra.mrb[0].mxu0 %v3561
      %v5648 = vpop.f32.mrb[0].mxu0
      %v5649 = vadd.f32 0.0, %v5648
      %v5650 = vpop.f32.mrb[0].mxu0
      %5651 = vmatprep.mubr.f32.mxu0 0.0
      %5652 = vmatmul.mubr.f32.gmra.mrb[0].mxu0 %v3564
      %v5653 = vpop.f32.mrb[0].mxu0
      %v5654 = vadd.f32 0.0, %v5653
      %v5655 = vpop.f32.mrb[0].mxu0
      %5656 = vmatprep.mubr.f32.mxu0 0.0
      %5657 = vmatmul.mubr.f32.gmra.mrb[0].mxu0 %v3567
      %v5658 = vpop.f32.mrb[0].mxu0
      %v5659 = vadd.f32 0.0, %v5658
      %v5660 = vpop.f32.mrb[0].mxu0
      %5661 = vmatprep.mubr.f32.mxu0 0.0
      %5662 = vmatmul.mubr.f32.gmra.mrb[0].mxu0 %v3570
      %v5663 = vpop.f32.mrb[0].mxu0
      %v5664 = vadd.f32 0.0, %v5663
      %v5665 = vpop.f32.mrb[0].mxu0
      %5666 = vmatprep.mubr.f32.mxu0 0.0
      %5667 = vmatmul.mubr.f32.gmra.mrb[0].mxu0 %v3573
      %v5668 = vpop.f32.mrb[0].mxu0
      %v5669 = vadd.f32 0.0, %v5668
      %v5670 = vpop.f32.mrb[0].mxu0
      %5671 = vmatprep.mubr.f32.mxu0 0.0
      %5672 = vmatmul.mubr.f32.gmra.mrb[0].mxu0 %v3576
      %v5673 = vpop.f32.mrb[0].mxu0
      %v5674 = vadd.f32 0.0, %v5673
      %v5675 = vpop.f32.mrb[0].mxu0
      %5676 = vmatprep.mubr.f32.mxu0 0.0
      %5677 = vmatmul.mubr.f32.gmra.mrb[0].mxu0 %v3579
      %v5678 = vpop.f32.mrb[0].mxu0
      %v5679 = vadd.f32 0.0, %v5678
      %v5680 = vpop.f32.mrb[0].mxu0
      %5681 = vmatprep.mubr.f32.mxu0 0.0
      %5682 = vmatmul.mubr.f32.gmra.mrb[0].mxu0 %v3582
      %v5683 = vpop.f32.mrb[0].mxu0
      %v5684 = vadd.f32 0.0, %v5683
      %v5685 = vpop.f32.mrb[0].mxu0
      %5686 = vmatprep.mubr.f32.mxu0 0.0
      %5687 = vmatmul.mubr.f32.gmra.mrb[0].mxu0 %v3585
      %v5688 = vpop.f32.mrb[0].mxu0
      %v5689 = vadd.f32 0.0, %v5688
      %v5690 = vpop.f32.mrb[0].mxu0
      %5691 = vmatprep.mubr.f32.mxu0 0.0
      %5692 = vmatmul.mubr.f32.gmra.mrb[0].mxu0 %v3588
      %v5693 = vpop.f32.mrb[0].mxu0
      %v5694 = vadd.f32 0.0, %v5693
      %v5695 = vpop.f32.mrb[0].mxu0
      %5696 = vmatprep.mubr.f32.mxu0 0.0
      %5697 = vmatmul.mubr.f32.gmra.mrb[0].mxu0 %v3591
      %v5698 = vpop.f32.mrb[0].mxu0
      %v5699 = vadd.f32 0.0, %v5698
      %v5700 = vpop.f32.mrb[0].mxu0
      %5701 = vmatprep.mubr.f32.mxu0 0.0
      %5702 = vmatmul.mubr.f32.gmra.mrb[0].mxu0 %v4681
      %v5703 = vpop.f32.mrb[0].mxu0
      %v5704 = vadd.f32 0.0, %v5703
      %v5705 = vpop.f32.mrb[0].mxu0
      %5706 = vmatprep.mubr.f32.mxu0 0.0
      %5707 = vmatmul.mubr.f32.gmra.mrb[0].mxu0 %v4684
      %v5708 = vpop.f32.mrb[0].mxu0
      %v5709 = vadd.f32 0.0, %v5708
      %v5710 = vpop.f32.mrb[0].mxu0
      %5711 = vmatprep.mubr.f32.mxu0 0.0
      %5712 = vmatmul.mubr.f32.gmra.mrb[0].mxu0 %v5489
      %v5713 = vpop.f32.mrb[0].mxu0
      %v5714 = vadd.f32 0.0, %v5713
      %v5715 = vpop.f32.mrb[0].mxu0
      %5716 = vmatprep.mubr.f32.mxu0 0.0
      %5717 = vmatmul.mubr.f32.gmra.mrb[0].mxu0 %v5492
      %v5718 = vpop.f32.mrb[0].mxu0
      %v5719 = vadd.f32 0.0, %v5718
      %v5720 = vpop.f32.mrb[0].mxu0
      %5721 = vdwg.mxu0
      %v5722 = vadd.f32 %v5453, %v5564
      %v5723 = vadd.f32 %v5454, %v5569
      %v5724 = vadd.f32 %v5455, %v5574
      %v5725 = vadd.f32 %v5456, %v5579
      %v5726 = vadd.f32 %v5457, %v5584
      %v5727 = vadd.f32 %v5458, %v5589
      %v5728 = vadd.f32 %v5459, %v5594
      %v5729 = vadd.f32 %v5460, %v5599
      %v5730 = vadd.f32 %v5461, %v5604
      %v5731 = vadd.f32 %v5462, %v5609
      %v5732 = vadd.f32 %v5463, %v5614
      %v5733 = vadd.f32 %v5464, %v5619
      %v5734 = vadd.f32 %v5465, %v5624
      %v5735 = vadd.f32 %v5466, %v5629
      %v5736 = vadd.f32 %v5467, %v5634
      %v5737 = vadd.f32 %v5468, %v5639
      %v5738 = vadd.f32 %v5469, %v5644
      %v5739 = vadd.f32 %v5470, %v5649
      %v5740 = vadd.f32 %v5471, %v5654
      %v5741 = vadd.f32 %v5472, %v5659
      %v5742 = vadd.f32 %v5473, %v5664
      %v5743 = vadd.f32 %v5474, %v5669
      %v5744 = vadd.f32 %v5475, %v5674
      %v5745 = vadd.f32 %v5476, %v5679
      %v5746 = vadd.f32 %v5477, %v5684
      %v5747 = vadd.f32 %v5478, %v5689
      %v5748 = vadd.f32 %v5479, %v5694
      %v5749 = vadd.f32 %v5480, %v5699
      %v5750 = vadd.f32 %v5481, %v5704
      %v5751 = vadd.f32 %v5482, %v5709
      %v5752 = vadd.f32 %v5483, %v5714
      %v5753 = vadd.f32 %v5484, %v5719
      %v5755 = vrot.slane %v3492, 1
      %v5756 = vrot.slane %v3493, 1
      %v5757 = vsel %vm754, %v5755, %v5756
      %v5758 = vrot.slane %v3494, 1
      %v5759 = vsel %vm754, %v5756, %v5758
      %v5760 = vrot.slane %v5486, 4
      %v5761 = vsel %vm439, %v5757, 0
      %v5763 = vsel %vm439, %v5759, 0
      %v5765 = vsel %vm901, %v5760, 0
      %5767 = vmatprep.subr.mxu0 0.0
      %5768 = vmatpush1.msra.mxu0 %v5765
      %5769 = vmatprep.subr.mxu0 0.0
      %5770 = vmatpush1.msra.mxu0 0.0
      %5771 = vmatprep.subr.mxu0 0.0
      %5772 = vmatpush1.msra.mxu0 0.0
      %5773 = vmatprep.subr.mxu0 0.0
      %5774 = vmatpush1.msra.mxu0 0.0
      %5775 = vmatprep.subr.mxu0 0.0
      %5776 = vmatpush1.msra.mxu0 0.0
      %5777 = vmatprep.subr.mxu0 0.0
      %5778 = vmatpush1.msra.mxu0 0.0
      %5779 = vmatprep.subr.mxu0 0.0
      %5780 = vmatpush1.msra.mxu0 0.0
      %5781 = vmatprep.subr.mxu0 0.0
      %5782 = vmatpush1.msra.mxu0 0.0
      %5783 = vmatprep.subr.mxu0 0.0
      %5784 = vmatpush1.msra.mxu0 0.0
      %5785 = vmatprep.subr.mxu0 0.0
      %5786 = vmatpush1.msra.mxu0 0.0
      %5787 = vmatprep.subr.mxu0 0.0
      %5788 = vmatpush1.msra.mxu0 0.0
      %5789 = vmatprep.subr.mxu0 0.0
      %5790 = vmatpush1.msra.mxu0 0.0
      %5791 = vmatprep.subr.mxu0 0.0
      %5792 = vmatpush1.msra.mxu0 0.0
      %5793 = vmatprep.subr.mxu0 0.0
      %5794 = vmatpush1.msra.mxu0 0.0
      %5795 = vmatprep.subr.mxu0 0.0
      %5796 = vmatpush1.msra.mxu0 0.0
      %5797 = vmatprep.subr.mxu0 0.0
      %5798 = vmatpush1.msra.mxu0 0.0
      %5799 = vmatprep.subr.mxu0 0.0
      %5800 = vmatpush1.msra.mxu0 0.0
      %5801 = vmatprep.subr.mxu0 0.0
      %5802 = vmatpush1.msra.mxu0 0.0
      %5803 = vmatprep.subr.mxu0 0.0
      %5804 = vmatpush1.msra.mxu0 0.0
      %5805 = vmatprep.subr.mxu0 0.0
      %5806 = vmatpush1.msra.mxu0 0.0
      %5807 = vmatprep.subr.mxu0 0.0
      %5808 = vmatpush1.msra.mxu0 0.0
      %5809 = vmatprep.subr.mxu0 0.0
      %5810 = vmatpush1.msra.mxu0 0.0
      %5811 = vmatprep.subr.mxu0 0.0
      %5812 = vmatpush1.msra.mxu0 0.0
      %5813 = vmatprep.subr.mxu0 0.0
      %5814 = vmatpush1.msra.mxu0 0.0
      %5815 = vmatprep.subr.mxu0 0.0
      %5816 = vmatpush1.msra.mxu0 0.0
      %5817 = vmatprep.subr.mxu0 0.0
      %5818 = vmatpush1.msra.mxu0 0.0
      %5819 = vmatprep.subr.mxu0 0.0
      %5820 = vmatpush1.msra.mxu0 0.0
      %5821 = vmatprep.subr.mxu0 0.0
      %5822 = vmatpush1.msra.mxu0 0.0
      %5823 = vmatprep.subr.mxu0 0.0
      %5824 = vmatpush1.msra.mxu0 0.0
      %5825 = vmatprep.subr.mxu0 0.0
      %5826 = vmatpush1.msra.mxu0 0.0
      %5827 = vmatprep.subr.mxu0 0.0
      %5828 = vmatpush1.msra.mxu0 0.0
      %5829 = vmatprep.subr.mxu0 0.0
      %5830 = vmatpush1.msra.mxu0 0.0
      %5831 = vmatprep.mubr.f32.mxu0 0.0
      %5832 = vmatmul.mubr.f32.gmra.mrb[0].mxu0 %v3958
      %v5833 = vpop.f32.mrb[0].mxu0
      %v5834 = vadd.f32 0.0, %v5833
      %v5835 = vpop.f32.mrb[0].mxu0
      %5836 = vmatprep.mubr.f32.mxu0 0.0
      %5837 = vmatmul.mubr.f32.gmra.mrb[0].mxu0 %v3960
      %v5838 = vpop.f32.mrb[0].mxu0
      %v5839 = vadd.f32 0.0, %v5838
      %v5840 = vpop.f32.mrb[0].mxu0
      %5841 = vmatprep.mubr.f32.mxu0 0.0
      %5842 = vmatmul.mubr.f32.gmra.mrb[0].mxu0 %v3962
      %v5843 = vpop.f32.mrb[0].mxu0
      %v5844 = vadd.f32 0.0, %v5843
      %v5845 = vpop.f32.mrb[0].mxu0
      %5846 = vmatprep.mubr.f32.mxu0 0.0
      %5847 = vmatmul.mubr.f32.gmra.mrb[0].mxu0 %v3964
      %v5848 = vpop.f32.mrb[0].mxu0
      %v5849 = vadd.f32 0.0, %v5848
      %v5850 = vpop.f32.mrb[0].mxu0
      %5851 = vmatprep.mubr.f32.mxu0 0.0
      %5852 = vmatmul.mubr.f32.gmra.mrb[0].mxu0 %v3966
      %v5853 = vpop.f32.mrb[0].mxu0
      %v5854 = vadd.f32 0.0, %v5853
      %v5855 = vpop.f32.mrb[0].mxu0
      %5856 = vmatprep.mubr.f32.mxu0 0.0
      %5857 = vmatmul.mubr.f32.gmra.mrb[0].mxu0 %v3968
      %v5858 = vpop.f32.mrb[0].mxu0
      %v5859 = vadd.f32 0.0, %v5858
      %v5860 = vpop.f32.mrb[0].mxu0
      %5861 = vmatprep.mubr.f32.mxu0 0.0
      %5862 = vmatmul.mubr.f32.gmra.mrb[0].mxu0 %v3970
      %v5863 = vpop.f32.mrb[0].mxu0
      %v5864 = vadd.f32 0.0, %v5863
      %v5865 = vpop.f32.mrb[0].mxu0
      %5866 = vmatprep.mubr.f32.mxu0 0.0
      %5867 = vmatmul.mubr.f32.gmra.mrb[0].mxu0 %v3972
      %v5868 = vpop.f32.mrb[0].mxu0
      %v5869 = vadd.f32 0.0, %v5868
      %v5870 = vpop.f32.mrb[0].mxu0
      %5871 = vmatprep.mubr.f32.mxu0 0.0
      %5872 = vmatmul.mubr.f32.gmra.mrb[0].mxu0 %v3974
      %v5873 = vpop.f32.mrb[0].mxu0
      %v5874 = vadd.f32 0.0, %v5873
      %v5875 = vpop.f32.mrb[0].mxu0
      %5876 = vmatprep.mubr.f32.mxu0 0.0
      %5877 = vmatmul.mubr.f32.gmra.mrb[0].mxu0 %v3976
      %v5878 = vpop.f32.mrb[0].mxu0
      %v5879 = vadd.f32 0.0, %v5878
      %v5880 = vpop.f32.mrb[0].mxu0
      %5881 = vmatprep.mubr.f32.mxu0 0.0
      %5882 = vmatmul.mubr.f32.gmra.mrb[0].mxu0 %v3978
      %v5883 = vpop.f32.mrb[0].mxu0
      %v5884 = vadd.f32 0.0, %v5883
      %v5885 = vpop.f32.mrb[0].mxu0
      %5886 = vmatprep.mubr.f32.mxu0 0.0
      %5887 = vmatmul.mubr.f32.gmra.mrb[0].mxu0 %v3980
      %v5888 = vpop.f32.mrb[0].mxu0
      %v5889 = vadd.f32 0.0, %v5888
      %v5890 = vpop.f32.mrb[0].mxu0
      %5891 = vmatprep.mubr.f32.mxu0 0.0
      %5892 = vmatmul.mubr.f32.gmra.mrb[0].mxu0 %v3982
      %v5893 = vpop.f32.mrb[0].mxu0
      %v5894 = vadd.f32 0.0, %v5893
      %v5895 = vpop.f32.mrb[0].mxu0
      %5896 = vmatprep.mubr.f32.mxu0 0.0
      %5897 = vmatmul.mubr.f32.gmra.mrb[0].mxu0 %v3984
      %v5898 = vpop.f32.mrb[0].mxu0
      %v5899 = vadd.f32 0.0, %v5898
      %v5900 = vpop.f32.mrb[0].mxu0
      %5901 = vmatprep.mubr.f32.mxu0 0.0
      %5902 = vmatmul.mubr.f32.gmra.mrb[0].mxu0 %v3986
      %v5903 = vpop.f32.mrb[0].mxu0
      %v5904 = vadd.f32 0.0, %v5903
      %v5905 = vpop.f32.mrb[0].mxu0
      %5906 = vmatprep.mubr.f32.mxu0 0.0
      %5907 = vmatmul.mubr.f32.gmra.mrb[0].mxu0 %v3988
      %v5908 = vpop.f32.mrb[0].mxu0
      %v5909 = vadd.f32 0.0, %v5908
      %v5910 = vpop.f32.mrb[0].mxu0
      %5911 = vmatprep.mubr.f32.mxu0 0.0
      %5912 = vmatmul.mubr.f32.gmra.mrb[0].mxu0 %v3990
      %v5913 = vpop.f32.mrb[0].mxu0
      %v5914 = vadd.f32 0.0, %v5913
      %v5915 = vpop.f32.mrb[0].mxu0
      %5916 = vmatprep.mubr.f32.mxu0 0.0
      %5917 = vmatmul.mubr.f32.gmra.mrb[0].mxu0 %v3992
      %v5918 = vpop.f32.mrb[0].mxu0
      %v5919 = vadd.f32 0.0, %v5918
      %v5920 = vpop.f32.mrb[0].mxu0
      %5921 = vmatprep.mubr.f32.mxu0 0.0
      %5922 = vmatmul.mubr.f32.gmra.mrb[0].mxu0 %v3994
      %v5923 = vpop.f32.mrb[0].mxu0
      %v5924 = vadd.f32 0.0, %v5923
      %v5925 = vpop.f32.mrb[0].mxu0
      %5926 = vmatprep.mubr.f32.mxu0 0.0
      %5927 = vmatmul.mubr.f32.gmra.mrb[0].mxu0 %v3996
      %v5928 = vpop.f32.mrb[0].mxu0
      %v5929 = vadd.f32 0.0, %v5928
      %v5930 = vpop.f32.mrb[0].mxu0
      %5931 = vmatprep.mubr.f32.mxu0 0.0
      %5932 = vmatmul.mubr.f32.gmra.mrb[0].mxu0 %v3998
      %v5933 = vpop.f32.mrb[0].mxu0
      %v5934 = vadd.f32 0.0, %v5933
      %v5935 = vpop.f32.mrb[0].mxu0
      %5936 = vmatprep.mubr.f32.mxu0 0.0
      %5937 = vmatmul.mubr.f32.gmra.mrb[0].mxu0 %v4000
      %v5938 = vpop.f32.mrb[0].mxu0
      %v5939 = vadd.f32 0.0, %v5938
      %v5940 = vpop.f32.mrb[0].mxu0
      %5941 = vmatprep.mubr.f32.mxu0 0.0
      %5942 = vmatmul.mubr.f32.gmra.mrb[0].mxu0 %v4002
      %v5943 = vpop.f32.mrb[0].mxu0
      %v5944 = vadd.f32 0.0, %v5943
      %v5945 = vpop.f32.mrb[0].mxu0
      %5946 = vmatprep.mubr.f32.mxu0 0.0
      %5947 = vmatmul.mubr.f32.gmra.mrb[0].mxu0 %v4004
      %v5948 = vpop.f32.mrb[0].mxu0
      %v5949 = vadd.f32 0.0, %v5948
      %v5950 = vpop.f32.mrb[0].mxu0
      %5951 = vmatprep.mubr.f32.mxu0 0.0
      %5952 = vmatmul.mubr.f32.gmra.mrb[0].mxu0 %v4006
      %v5953 = vpop.f32.mrb[0].mxu0
      %v5954 = vadd.f32 0.0, %v5953
      %v5955 = vpop.f32.mrb[0].mxu0
      %5956 = vmatprep.mubr.f32.mxu0 0.0
      %5957 = vmatmul.mubr.f32.gmra.mrb[0].mxu0 %v4008
      %v5958 = vpop.f32.mrb[0].mxu0
      %v5959 = vadd.f32 0.0, %v5958
      %v5960 = vpop.f32.mrb[0].mxu0
      %5961 = vmatprep.mubr.f32.mxu0 0.0
      %5962 = vmatmul.mubr.f32.gmra.mrb[0].mxu0 %v4010
      %v5963 = vpop.f32.mrb[0].mxu0
      %v5964 = vadd.f32 0.0, %v5963
      %v5965 = vpop.f32.mrb[0].mxu0
      %5966 = vmatprep.mubr.f32.mxu0 0.0
      %5967 = vmatmul.mubr.f32.gmra.mrb[0].mxu0 %v4012
      %v5968 = vpop.f32.mrb[0].mxu0
      %v5969 = vadd.f32 0.0, %v5968
      %v5970 = vpop.f32.mrb[0].mxu0
      %5971 = vmatprep.mubr.f32.mxu0 0.0
      %5972 = vmatmul.mubr.f32.gmra.mrb[0].mxu0 %v4953
      %v5973 = vpop.f32.mrb[0].mxu0
      %v5974 = vadd.f32 0.0, %v5973
      %v5975 = vpop.f32.mrb[0].mxu0
      %5976 = vmatprep.mubr.f32.mxu0 0.0
      %5977 = vmatmul.mubr.f32.gmra.mrb[0].mxu0 %v4955
      %v5978 = vpop.f32.mrb[0].mxu0
      %v5979 = vadd.f32 0.0, %v5978
      %v5980 = vpop.f32.mrb[0].mxu0
      %5981 = vmatprep.mubr.f32.mxu0 0.0
      %5982 = vmatmul.mubr.f32.gmra.mrb[0].mxu0 %v5761
      %v5983 = vpop.f32.mrb[0].mxu0
      %v5984 = vadd.f32 0.0, %v5983
      %v5985 = vpop.f32.mrb[0].mxu0
      %5986 = vmatprep.mubr.f32.mxu0 0.0
      %5987 = vmatmul.mubr.f32.gmra.mrb[0].mxu0 %v5763
      %v5988 = vpop.f32.mrb[0].mxu0
      %v5989 = vadd.f32 0.0, %v5988
      %v5990 = vpop.f32.mrb[0].mxu0
      %5991 = vdwg.mxu0
      %v5992 = vadd.f32 %v5722, %v5834
      %v5993 = vadd.f32 %v5723, %v5839
      %v5994 = vadd.f32 %v5724, %v5844
      %v5995 = vadd.f32 %v5725, %v5849
      %v5996 = vadd.f32 %v5726, %v5854
      %v5997 = vadd.f32 %v5727, %v5859
      %v5998 = vadd.f32 %v5728, %v5864
      %v5999 = vadd.f32 %v5729, %v5869
      %v6000 = vadd.f32 %v5730, %v5874
      %v6001 = vadd.f32 %v5731, %v5879
      %v6002 = vadd.f32 %v5732, %v5884
      %v6003 = vadd.f32 %v5733, %v5889
      %v6004 = vadd.f32 %v5734, %v5894
      %v6005 = vadd.f32 %v5735, %v5899
      %v6006 = vadd.f32 %v5736, %v5904
      %v6007 = vadd.f32 %v5737, %v5909
      %v6008 = vadd.f32 %v5738, %v5914
      %v6009 = vadd.f32 %v5739, %v5919
      %v6010 = vadd.f32 %v5740, %v5924
      %v6011 = vadd.f32 %v5741, %v5929
      %v6012 = vadd.f32 %v5742, %v5934
      %v6013 = vadd.f32 %v5743, %v5939
      %v6014 = vadd.f32 %v5744, %v5944
      %v6015 = vadd.f32 %v5745, %v5949
      %v6016 = vadd.f32 %v5746, %v5954
      %v6017 = vadd.f32 %v5747, %v5959
      %v6018 = vadd.f32 %v5748, %v5964
      %v6019 = vadd.f32 %v5749, %v5969
      %v6020 = vadd.f32 %v5750, %v5974
      %v6021 = vadd.f32 %v5751, %v5979
      %v6022 = vadd.f32 %v5752, %v5984
      %v6023 = vadd.f32 %v5753, %v5989
      %v6024 = vrot.slane %v3492, 2
      %v6025 = vrot.slane %v3493, 2
      %v6026 = vsel %vm1420, %v6024, %v6025
      %v6027 = vrot.slane %v3494, 2
      %v6028 = vsel %vm1420, %v6025, %v6027
      %v6029 = vsel %vm439, %v6026, 0
      %v6031 = vsel %vm439, %v6028, 0
      %v6034 = vsel %vm901, %v5487, 0
      %6036 = vmatprep.subr.mxu0 0.0
      %6037 = vmatpush1.msra.mxu0 %v6034
      %6038 = vmatprep.subr.mxu0 0.0
      %6039 = vmatpush1.msra.mxu0 0.0
      %6040 = vmatprep.subr.mxu0 0.0
      %6041 = vmatpush1.msra.mxu0 0.0
      %6042 = vmatprep.subr.mxu0 0.0
      %6043 = vmatpush1.msra.mxu0 0.0
      %6044 = vmatprep.subr.mxu0 0.0
      %6045 = vmatpush1.msra.mxu0 0.0
      %6046 = vmatprep.subr.mxu0 0.0
      %6047 = vmatpush1.msra.mxu0 0.0
      %6048 = vmatprep.subr.mxu0 0.0
      %6049 = vmatpush1.msra.mxu0 0.0
      %6050 = vmatprep.subr.mxu0 0.0
      %6051 = vmatpush1.msra.mxu0 0.0
      %6052 = vmatprep.subr.mxu0 0.0
      %6053 = vmatpush1.msra.mxu0 0.0
      %6054 = vmatprep.subr.mxu0 0.0
      %6055 = vmatpush1.msra.mxu0 0.0
      %6056 = vmatprep.subr.mxu0 0.0
      %6057 = vmatpush1.msra.mxu0 0.0
      %6058 = vmatprep.subr.mxu0 0.0
      %6059 = vmatpush1.msra.mxu0 0.0
      %6060 = vmatprep.subr.mxu0 0.0
      %6061 = vmatpush1.msra.mxu0 0.0
      %6062 = vmatprep.subr.mxu0 0.0
      %6063 = vmatpush1.msra.mxu0 0.0
      %6064 = vmatprep.subr.mxu0 0.0
      %6065 = vmatpush1.msra.mxu0 0.0
      %6066 = vmatprep.subr.mxu0 0.0
      %6067 = vmatpush1.msra.mxu0 0.0
      %6068 = vmatprep.subr.mxu0 0.0
      %6069 = vmatpush1.msra.mxu0 0.0
      %6070 = vmatprep.subr.mxu0 0.0
      %6071 = vmatpush1.msra.mxu0 0.0
      %6072 = vmatprep.subr.mxu0 0.0
      %6073 = vmatpush1.msra.mxu0 0.0
      %6074 = vmatprep.subr.mxu0 0.0
      %6075 = vmatpush1.msra.mxu0 0.0
      %6076 = vmatprep.subr.mxu0 0.0
      %6077 = vmatpush1.msra.mxu0 0.0
      %6078 = vmatprep.subr.mxu0 0.0
      %6079 = vmatpush1.msra.mxu0 0.0
      %6080 = vmatprep.subr.mxu0 0.0
      %6081 = vmatpush1.msra.mxu0 0.0
      %6082 = vmatprep.subr.mxu0 0.0
      %6083 = vmatpush1.msra.mxu0 0.0
      %6084 = vmatprep.subr.mxu0 0.0
      %6085 = vmatpush1.msra.mxu0 0.0
      %6086 = vmatprep.subr.mxu0 0.0
      %6087 = vmatpush1.msra.mxu0 0.0
      %6088 = vmatprep.subr.mxu0 0.0
      %6089 = vmatpush1.msra.mxu0 0.0
      %6090 = vmatprep.subr.mxu0 0.0
      %6091 = vmatpush1.msra.mxu0 0.0
      %6092 = vmatprep.subr.mxu0 0.0
      %6093 = vmatpush1.msra.mxu0 0.0
      %6094 = vmatprep.subr.mxu0 0.0
      %6095 = vmatpush1.msra.mxu0 0.0
      %6096 = vmatprep.subr.mxu0 0.0
      %6097 = vmatpush1.msra.mxu0 0.0
      %6098 = vmatprep.subr.mxu0 0.0
      %6099 = vmatpush1.msra.mxu0 0.0
      %6100 = vmatprep.mubr.f32.mxu0 0.0
      %6101 = vmatmul.mubr.f32.gmra.mrb[0].mxu0 %v4361
      %v6102 = vpop.f32.mrb[0].mxu0
      %v6103 = vadd.f32 0.0, %v6102
      %v6104 = vpop.f32.mrb[0].mxu0
      %6105 = vmatprep.mubr.f32.mxu0 0.0
      %6106 = vmatmul.mubr.f32.gmra.mrb[0].mxu0 %v4363
      %v6107 = vpop.f32.mrb[0].mxu0
      %v6108 = vadd.f32 0.0, %v6107
      %v6109 = vpop.f32.mrb[0].mxu0
      %6110 = vmatprep.mubr.f32.mxu0 0.0
      %6111 = vmatmul.mubr.f32.gmra.mrb[0].mxu0 %v4365
      %v6112 = vpop.f32.mrb[0].mxu0
      %v6113 = vadd.f32 0.0, %v6112
      %v6114 = vpop.f32.mrb[0].mxu0
      %6115 = vmatprep.mubr.f32.mxu0 0.0
      %6116 = vmatmul.mubr.f32.gmra.mrb[0].mxu0 %v4367
      %v6117 = vpop.f32.mrb[0].mxu0
      %v6118 = vadd.f32 0.0, %v6117
      %v6119 = vpop.f32.mrb[0].mxu0
      %6120 = vmatprep.mubr.f32.mxu0 0.0
      %6121 = vmatmul.mubr.f32.gmra.mrb[0].mxu0 %v4369
      %v6122 = vpop.f32.mrb[0].mxu0
      %v6123 = vadd.f32 0.0, %v6122
      %v6124 = vpop.f32.mrb[0].mxu0
      %6125 = vmatprep.mubr.f32.mxu0 0.0
      %6126 = vmatmul.mubr.f32.gmra.mrb[0].mxu0 %v4371
      %v6127 = vpop.f32.mrb[0].mxu0
      %v6128 = vadd.f32 0.0, %v6127
      %v6129 = vpop.f32.mrb[0].mxu0
      %6130 = vmatprep.mubr.f32.mxu0 0.0
      %6131 = vmatmul.mubr.f32.gmra.mrb[0].mxu0 %v4373
      %v6132 = vpop.f32.mrb[0].mxu0
      %v6133 = vadd.f32 0.0, %v6132
      %v6134 = vpop.f32.mrb[0].mxu0
      %6135 = vmatprep.mubr.f32.mxu0 0.0
      %6136 = vmatmul.mubr.f32.gmra.mrb[0].mxu0 %v4375
      %v6137 = vpop.f32.mrb[0].mxu0
      %v6138 = vadd.f32 0.0, %v6137
      %v6139 = vpop.f32.mrb[0].mxu0
      %6140 = vmatprep.mubr.f32.mxu0 0.0
      %6141 = vmatmul.mubr.f32.gmra.mrb[0].mxu0 %v4377
      %v6142 = vpop.f32.mrb[0].mxu0
      %v6143 = vadd.f32 0.0, %v6142
      %v6144 = vpop.f32.mrb[0].mxu0
      %6145 = vmatprep.mubr.f32.mxu0 0.0
      %6146 = vmatmul.mubr.f32.gmra.mrb[0].mxu0 %v4379
      %v6147 = vpop.f32.mrb[0].mxu0
      %v6148 = vadd.f32 0.0, %v6147
      %v6149 = vpop.f32.mrb[0].mxu0
      %6150 = vmatprep.mubr.f32.mxu0 0.0
      %6151 = vmatmul.mubr.f32.gmra.mrb[0].mxu0 %v4381
      %v6152 = vpop.f32.mrb[0].mxu0
      %v6153 = vadd.f32 0.0, %v6152
      %v6154 = vpop.f32.mrb[0].mxu0
      %6155 = vmatprep.mubr.f32.mxu0 0.0
      %6156 = vmatmul.mubr.f32.gmra.mrb[0].mxu0 %v4383
      %v6157 = vpop.f32.mrb[0].mxu0
      %v6158 = vadd.f32 0.0, %v6157
      %v6159 = vpop.f32.mrb[0].mxu0
      %6160 = vmatprep.mubr.f32.mxu0 0.0
      %6161 = vmatmul.mubr.f32.gmra.mrb[0].mxu0 %v4385
      %v6162 = vpop.f32.mrb[0].mxu0
      %v6163 = vadd.f32 0.0, %v6162
      %v6164 = vpop.f32.mrb[0].mxu0
      %6165 = vmatprep.mubr.f32.mxu0 0.0
      %6166 = vmatmul.mubr.f32.gmra.mrb[0].mxu0 %v4387
      %v6167 = vpop.f32.mrb[0].mxu0
      %v6168 = vadd.f32 0.0, %v6167
      %v6169 = vpop.f32.mrb[0].mxu0
      %6170 = vmatprep.mubr.f32.mxu0 0.0
      %6171 = vmatmul.mubr.f32.gmra.mrb[0].mxu0 %v4389
      %v6172 = vpop.f32.mrb[0].mxu0
      %v6173 = vadd.f32 0.0, %v6172
      %v6174 = vpop.f32.mrb[0].mxu0
      %6175 = vmatprep.mubr.f32.mxu0 0.0
      %6176 = vmatmul.mubr.f32.gmra.mrb[0].mxu0 %v4391
      %v6177 = vpop.f32.mrb[0].mxu0
      %v6178 = vadd.f32 0.0, %v6177
      %v6179 = vpop.f32.mrb[0].mxu0
      %6180 = vmatprep.mubr.f32.mxu0 0.0
      %6181 = vmatmul.mubr.f32.gmra.mrb[0].mxu0 %v4393
      %v6182 = vpop.f32.mrb[0].mxu0
      %v6183 = vadd.f32 0.0, %v6182
      %v6184 = vpop.f32.mrb[0].mxu0
      %6185 = vmatprep.mubr.f32.mxu0 0.0
      %6186 = vmatmul.mubr.f32.gmra.mrb[0].mxu0 %v4395
      %v6187 = vpop.f32.mrb[0].mxu0
      %v6188 = vadd.f32 0.0, %v6187
      %v6189 = vpop.f32.mrb[0].mxu0
      %6190 = vmatprep.mubr.f32.mxu0 0.0
      %6191 = vmatmul.mubr.f32.gmra.mrb[0].mxu0 %v4397
      %v6192 = vpop.f32.mrb[0].mxu0
      %v6193 = vadd.f32 0.0, %v6192
      %v6194 = vpop.f32.mrb[0].mxu0
      %6195 = vmatprep.mubr.f32.mxu0 0.0
      %6196 = vmatmul.mubr.f32.gmra.mrb[0].mxu0 %v4399
      %v6197 = vpop.f32.mrb[0].mxu0
      %v6198 = vadd.f32 0.0, %v6197
      %v6199 = vpop.f32.mrb[0].mxu0
      %6200 = vmatprep.mubr.f32.mxu0 0.0
      %6201 = vmatmul.mubr.f32.gmra.mrb[0].mxu0 %v4401
      %v6202 = vpop.f32.mrb[0].mxu0
      %v6203 = vadd.f32 0.0, %v6202
      %v6204 = vpop.f32.mrb[0].mxu0
      %6205 = vmatprep.mubr.f32.mxu0 0.0
      %6206 = vmatmul.mubr.f32.gmra.mrb[0].mxu0 %v4403
      %v6207 = vpop.f32.mrb[0].mxu0
      %v6208 = vadd.f32 0.0, %v6207
      %v6209 = vpop.f32.mrb[0].mxu0
      %6210 = vmatprep.mubr.f32.mxu0 0.0
      %6211 = vmatmul.mubr.f32.gmra.mrb[0].mxu0 %v4405
      %v6212 = vpop.f32.mrb[0].mxu0
      %v6213 = vadd.f32 0.0, %v6212
      %v6214 = vpop.f32.mrb[0].mxu0
      %6215 = vmatprep.mubr.f32.mxu0 0.0
      %6216 = vmatmul.mubr.f32.gmra.mrb[0].mxu0 %v4407
      %v6217 = vpop.f32.mrb[0].mxu0
      %v6218 = vadd.f32 0.0, %v6217
      %v6219 = vpop.f32.mrb[0].mxu0
      %6220 = vmatprep.mubr.f32.mxu0 0.0
      %6221 = vmatmul.mubr.f32.gmra.mrb[0].mxu0 %v4409
      %v6222 = vpop.f32.mrb[0].mxu0
      %v6223 = vadd.f32 0.0, %v6222
      %v6224 = vpop.f32.mrb[0].mxu0
      %6225 = vmatprep.mubr.f32.mxu0 0.0
      %6226 = vmatmul.mubr.f32.gmra.mrb[0].mxu0 %v4411
      %v6227 = vpop.f32.mrb[0].mxu0
      %v6228 = vadd.f32 0.0, %v6227
      %v6229 = vpop.f32.mrb[0].mxu0
      %6230 = vmatprep.mubr.f32.mxu0 0.0
      %6231 = vmatmul.mubr.f32.gmra.mrb[0].mxu0 %v4413
      %v6232 = vpop.f32.mrb[0].mxu0
      %v6233 = vadd.f32 0.0, %v6232
      %v6234 = vpop.f32.mrb[0].mxu0
      %6235 = vmatprep.mubr.f32.mxu0 0.0
      %6236 = vmatmul.mubr.f32.gmra.mrb[0].mxu0 %v4415
      %v6237 = vpop.f32.mrb[0].mxu0
      %v6238 = vadd.f32 0.0, %v6237
      %v6239 = vpop.f32.mrb[0].mxu0
      %6240 = vmatprep.mubr.f32.mxu0 0.0
      %6241 = vmatmul.mubr.f32.gmra.mrb[0].mxu0 %v5221
      %v6242 = vpop.f32.mrb[0].mxu0
      %v6243 = vadd.f32 0.0, %v6242
      %v6244 = vpop.f32.mrb[0].mxu0
      %6245 = vmatprep.mubr.f32.mxu0 0.0
      %6246 = vmatmul.mubr.f32.gmra.mrb[0].mxu0 %v5223
      %v6247 = vpop.f32.mrb[0].mxu0
      %v6248 = vadd.f32 0.0, %v6247
      %v6249 = vpop.f32.mrb[0].mxu0
      %6250 = vmatprep.mubr.f32.mxu0 0.0
      %6251 = vmatmul.mubr.f32.gmra.mrb[0].mxu0 %v6029
      %v6252 = vpop.f32.mrb[0].mxu0
      %v6253 = vadd.f32 0.0, %v6252
      %v6254 = vpop.f32.mrb[0].mxu0
      %6255 = vmatprep.mubr.f32.mxu0 0.0
      %6256 = vmatmul.mubr.f32.gmra.mrb[0].mxu0 %v6031
      %v6257 = vpop.f32.mrb[0].mxu0
      %v6258 = vadd.f32 0.0, %v6257
      %v6259 = vpop.f32.mrb[0].mxu0
      %6260 = vdwg.mxu0
      %v6261 = vadd.f32 %v5992, %v6103
      %v6262 = vadd.f32 %v5993, %v6108
      %v6263 = vadd.f32 %v5994, %v6113
      %v6264 = vadd.f32 %v5995, %v6118
      %v6265 = vadd.f32 %v5996, %v6123
      %v6266 = vadd.f32 %v5997, %v6128
      %v6267 = vadd.f32 %v5998, %v6133
      %v6268 = vadd.f32 %v5999, %v6138
      %v6269 = vadd.f32 %v6000, %v6143
      %v6270 = vadd.f32 %v6001, %v6148
      %v6271 = vadd.f32 %v6002, %v6153
      %v6272 = vadd.f32 %v6003, %v6158
      %v6273 = vadd.f32 %v6004, %v6163
      %v6274 = vadd.f32 %v6005, %v6168
      %v6275 = vadd.f32 %v6006, %v6173
      %v6276 = vadd.f32 %v6007, %v6178
      %v6277 = vadd.f32 %v6008, %v6183
      %v6278 = vadd.f32 %v6009, %v6188
      %v6279 = vadd.f32 %v6010, %v6193
      %v6280 = vadd.f32 %v6011, %v6198
      %v6281 = vadd.f32 %v6012, %v6203
      %v6282 = vadd.f32 %v6013, %v6208
      %v6283 = vadd.f32 %v6014, %v6213
      %v6284 = vadd.f32 %v6015, %v6218
      %v6285 = vadd.f32 %v6016, %v6223
      %v6286 = vadd.f32 %v6017, %v6228
      %v6287 = vadd.f32 %v6018, %v6233
      %v6288 = vadd.f32 %v6019, %v6238
      %v6289 = vadd.f32 %v6020, %v6243
      %v6290 = vadd.f32 %v6021, %v6248
      %v6291 = vadd.f32 %v6022, %v6253
      %v6292 = vadd.f32 %v6023, %v6258
      %v6294 = vlaneseq
      %v6295 = vshrl.u32 %v6294, 7
      %v6296 = vsub.s32 0, %v6295
      %v6297 = vrot.slane %v647, %v6296
      %v6299 = vadd.f32 %v6261, %v6297
      %v6300 = vadd.f32 %v6262, %v6297
      %v6301 = vadd.f32 %v6263, %v6297
      %v6302 = vadd.f32 %v6264, %v6297
      %v6303 = vadd.f32 %v6265, %v6297
      %v6304 = vadd.f32 %v6266, %v6297
      %v6305 = vadd.f32 %v6267, %v6297
      %v6306 = vadd.f32 %v6268, %v6297
      %v6307 = vadd.f32 %v6269, %v6297
      %v6308 = vadd.f32 %v6270, %v6297
      %v6309 = vadd.f32 %v6271, %v6297
      %v6310 = vadd.f32 %v6272, %v6297
      %v6311 = vadd.f32 %v6273, %v6297
      %v6312 = vadd.f32 %v6274, %v6297
      %v6313 = vadd.f32 %v6275, %v6297
      %v6314 = vadd.f32 %v6276, %v6297
      %v6315 = vadd.f32 %v6277, %v6297
      %v6316 = vadd.f32 %v6278, %v6297
      %v6317 = vadd.f32 %v6279, %v6297
      %v6318 = vadd.f32 %v6280, %v6297
      %v6319 = vadd.f32 %v6281, %v6297
      %v6320 = vadd.f32 %v6282, %v6297
      %v6321 = vadd.f32 %v6283, %v6297
      %v6322 = vadd.f32 %v6284, %v6297
      %v6323 = vadd.f32 %v6285, %v6297
      %v6324 = vadd.f32 %v6286, %v6297
      %v6325 = vadd.f32 %v6287, %v6297
      %v6326 = vadd.f32 %v6288, %v6297
      %v6327 = vadd.f32 %v6289, %v6297
      %v6328 = vadd.f32 %v6290, %v6297
      %v6329 = vadd.f32 %v6291, %v6297
      %v6330 = vadd.f32 %v6292, %v6297
      %v6331 = vsel %vm439, %v6299, 0.0
      %v6332 = vsel %vm439, %v6300, 0.0
      %v6333 = vadd.f32 %v6331, %v6332
      %v6334 = vsel %vm439, %v6301, 0.0
      %v6335 = vadd.f32 %v6333, %v6334
      %v6336 = vsel %vm439, %v6302, 0.0
      %v6337 = vadd.f32 %v6335, %v6336
      %v6338 = vsel %vm439, %v6303, 0.0
      %v6339 = vadd.f32 %v6337, %v6338
      %v6340 = vsel %vm439, %v6304, 0.0
      %v6341 = vadd.f32 %v6339, %v6340
      %v6342 = vsel %vm439, %v6305, 0.0
      %v6343 = vadd.f32 %v6341, %v6342
      %v6344 = vsel %vm439, %v6306, 0.0
      %v6345 = vadd.f32 %v6343, %v6344
      %v6346 = vsel %vm439, %v6307, 0.0
      %v6347 = vadd.f32 %v6345, %v6346
      %v6348 = vsel %vm439, %v6308, 0.0
      %v6349 = vadd.f32 %v6347, %v6348
      %v6350 = vsel %vm439, %v6309, 0.0
      %v6351 = vadd.f32 %v6349, %v6350
      %v6352 = vsel %vm439, %v6310, 0.0
      %v6353 = vadd.f32 %v6351, %v6352
      %v6354 = vsel %vm439, %v6311, 0.0
      %v6355 = vadd.f32 %v6353, %v6354
      %v6356 = vsel %vm439, %v6312, 0.0
      %v6357 = vadd.f32 %v6355, %v6356
      %v6358 = vsel %vm439, %v6313, 0.0
      %v6359 = vadd.f32 %v6357, %v6358
      %v6360 = vsel %vm439, %v6314, 0.0
      %v6361 = vadd.f32 %v6359, %v6360
      %v6362 = vsel %vm439, %v6315, 0.0
      %v6363 = vadd.f32 %v6361, %v6362
      %v6364 = vsel %vm439, %v6316, 0.0
      %v6365 = vadd.f32 %v6363, %v6364
      %v6366 = vsel %vm439, %v6317, 0.0
      %v6367 = vadd.f32 %v6365, %v6366
      %v6368 = vsel %vm439, %v6318, 0.0
      %v6369 = vadd.f32 %v6367, %v6368
      %v6370 = vsel %vm439, %v6319, 0.0
      %v6371 = vadd.f32 %v6369, %v6370
      %v6372 = vsel %vm439, %v6320, 0.0
      %v6373 = vadd.f32 %v6371, %v6372
      %v6374 = vsel %vm439, %v6321, 0.0
      %v6375 = vadd.f32 %v6373, %v6374
      %v6376 = vsel %vm439, %v6322, 0.0
      %v6377 = vadd.f32 %v6375, %v6376
      %v6378 = vsel %vm439, %v6323, 0.0
      %v6379 = vadd.f32 %v6377, %v6378
      %v6380 = vsel %vm439, %v6324, 0.0
      %v6381 = vadd.f32 %v6379, %v6380
      %v6382 = vsel %vm439, %v6325, 0.0
      %v6383 = vadd.f32 %v6381, %v6382
      %v6384 = vsel %vm439, %v6326, 0.0
      %v6385 = vadd.f32 %v6383, %v6384
      %v6386 = vsel %vm439, %v6327, 0.0
      %v6387 = vadd.f32 %v6385, %v6386
      %v6388 = vsel %vm439, %v6328, 0.0
      %v6389 = vadd.f32 %v6387, %v6388
      %v6390 = vsel %vm439, %v6329, 0.0
      %v6391 = vadd.f32 %v6389, %v6390
      %v6392 = vsel %vm439, %v6330, 0.0
      %v6393 = vadd.f32 %v6391, %v6392
      %v6394 = vrot.slane %v6393, 4
      %v6395 = vadd.f32 %v6393, %v6394
      %v6396 = vrot.slane %v6395, 2
      %v6397 = vadd.f32 %v6395, %v6396
      %v6398 = vrot.slane %v6397, 1
      %v6399 = vadd.f32 %v6397, %v6398
      %v6400 = vmul.f32 %v6399, 0.00390625
      %v6401 = vsub.f32 %v6299, %v6400
      %v6402 = vsub.f32 %v6300, %v6400
      %v6403 = vsub.f32 %v6301, %v6400
      %v6404 = vsub.f32 %v6302, %v6400
      %v6405 = vsub.f32 %v6303, %v6400
      %v6406 = vsub.f32 %v6304, %v6400
      %v6407 = vsub.f32 %v6305, %v6400
      %v6408 = vsub.f32 %v6306, %v6400
      %v6409 = vsub.f32 %v6307, %v6400
      %v6410 = vsub.f32 %v6308, %v6400
      %v6411 = vsub.f32 %v6309, %v6400
      %v6412 = vsub.f32 %v6310, %v6400
      %v6413 = vsub.f32 %v6311, %v6400
      %v6414 = vsub.f32 %v6312, %v6400
      %v6415 = vsub.f32 %v6313, %v6400
      %v6416 = vsub.f32 %v6314, %v6400
      %v6417 = vsub.f32 %v6315, %v6400
      %v6418 = vsub.f32 %v6316, %v6400
      %v6419 = vsub.f32 %v6317, %v6400
      %v6420 = vsub.f32 %v6318, %v6400
      %v6421 = vsub.f32 %v6319, %v6400
      %v6422 = vsub.f32 %v6320, %v6400
      %v6423 = vsub.f32 %v6321, %v6400
      %v6424 = vsub.f32 %v6322, %v6400
      %v6425 = vsub.f32 %v6323, %v6400
      %v6426 = vsub.f32 %v6324, %v6400
      %v6427 = vsub.f32 %v6325, %v6400
      %v6428 = vsub.f32 %v6326, %v6400
      %v6429 = vsub.f32 %v6327, %v6400
      %v6430 = vsub.f32 %v6328, %v6400
      %v6431 = vsub.f32 %v6329, %v6400
      %v6432 = vsub.f32 %v6330, %v6400
      %v6433 = vmul.f32 %v6401, %v6401
      %v6434 = vmul.f32 %v6402, %v6402
      %v6435 = vmul.f32 %v6403, %v6403
      %v6436 = vmul.f32 %v6404, %v6404
      %v6437 = vmul.f32 %v6405, %v6405
      %v6438 = vmul.f32 %v6406, %v6406
      %v6439 = vmul.f32 %v6407, %v6407
      %v6440 = vmul.f32 %v6408, %v6408
      %v6441 = vmul.f32 %v6409, %v6409
      %v6442 = vmul.f32 %v6410, %v6410
      %v6443 = vmul.f32 %v6411, %v6411
      %v6444 = vmul.f32 %v6412, %v6412
      %v6445 = vmul.f32 %v6413, %v6413
      %v6446 = vmul.f32 %v6414, %v6414
      %v6447 = vmul.f32 %v6415, %v6415
      %v6448 = vmul.f32 %v6416, %v6416
      %v6449 = vmul.f32 %v6417, %v6417
      %v6450 = vmul.f32 %v6418, %v6418
      %v6451 = vmul.f32 %v6419, %v6419
      %v6452 = vmul.f32 %v6420, %v6420
      %v6453 = vmul.f32 %v6421, %v6421
      %v6454 = vmul.f32 %v6422, %v6422
      %v6455 = vmul.f32 %v6423, %v6423
      %v6456 = vmul.f32 %v6424, %v6424
      %v6457 = vmul.f32 %v6425, %v6425
      %v6458 = vmul.f32 %v6426, %v6426
      %v6459 = vmul.f32 %v6427, %v6427
      %v6460 = vmul.f32 %v6428, %v6428
      %v6461 = vmul.f32 %v6429, %v6429
      %v6462 = vmul.f32 %v6430, %v6430
      %v6463 = vmul.f32 %v6431, %v6431
      %v6464 = vmul.f32 %v6432, %v6432
      %v6465 = vsel %vm439, %v6433, 0.0
      %v6466 = vsel %vm439, %v6434, 0.0
      %v6467 = vadd.f32 %v6465, %v6466
      %v6468 = vsel %vm439, %v6435, 0.0
      %v6469 = vadd.f32 %v6467, %v6468
      %v6470 = vsel %vm439, %v6436, 0.0
      %v6471 = vadd.f32 %v6469, %v6470
      %v6472 = vsel %vm439, %v6437, 0.0
      %v6473 = vadd.f32 %v6471, %v6472
      %v6474 = vsel %vm439, %v6438, 0.0
      %v6475 = vadd.f32 %v6473, %v6474
      %v6476 = vsel %vm439, %v6439, 0.0
      %v6477 = vadd.f32 %v6475, %v6476
      %v6478 = vsel %vm439, %v6440, 0.0
      %v6479 = vadd.f32 %v6477, %v6478
      %v6480 = vsel %vm439, %v6441, 0.0
      %v6481 = vadd.f32 %v6479, %v6480
      %v6482 = vsel %vm439, %v6442, 0.0
      %v6483 = vadd.f32 %v6481, %v6482
      %v6484 = vsel %vm439, %v6443, 0.0
      %v6485 = vadd.f32 %v6483, %v6484
      %v6486 = vsel %vm439, %v6444, 0.0
      %v6487 = vadd.f32 %v6485, %v6486
      %v6488 = vsel %vm439, %v6445, 0.0
      %v6489 = vadd.f32 %v6487, %v6488
      %v6490 = vsel %vm439, %v6446, 0.0
      %v6491 = vadd.f32 %v6489, %v6490
      %v6492 = vsel %vm439, %v6447, 0.0
      %v6493 = vadd.f32 %v6491, %v6492
      %v6494 = vsel %vm439, %v6448, 0.0
      %v6495 = vadd.f32 %v6493, %v6494
      %v6496 = vsel %vm439, %v6449, 0.0
      %v6497 = vadd.f32 %v6495, %v6496
      %v6498 = vsel %vm439, %v6450, 0.0
      %v6499 = vadd.f32 %v6497, %v6498
      %v6500 = vsel %vm439, %v6451, 0.0
      %v6501 = vadd.f32 %v6499, %v6500
      %v6502 = vsel %vm439, %v6452, 0.0
      %v6503 = vadd.f32 %v6501, %v6502
      %v6504 = vsel %vm439, %v6453, 0.0
      %v6505 = vadd.f32 %v6503, %v6504
      %v6506 = vsel %vm439, %v6454, 0.0
      %v6507 = vadd.f32 %v6505, %v6506
      %v6508 = vsel %vm439, %v6455, 0.0
      %v6509 = vadd.f32 %v6507, %v6508
      %v6510 = vsel %vm439, %v6456, 0.0
      %v6511 = vadd.f32 %v6509, %v6510
      %v6512 = vsel %vm439, %v6457, 0.0
      %v6513 = vadd.f32 %v6511, %v6512
      %v6514 = vsel %vm439, %v6458, 0.0
      %v6515 = vadd.f32 %v6513, %v6514
      %v6516 = vsel %vm439, %v6459, 0.0
      %v6517 = vadd.f32 %v6515, %v6516
      %v6518 = vsel %vm439, %v6460, 0.0
      %v6519 = vadd.f32 %v6517, %v6518
      %v6520 = vsel %vm439, %v6461, 0.0
      %v6521 = vadd.f32 %v6519, %v6520
      %v6522 = vsel %vm439, %v6462, 0.0
      %v6523 = vadd.f32 %v6521, %v6522
      %v6524 = vsel %vm439, %v6463, 0.0
      %v6525 = vadd.f32 %v6523, %v6524
      %v6526 = vsel %vm439, %v6464, 0.0
      %v6527 = vadd.f32 %v6525, %v6526
      %v6528 = vrot.slane %v6527, 4
      %v6529 = vadd.f32 %v6527, %v6528
      %v6530 = vrot.slane %v6529, 2
      %v6531 = vadd.f32 %v6529, %v6530
      %v6532 = vrot.slane %v6531, 1
      %v6533 = vadd.f32 %v6531, %v6532
      %v6534 = vmul.f32 %v6533, 0.00390625
      %v6535 = vadd.f32 %v6534, 1e-05
      %v6536 = vrsqrt.pop %v6535
      %v6537 = vmul.f32 %v6401, %v6536
      %v6538 = vmul.f32 %v6402, %v6536
      %v6539 = vmul.f32 %v6403, %v6536
      %v6540 = vmul.f32 %v6404, %v6536
      %v6541 = vmul.f32 %v6405, %v6536
      %v6542 = vmul.f32 %v6406, %v6536
      %v6543 = vmul.f32 %v6407, %v6536
      %v6544 = vmul.f32 %v6408, %v6536
      %v6545 = vmul.f32 %v6409, %v6536
      %v6546 = vmul.f32 %v6410, %v6536
      %v6547 = vmul.f32 %v6411, %v6536
      %v6548 = vmul.f32 %v6412, %v6536
      %v6549 = vmul.f32 %v6413, %v6536
      %v6550 = vmul.f32 %v6414, %v6536
      %v6551 = vmul.f32 %v6415, %v6536
      %v6552 = vmul.f32 %v6416, %v6536
      %v6553 = vmul.f32 %v6417, %v6536
      %v6554 = vmul.f32 %v6418, %v6536
      %v6555 = vmul.f32 %v6419, %v6536
      %v6556 = vmul.f32 %v6420, %v6536
      %v6557 = vmul.f32 %v6421, %v6536
      %v6558 = vmul.f32 %v6422, %v6536
      %v6559 = vmul.f32 %v6423, %v6536
      %v6560 = vmul.f32 %v6424, %v6536
      %v6561 = vmul.f32 %v6425, %v6536
      %v6562 = vmul.f32 %v6426, %v6536
      %v6563 = vmul.f32 %v6427, %v6536
      %v6564 = vmul.f32 %v6428, %v6536
      %v6565 = vmul.f32 %v6429, %v6536
      %v6566 = vmul.f32 %v6430, %v6536
      %v6567 = vmul.f32 %v6431, %v6536
      %v6568 = vmul.f32 %v6432, %v6536
      %v6570 = vlaneseq
      %v6571 = vshrl.u32 %v6570, 7
      %v6572 = vsub.s32 0, %v6571
      %v6573 = vrot.slane %v648, %v6572
      %v6575 = vmul.f32 %v6537, %v6573
      %v6576 = vmul.f32 %v6538, %v6573
      %v6577 = vmul.f32 %v6539, %v6573
      %v6578 = vmul.f32 %v6540, %v6573
      %v6579 = vmul.f32 %v6541, %v6573
      %v6580 = vmul.f32 %v6542, %v6573
      %v6581 = vmul.f32 %v6543, %v6573
      %v6582 = vmul.f32 %v6544, %v6573
      %v6583 = vmul.f32 %v6545, %v6573
      %v6584 = vmul.f32 %v6546, %v6573
      %v6585 = vmul.f32 %v6547, %v6573
      %v6586 = vmul.f32 %v6548, %v6573
      %v6587 = vmul.f32 %v6549, %v6573
      %v6588 = vmul.f32 %v6550, %v6573
      %v6589 = vmul.f32 %v6551, %v6573
      %v6590 = vmul.f32 %v6552, %v6573
      %v6591 = vmul.f32 %v6553, %v6573
      %v6592 = vmul.f32 %v6554, %v6573
      %v6593 = vmul.f32 %v6555, %v6573
      %v6594 = vmul.f32 %v6556, %v6573
      %v6595 = vmul.f32 %v6557, %v6573
      %v6596 = vmul.f32 %v6558, %v6573
      %v6597 = vmul.f32 %v6559, %v6573
      %v6598 = vmul.f32 %v6560, %v6573
      %v6599 = vmul.f32 %v6561, %v6573
      %v6600 = vmul.f32 %v6562, %v6573
      %v6601 = vmul.f32 %v6563, %v6573
      %v6602 = vmul.f32 %v6564, %v6573
      %v6603 = vmul.f32 %v6565, %v6573
      %v6604 = vmul.f32 %v6566, %v6573
      %v6605 = vmul.f32 %v6567, %v6573
      %v6606 = vmul.f32 %v6568, %v6573
      %v6608 = vlaneseq
      %v6609 = vshrl.u32 %v6608, 7
      %v6610 = vsub.s32 0, %v6609
      %v6611 = vrot.slane %v649, %v6610
      %v6613 = vadd.f32 %v6575, %v6611
      %v6614 = vadd.f32 %v6576, %v6611
      %v6615 = vadd.f32 %v6577, %v6611
      %v6616 = vadd.f32 %v6578, %v6611
      %v6617 = vadd.f32 %v6579, %v6611
      %v6618 = vadd.f32 %v6580, %v6611
      %v6619 = vadd.f32 %v6581, %v6611
      %v6620 = vadd.f32 %v6582, %v6611
      %v6621 = vadd.f32 %v6583, %v6611
      %v6622 = vadd.f32 %v6584, %v6611
      %v6623 = vadd.f32 %v6585, %v6611
      %v6624 = vadd.f32 %v6586, %v6611
      %v6625 = vadd.f32 %v6587, %v6611
      %v6626 = vadd.f32 %v6588, %v6611
      %v6627 = vadd.f32 %v6589, %v6611
      %v6628 = vadd.f32 %v6590, %v6611
      %v6629 = vadd.f32 %v6591, %v6611
      %v6630 = vadd.f32 %v6592, %v6611
      %v6631 = vadd.f32 %v6593, %v6611
      %v6632 = vadd.f32 %v6594, %v6611
      %v6633 = vadd.f32 %v6595, %v6611
      %v6634 = vadd.f32 %v6596, %v6611
      %v6635 = vadd.f32 %v6597, %v6611
      %v6636 = vadd.f32 %v6598, %v6611
      %v6637 = vadd.f32 %v6599, %v6611
      %v6638 = vadd.f32 %v6600, %v6611
      %v6639 = vadd.f32 %v6601, %v6611
      %v6640 = vadd.f32 %v6602, %v6611
      %v6641 = vadd.f32 %v6603, %v6611
      %v6642 = vadd.f32 %v6604, %v6611
      %v6643 = vadd.f32 %v6605, %v6611
      %v6644 = vadd.f32 %v6606, %v6611
      %vm6645 = vcmp.gt.f32.partialorder %v6613, 0.0
      %vm6646 = vcmp.gt.f32.partialorder %v6614, 0.0
      %vm6647 = vcmp.gt.f32.partialorder %v6615, 0.0
      %vm6648 = vcmp.gt.f32.partialorder %v6616, 0.0
      %vm6649 = vcmp.gt.f32.partialorder %v6617, 0.0
      %vm6650 = vcmp.gt.f32.partialorder %v6618, 0.0
      %vm6651 = vcmp.gt.f32.partialorder %v6619, 0.0
      %vm6652 = vcmp.gt.f32.partialorder %v6620, 0.0
      %vm6653 = vcmp.gt.f32.partialorder %v6621, 0.0
      %vm6654 = vcmp.gt.f32.partialorder %v6622, 0.0
      %vm6655 = vcmp.gt.f32.partialorder %v6623, 0.0
      %vm6656 = vcmp.gt.f32.partialorder %v6624, 0.0
      %vm6657 = vcmp.gt.f32.partialorder %v6625, 0.0
      %vm6658 = vcmp.gt.f32.partialorder %v6626, 0.0
      %vm6659 = vcmp.gt.f32.partialorder %v6627, 0.0
      %vm6660 = vcmp.gt.f32.partialorder %v6628, 0.0
      %vm6661 = vcmp.gt.f32.partialorder %v6629, 0.0
      %vm6662 = vcmp.gt.f32.partialorder %v6630, 0.0
      %vm6663 = vcmp.gt.f32.partialorder %v6631, 0.0
      %vm6664 = vcmp.gt.f32.partialorder %v6632, 0.0
      %vm6665 = vcmp.gt.f32.partialorder %v6633, 0.0
      %vm6666 = vcmp.gt.f32.partialorder %v6634, 0.0
      %vm6667 = vcmp.gt.f32.partialorder %v6635, 0.0
      %vm6668 = vcmp.gt.f32.partialorder %v6636, 0.0
      %vm6669 = vcmp.gt.f32.partialorder %v6637, 0.0
      %vm6670 = vcmp.gt.f32.partialorder %v6638, 0.0
      %vm6671 = vcmp.gt.f32.partialorder %v6639, 0.0
      %vm6672 = vcmp.gt.f32.partialorder %v6640, 0.0
      %vm6673 = vcmp.gt.f32.partialorder %v6641, 0.0
      %vm6674 = vcmp.gt.f32.partialorder %v6642, 0.0
      %vm6675 = vcmp.gt.f32.partialorder %v6643, 0.0
      %vm6676 = vcmp.gt.f32.partialorder %v6644, 0.0
      %v6677 = vmul.f32 %v6613, 0.1
      %v6678 = vmul.f32 %v6614, 0.1
      %v6679 = vmul.f32 %v6615, 0.1
      %v6680 = vmul.f32 %v6616, 0.1
      %v6681 = vmul.f32 %v6617, 0.1
      %v6682 = vmul.f32 %v6618, 0.1
      %v6683 = vmul.f32 %v6619, 0.1
      %v6684 = vmul.f32 %v6620, 0.1
      %v6685 = vmul.f32 %v6621, 0.1
      %v6686 = vmul.f32 %v6622, 0.1
      %v6687 = vmul.f32 %v6623, 0.1
      %v6688 = vmul.f32 %v6624, 0.1
      %v6689 = vmul.f32 %v6625, 0.1
      %v6690 = vmul.f32 %v6626, 0.1
      %v6691 = vmul.f32 %v6627, 0.1
      %v6692 = vmul.f32 %v6628, 0.1
      %v6693 = vmul.f32 %v6629, 0.1
      %v6694 = vmul.f32 %v6630, 0.1
      %v6695 = vmul.f32 %v6631, 0.1
      %v6696 = vmul.f32 %v6632, 0.1
      %v6697 = vmul.f32 %v6633, 0.1
      %v6698 = vmul.f32 %v6634, 0.1
      %v6699 = vmul.f32 %v6635, 0.1
      %v6700 = vmul.f32 %v6636, 0.1
      %v6701 = vmul.f32 %v6637, 0.1
      %v6702 = vmul.f32 %v6638, 0.1
      %v6703 = vmul.f32 %v6639, 0.1
      %v6704 = vmul.f32 %v6640, 0.1
      %v6705 = vmul.f32 %v6641, 0.1
      %v6706 = vmul.f32 %v6642, 0.1
      %v6707 = vmul.f32 %v6643, 0.1
      %v6708 = vmul.f32 %v6644, 0.1
      %v6709 = vsel %vm6645, %v6613, %v6677
      %v6710 = vsel %vm6646, %v6614, %v6678
      %v6711 = vsel %vm6647, %v6615, %v6679
      %v6712 = vsel %vm6648, %v6616, %v6680
      %v6713 = vsel %vm6649, %v6617, %v6681
      %v6714 = vsel %vm6650, %v6618, %v6682
      %v6715 = vsel %vm6651, %v6619, %v6683
      %v6716 = vsel %vm6652, %v6620, %v6684
      %v6717 = vsel %vm6653, %v6621, %v6685
      %v6718 = vsel %vm6654, %v6622, %v6686
      %v6719 = vsel %vm6655, %v6623, %v6687
      %v6720 = vsel %vm6656, %v6624, %v6688
      %v6721 = vsel %vm6657, %v6625, %v6689
      %v6722 = vsel %vm6658, %v6626, %v6690
      %v6723 = vsel %vm6659, %v6627, %v6691
      %v6724 = vsel %vm6660, %v6628, %v6692
      %v6725 = vsel %vm6661, %v6629, %v6693
      %v6726 = vsel %vm6662, %v6630, %v6694
      %v6727 = vsel %vm6663, %v6631, %v6695
      %v6728 = vsel %vm6664, %v6632, %v6696
      %v6729 = vsel %vm6665, %v6633, %v6697
      %v6730 = vsel %vm6666, %v6634, %v6698
      %v6731 = vsel %vm6667, %v6635, %v6699
      %v6732 = vsel %vm6668, %v6636, %v6700
      %v6733 = vsel %vm6669, %v6637, %v6701
      %v6734 = vsel %vm6670, %v6638, %v6702
      %v6735 = vsel %vm6671, %v6639, %v6703
      %v6736 = vsel %vm6672, %v6640, %v6704
      %v6737 = vsel %vm6673, %v6641, %v6705
      %v6738 = vsel %vm6674, %v6642, %v6706
      %v6739 = vsel %vm6675, %v6643, %v6707
      %v6740 = vsel %vm6676, %v6644, %v6708
      %6741 = vst.msk [vmem:[#allocation4] sm:$0xff] %vm439, 0.0
      %6742 = vst.msk [vmem:[#allocation4 + $0x8] sm:$0xff] %vm439, 0.0
      %6743 = vst.msk [vmem:[#allocation4 + $0x10] sm:$0x3] %vm442, 0.0
      %6744 = vst.msk [vmem:[#allocation4 + $0x18] sm:$0xff] %vm439, 0.0
      %6745 = vst.msk [vmem:[#allocation4 + $0x20] sm:$0xff] %vm439, 0.0
      %6746 = vst.msk [vmem:[#allocation4 + $0x28] sm:$0x3] %vm442, 0.0
      %6747 = vst.msk [vmem:[#allocation4 + $0x30] sm:$0xff] %vm439, 0.0
      %6748 = vst.msk [vmem:[#allocation4 + $0x38] sm:$0xff] %vm439, 0.0
      %6749 = vst.msk [vmem:[#allocation4 + $0x40] sm:$0x3] %vm442, 0.0
      %6750 = vst.msk [vmem:[#allocation4 + $0x48] sm:$0xff] %vm439, 0.0
      %6751 = vst.msk [vmem:[#allocation4 + $0x50] sm:$0xff] %vm439, 0.0
      %6752 = vst.msk [vmem:[#allocation4 + $0x58] sm:$0x3] %vm442, 0.0
      %6753 = vst.msk [vmem:[#allocation4 + $0x60] sm:$0xff] %vm439, 0.0
      %6754 = vst.msk [vmem:[#allocation4 + $0x68] sm:$0xff] %vm439, 0.0
      %6755 = vst.msk [vmem:[#allocation4 + $0x70] sm:$0x3] %vm442, 0.0
      %6756 = vst.msk [vmem:[#allocation4 + $0x78] sm:$0xff] %vm439, 0.0
      %6757 = vst.msk [vmem:[#allocation4 + $0x80] sm:$0xff] %vm439, 0.0
      %6758 = vst.msk [vmem:[#allocation4 + $0x88] sm:$0x3] %vm442, 0.0
      %6759 = vst.msk [vmem:[#allocation4 + $0x90] sm:$0xff] %vm439, 0.0
      %6760 = vst.msk [vmem:[#allocation4 + $0x98] sm:$0xff] %vm439, 0.0
      %6761 = vst.msk [vmem:[#allocation4 + $0xa0] sm:$0x3] %vm442, 0.0
      %6762 = vst.msk [vmem:[#allocation4 + $0xa8] sm:$0xff] %vm439, 0.0
      %6763 = vst.msk [vmem:[#allocation4 + $0xb0] sm:$0xff] %vm439, 0.0
      %6764 = vst.msk [vmem:[#allocation4 + $0xb8] sm:$0x3] %vm442, 0.0
      %6765 = vst.msk [vmem:[#allocation4 + $0xc0] sm:$0xff] %vm439, 0.0
      %6766 = vst.msk [vmem:[#allocation4 + $0xc8] sm:$0xff] %vm439, 0.0
      %6767 = vst.msk [vmem:[#allocation4 + $0xd0] sm:$0x3] %vm442, 0.0
      %6768 = vst.msk [vmem:[#allocation4 + $0xd8] sm:$0xff] %vm439, 0.0
      %6769 = vst.msk [vmem:[#allocation4 + $0xe0] sm:$0xff] %vm439, 0.0
      %6770 = vst.msk [vmem:[#allocation4 + $0xe8] sm:$0x3] %vm442, 0.0
      %6771 = vst.msk [vmem:[#allocation4 + $0xf0] sm:$0xff] %vm439, 0.0
      %6772 = vst.msk [vmem:[#allocation4 + $0xf8] sm:$0xff] %vm439, 0.0
      %6773 = vst.msk [vmem:[#allocation4 + $0x100] sm:$0x3] %vm442, 0.0
      %6774 = vst.msk [vmem:[#allocation4 + $0x108] sm:$0xff] %vm439, 0.0
      %6775 = vst.msk [vmem:[#allocation4 + $0x110] sm:$0xff] %vm439, 0.0
      %6776 = vst.msk [vmem:[#allocation4 + $0x118] sm:$0x3] %vm442, 0.0
      %6777 = vst.msk [vmem:[#allocation4 + $0x120] sm:$0xff] %vm439, 0.0
      %6778 = vst.msk [vmem:[#allocation4 + $0x128] sm:$0xff] %vm439, 0.0
      %6779 = vst.msk [vmem:[#allocation4 + $0x130] sm:$0x3] %vm442, 0.0
      %6780 = vst.msk [vmem:[#allocation4 + $0x138] sm:$0xff] %vm439, 0.0
      %6781 = vst.msk [vmem:[#allocation4 + $0x140] sm:$0xff] %vm439, 0.0
      %6782 = vst.msk [vmem:[#allocation4 + $0x148] sm:$0x3] %vm442, 0.0
      %6783 = vst.msk [vmem:[#allocation4 + $0x150] sm:$0xff] %vm439, 0.0
      %6784 = vst.msk [vmem:[#allocation4 + $0x158] sm:$0xff] %vm439, 0.0
      %6785 = vst.msk [vmem:[#allocation4 + $0x160] sm:$0x3] %vm442, 0.0
      %6786 = vst.msk [vmem:[#allocation4 + $0x168] sm:$0xff] %vm439, 0.0
      %6787 = vst.msk [vmem:[#allocation4 + $0x170] sm:$0xff] %vm439, 0.0
      %6788 = vst.msk [vmem:[#allocation4 + $0x178] sm:$0x3] %vm442, 0.0
      %6789 = vst.msk [vmem:[#allocation4 + $0x180] sm:$0xff] %vm439, 0.0
      %6790 = vst.msk [vmem:[#allocation4 + $0x188] sm:$0xff] %vm439, 0.0
      %6791 = vst.msk [vmem:[#allocation4 + $0x190] sm:$0x3] %vm442, 0.0
      %6792 = vst.msk [vmem:[#allocation4 + $0x198] sm:$0xff] %vm439, 0.0
      %6793 = vst.msk [vmem:[#allocation4 + $0x1a0] sm:$0xff] %vm439, 0.0
      %6794 = vst.msk [vmem:[#allocation4 + $0x1a8] sm:$0x3] %vm442, 0.0
      %s6795 = scalar_lea.vmem [#allocation4], 24
      %6796 = vst.msk [vmem:[%s6795 + $0x1] sm:$0xff] %vm439, %v6709
      %6797 = vst.msk [vmem:[%s6795 + $0x9] sm:$0xff] %vm439, %v6710
      %6798 = vst.msk [vmem:[%s6795 + $0x19] sm:$0xff] %vm439, %v6711
      %6799 = vst.msk [vmem:[%s6795 + $0x21] sm:$0xff] %vm439, %v6712
      %6800 = vst.msk [vmem:[%s6795 + $0x31] sm:$0xff] %vm439, %v6713
      %6801 = vst.msk [vmem:[%s6795 + $0x39] sm:$0xff] %vm439, %v6714
      %6802 = vst.msk [vmem:[%s6795 + $0x49] sm:$0xff] %vm439, %v6715
      %6803 = vst.msk [vmem:[%s6795 + $0x51] sm:$0xff] %vm439, %v6716
      %6804 = vst.msk [vmem:[%s6795 + $0x61] sm:$0xff] %vm439, %v6717
      %6805 = vst.msk [vmem:[%s6795 + $0x69] sm:$0xff] %vm439, %v6718
      %6806 = vst.msk [vmem:[%s6795 + $0x79] sm:$0xff] %vm439, %v6719
      %6807 = vst.msk [vmem:[%s6795 + $0x81] sm:$0xff] %vm439, %v6720
      %6808 = vst.msk [vmem:[%s6795 + $0x91] sm:$0xff] %vm439, %v6721
      %6809 = vst.msk [vmem:[%s6795 + $0x99] sm:$0xff] %vm439, %v6722
      %6810 = vst.msk [vmem:[%s6795 + $0xa9] sm:$0xff] %vm439, %v6723
      %6811 = vst.msk [vmem:[%s6795 + $0xb1] sm:$0xff] %vm439, %v6724
      %6812 = vst.msk [vmem:[%s6795 + $0xc1] sm:$0xff] %vm439, %v6725
      %6813 = vst.msk [vmem:[%s6795 + $0xc9] sm:$0xff] %vm439, %v6726
      %6814 = vst.msk [vmem:[%s6795 + $0xd9] sm:$0xff] %vm439, %v6727
      %6815 = vst.msk [vmem:[%s6795 + $0xe1] sm:$0xff] %vm439, %v6728
      %6816 = vst.msk [vmem:[%s6795 + $0xf1] sm:$0xff] %vm439, %v6729
      %6817 = vst.msk [vmem:[%s6795 + $0xf9] sm:$0xff] %vm439, %v6730
      %6818 = vst.msk [vmem:[%s6795 + $0x109] sm:$0xff] %vm439, %v6731
      %6819 = vst.msk [vmem:[%s6795 + $0x111] sm:$0xff] %vm439, %v6732
      %6820 = vst.msk [vmem:[%s6795 + $0x121] sm:$0xff] %vm439, %v6733
      %6821 = vst.msk [vmem:[%s6795 + $0x129] sm:$0xff] %vm439, %v6734
      %6822 = vst.msk [vmem:[%s6795 + $0x139] sm:$0xff] %vm439, %v6735
      %6823 = vst.msk [vmem:[%s6795 + $0x141] sm:$0xff] %vm439, %v6736
      %6824 = vst.msk [vmem:[%s6795 + $0x151] sm:$0xff] %vm439, %v6737
      %6825 = vst.msk [vmem:[%s6795 + $0x159] sm:$0xff] %vm439, %v6738
      %6826 = vst.msk [vmem:[%s6795 + $0x169] sm:$0xff] %vm439, %v6739
      %6827 = vst.msk [vmem:[%s6795 + $0x171] sm:$0xff] %vm439, %v6740
      %v6828 = vld [vmem:[%s8] sm:$0x1]
      %v6829 = vld [vmem:[%s9] sm:$0x1]
      %v6830 = vld [vmem:[%s10] sm:$0x1]
      %v6831 = vld [vmem:[#allocation4] sm:$0xff]
      %v6832 = vld [vmem:[#allocation4 + $0x8] sm:$0xff]
      %v6833 = vld [vmem:[#allocation4 + $0x10] sm:$0x3]
      %v6834 = vld [vmem:[#allocation4 + $0x18] sm:$0xff]
      %v6835 = vld [vmem:[#allocation4 + $0x20] sm:$0xff]
      %v6836 = vld [vmem:[#allocation4 + $0x28] sm:$0x3]
      %v6837 = vld [vmem:[#allocation4 + $0x30] sm:$0xff]
      %v6838 = vld [vmem:[#allocation4 + $0x38] sm:$0xff]
      %v6839 = vld [vmem:[#allocation4 + $0x40] sm:$0x3]
      %v6840 = vld [vmem:[#allocation4 + $0x48] sm:$0xff]
      %v6841 = vld [vmem:[#allocation4 + $0x50] sm:$0xff]
      %v6842 = vld [vmem:[#allocation4 + $0x58] sm:$0x3]
      %v6843 = vld [vmem:[#allocation4 + $0x60] sm:$0xff]
      %v6844 = vld [vmem:[#allocation4 + $0x68] sm:$0xff]
      %v6845 = vld [vmem:[#allocation4 + $0x70] sm:$0x3]
      %v6846 = vld [vmem:[#allocation4 + $0x78] sm:$0xff]
      %v6847 = vld [vmem:[#allocation4 + $0x80] sm:$0xff]
      %v6848 = vld [vmem:[#allocation4 + $0x88] sm:$0x3]
      %v6849 = vld [vmem:[#allocation4 + $0x90] sm:$0xff]
      %v6850 = vld [vmem:[#allocation4 + $0x98] sm:$0xff]
      %v6851 = vld [vmem:[#allocation4 + $0xa0] sm:$0x3]
      %v6852 = vld [vmem:[#allocation4 + $0xa8] sm:$0xff]
      %v6853 = vld [vmem:[#allocation4 + $0xb0] sm:$0xff]
      %v6854 = vld [vmem:[#allocation4 + $0xb8] sm:$0x3]
      %v6855 = vld [vmem:[#allocation4 + $0xc0] sm:$0xff]
      %v6856 = vld [vmem:[#allocation4 + $0xc8] sm:$0xff]
      %v6857 = vld [vmem:[#allocation4 + $0xd0] sm:$0x3]
      %v6858 = vld [vmem:[#allocation4 + $0xd8] sm:$0xff]
      %v6859 = vld [vmem:[#allocation4 + $0xe0] sm:$0xff]
      %v6860 = vld [vmem:[#allocation4 + $0xe8] sm:$0x3]
      %v6861 = vld [vmem:[#allocation4 + $0xf0] sm:$0xff]
      %v6862 = vld [vmem:[#allocation4 + $0xf8] sm:$0xff]
      %v6863 = vld [vmem:[#allocation4 + $0x100] sm:$0x3]
      %v6864 = vld [vmem:[#allocation4 + $0x108] sm:$0xff]
      %v6865 = vld [vmem:[#allocation4 + $0x110] sm:$0xff]
      %v6866 = vld [vmem:[#allocation4 + $0x118] sm:$0x3]
      %v6867 = vld [vmem:[#allocation4 + $0x120] sm:$0xff]
      %v6868 = vld [vmem:[#allocation4 + $0x128] sm:$0xff]
      %v6869 = vld [vmem:[#allocation4 + $0x130] sm:$0x3]
      %v6870 = vld [vmem:[#allocation4 + $0x138] sm:$0xff]
      %v6871 = vld [vmem:[#allocation4 + $0x140] sm:$0xff]
      %v6872 = vld [vmem:[#allocation4 + $0x148] sm:$0x3]
      %v6873 = vld [vmem:[#allocation4 + $0x150] sm:$0xff]
      %v6874 = vld [vmem:[#allocation4 + $0x158] sm:$0xff]
      %v6875 = vld [vmem:[#allocation4 + $0x160] sm:$0x3]
      %v6876 = vld [vmem:[#allocation4 + $0x168] sm:$0xff]
      %v6877 = vld [vmem:[#allocation4 + $0x170] sm:$0xff]
      %v6878 = vld [vmem:[#allocation4 + $0x178] sm:$0x3]
      %v6879 = vld [vmem:[#allocation4 + $0x180] sm:$0xff]
      %v6880 = vld [vmem:[#allocation4 + $0x188] sm:$0xff]
      %v6881 = vld [vmem:[#allocation4 + $0x190] sm:$0x3]
      %v6882 = vld [vmem:[#allocation4 + $0x198] sm:$0xff]
      %v6883 = vld [vmem:[#allocation4 + $0x1a0] sm:$0xff]
      %v6884 = vld [vmem:[#allocation4 + $0x1a8] sm:$0x3]
      %v6885 = vld [vmem:[%s7] sm:$0xff]
      %v6886 = vld [vmem:[%s7 + $0x8] sm:$0xf]
      %v6935 = vrot.slane %v6831, 1
      %v6936 = vrot.slane %v6832, 1
      %v6937 = vsel %vm754, %v6935, %v6936
      %v6938 = vrot.slane %v6833, 1
      %v6939 = vsel %vm754, %v6936, %v6938
      %v6940 = vrot.slane %v6834, 1
      %v6941 = vrot.slane %v6835, 1
      %v6942 = vsel %vm754, %v6940, %v6941
      %v6943 = vrot.slane %v6836, 1
      %v6944 = vsel %vm754, %v6941, %v6943
      %v6945 = vrot.slane %v6837, 1
      %v6946 = vrot.slane %v6838, 1
      %v6947 = vsel %vm754, %v6945, %v6946
      %v6948 = vrot.slane %v6839, 1
      %v6949 = vsel %vm754, %v6946, %v6948
      %v6950 = vrot.slane %v6840, 1
      %v6951 = vrot.slane %v6841, 1
      %v6952 = vsel %vm754, %v6950, %v6951
      %v6953 = vrot.slane %v6842, 1
      %v6954 = vsel %vm754, %v6951, %v6953
      %v6955 = vrot.slane %v6843, 1
      %v6956 = vrot.slane %v6844, 1
      %v6957 = vsel %vm754, %v6955, %v6956
      %v6958 = vrot.slane %v6845, 1
      %v6959 = vsel %vm754, %v6956, %v6958
      %v6960 = vrot.slane %v6846, 1
      %v6961 = vrot.slane %v6847, 1
      %v6962 = vsel %vm754, %v6960, %v6961
      %v6963 = vrot.slane %v6848, 1
      %v6964 = vsel %vm754, %v6961, %v6963
      %v6965 = vrot.slane %v6849, 1
      %v6966 = vrot.slane %v6850, 1
      %v6967 = vsel %vm754, %v6965, %v6966
      %v6968 = vrot.slane %v6851, 1
      %v6969 = vsel %vm754, %v6966, %v6968
      %v6970 = vrot.slane %v6852, 1
      %v6971 = vrot.slane %v6853, 1
      %v6972 = vsel %vm754, %v6970, %v6971
      %v6973 = vrot.slane %v6854, 1
      %v6974 = vsel %vm754, %v6971, %v6973
      %v6975 = vrot.slane %v6855, 1
      %v6976 = vrot.slane %v6856, 1
      %v6977 = vsel %vm754, %v6975, %v6976
      %v6978 = vrot.slane %v6857, 1
      %v6979 = vsel %vm754, %v6976, %v6978
      %v6980 = vrot.slane %v6858, 1
      %v6981 = vrot.slane %v6859, 1
      %v6982 = vsel %vm754, %v6980, %v6981
      %v6983 = vrot.slane %v6860, 1
      %v6984 = vsel %vm754, %v6981, %v6983
      %v6985 = vrot.slane %v6861, 1
      %v6986 = vrot.slane %v6862, 1
      %v6987 = vsel %vm754, %v6985, %v6986
      %v6988 = vrot.slane %v6863, 1
      %v6989 = vsel %vm754, %v6986, %v6988
      %v6990 = vrot.slane %v6864, 1
      %v6991 = vrot.slane %v6865, 1
      %v6992 = vsel %vm754, %v6990, %v6991
      %v6993 = vrot.slane %v6866, 1
      %v6994 = vsel %vm754, %v6991, %v6993
      %v6995 = vrot.slane %v6867, 1
      %v6996 = vrot.slane %v6868, 1
      %v6997 = vsel %vm754, %v6995, %v6996
      %v6998 = vrot.slane %v6869, 1
      %v6999 = vsel %vm754, %v6996, %v6998
      %v7000 = vrot.slane %v6870, 1
      %v7001 = vrot.slane %v6871, 1
      %v7002 = vsel %vm754, %v7000, %v7001
      %v7003 = vrot.slane %v6872, 1
      %v7004 = vsel %vm754, %v7001, %v7003
      %v7005 = vrot.slane %v6873, 1
      %v7006 = vrot.slane %v6874, 1
      %v7007 = vsel %vm754, %v7005, %v7006
      %v7008 = vrot.slane %v6875, 1
      %v7009 = vsel %vm754, %v7006, %v7008
      %v7010 = vrot.slane %v6876, 1
      %v7011 = vrot.slane %v6877, 1
      %v7012 = vsel %vm754, %v7010, %v7011
      %v7013 = vrot.slane %v6878, 1
      %v7014 = vsel %vm754, %v7011, %v7013
      %v7016 = vrot.slane %v6885, 4
      %v7017 = vsel %vm439, %v6937, 0
      %v7019 = vsel %vm439, %v6939, 0
      %v7021 = vsel %vm439, %v6942, 0
      %v7023 = vsel %vm439, %v6944, 0
      %v7025 = vsel %vm439, %v6947, 0
      %v7027 = vsel %vm439, %v6949, 0
      %v7029 = vsel %vm439, %v6952, 0
      %v7031 = vsel %vm439, %v6954, 0
      %v7033 = vsel %vm439, %v6957, 0
      %v7035 = vsel %vm439, %v6959, 0
      %v7037 = vsel %vm439, %v6962, 0
      %v7039 = vsel %vm439, %v6964, 0
      %v7041 = vsel %vm439, %v6967, 0
      %v7043 = vsel %vm439, %v6969, 0
      %v7045 = vsel %vm439, %v6972, 0
      %v7047 = vsel %vm439, %v6974, 0
      %v7049 = vsel %vm439, %v6977, 0
      %v7051 = vsel %vm439, %v6979, 0
      %v7053 = vsel %vm439, %v6982, 0
      %v7055 = vsel %vm439, %v6984, 0
      %v7057 = vsel %vm439, %v6987, 0
      %v7059 = vsel %vm439, %v6989, 0
      %v7061 = vsel %vm439, %v6992, 0
      %v7063 = vsel %vm439, %v6994, 0
      %v7065 = vsel %vm439, %v6997, 0
      %v7067 = vsel %vm439, %v6999, 0
      %v7069 = vsel %vm439, %v7002, 0
      %v7071 = vsel %vm439, %v7004, 0
      %v7073 = vsel %vm439, %v7007, 0
      %v7075 = vsel %vm439, %v7009, 0
      %v7077 = vsel %vm439, %v7012, 0
      %v7079 = vsel %vm439, %v7014, 0
      %v7081 = vsel %vm901, %v7016, 0
      %7083 = vmatprep.subr.mxu0 0.0
      %7084 = vmatpush1.msra.mxu0 %v7081
      %7085 = vmatprep.subr.mxu0 0.0
      %7086 = vmatpush1.msra.mxu0 0.0
      %7087 = vmatprep.subr.mxu0 0.0
      %7088 = vmatpush1.msra.mxu0 0.0
      %7089 = vmatprep.subr.mxu0 0.0
      %7090 = vmatpush1.msra.mxu0 0.0
      %7091 = vmatprep.subr.mxu0 0.0
      %7092 = vmatpush1.msra.mxu0 0.0
      %7093 = vmatprep.subr.mxu0 0.0
      %7094 = vmatpush1.msra.mxu0 0.0
      %7095 = vmatprep.subr.mxu0 0.0
      %7096 = vmatpush1.msra.mxu0 0.0
      %7097 = vmatprep.subr.mxu0 0.0
      %7098 = vmatpush1.msra.mxu0 0.0
      %7099 = vmatprep.subr.mxu0 0.0
      %7100 = vmatpush1.msra.mxu0 0.0
      %7101 = vmatprep.subr.mxu0 0.0
      %7102 = vmatpush1.msra.mxu0 0.0
      %7103 = vmatprep.subr.mxu0 0.0
      %7104 = vmatpush1.msra.mxu0 0.0
      %7105 = vmatprep.subr.mxu0 0.0
      %7106 = vmatpush1.msra.mxu0 0.0
      %7107 = vmatprep.subr.mxu0 0.0
      %7108 = vmatpush1.msra.mxu0 0.0
      %7109 = vmatprep.subr.mxu0 0.0
      %7110 = vmatpush1.msra.mxu0 0.0
      %7111 = vmatprep.subr.mxu0 0.0
      %7112 = vmatpush1.msra.mxu0 0.0
      %7113 = vmatprep.subr.mxu0 0.0
      %7114 = vmatpush1.msra.mxu0 0.0
      %7115 = vmatprep.subr.mxu0 0.0
      %7116 = vmatpush1.msra.mxu0 0.0
      %7117 = vmatprep.subr.mxu0 0.0
      %7118 = vmatpush1.msra.mxu0 0.0
      %7119 = vmatprep.subr.mxu0 0.0
      %7120 = vmatpush1.msra.mxu0 0.0
      %7121 = vmatprep.subr.mxu0 0.0
      %7122 = vmatpush1.msra.mxu0 0.0
      %7123 = vmatprep.subr.mxu0 0.0
      %7124 = vmatpush1.msra.mxu0 0.0
      %7125 = vmatprep.subr.mxu0 0.0
      %7126 = vmatpush1.msra.mxu0 0.0
      %7127 = vmatprep.subr.mxu0 0.0
      %7128 = vmatpush1.msra.mxu0 0.0
      %7129 = vmatprep.subr.mxu0 0.0
      %7130 = vmatpush1.msra.mxu0 0.0
      %7131 = vmatprep.subr.mxu0 0.0
      %7132 = vmatpush1.msra.mxu0 0.0
      %7133 = vmatprep.subr.mxu0 0.0
      %7134 = vmatpush1.msra.mxu0 0.0
      %7135 = vmatprep.subr.mxu0 0.0
      %7136 = vmatpush1.msra.mxu0 0.0
      %7137 = vmatprep.subr.mxu0 0.0
      %7138 = vmatpush1.msra.mxu0 0.0
      %7139 = vmatprep.subr.mxu0 0.0
      %7140 = vmatpush1.msra.mxu0 0.0
      %7141 = vmatprep.subr.mxu0 0.0
      %7142 = vmatpush1.msra.mxu0 0.0
      %7143 = vmatprep.subr.mxu0 0.0
      %7144 = vmatpush1.msra.mxu0 0.0
      %7145 = vmatprep.subr.mxu0 0.0
      %7146 = vmatpush1.msra.mxu0 0.0
      %7147 = vmatprep.mubr.f32.mxu0 0.0
      %7148 = vmatmul.mubr.f32.gmra.mrb[0].mxu0 %v7017
      %v7149 = vpop.f32.mrb[0].mxu0
      %v7150 = vadd.f32 0.0, %v7149
      %v7151 = vpop.f32.mrb[0].mxu0
      %7152 = vmatprep.mubr.f32.mxu0 0.0
      %7153 = vmatmul.mubr.f32.gmra.mrb[0].mxu0 %v7019
      %v7154 = vpop.f32.mrb[0].mxu0
      %v7155 = vadd.f32 0.0, %v7154
      %v7156 = vpop.f32.mrb[0].mxu0
      %7157 = vmatprep.mubr.f32.mxu0 0.0
      %7158 = vmatmul.mubr.f32.gmra.mrb[0].mxu0 %v7021
      %v7159 = vpop.f32.mrb[0].mxu0
      %v7160 = vadd.f32 0.0, %v7159
      %v7161 = vpop.f32.mrb[0].mxu0
      %7162 = vmatprep.mubr.f32.mxu0 0.0
      %7163 = vmatmul.mubr.f32.gmra.mrb[0].mxu0 %v7023
      %v7164 = vpop.f32.mrb[0].mxu0
      %v7165 = vadd.f32 0.0, %v7164
      %v7166 = vpop.f32.mrb[0].mxu0
      %7167 = vmatprep.mubr.f32.mxu0 0.0
      %7168 = vmatmul.mubr.f32.gmra.mrb[0].mxu0 %v7025
      %v7169 = vpop.f32.mrb[0].mxu0
      %v7170 = vadd.f32 0.0, %v7169
      %v7171 = vpop.f32.mrb[0].mxu0
      %7172 = vmatprep.mubr.f32.mxu0 0.0
      %7173 = vmatmul.mubr.f32.gmra.mrb[0].mxu0 %v7027
      %v7174 = vpop.f32.mrb[0].mxu0
      %v7175 = vadd.f32 0.0, %v7174
      %v7176 = vpop.f32.mrb[0].mxu0
      %7177 = vmatprep.mubr.f32.mxu0 0.0
      %7178 = vmatmul.mubr.f32.gmra.mrb[0].mxu0 %v7029
      %v7179 = vpop.f32.mrb[0].mxu0
      %v7180 = vadd.f32 0.0, %v7179
      %v7181 = vpop.f32.mrb[0].mxu0
      %7182 = vmatprep.mubr.f32.mxu0 0.0
      %7183 = vmatmul.mubr.f32.gmra.mrb[0].mxu0 %v7031
      %v7184 = vpop.f32.mrb[0].mxu0
      %v7185 = vadd.f32 0.0, %v7184
      %v7186 = vpop.f32.mrb[0].mxu0
      %7187 = vmatprep.mubr.f32.mxu0 0.0
      %7188 = vmatmul.mubr.f32.gmra.mrb[0].mxu0 %v7033
      %v7189 = vpop.f32.mrb[0].mxu0
      %v7190 = vadd.f32 0.0, %v7189
      %v7191 = vpop.f32.mrb[0].mxu0
      %7192 = vmatprep.mubr.f32.mxu0 0.0
      %7193 = vmatmul.mubr.f32.gmra.mrb[0].mxu0 %v7035
      %v7194 = vpop.f32.mrb[0].mxu0
      %v7195 = vadd.f32 0.0, %v7194
      %v7196 = vpop.f32.mrb[0].mxu0
      %7197 = vmatprep.mubr.f32.mxu0 0.0
      %7198 = vmatmul.mubr.f32.gmra.mrb[0].mxu0 %v7037
      %v7199 = vpop.f32.mrb[0].mxu0
      %v7200 = vadd.f32 0.0, %v7199
      %v7201 = vpop.f32.mrb[0].mxu0
      %7202 = vmatprep.mubr.f32.mxu0 0.0
      %7203 = vmatmul.mubr.f32.gmra.mrb[0].mxu0 %v7039
      %v7204 = vpop.f32.mrb[0].mxu0
      %v7205 = vadd.f32 0.0, %v7204
      %v7206 = vpop.f32.mrb[0].mxu0
      %7207 = vmatprep.mubr.f32.mxu0 0.0
      %7208 = vmatmul.mubr.f32.gmra.mrb[0].mxu0 %v7041
      %v7209 = vpop.f32.mrb[0].mxu0
      %v7210 = vadd.f32 0.0, %v7209
      %v7211 = vpop.f32.mrb[0].mxu0
      %7212 = vmatprep.mubr.f32.mxu0 0.0
      %7213 = vmatmul.mubr.f32.gmra.mrb[0].mxu0 %v7043
      %v7214 = vpop.f32.mrb[0].mxu0
      %v7215 = vadd.f32 0.0, %v7214
      %v7216 = vpop.f32.mrb[0].mxu0
      %7217 = vmatprep.mubr.f32.mxu0 0.0
      %7218 = vmatmul.mubr.f32.gmra.mrb[0].mxu0 %v7045
      %v7219 = vpop.f32.mrb[0].mxu0
      %v7220 = vadd.f32 0.0, %v7219
      %v7221 = vpop.f32.mrb[0].mxu0
      %7222 = vmatprep.mubr.f32.mxu0 0.0
      %7223 = vmatmul.mubr.f32.gmra.mrb[0].mxu0 %v7047
      %v7224 = vpop.f32.mrb[0].mxu0
      %v7225 = vadd.f32 0.0, %v7224
      %v7226 = vpop.f32.mrb[0].mxu0
      %7227 = vmatprep.mubr.f32.mxu0 0.0
      %7228 = vmatmul.mubr.f32.gmra.mrb[0].mxu0 %v7049
      %v7229 = vpop.f32.mrb[0].mxu0
      %v7230 = vadd.f32 0.0, %v7229
      %v7231 = vpop.f32.mrb[0].mxu0
      %7232 = vmatprep.mubr.f32.mxu0 0.0
      %7233 = vmatmul.mubr.f32.gmra.mrb[0].mxu0 %v7051
      %v7234 = vpop.f32.mrb[0].mxu0
      %v7235 = vadd.f32 0.0, %v7234
      %v7236 = vpop.f32.mrb[0].mxu0
      %7237 = vmatprep.mubr.f32.mxu0 0.0
      %7238 = vmatmul.mubr.f32.gmra.mrb[0].mxu0 %v7053
      %v7239 = vpop.f32.mrb[0].mxu0
      %v7240 = vadd.f32 0.0, %v7239
      %v7241 = vpop.f32.mrb[0].mxu0
      %7242 = vmatprep.mubr.f32.mxu0 0.0
      %7243 = vmatmul.mubr.f32.gmra.mrb[0].mxu0 %v7055
      %v7244 = vpop.f32.mrb[0].mxu0
      %v7245 = vadd.f32 0.0, %v7244
      %v7246 = vpop.f32.mrb[0].mxu0
      %7247 = vmatprep.mubr.f32.mxu0 0.0
      %7248 = vmatmul.mubr.f32.gmra.mrb[0].mxu0 %v7057
      %v7249 = vpop.f32.mrb[0].mxu0
      %v7250 = vadd.f32 0.0, %v7249
      %v7251 = vpop.f32.mrb[0].mxu0
      %7252 = vmatprep.mubr.f32.mxu0 0.0
      %7253 = vmatmul.mubr.f32.gmra.mrb[0].mxu0 %v7059
      %v7254 = vpop.f32.mrb[0].mxu0
      %v7255 = vadd.f32 0.0, %v7254
      %v7256 = vpop.f32.mrb[0].mxu0
      %7257 = vmatprep.mubr.f32.mxu0 0.0
      %7258 = vmatmul.mubr.f32.gmra.mrb[0].mxu0 %v7061
      %v7259 = vpop.f32.mrb[0].mxu0
      %v7260 = vadd.f32 0.0, %v7259
      %v7261 = vpop.f32.mrb[0].mxu0
      %7262 = vmatprep.mubr.f32.mxu0 0.0
      %7263 = vmatmul.mubr.f32.gmra.mrb[0].mxu0 %v7063
      %v7264 = vpop.f32.mrb[0].mxu0
      %v7265 = vadd.f32 0.0, %v7264
      %v7266 = vpop.f32.mrb[0].mxu0
      %7267 = vmatprep.mubr.f32.mxu0 0.0
      %7268 = vmatmul.mubr.f32.gmra.mrb[0].mxu0 %v7065
      %v7269 = vpop.f32.mrb[0].mxu0
      %v7270 = vadd.f32 0.0, %v7269
      %v7271 = vpop.f32.mrb[0].mxu0
      %7272 = vmatprep.mubr.f32.mxu0 0.0
      %7273 = vmatmul.mubr.f32.gmra.mrb[0].mxu0 %v7067
      %v7274 = vpop.f32.mrb[0].mxu0
      %v7275 = vadd.f32 0.0, %v7274
      %v7276 = vpop.f32.mrb[0].mxu0
      %7277 = vmatprep.mubr.f32.mxu0 0.0
      %7278 = vmatmul.mubr.f32.gmra.mrb[0].mxu0 %v7069
      %v7279 = vpop.f32.mrb[0].mxu0
      %v7280 = vadd.f32 0.0, %v7279
      %v7281 = vpop.f32.mrb[0].mxu0
      %7282 = vmatprep.mubr.f32.mxu0 0.0
      %7283 = vmatmul.mubr.f32.gmra.mrb[0].mxu0 %v7071
      %v7284 = vpop.f32.mrb[0].mxu0
      %v7285 = vadd.f32 0.0, %v7284
      %v7286 = vpop.f32.mrb[0].mxu0
      %7287 = vmatprep.mubr.f32.mxu0 0.0
      %7288 = vmatmul.mubr.f32.gmra.mrb[0].mxu0 %v7073
      %v7289 = vpop.f32.mrb[0].mxu0
      %v7290 = vadd.f32 0.0, %v7289
      %v7291 = vpop.f32.mrb[0].mxu0
      %7292 = vmatprep.mubr.f32.mxu0 0.0
      %7293 = vmatmul.mubr.f32.gmra.mrb[0].mxu0 %v7075
      %v7294 = vpop.f32.mrb[0].mxu0
      %v7295 = vadd.f32 0.0, %v7294
      %v7296 = vpop.f32.mrb[0].mxu0
      %7297 = vmatprep.mubr.f32.mxu0 0.0
      %7298 = vmatmul.mubr.f32.gmra.mrb[0].mxu0 %v7077
      %v7299 = vpop.f32.mrb[0].mxu0
      %v7300 = vadd.f32 0.0, %v7299
      %v7301 = vpop.f32.mrb[0].mxu0
      %7302 = vmatprep.mubr.f32.mxu0 0.0
      %7303 = vmatmul.mubr.f32.gmra.mrb[0].mxu0 %v7079
      %v7304 = vpop.f32.mrb[0].mxu0
      %v7305 = vadd.f32 0.0, %v7304
      %v7306 = vpop.f32.mrb[0].mxu0
      %7307 = vdwg.mxu0
      %v7308 = vsel %vm439, %v6831, 0
      %v7310 = vsel %vm439, %v6832, 0
      %v7312 = vsel %vm439, %v6834, 0
      %v7314 = vsel %vm439, %v6835, 0
      %v7316 = vsel %vm439, %v6837, 0
      %v7318 = vsel %vm439, %v6838, 0
      %v7320 = vsel %vm439, %v6840, 0
      %v7322 = vsel %vm439, %v6841, 0
      %v7324 = vsel %vm439, %v6843, 0
      %v7326 = vsel %vm439, %v6844, 0
      %v7328 = vsel %vm439, %v6846, 0
      %v7330 = vsel %vm439, %v6847, 0
      %v7332 = vsel %vm439, %v6849, 0
      %v7334 = vsel %vm439, %v6850, 0
      %v7336 = vsel %vm439, %v6852, 0
      %v7338 = vsel %vm439, %v6853, 0
      %v7340 = vsel %vm439, %v6855, 0
      %v7342 = vsel %vm439, %v6856, 0
      %v7344 = vsel %vm439, %v6858, 0
      %v7346 = vsel %vm439, %v6859, 0
      %v7348 = vsel %vm439, %v6861, 0
      %v7350 = vsel %vm439, %v6862, 0
      %v7352 = vsel %vm439, %v6864, 0
      %v7354 = vsel %vm439, %v6865, 0
      %v7356 = vsel %vm439, %v6867, 0
      %v7358 = vsel %vm439, %v6868, 0
      %v7360 = vsel %vm439, %v6870, 0
      %v7362 = vsel %vm439, %v6871, 0
      %v7364 = vsel %vm439, %v6873, 0
      %v7366 = vsel %vm439, %v6874, 0
      %v7368 = vsel %vm439, %v6876, 0
      %v7370 = vsel %vm439, %v6877, 0
      %v7372 = vsel %vm901, %v6885, 0
      %7374 = vmatprep.subr.mxu0 0.0
      %7375 = vmatpush1.msra.mxu0 %v7372
      %7376 = vmatprep.subr.mxu0 0.0
      %7377 = vmatpush1.msra.mxu0 0.0
      %7378 = vmatprep.subr.mxu0 0.0
      %7379 = vmatpush1.msra.mxu0 0.0
      %7380 = vmatprep.subr.mxu0 0.0
      %7381 = vmatpush1.msra.mxu0 0.0
      %7382 = vmatprep.subr.mxu0 0.0
      %7383 = vmatpush1.msra.mxu0 0.0
      %7384 = vmatprep.subr.mxu0 0.0
      %7385 = vmatpush1.msra.mxu0 0.0
      %7386 = vmatprep.subr.mxu0 0.0
      %7387 = vmatpush1.msra.mxu0 0.0
      %7388 = vmatprep.subr.mxu0 0.0
      %7389 = vmatpush1.msra.mxu0 0.0
      %7390 = vmatprep.subr.mxu0 0.0
      %7391 = vmatpush1.msra.mxu0 0.0
      %7392 = vmatprep.subr.mxu0 0.0
      %7393 = vmatpush1.msra.mxu0 0.0
      %7394 = vmatprep.subr.mxu0 0.0
      %7395 = vmatpush1.msra.mxu0 0.0
      %7396 = vmatprep.subr.mxu0 0.0
      %7397 = vmatpush1.msra.mxu0 0.0
      %7398 = vmatprep.subr.mxu0 0.0
      %7399 = vmatpush1.msra.mxu0 0.0
      %7400 = vmatprep.subr.mxu0 0.0
      %7401 = vmatpush1.msra.mxu0 0.0
      %7402 = vmatprep.subr.mxu0 0.0
      %7403 = vmatpush1.msra.mxu0 0.0
      %7404 = vmatprep.subr.mxu0 0.0
      %7405 = vmatpush1.msra.mxu0 0.0
      %7406 = vmatprep.subr.mxu0 0.0
      %7407 = vmatpush1.msra.mxu0 0.0
      %7408 = vmatprep.subr.mxu0 0.0
      %7409 = vmatpush1.msra.mxu0 0.0
      %7410 = vmatprep.subr.mxu0 0.0
      %7411 = vmatpush1.msra.mxu0 0.0
      %7412 = vmatprep.subr.mxu0 0.0
      %7413 = vmatpush1.msra.mxu0 0.0
      %7414 = vmatprep.subr.mxu0 0.0
      %7415 = vmatpush1.msra.mxu0 0.0
      %7416 = vmatprep.subr.mxu0 0.0
      %7417 = vmatpush1.msra.mxu0 0.0
      %7418 = vmatprep.subr.mxu0 0.0
      %7419 = vmatpush1.msra.mxu0 0.0
      %7420 = vmatprep.subr.mxu0 0.0
      %7421 = vmatpush1.msra.mxu0 0.0
      %7422 = vmatprep.subr.mxu0 0.0
      %7423 = vmatpush1.msra.mxu0 0.0
      %7424 = vmatprep.subr.mxu0 0.0
      %7425 = vmatpush1.msra.mxu0 0.0
      %7426 = vmatprep.subr.mxu0 0.0
      %7427 = vmatpush1.msra.mxu0 0.0
      %7428 = vmatprep.subr.mxu0 0.0
      %7429 = vmatpush1.msra.mxu0 0.0
      %7430 = vmatprep.subr.mxu0 0.0
      %7431 = vmatpush1.msra.mxu0 0.0
      %7432 = vmatprep.subr.mxu0 0.0
      %7433 = vmatpush1.msra.mxu0 0.0
      %7434 = vmatprep.subr.mxu0 0.0
      %7435 = vmatpush1.msra.mxu0 0.0
      %7436 = vmatprep.subr.mxu0 0.0
      %7437 = vmatpush1.msra.mxu0 0.0
      %7438 = vmatprep.mubr.f32.mxu0 0.0
      %7439 = vmatmul.mubr.f32.gmra.mrb[0].mxu0 %v7308
      %v7440 = vpop.f32.mrb[0].mxu0
      %v7441 = vadd.f32 %v7150, %v7440
      %v7442 = vpop.f32.mrb[0].mxu0
      %7443 = vmatprep.mubr.f32.mxu0 0.0
      %7444 = vmatmul.mubr.f32.gmra.mrb[0].mxu0 %v7310
      %v7445 = vpop.f32.mrb[0].mxu0
      %v7446 = vadd.f32 %v7155, %v7445
      %v7447 = vpop.f32.mrb[0].mxu0
      %7448 = vmatprep.mubr.f32.mxu0 0.0
      %7449 = vmatmul.mubr.f32.gmra.mrb[0].mxu0 %v7312
      %v7450 = vpop.f32.mrb[0].mxu0
      %v7451 = vadd.f32 %v7160, %v7450
      %v7452 = vpop.f32.mrb[0].mxu0
      %7453 = vmatprep.mubr.f32.mxu0 0.0
      %7454 = vmatmul.mubr.f32.gmra.mrb[0].mxu0 %v7314
      %v7455 = vpop.f32.mrb[0].mxu0
      %v7456 = vadd.f32 %v7165, %v7455
      %v7457 = vpop.f32.mrb[0].mxu0
      %7458 = vmatprep.mubr.f32.mxu0 0.0
      %7459 = vmatmul.mubr.f32.gmra.mrb[0].mxu0 %v7316
      %v7460 = vpop.f32.mrb[0].mxu0
      %v7461 = vadd.f32 %v7170, %v7460
      %v7462 = vpop.f32.mrb[0].mxu0
      %7463 = vmatprep.mubr.f32.mxu0 0.0
      %7464 = vmatmul.mubr.f32.gmra.mrb[0].mxu0 %v7318
      %v7465 = vpop.f32.mrb[0].mxu0
      %v7466 = vadd.f32 %v7175, %v7465
      %v7467 = vpop.f32.mrb[0].mxu0
      %7468 = vmatprep.mubr.f32.mxu0 0.0
      %7469 = vmatmul.mubr.f32.gmra.mrb[0].mxu0 %v7320
      %v7470 = vpop.f32.mrb[0].mxu0
      %v7471 = vadd.f32 %v7180, %v7470
      %v7472 = vpop.f32.mrb[0].mxu0
      %7473 = vmatprep.mubr.f32.mxu0 0.0
      %7474 = vmatmul.mubr.f32.gmra.mrb[0].mxu0 %v7322
      %v7475 = vpop.f32.mrb[0].mxu0
      %v7476 = vadd.f32 %v7185, %v7475
      %v7477 = vpop.f32.mrb[0].mxu0
      %7478 = vmatprep.mubr.f32.mxu0 0.0
      %7479 = vmatmul.mubr.f32.gmra.mrb[0].mxu0 %v7324
      %v7480 = vpop.f32.mrb[0].mxu0
      %v7481 = vadd.f32 %v7190, %v7480
      %v7482 = vpop.f32.mrb[0].mxu0
      %7483 = vmatprep.mubr.f32.mxu0 0.0
      %7484 = vmatmul.mubr.f32.gmra.mrb[0].mxu0 %v7326
      %v7485 = vpop.f32.mrb[0].mxu0
      %v7486 = vadd.f32 %v7195, %v7485
      %v7487 = vpop.f32.mrb[0].mxu0
      %7488 = vmatprep.mubr.f32.mxu0 0.0
      %7489 = vmatmul.mubr.f32.gmra.mrb[0].mxu0 %v7328
      %v7490 = vpop.f32.mrb[0].mxu0
      %v7491 = vadd.f32 %v7200, %v7490
      %v7492 = vpop.f32.mrb[0].mxu0
      %7493 = vmatprep.mubr.f32.mxu0 0.0
      %7494 = vmatmul.mubr.f32.gmra.mrb[0].mxu0 %v7330
      %v7495 = vpop.f32.mrb[0].mxu0
      %v7496 = vadd.f32 %v7205, %v7495
      %v7497 = vpop.f32.mrb[0].mxu0
      %7498 = vmatprep.mubr.f32.mxu0 0.0
      %7499 = vmatmul.mubr.f32.gmra.mrb[0].mxu0 %v7332
      %v7500 = vpop.f32.mrb[0].mxu0
      %v7501 = vadd.f32 %v7210, %v7500
      %v7502 = vpop.f32.mrb[0].mxu0
      %7503 = vmatprep.mubr.f32.mxu0 0.0
      %7504 = vmatmul.mubr.f32.gmra.mrb[0].mxu0 %v7334
      %v7505 = vpop.f32.mrb[0].mxu0
      %v7506 = vadd.f32 %v7215, %v7505
      %v7507 = vpop.f32.mrb[0].mxu0
      %7508 = vmatprep.mubr.f32.mxu0 0.0
      %7509 = vmatmul.mubr.f32.gmra.mrb[0].mxu0 %v7336
      %v7510 = vpop.f32.mrb[0].mxu0
      %v7511 = vadd.f32 %v7220, %v7510
      %v7512 = vpop.f32.mrb[0].mxu0
      %7513 = vmatprep.mubr.f32.mxu0 0.0
      %7514 = vmatmul.mubr.f32.gmra.mrb[0].mxu0 %v7338
      %v7515 = vpop.f32.mrb[0].mxu0
      %v7516 = vadd.f32 %v7225, %v7515
      %v7517 = vpop.f32.mrb[0].mxu0
      %7518 = vmatprep.mubr.f32.mxu0 0.0
      %7519 = vmatmul.mubr.f32.gmra.mrb[0].mxu0 %v7340
      %v7520 = vpop.f32.mrb[0].mxu0
      %v7521 = vadd.f32 %v7230, %v7520
      %v7522 = vpop.f32.mrb[0].mxu0
      %7523 = vmatprep.mubr.f32.mxu0 0.0
      %7524 = vmatmul.mubr.f32.gmra.mrb[0].mxu0 %v7342
      %v7525 = vpop.f32.mrb[0].mxu0
      %v7526 = vadd.f32 %v7235, %v7525
      %v7527 = vpop.f32.mrb[0].mxu0
      %7528 = vmatprep.mubr.f32.mxu0 0.0
      %7529 = vmatmul.mubr.f32.gmra.mrb[0].mxu0 %v7344
      %v7530 = vpop.f32.mrb[0].mxu0
      %v7531 = vadd.f32 %v7240, %v7530
      %v7532 = vpop.f32.mrb[0].mxu0
      %7533 = vmatprep.mubr.f32.mxu0 0.0
      %7534 = vmatmul.mubr.f32.gmra.mrb[0].mxu0 %v7346
      %v7535 = vpop.f32.mrb[0].mxu0
      %v7536 = vadd.f32 %v7245, %v7535
      %v7537 = vpop.f32.mrb[0].mxu0
      %7538 = vmatprep.mubr.f32.mxu0 0.0
      %7539 = vmatmul.mubr.f32.gmra.mrb[0].mxu0 %v7348
      %v7540 = vpop.f32.mrb[0].mxu0
      %v7541 = vadd.f32 %v7250, %v7540
      %v7542 = vpop.f32.mrb[0].mxu0
      %7543 = vmatprep.mubr.f32.mxu0 0.0
      %7544 = vmatmul.mubr.f32.gmra.mrb[0].mxu0 %v7350
      %v7545 = vpop.f32.mrb[0].mxu0
      %v7546 = vadd.f32 %v7255, %v7545
      %v7547 = vpop.f32.mrb[0].mxu0
      %7548 = vmatprep.mubr.f32.mxu0 0.0
      %7549 = vmatmul.mubr.f32.gmra.mrb[0].mxu0 %v7352
      %v7550 = vpop.f32.mrb[0].mxu0
      %v7551 = vadd.f32 %v7260, %v7550
      %v7552 = vpop.f32.mrb[0].mxu0
      %7553 = vmatprep.mubr.f32.mxu0 0.0
      %7554 = vmatmul.mubr.f32.gmra.mrb[0].mxu0 %v7354
      %v7555 = vpop.f32.mrb[0].mxu0
      %v7556 = vadd.f32 %v7265, %v7555
      %v7557 = vpop.f32.mrb[0].mxu0
      %7558 = vmatprep.mubr.f32.mxu0 0.0
      %7559 = vmatmul.mubr.f32.gmra.mrb[0].mxu0 %v7356
      %v7560 = vpop.f32.mrb[0].mxu0
      %v7561 = vadd.f32 %v7270, %v7560
      %v7562 = vpop.f32.mrb[0].mxu0
      %7563 = vmatprep.mubr.f32.mxu0 0.0
      %7564 = vmatmul.mubr.f32.gmra.mrb[0].mxu0 %v7358
      %v7565 = vpop.f32.mrb[0].mxu0
      %v7566 = vadd.f32 %v7275, %v7565
      %v7567 = vpop.f32.mrb[0].mxu0
      %7568 = vmatprep.mubr.f32.mxu0 0.0
      %7569 = vmatmul.mubr.f32.gmra.mrb[0].mxu0 %v7360
      %v7570 = vpop.f32.mrb[0].mxu0
      %v7571 = vadd.f32 %v7280, %v7570
      %v7572 = vpop.f32.mrb[0].mxu0
      %7573 = vmatprep.mubr.f32.mxu0 0.0
      %7574 = vmatmul.mubr.f32.gmra.mrb[0].mxu0 %v7362
      %v7575 = vpop.f32.mrb[0].mxu0
      %v7576 = vadd.f32 %v7285, %v7575
      %v7577 = vpop.f32.mrb[0].mxu0
      %7578 = vmatprep.mubr.f32.mxu0 0.0
      %7579 = vmatmul.mubr.f32.gmra.mrb[0].mxu0 %v7364
      %v7580 = vpop.f32.mrb[0].mxu0
      %v7581 = vadd.f32 %v7290, %v7580
      %v7582 = vpop.f32.mrb[0].mxu0
      %7583 = vmatprep.mubr.f32.mxu0 0.0
      %7584 = vmatmul.mubr.f32.gmra.mrb[0].mxu0 %v7366
      %v7585 = vpop.f32.mrb[0].mxu0
      %v7586 = vadd.f32 %v7295, %v7585
      %v7587 = vpop.f32.mrb[0].mxu0
      %7588 = vmatprep.mubr.f32.mxu0 0.0
      %7589 = vmatmul.mubr.f32.gmra.mrb[0].mxu0 %v7368
      %v7590 = vpop.f32.mrb[0].mxu0
      %v7591 = vadd.f32 %v7300, %v7590
      %v7592 = vpop.f32.mrb[0].mxu0
      %7593 = vmatprep.mubr.f32.mxu0 0.0
      %7594 = vmatmul.mubr.f32.gmra.mrb[0].mxu0 %v7370
      %v7595 = vpop.f32.mrb[0].mxu0
      %v7596 = vadd.f32 %v7305, %v7595
      %v7597 = vpop.f32.mrb[0].mxu0
      %7598 = vdwg.mxu0
      %v7599 = vrot.slane %v6831, 2
      %v7600 = vrot.slane %v6832, 2
      %v7601 = vsel %vm1420, %v7599, %v7600
      %v7602 = vrot.slane %v6833, 2
      %v7603 = vsel %vm1420, %v7600, %v7602
      %v7604 = vrot.slane %v6834, 2
      %v7605 = vrot.slane %v6835, 2
      %v7606 = vsel %vm1420, %v7604, %v7605
      %v7607 = vrot.slane %v6836, 2
      %v7608 = vsel %vm1420, %v7605, %v7607
      %v7609 = vrot.slane %v6837, 2
      %v7610 = vrot.slane %v6838, 2
      %v7611 = vsel %vm1420, %v7609, %v7610
      %v7612 = vrot.slane %v6839, 2
      %v7613 = vsel %vm1420, %v7610, %v7612
      %v7614 = vrot.slane %v6840, 2
      %v7615 = vrot.slane %v6841, 2
      %v7616 = vsel %vm1420, %v7614, %v7615
      %v7617 = vrot.slane %v6842, 2
      %v7618 = vsel %vm1420, %v7615, %v7617
      %v7619 = vrot.slane %v6843, 2
      %v7620 = vrot.slane %v6844, 2
      %v7621 = vsel %vm1420, %v7619, %v7620
      %v7622 = vrot.slane %v6845, 2
      %v7623 = vsel %vm1420, %v7620, %v7622
      %v7624 = vrot.slane %v6846, 2
      %v7625 = vrot.slane %v6847, 2
      %v7626 = vsel %vm1420, %v7624, %v7625
      %v7627 = vrot.slane %v6848, 2
      %v7628 = vsel %vm1420, %v7625, %v7627
      %v7629 = vrot.slane %v6849, 2
      %v7630 = vrot.slane %v6850, 2
      %v7631 = vsel %vm1420, %v7629, %v7630
      %v7632 = vrot.slane %v6851, 2
      %v7633 = vsel %vm1420, %v7630, %v7632
      %v7634 = vrot.slane %v6852, 2
      %v7635 = vrot.slane %v6853, 2
      %v7636 = vsel %vm1420, %v7634, %v7635
      %v7637 = vrot.slane %v6854, 2
      %v7638 = vsel %vm1420, %v7635, %v7637
      %v7639 = vrot.slane %v6855, 2
      %v7640 = vrot.slane %v6856, 2
      %v7641 = vsel %vm1420, %v7639, %v7640
      %v7642 = vrot.slane %v6857, 2
      %v7643 = vsel %vm1420, %v7640, %v7642
      %v7644 = vrot.slane %v6858, 2
      %v7645 = vrot.slane %v6859, 2
      %v7646 = vsel %vm1420, %v7644, %v7645
      %v7647 = vrot.slane %v6860, 2
      %v7648 = vsel %vm1420, %v7645, %v7647
      %v7649 = vrot.slane %v6861, 2
      %v7650 = vrot.slane %v6862, 2
      %v7651 = vsel %vm1420, %v7649, %v7650
      %v7652 = vrot.slane %v6863, 2
      %v7653 = vsel %vm1420, %v7650, %v7652
      %v7654 = vrot.slane %v6864, 2
      %v7655 = vrot.slane %v6865, 2
      %v7656 = vsel %vm1420, %v7654, %v7655
      %v7657 = vrot.slane %v6866, 2
      %v7658 = vsel %vm1420, %v7655, %v7657
      %v7659 = vrot.slane %v6867, 2
      %v7660 = vrot.slane %v6868, 2
      %v7661 = vsel %vm1420, %v7659, %v7660
      %v7662 = vrot.slane %v6869, 2
      %v7663 = vsel %vm1420, %v7660, %v7662
      %v7664 = vrot.slane %v6870, 2
      %v7665 = vrot.slane %v6871, 2
      %v7666 = vsel %vm1420, %v7664, %v7665
      %v7667 = vrot.slane %v6872, 2
      %v7668 = vsel %vm1420, %v7665, %v7667
      %v7669 = vrot.slane %v6873, 2
      %v7670 = vrot.slane %v6874, 2
      %v7671 = vsel %vm1420, %v7669, %v7670
      %v7672 = vrot.slane %v6875, 2
      %v7673 = vsel %vm1420, %v7670, %v7672
      %v7674 = vrot.slane %v6876, 2
      %v7675 = vrot.slane %v6877, 2
      %v7676 = vsel %vm1420, %v7674, %v7675
      %v7677 = vrot.slane %v6878, 2
      %v7678 = vsel %vm1420, %v7675, %v7677
      %v7679 = vsel %vm439, %v7601, 0
      %v7681 = vsel %vm439, %v7603, 0
      %v7683 = vsel %vm439, %v7606, 0
      %v7685 = vsel %vm439, %v7608, 0
      %v7687 = vsel %vm439, %v7611, 0
      %v7689 = vsel %vm439, %v7613, 0
      %v7691 = vsel %vm439, %v7616, 0
      %v7693 = vsel %vm439, %v7618, 0
      %v7695 = vsel %vm439, %v7621, 0
      %v7697 = vsel %vm439, %v7623, 0
      %v7699 = vsel %vm439, %v7626, 0
      %v7701 = vsel %vm439, %v7628, 0
      %v7703 = vsel %vm439, %v7631, 0
      %v7705 = vsel %vm439, %v7633, 0
      %v7707 = vsel %vm439, %v7636, 0
      %v7709 = vsel %vm439, %v7638, 0
      %v7711 = vsel %vm439, %v7641, 0
      %v7713 = vsel %vm439, %v7643, 0
      %v7715 = vsel %vm439, %v7646, 0
      %v7717 = vsel %vm439, %v7648, 0
      %v7719 = vsel %vm439, %v7651, 0
      %v7721 = vsel %vm439, %v7653, 0
      %v7723 = vsel %vm439, %v7656, 0
      %v7725 = vsel %vm439, %v7658, 0
      %v7727 = vsel %vm439, %v7661, 0
      %v7729 = vsel %vm439, %v7663, 0
      %v7731 = vsel %vm439, %v7666, 0
      %v7733 = vsel %vm439, %v7668, 0
      %v7735 = vsel %vm439, %v7671, 0
      %v7737 = vsel %vm439, %v7673, 0
      %v7739 = vsel %vm439, %v7676, 0
      %v7741 = vsel %vm439, %v7678, 0
      %v7744 = vsel %vm901, %v6886, 0
      %7746 = vmatprep.subr.mxu0 0.0
      %7747 = vmatpush1.msra.mxu0 %v7744
      %7748 = vmatprep.subr.mxu0 0.0
      %7749 = vmatpush1.msra.mxu0 0.0
      %7750 = vmatprep.subr.mxu0 0.0
      %7751 = vmatpush1.msra.mxu0 0.0
      %7752 = vmatprep.subr.mxu0 0.0
      %7753 = vmatpush1.msra.mxu0 0.0
      %7754 = vmatprep.subr.mxu0 0.0
      %7755 = vmatpush1.msra.mxu0 0.0
      %7756 = vmatprep.subr.mxu0 0.0
      %7757 = vmatpush1.msra.mxu0 0.0
      %7758 = vmatprep.subr.mxu0 0.0
      %7759 = vmatpush1.msra.mxu0 0.0
      %7760 = vmatprep.subr.mxu0 0.0
      %7761 = vmatpush1.msra.mxu0 0.0
      %7762 = vmatprep.subr.mxu0 0.0
      %7763 = vmatpush1.msra.mxu0 0.0
      %7764 = vmatprep.subr.mxu0 0.0
      %7765 = vmatpush1.msra.mxu0 0.0
      %7766 = vmatprep.subr.mxu0 0.0
      %7767 = vmatpush1.msra.mxu0 0.0
      %7768 = vmatprep.subr.mxu0 0.0
      %7769 = vmatpush1.msra.mxu0 0.0
      %7770 = vmatprep.subr.mxu0 0.0
      %7771 = vmatpush1.msra.mxu0 0.0
      %7772 = vmatprep.subr.mxu0 0.0
      %7773 = vmatpush1.msra.mxu0 0.0
      %7774 = vmatprep.subr.mxu0 0.0
      %7775 = vmatpush1.msra.mxu0 0.0
      %7776 = vmatprep.subr.mxu0 0.0
      %7777 = vmatpush1.msra.mxu0 0.0
      %7778 = vmatprep.subr.mxu0 0.0
      %7779 = vmatpush1.msra.mxu0 0.0
      %7780 = vmatprep.subr.mxu0 0.0
      %7781 = vmatpush1.msra.mxu0 0.0
      %7782 = vmatprep.subr.mxu0 0.0
      %7783 = vmatpush1.msra.mxu0 0.0
      %7784 = vmatprep.subr.mxu0 0.0
      %7785 = vmatpush1.msra.mxu0 0.0
      %7786 = vmatprep.subr.mxu0 0.0
      %7787 = vmatpush1.msra.mxu0 0.0
      %7788 = vmatprep.subr.mxu0 0.0
      %7789 = vmatpush1.msra.mxu0 0.0
      %7790 = vmatprep.subr.mxu0 0.0
      %7791 = vmatpush1.msra.mxu0 0.0
      %7792 = vmatprep.subr.mxu0 0.0
      %7793 = vmatpush1.msra.mxu0 0.0
      %7794 = vmatprep.subr.mxu0 0.0
      %7795 = vmatpush1.msra.mxu0 0.0
      %7796 = vmatprep.subr.mxu0 0.0
      %7797 = vmatpush1.msra.mxu0 0.0
      %7798 = vmatprep.subr.mxu0 0.0
      %7799 = vmatpush1.msra.mxu0 0.0
      %7800 = vmatprep.subr.mxu0 0.0
      %7801 = vmatpush1.msra.mxu0 0.0
      %7802 = vmatprep.subr.mxu0 0.0
      %7803 = vmatpush1.msra.mxu0 0.0
      %7804 = vmatprep.subr.mxu0 0.0
      %7805 = vmatpush1.msra.mxu0 0.0
      %7806 = vmatprep.subr.mxu0 0.0
      %7807 = vmatpush1.msra.mxu0 0.0
      %7808 = vmatprep.subr.mxu0 0.0
      %7809 = vmatpush1.msra.mxu0 0.0
      %7810 = vmatprep.mubr.f32.mxu0 0.0
      %7811 = vmatmul.mubr.f32.gmra.mrb[0].mxu0 %v7679
      %v7812 = vpop.f32.mrb[0].mxu0
      %v7813 = vadd.f32 0.0, %v7812
      %v7814 = vpop.f32.mrb[0].mxu0
      %7815 = vmatprep.mubr.f32.mxu0 0.0
      %7816 = vmatmul.mubr.f32.gmra.mrb[0].mxu0 %v7681
      %v7817 = vpop.f32.mrb[0].mxu0
      %v7818 = vadd.f32 0.0, %v7817
      %v7819 = vpop.f32.mrb[0].mxu0
      %7820 = vmatprep.mubr.f32.mxu0 0.0
      %7821 = vmatmul.mubr.f32.gmra.mrb[0].mxu0 %v7683
      %v7822 = vpop.f32.mrb[0].mxu0
      %v7823 = vadd.f32 0.0, %v7822
      %v7824 = vpop.f32.mrb[0].mxu0
      %7825 = vmatprep.mubr.f32.mxu0 0.0
      %7826 = vmatmul.mubr.f32.gmra.mrb[0].mxu0 %v7685
      %v7827 = vpop.f32.mrb[0].mxu0
      %v7828 = vadd.f32 0.0, %v7827
      %v7829 = vpop.f32.mrb[0].mxu0
      %7830 = vmatprep.mubr.f32.mxu0 0.0
      %7831 = vmatmul.mubr.f32.gmra.mrb[0].mxu0 %v7687
      %v7832 = vpop.f32.mrb[0].mxu0
      %v7833 = vadd.f32 0.0, %v7832
      %v7834 = vpop.f32.mrb[0].mxu0
      %7835 = vmatprep.mubr.f32.mxu0 0.0
      %7836 = vmatmul.mubr.f32.gmra.mrb[0].mxu0 %v7689
      %v7837 = vpop.f32.mrb[0].mxu0
      %v7838 = vadd.f32 0.0, %v7837
      %v7839 = vpop.f32.mrb[0].mxu0
      %7840 = vmatprep.mubr.f32.mxu0 0.0
      %7841 = vmatmul.mubr.f32.gmra.mrb[0].mxu0 %v7691
      %v7842 = vpop.f32.mrb[0].mxu0
      %v7843 = vadd.f32 0.0, %v7842
      %v7844 = vpop.f32.mrb[0].mxu0
      %7845 = vmatprep.mubr.f32.mxu0 0.0
      %7846 = vmatmul.mubr.f32.gmra.mrb[0].mxu0 %v7693
      %v7847 = vpop.f32.mrb[0].mxu0
      %v7848 = vadd.f32 0.0, %v7847
      %v7849 = vpop.f32.mrb[0].mxu0
      %7850 = vmatprep.mubr.f32.mxu0 0.0
      %7851 = vmatmul.mubr.f32.gmra.mrb[0].mxu0 %v7695
      %v7852 = vpop.f32.mrb[0].mxu0
      %v7853 = vadd.f32 0.0, %v7852
      %v7854 = vpop.f32.mrb[0].mxu0
      %7855 = vmatprep.mubr.f32.mxu0 0.0
      %7856 = vmatmul.mubr.f32.gmra.mrb[0].mxu0 %v7697
      %v7857 = vpop.f32.mrb[0].mxu0
      %v7858 = vadd.f32 0.0, %v7857
      %v7859 = vpop.f32.mrb[0].mxu0
      %7860 = vmatprep.mubr.f32.mxu0 0.0
      %7861 = vmatmul.mubr.f32.gmra.mrb[0].mxu0 %v7699
      %v7862 = vpop.f32.mrb[0].mxu0
      %v7863 = vadd.f32 0.0, %v7862
      %v7864 = vpop.f32.mrb[0].mxu0
      %7865 = vmatprep.mubr.f32.mxu0 0.0
      %7866 = vmatmul.mubr.f32.gmra.mrb[0].mxu0 %v7701
      %v7867 = vpop.f32.mrb[0].mxu0
      %v7868 = vadd.f32 0.0, %v7867
      %v7869 = vpop.f32.mrb[0].mxu0
      %7870 = vmatprep.mubr.f32.mxu0 0.0
      %7871 = vmatmul.mubr.f32.gmra.mrb[0].mxu0 %v7703
      %v7872 = vpop.f32.mrb[0].mxu0
      %v7873 = vadd.f32 0.0, %v7872
      %v7874 = vpop.f32.mrb[0].mxu0
      %7875 = vmatprep.mubr.f32.mxu0 0.0
      %7876 = vmatmul.mubr.f32.gmra.mrb[0].mxu0 %v7705
      %v7877 = vpop.f32.mrb[0].mxu0
      %v7878 = vadd.f32 0.0, %v7877
      %v7879 = vpop.f32.mrb[0].mxu0
      %7880 = vmatprep.mubr.f32.mxu0 0.0
      %7881 = vmatmul.mubr.f32.gmra.mrb[0].mxu0 %v7707
      %v7882 = vpop.f32.mrb[0].mxu0
      %v7883 = vadd.f32 0.0, %v7882
      %v7884 = vpop.f32.mrb[0].mxu0
      %7885 = vmatprep.mubr.f32.mxu0 0.0
      %7886 = vmatmul.mubr.f32.gmra.mrb[0].mxu0 %v7709
      %v7887 = vpop.f32.mrb[0].mxu0
      %v7888 = vadd.f32 0.0, %v7887
      %v7889 = vpop.f32.mrb[0].mxu0
      %7890 = vmatprep.mubr.f32.mxu0 0.0
      %7891 = vmatmul.mubr.f32.gmra.mrb[0].mxu0 %v7711
      %v7892 = vpop.f32.mrb[0].mxu0
      %v7893 = vadd.f32 0.0, %v7892
      %v7894 = vpop.f32.mrb[0].mxu0
      %7895 = vmatprep.mubr.f32.mxu0 0.0
      %7896 = vmatmul.mubr.f32.gmra.mrb[0].mxu0 %v7713
      %v7897 = vpop.f32.mrb[0].mxu0
      %v7898 = vadd.f32 0.0, %v7897
      %v7899 = vpop.f32.mrb[0].mxu0
      %7900 = vmatprep.mubr.f32.mxu0 0.0
      %7901 = vmatmul.mubr.f32.gmra.mrb[0].mxu0 %v7715
      %v7902 = vpop.f32.mrb[0].mxu0
      %v7903 = vadd.f32 0.0, %v7902
      %v7904 = vpop.f32.mrb[0].mxu0
      %7905 = vmatprep.mubr.f32.mxu0 0.0
      %7906 = vmatmul.mubr.f32.gmra.mrb[0].mxu0 %v7717
      %v7907 = vpop.f32.mrb[0].mxu0
      %v7908 = vadd.f32 0.0, %v7907
      %v7909 = vpop.f32.mrb[0].mxu0
      %7910 = vmatprep.mubr.f32.mxu0 0.0
      %7911 = vmatmul.mubr.f32.gmra.mrb[0].mxu0 %v7719
      %v7912 = vpop.f32.mrb[0].mxu0
      %v7913 = vadd.f32 0.0, %v7912
      %v7914 = vpop.f32.mrb[0].mxu0
      %7915 = vmatprep.mubr.f32.mxu0 0.0
      %7916 = vmatmul.mubr.f32.gmra.mrb[0].mxu0 %v7721
      %v7917 = vpop.f32.mrb[0].mxu0
      %v7918 = vadd.f32 0.0, %v7917
      %v7919 = vpop.f32.mrb[0].mxu0
      %7920 = vmatprep.mubr.f32.mxu0 0.0
      %7921 = vmatmul.mubr.f32.gmra.mrb[0].mxu0 %v7723
      %v7922 = vpop.f32.mrb[0].mxu0
      %v7923 = vadd.f32 0.0, %v7922
      %v7924 = vpop.f32.mrb[0].mxu0
      %7925 = vmatprep.mubr.f32.mxu0 0.0
      %7926 = vmatmul.mubr.f32.gmra.mrb[0].mxu0 %v7725
      %v7927 = vpop.f32.mrb[0].mxu0
      %v7928 = vadd.f32 0.0, %v7927
      %v7929 = vpop.f32.mrb[0].mxu0
      %7930 = vmatprep.mubr.f32.mxu0 0.0
      %7931 = vmatmul.mubr.f32.gmra.mrb[0].mxu0 %v7727
      %v7932 = vpop.f32.mrb[0].mxu0
      %v7933 = vadd.f32 0.0, %v7932
      %v7934 = vpop.f32.mrb[0].mxu0
      %7935 = vmatprep.mubr.f32.mxu0 0.0
      %7936 = vmatmul.mubr.f32.gmra.mrb[0].mxu0 %v7729
      %v7937 = vpop.f32.mrb[0].mxu0
      %v7938 = vadd.f32 0.0, %v7937
      %v7939 = vpop.f32.mrb[0].mxu0
      %7940 = vmatprep.mubr.f32.mxu0 0.0
      %7941 = vmatmul.mubr.f32.gmra.mrb[0].mxu0 %v7731
      %v7942 = vpop.f32.mrb[0].mxu0
      %v7943 = vadd.f32 0.0, %v7942
      %v7944 = vpop.f32.mrb[0].mxu0
      %7945 = vmatprep.mubr.f32.mxu0 0.0
      %7946 = vmatmul.mubr.f32.gmra.mrb[0].mxu0 %v7733
      %v7947 = vpop.f32.mrb[0].mxu0
      %v7948 = vadd.f32 0.0, %v7947
      %v7949 = vpop.f32.mrb[0].mxu0
      %7950 = vmatprep.mubr.f32.mxu0 0.0
      %7951 = vmatmul.mubr.f32.gmra.mrb[0].mxu0 %v7735
      %v7952 = vpop.f32.mrb[0].mxu0
      %v7953 = vadd.f32 0.0, %v7952
      %v7954 = vpop.f32.mrb[0].mxu0
      %7955 = vmatprep.mubr.f32.mxu0 0.0
      %7956 = vmatmul.mubr.f32.gmra.mrb[0].mxu0 %v7737
      %v7957 = vpop.f32.mrb[0].mxu0
      %v7958 = vadd.f32 0.0, %v7957
      %v7959 = vpop.f32.mrb[0].mxu0
      %7960 = vmatprep.mubr.f32.mxu0 0.0
      %7961 = vmatmul.mubr.f32.gmra.mrb[0].mxu0 %v7739
      %v7962 = vpop.f32.mrb[0].mxu0
      %v7963 = vadd.f32 0.0, %v7962
      %v7964 = vpop.f32.mrb[0].mxu0
      %7965 = vmatprep.mubr.f32.mxu0 0.0
      %7966 = vmatmul.mubr.f32.gmra.mrb[0].mxu0 %v7741
      %v7967 = vpop.f32.mrb[0].mxu0
      %v7968 = vadd.f32 0.0, %v7967
      %v7969 = vpop.f32.mrb[0].mxu0
      %7970 = vdwg.mxu0
      %v7971 = vadd.f32 %v7441, %v7813
      %v7972 = vadd.f32 %v7446, %v7818
      %v7973 = vadd.f32 %v7451, %v7823
      %v7974 = vadd.f32 %v7456, %v7828
      %v7975 = vadd.f32 %v7461, %v7833
      %v7976 = vadd.f32 %v7466, %v7838
      %v7977 = vadd.f32 %v7471, %v7843
      %v7978 = vadd.f32 %v7476, %v7848
      %v7979 = vadd.f32 %v7481, %v7853
      %v7980 = vadd.f32 %v7486, %v7858
      %v7981 = vadd.f32 %v7491, %v7863
      %v7982 = vadd.f32 %v7496, %v7868
      %v7983 = vadd.f32 %v7501, %v7873
      %v7984 = vadd.f32 %v7506, %v7878
      %v7985 = vadd.f32 %v7511, %v7883
      %v7986 = vadd.f32 %v7516, %v7888
      %v7987 = vadd.f32 %v7521, %v7893
      %v7988 = vadd.f32 %v7526, %v7898
      %v7989 = vadd.f32 %v7531, %v7903
      %v7990 = vadd.f32 %v7536, %v7908
      %v7991 = vadd.f32 %v7541, %v7913
      %v7992 = vadd.f32 %v7546, %v7918
      %v7993 = vadd.f32 %v7551, %v7923
      %v7994 = vadd.f32 %v7556, %v7928
      %v7995 = vadd.f32 %v7561, %v7933
      %v7996 = vadd.f32 %v7566, %v7938
      %v7997 = vadd.f32 %v7571, %v7943
      %v7998 = vadd.f32 %v7576, %v7948
      %v7999 = vadd.f32 %v7581, %v7953
      %v8000 = vadd.f32 %v7586, %v7958
      %v8001 = vadd.f32 %v7591, %v7963
      %v8002 = vadd.f32 %v7596, %v7968
      %s8003 = scalar_lea.vmem %s7, 16
      %v8004 = vld [vmem:[%s8003] sm:$0xff]
      %v8005 = vld [vmem:[%s8003 + $0x8] sm:$0xf]
      %v8007 = vsel %vm439, %v6879, 0
      %v8010 = vsel %vm439, %v6880, 0
      %v8013 = vsel %vm901, %v8004, 0
      %8015 = vmatprep.subr.mxu0 0.0
      %8016 = vmatpush1.msra.mxu0 %v8013
      %8017 = vmatprep.subr.mxu0 0.0
      %8018 = vmatpush1.msra.mxu0 0.0
      %8019 = vmatprep.subr.mxu0 0.0
      %8020 = vmatpush1.msra.mxu0 0.0
      %8021 = vmatprep.subr.mxu0 0.0
      %8022 = vmatpush1.msra.mxu0 0.0
      %8023 = vmatprep.subr.mxu0 0.0
      %8024 = vmatpush1.msra.mxu0 0.0
      %8025 = vmatprep.subr.mxu0 0.0
      %8026 = vmatpush1.msra.mxu0 0.0
      %8027 = vmatprep.subr.mxu0 0.0
      %8028 = vmatpush1.msra.mxu0 0.0
      %8029 = vmatprep.subr.mxu0 0.0
      %8030 = vmatpush1.msra.mxu0 0.0
      %8031 = vmatprep.subr.mxu0 0.0
      %8032 = vmatpush1.msra.mxu0 0.0
      %8033 = vmatprep.subr.mxu0 0.0
      %8034 = vmatpush1.msra.mxu0 0.0
      %8035 = vmatprep.subr.mxu0 0.0
      %8036 = vmatpush1.msra.mxu0 0.0
      %8037 = vmatprep.subr.mxu0 0.0
      %8038 = vmatpush1.msra.mxu0 0.0
      %8039 = vmatprep.subr.mxu0 0.0
      %8040 = vmatpush1.msra.mxu0 0.0
      %8041 = vmatprep.subr.mxu0 0.0
      %8042 = vmatpush1.msra.mxu0 0.0
      %8043 = vmatprep.subr.mxu0 0.0
      %8044 = vmatpush1.msra.mxu0 0.0
      %8045 = vmatprep.subr.mxu0 0.0
      %8046 = vmatpush1.msra.mxu0 0.0
      %8047 = vmatprep.subr.mxu0 0.0
      %8048 = vmatpush1.msra.mxu0 0.0
      %8049 = vmatprep.subr.mxu0 0.0
      %8050 = vmatpush1.msra.mxu0 0.0
      %8051 = vmatprep.subr.mxu0 0.0
      %8052 = vmatpush1.msra.mxu0 0.0
      %8053 = vmatprep.subr.mxu0 0.0
      %8054 = vmatpush1.msra.mxu0 0.0
      %8055 = vmatprep.subr.mxu0 0.0
      %8056 = vmatpush1.msra.mxu0 0.0
      %8057 = vmatprep.subr.mxu0 0.0
      %8058 = vmatpush1.msra.mxu0 0.0
      %8059 = vmatprep.subr.mxu0 0.0
      %8060 = vmatpush1.msra.mxu0 0.0
      %8061 = vmatprep.subr.mxu0 0.0
      %8062 = vmatpush1.msra.mxu0 0.0
      %8063 = vmatprep.subr.mxu0 0.0
      %8064 = vmatpush1.msra.mxu0 0.0
      %8065 = vmatprep.subr.mxu0 0.0
      %8066 = vmatpush1.msra.mxu0 0.0
      %8067 = vmatprep.subr.mxu0 0.0
      %8068 = vmatpush1.msra.mxu0 0.0
      %8069 = vmatprep.subr.mxu0 0.0
      %8070 = vmatpush1.msra.mxu0 0.0
      %8071 = vmatprep.subr.mxu0 0.0
      %8072 = vmatpush1.msra.mxu0 0.0
      %8073 = vmatprep.subr.mxu0 0.0
      %8074 = vmatpush1.msra.mxu0 0.0
      %8075 = vmatprep.subr.mxu0 0.0
      %8076 = vmatpush1.msra.mxu0 0.0
      %8077 = vmatprep.subr.mxu0 0.0
      %8078 = vmatpush1.msra.mxu0 0.0
      %8079 = vmatprep.mubr.f32.mxu0 0.0
      %8080 = vmatmul.mubr.f32.gmra.mrb[0].mxu0 %v7312
      %v8081 = vpop.f32.mrb[0].mxu0
      %v8082 = vadd.f32 0.0, %v8081
      %v8083 = vpop.f32.mrb[0].mxu0
      %8084 = vmatprep.mubr.f32.mxu0 0.0
      %8085 = vmatmul.mubr.f32.gmra.mrb[0].mxu0 %v7314
      %v8086 = vpop.f32.mrb[0].mxu0
      %v8087 = vadd.f32 0.0, %v8086
      %v8088 = vpop.f32.mrb[0].mxu0
      %8089 = vmatprep.mubr.f32.mxu0 0.0
      %8090 = vmatmul.mubr.f32.gmra.mrb[0].mxu0 %v7316
      %v8091 = vpop.f32.mrb[0].mxu0
      %v8092 = vadd.f32 0.0, %v8091
      %v8093 = vpop.f32.mrb[0].mxu0
      %8094 = vmatprep.mubr.f32.mxu0 0.0
      %8095 = vmatmul.mubr.f32.gmra.mrb[0].mxu0 %v7318
      %v8096 = vpop.f32.mrb[0].mxu0
      %v8097 = vadd.f32 0.0, %v8096
      %v8098 = vpop.f32.mrb[0].mxu0
      %8099 = vmatprep.mubr.f32.mxu0 0.0
      %8100 = vmatmul.mubr.f32.gmra.mrb[0].mxu0 %v7320
      %v8101 = vpop.f32.mrb[0].mxu0
      %v8102 = vadd.f32 0.0, %v8101
      %v8103 = vpop.f32.mrb[0].mxu0
      %8104 = vmatprep.mubr.f32.mxu0 0.0
      %8105 = vmatmul.mubr.f32.gmra.mrb[0].mxu0 %v7322
      %v8106 = vpop.f32.mrb[0].mxu0
      %v8107 = vadd.f32 0.0, %v8106
      %v8108 = vpop.f32.mrb[0].mxu0
      %8109 = vmatprep.mubr.f32.mxu0 0.0
      %8110 = vmatmul.mubr.f32.gmra.mrb[0].mxu0 %v7324
      %v8111 = vpop.f32.mrb[0].mxu0
      %v8112 = vadd.f32 0.0, %v8111
      %v8113 = vpop.f32.mrb[0].mxu0
      %8114 = vmatprep.mubr.f32.mxu0 0.0
      %8115 = vmatmul.mubr.f32.gmra.mrb[0].mxu0 %v7326
      %v8116 = vpop.f32.mrb[0].mxu0
      %v8117 = vadd.f32 0.0, %v8116
      %v8118 = vpop.f32.mrb[0].mxu0
      %8119 = vmatprep.mubr.f32.mxu0 0.0
      %8120 = vmatmul.mubr.f32.gmra.mrb[0].mxu0 %v7328
      %v8121 = vpop.f32.mrb[0].mxu0
      %v8122 = vadd.f32 0.0, %v8121
      %v8123 = vpop.f32.mrb[0].mxu0
      %8124 = vmatprep.mubr.f32.mxu0 0.0
      %8125 = vmatmul.mubr.f32.gmra.mrb[0].mxu0 %v7330
      %v8126 = vpop.f32.mrb[0].mxu0
      %v8127 = vadd.f32 0.0, %v8126
      %v8128 = vpop.f32.mrb[0].mxu0
      %8129 = vmatprep.mubr.f32.mxu0 0.0
      %8130 = vmatmul.mubr.f32.gmra.mrb[0].mxu0 %v7332
      %v8131 = vpop.f32.mrb[0].mxu0
      %v8132 = vadd.f32 0.0, %v8131
      %v8133 = vpop.f32.mrb[0].mxu0
      %8134 = vmatprep.mubr.f32.mxu0 0.0
      %8135 = vmatmul.mubr.f32.gmra.mrb[0].mxu0 %v7334
      %v8136 = vpop.f32.mrb[0].mxu0
      %v8137 = vadd.f32 0.0, %v8136
      %v8138 = vpop.f32.mrb[0].mxu0
      %8139 = vmatprep.mubr.f32.mxu0 0.0
      %8140 = vmatmul.mubr.f32.gmra.mrb[0].mxu0 %v7336
      %v8141 = vpop.f32.mrb[0].mxu0
      %v8142 = vadd.f32 0.0, %v8141
      %v8143 = vpop.f32.mrb[0].mxu0
      %8144 = vmatprep.mubr.f32.mxu0 0.0
      %8145 = vmatmul.mubr.f32.gmra.mrb[0].mxu0 %v7338
      %v8146 = vpop.f32.mrb[0].mxu0
      %v8147 = vadd.f32 0.0, %v8146
      %v8148 = vpop.f32.mrb[0].mxu0
      %8149 = vmatprep.mubr.f32.mxu0 0.0
      %8150 = vmatmul.mubr.f32.gmra.mrb[0].mxu0 %v7340
      %v8151 = vpop.f32.mrb[0].mxu0
      %v8152 = vadd.f32 0.0, %v8151
      %v8153 = vpop.f32.mrb[0].mxu0
      %8154 = vmatprep.mubr.f32.mxu0 0.0
      %8155 = vmatmul.mubr.f32.gmra.mrb[0].mxu0 %v7342
      %v8156 = vpop.f32.mrb[0].mxu0
      %v8157 = vadd.f32 0.0, %v8156
      %v8158 = vpop.f32.mrb[0].mxu0
      %8159 = vmatprep.mubr.f32.mxu0 0.0
      %8160 = vmatmul.mubr.f32.gmra.mrb[0].mxu0 %v7344
      %v8161 = vpop.f32.mrb[0].mxu0
      %v8162 = vadd.f32 0.0, %v8161
      %v8163 = vpop.f32.mrb[0].mxu0
      %8164 = vmatprep.mubr.f32.mxu0 0.0
      %8165 = vmatmul.mubr.f32.gmra.mrb[0].mxu0 %v7346
      %v8166 = vpop.f32.mrb[0].mxu0
      %v8167 = vadd.f32 0.0, %v8166
      %v8168 = vpop.f32.mrb[0].mxu0
      %8169 = vmatprep.mubr.f32.mxu0 0.0
      %8170 = vmatmul.mubr.f32.gmra.mrb[0].mxu0 %v7348
      %v8171 = vpop.f32.mrb[0].mxu0
      %v8172 = vadd.f32 0.0, %v8171
      %v8173 = vpop.f32.mrb[0].mxu0
      %8174 = vmatprep.mubr.f32.mxu0 0.0
      %8175 = vmatmul.mubr.f32.gmra.mrb[0].mxu0 %v7350
      %v8176 = vpop.f32.mrb[0].mxu0
      %v8177 = vadd.f32 0.0, %v8176
      %v8178 = vpop.f32.mrb[0].mxu0
      %8179 = vmatprep.mubr.f32.mxu0 0.0
      %8180 = vmatmul.mubr.f32.gmra.mrb[0].mxu0 %v7352
      %v8181 = vpop.f32.mrb[0].mxu0
      %v8182 = vadd.f32 0.0, %v8181
      %v8183 = vpop.f32.mrb[0].mxu0
      %8184 = vmatprep.mubr.f32.mxu0 0.0
      %8185 = vmatmul.mubr.f32.gmra.mrb[0].mxu0 %v7354
      %v8186 = vpop.f32.mrb[0].mxu0
      %v8187 = vadd.f32 0.0, %v8186
      %v8188 = vpop.f32.mrb[0].mxu0
      %8189 = vmatprep.mubr.f32.mxu0 0.0
      %8190 = vmatmul.mubr.f32.gmra.mrb[0].mxu0 %v7356
      %v8191 = vpop.f32.mrb[0].mxu0
      %v8192 = vadd.f32 0.0, %v8191
      %v8193 = vpop.f32.mrb[0].mxu0
      %8194 = vmatprep.mubr.f32.mxu0 0.0
      %8195 = vmatmul.mubr.f32.gmra.mrb[0].mxu0 %v7358
      %v8196 = vpop.f32.mrb[0].mxu0
      %v8197 = vadd.f32 0.0, %v8196
      %v8198 = vpop.f32.mrb[0].mxu0
      %8199 = vmatprep.mubr.f32.mxu0 0.0
      %8200 = vmatmul.mubr.f32.gmra.mrb[0].mxu0 %v7360
      %v8201 = vpop.f32.mrb[0].mxu0
      %v8202 = vadd.f32 0.0, %v8201
      %v8203 = vpop.f32.mrb[0].mxu0
      %8204 = vmatprep.mubr.f32.mxu0 0.0
      %8205 = vmatmul.mubr.f32.gmra.mrb[0].mxu0 %v7362
      %v8206 = vpop.f32.mrb[0].mxu0
      %v8207 = vadd.f32 0.0, %v8206
      %v8208 = vpop.f32.mrb[0].mxu0
      %8209 = vmatprep.mubr.f32.mxu0 0.0
      %8210 = vmatmul.mubr.f32.gmra.mrb[0].mxu0 %v7364
      %v8211 = vpop.f32.mrb[0].mxu0
      %v8212 = vadd.f32 0.0, %v8211
      %v8213 = vpop.f32.mrb[0].mxu0
      %8214 = vmatprep.mubr.f32.mxu0 0.0
      %8215 = vmatmul.mubr.f32.gmra.mrb[0].mxu0 %v7366
      %v8216 = vpop.f32.mrb[0].mxu0
      %v8217 = vadd.f32 0.0, %v8216
      %v8218 = vpop.f32.mrb[0].mxu0
      %8219 = vmatprep.mubr.f32.mxu0 0.0
      %8220 = vmatmul.mubr.f32.gmra.mrb[0].mxu0 %v7368
      %v8221 = vpop.f32.mrb[0].mxu0
      %v8222 = vadd.f32 0.0, %v8221
      %v8223 = vpop.f32.mrb[0].mxu0
      %8224 = vmatprep.mubr.f32.mxu0 0.0
      %8225 = vmatmul.mubr.f32.gmra.mrb[0].mxu0 %v7370
      %v8226 = vpop.f32.mrb[0].mxu0
      %v8227 = vadd.f32 0.0, %v8226
      %v8228 = vpop.f32.mrb[0].mxu0
      %8229 = vmatprep.mubr.f32.mxu0 0.0
      %8230 = vmatmul.mubr.f32.gmra.mrb[0].mxu0 %v8007
      %v8231 = vpop.f32.mrb[0].mxu0
      %v8232 = vadd.f32 0.0, %v8231
      %v8233 = vpop.f32.mrb[0].mxu0
      %8234 = vmatprep.mubr.f32.mxu0 0.0
      %8235 = vmatmul.mubr.f32.gmra.mrb[0].mxu0 %v8010
      %v8236 = vpop.f32.mrb[0].mxu0
      %v8237 = vadd.f32 0.0, %v8236
      %v8238 = vpop.f32.mrb[0].mxu0
      %8239 = vdwg.mxu0
      %v8240 = vadd.f32 %v7971, %v8082
      %v8241 = vadd.f32 %v7972, %v8087
      %v8242 = vadd.f32 %v7973, %v8092
      %v8243 = vadd.f32 %v7974, %v8097
      %v8244 = vadd.f32 %v7975, %v8102
      %v8245 = vadd.f32 %v7976, %v8107
      %v8246 = vadd.f32 %v7977, %v8112
      %v8247 = vadd.f32 %v7978, %v8117
      %v8248 = vadd.f32 %v7979, %v8122
      %v8249 = vadd.f32 %v7980, %v8127
      %v8250 = vadd.f32 %v7981, %v8132
      %v8251 = vadd.f32 %v7982, %v8137
      %v8252 = vadd.f32 %v7983, %v8142
      %v8253 = vadd.f32 %v7984, %v8147
      %v8254 = vadd.f32 %v7985, %v8152
      %v8255 = vadd.f32 %v7986, %v8157
      %v8256 = vadd.f32 %v7987, %v8162
      %v8257 = vadd.f32 %v7988, %v8167
      %v8258 = vadd.f32 %v7989, %v8172
      %v8259 = vadd.f32 %v7990, %v8177
      %v8260 = vadd.f32 %v7991, %v8182
      %v8261 = vadd.f32 %v7992, %v8187
      %v8262 = vadd.f32 %v7993, %v8192
      %v8263 = vadd.f32 %v7994, %v8197
      %v8264 = vadd.f32 %v7995, %v8202
      %v8265 = vadd.f32 %v7996, %v8207
      %v8266 = vadd.f32 %v7997, %v8212
      %v8267 = vadd.f32 %v7998, %v8217
      %v8268 = vadd.f32 %v7999, %v8222
      %v8269 = vadd.f32 %v8000, %v8227
      %v8270 = vadd.f32 %v8001, %v8232
      %v8271 = vadd.f32 %v8002, %v8237
      %v8273 = vrot.slane %v6879, 1
      %v8274 = vrot.slane %v6880, 1
      %v8275 = vsel %vm754, %v8273, %v8274
      %v8276 = vrot.slane %v6881, 1
      %v8277 = vsel %vm754, %v8274, %v8276
      %v8278 = vrot.slane %v8004, 4
      %v8279 = vsel %vm439, %v8275, 0
      %v8281 = vsel %vm439, %v8277, 0
      %v8283 = vsel %vm901, %v8278, 0
      %8285 = vmatprep.subr.mxu0 0.0
      %8286 = vmatpush1.msra.mxu0 %v8283
      %8287 = vmatprep.subr.mxu0 0.0
      %8288 = vmatpush1.msra.mxu0 0.0
      %8289 = vmatprep.subr.mxu0 0.0
      %8290 = vmatpush1.msra.mxu0 0.0
      %8291 = vmatprep.subr.mxu0 0.0
      %8292 = vmatpush1.msra.mxu0 0.0
      %8293 = vmatprep.subr.mxu0 0.0
      %8294 = vmatpush1.msra.mxu0 0.0
      %8295 = vmatprep.subr.mxu0 0.0
      %8296 = vmatpush1.msra.mxu0 0.0
      %8297 = vmatprep.subr.mxu0 0.0
      %8298 = vmatpush1.msra.mxu0 0.0
      %8299 = vmatprep.subr.mxu0 0.0
      %8300 = vmatpush1.msra.mxu0 0.0
      %8301 = vmatprep.subr.mxu0 0.0
      %8302 = vmatpush1.msra.mxu0 0.0
      %8303 = vmatprep.subr.mxu0 0.0
      %8304 = vmatpush1.msra.mxu0 0.0
      %8305 = vmatprep.subr.mxu0 0.0
      %8306 = vmatpush1.msra.mxu0 0.0
      %8307 = vmatprep.subr.mxu0 0.0
      %8308 = vmatpush1.msra.mxu0 0.0
      %8309 = vmatprep.subr.mxu0 0.0
      %8310 = vmatpush1.msra.mxu0 0.0
      %8311 = vmatprep.subr.mxu0 0.0
      %8312 = vmatpush1.msra.mxu0 0.0
      %8313 = vmatprep.subr.mxu0 0.0
      %8314 = vmatpush1.msra.mxu0 0.0
      %8315 = vmatprep.subr.mxu0 0.0
      %8316 = vmatpush1.msra.mxu0 0.0
      %8317 = vmatprep.subr.mxu0 0.0
      %8318 = vmatpush1.msra.mxu0 0.0
      %8319 = vmatprep.subr.mxu0 0.0
      %8320 = vmatpush1.msra.mxu0 0.0
      %8321 = vmatprep.subr.mxu0 0.0
      %8322 = vmatpush1.msra.mxu0 0.0
      %8323 = vmatprep.subr.mxu0 0.0
      %8324 = vmatpush1.msra.mxu0 0.0
      %8325 = vmatprep.subr.mxu0 0.0
      %8326 = vmatpush1.msra.mxu0 0.0
      %8327 = vmatprep.subr.mxu0 0.0
      %8328 = vmatpush1.msra.mxu0 0.0
      %8329 = vmatprep.subr.mxu0 0.0
      %8330 = vmatpush1.msra.mxu0 0.0
      %8331 = vmatprep.subr.mxu0 0.0
      %8332 = vmatpush1.msra.mxu0 0.0
      %8333 = vmatprep.subr.mxu0 0.0
      %8334 = vmatpush1.msra.mxu0 0.0
      %8335 = vmatprep.subr.mxu0 0.0
      %8336 = vmatpush1.msra.mxu0 0.0
      %8337 = vmatprep.subr.mxu0 0.0
      %8338 = vmatpush1.msra.mxu0 0.0
      %8339 = vmatprep.subr.mxu0 0.0
      %8340 = vmatpush1.msra.mxu0 0.0
      %8341 = vmatprep.subr.mxu0 0.0
      %8342 = vmatpush1.msra.mxu0 0.0
      %8343 = vmatprep.subr.mxu0 0.0
      %8344 = vmatpush1.msra.mxu0 0.0
      %8345 = vmatprep.subr.mxu0 0.0
      %8346 = vmatpush1.msra.mxu0 0.0
      %8347 = vmatprep.subr.mxu0 0.0
      %8348 = vmatpush1.msra.mxu0 0.0
      %8349 = vmatprep.mubr.f32.mxu0 0.0
      %8350 = vmatmul.mubr.f32.gmra.mrb[0].mxu0 %v7021
      %v8351 = vpop.f32.mrb[0].mxu0
      %v8352 = vadd.f32 0.0, %v8351
      %v8353 = vpop.f32.mrb[0].mxu0
      %8354 = vmatprep.mubr.f32.mxu0 0.0
      %8355 = vmatmul.mubr.f32.gmra.mrb[0].mxu0 %v7023
      %v8356 = vpop.f32.mrb[0].mxu0
      %v8357 = vadd.f32 0.0, %v8356
      %v8358 = vpop.f32.mrb[0].mxu0
      %8359 = vmatprep.mubr.f32.mxu0 0.0
      %8360 = vmatmul.mubr.f32.gmra.mrb[0].mxu0 %v7025
      %v8361 = vpop.f32.mrb[0].mxu0
      %v8362 = vadd.f32 0.0, %v8361
      %v8363 = vpop.f32.mrb[0].mxu0
      %8364 = vmatprep.mubr.f32.mxu0 0.0
      %8365 = vmatmul.mubr.f32.gmra.mrb[0].mxu0 %v7027
      %v8366 = vpop.f32.mrb[0].mxu0
      %v8367 = vadd.f32 0.0, %v8366
      %v8368 = vpop.f32.mrb[0].mxu0
      %8369 = vmatprep.mubr.f32.mxu0 0.0
      %8370 = vmatmul.mubr.f32.gmra.mrb[0].mxu0 %v7029
      %v8371 = vpop.f32.mrb[0].mxu0
      %v8372 = vadd.f32 0.0, %v8371
      %v8373 = vpop.f32.mrb[0].mxu0
      %8374 = vmatprep.mubr.f32.mxu0 0.0
      %8375 = vmatmul.mubr.f32.gmra.mrb[0].mxu0 %v7031
      %v8376 = vpop.f32.mrb[0].mxu0
      %v8377 = vadd.f32 0.0, %v8376
      %v8378 = vpop.f32.mrb[0].mxu0
      %8379 = vmatprep.mubr.f32.mxu0 0.0
      %8380 = vmatmul.mubr.f32.gmra.mrb[0].mxu0 %v7033
      %v8381 = vpop.f32.mrb[0].mxu0
      %v8382 = vadd.f32 0.0, %v8381
      %v8383 = vpop.f32.mrb[0].mxu0
      %8384 = vmatprep.mubr.f32.mxu0 0.0
      %8385 = vmatmul.mubr.f32.gmra.mrb[0].mxu0 %v7035
      %v8386 = vpop.f32.mrb[0].mxu0
      %v8387 = vadd.f32 0.0, %v8386
      %v8388 = vpop.f32.mrb[0].mxu0
      %8389 = vmatprep.mubr.f32.mxu0 0.0
      %8390 = vmatmul.mubr.f32.gmra.mrb[0].mxu0 %v7037
      %v8391 = vpop.f32.mrb[0].mxu0
      %v8392 = vadd.f32 0.0, %v8391
      %v8393 = vpop.f32.mrb[0].mxu0
      %8394 = vmatprep.mubr.f32.mxu0 0.0
      %8395 = vmatmul.mubr.f32.gmra.mrb[0].mxu0 %v7039
      %v8396 = vpop.f32.mrb[0].mxu0
      %v8397 = vadd.f32 0.0, %v8396
      %v8398 = vpop.f32.mrb[0].mxu0
      %8399 = vmatprep.mubr.f32.mxu0 0.0
      %8400 = vmatmul.mubr.f32.gmra.mrb[0].mxu0 %v7041
      %v8401 = vpop.f32.mrb[0].mxu0
      %v8402 = vadd.f32 0.0, %v8401
      %v8403 = vpop.f32.mrb[0].mxu0
      %8404 = vmatprep.mubr.f32.mxu0 0.0
      %8405 = vmatmul.mubr.f32.gmra.mrb[0].mxu0 %v7043
      %v8406 = vpop.f32.mrb[0].mxu0
      %v8407 = vadd.f32 0.0, %v8406
      %v8408 = vpop.f32.mrb[0].mxu0
      %8409 = vmatprep.mubr.f32.mxu0 0.0
      %8410 = vmatmul.mubr.f32.gmra.mrb[0].mxu0 %v7045
      %v8411 = vpop.f32.mrb[0].mxu0
      %v8412 = vadd.f32 0.0, %v8411
      %v8413 = vpop.f32.mrb[0].mxu0
      %8414 = vmatprep.mubr.f32.mxu0 0.0
      %8415 = vmatmul.mubr.f32.gmra.mrb[0].mxu0 %v7047
      %v8416 = vpop.f32.mrb[0].mxu0
      %v8417 = vadd.f32 0.0, %v8416
      %v8418 = vpop.f32.mrb[0].mxu0
      %8419 = vmatprep.mubr.f32.mxu0 0.0
      %8420 = vmatmul.mubr.f32.gmra.mrb[0].mxu0 %v7049
      %v8421 = vpop.f32.mrb[0].mxu0
      %v8422 = vadd.f32 0.0, %v8421
      %v8423 = vpop.f32.mrb[0].mxu0
      %8424 = vmatprep.mubr.f32.mxu0 0.0
      %8425 = vmatmul.mubr.f32.gmra.mrb[0].mxu0 %v7051
      %v8426 = vpop.f32.mrb[0].mxu0
      %v8427 = vadd.f32 0.0, %v8426
      %v8428 = vpop.f32.mrb[0].mxu0
      %8429 = vmatprep.mubr.f32.mxu0 0.0
      %8430 = vmatmul.mubr.f32.gmra.mrb[0].mxu0 %v7053
      %v8431 = vpop.f32.mrb[0].mxu0
      %v8432 = vadd.f32 0.0, %v8431
      %v8433 = vpop.f32.mrb[0].mxu0
      %8434 = vmatprep.mubr.f32.mxu0 0.0
      %8435 = vmatmul.mubr.f32.gmra.mrb[0].mxu0 %v7055
      %v8436 = vpop.f32.mrb[0].mxu0
      %v8437 = vadd.f32 0.0, %v8436
      %v8438 = vpop.f32.mrb[0].mxu0
      %8439 = vmatprep.mubr.f32.mxu0 0.0
      %8440 = vmatmul.mubr.f32.gmra.mrb[0].mxu0 %v7057
      %v8441 = vpop.f32.mrb[0].mxu0
      %v8442 = vadd.f32 0.0, %v8441
      %v8443 = vpop.f32.mrb[0].mxu0
      %8444 = vmatprep.mubr.f32.mxu0 0.0
      %8445 = vmatmul.mubr.f32.gmra.mrb[0].mxu0 %v7059
      %v8446 = vpop.f32.mrb[0].mxu0
      %v8447 = vadd.f32 0.0, %v8446
      %v8448 = vpop.f32.mrb[0].mxu0
      %8449 = vmatprep.mubr.f32.mxu0 0.0
      %8450 = vmatmul.mubr.f32.gmra.mrb[0].mxu0 %v7061
      %v8451 = vpop.f32.mrb[0].mxu0
      %v8452 = vadd.f32 0.0, %v8451
      %v8453 = vpop.f32.mrb[0].mxu0
      %8454 = vmatprep.mubr.f32.mxu0 0.0
      %8455 = vmatmul.mubr.f32.gmra.mrb[0].mxu0 %v7063
      %v8456 = vpop.f32.mrb[0].mxu0
      %v8457 = vadd.f32 0.0, %v8456
      %v8458 = vpop.f32.mrb[0].mxu0
      %8459 = vmatprep.mubr.f32.mxu0 0.0
      %8460 = vmatmul.mubr.f32.gmra.mrb[0].mxu0 %v7065
      %v8461 = vpop.f32.mrb[0].mxu0
      %v8462 = vadd.f32 0.0, %v8461
      %v8463 = vpop.f32.mrb[0].mxu0
      %8464 = vmatprep.mubr.f32.mxu0 0.0
      %8465 = vmatmul.mubr.f32.gmra.mrb[0].mxu0 %v7067
      %v8466 = vpop.f32.mrb[0].mxu0
      %v8467 = vadd.f32 0.0, %v8466
      %v8468 = vpop.f32.mrb[0].mxu0
      %8469 = vmatprep.mubr.f32.mxu0 0.0
      %8470 = vmatmul.mubr.f32.gmra.mrb[0].mxu0 %v7069
      %v8471 = vpop.f32.mrb[0].mxu0
      %v8472 = vadd.f32 0.0, %v8471
      %v8473 = vpop.f32.mrb[0].mxu0
      %8474 = vmatprep.mubr.f32.mxu0 0.0
      %8475 = vmatmul.mubr.f32.gmra.mrb[0].mxu0 %v7071
      %v8476 = vpop.f32.mrb[0].mxu0
      %v8477 = vadd.f32 0.0, %v8476
      %v8478 = vpop.f32.mrb[0].mxu0
      %8479 = vmatprep.mubr.f32.mxu0 0.0
      %8480 = vmatmul.mubr.f32.gmra.mrb[0].mxu0 %v7073
      %v8481 = vpop.f32.mrb[0].mxu0
      %v8482 = vadd.f32 0.0, %v8481
      %v8483 = vpop.f32.mrb[0].mxu0
      %8484 = vmatprep.mubr.f32.mxu0 0.0
      %8485 = vmatmul.mubr.f32.gmra.mrb[0].mxu0 %v7075
      %v8486 = vpop.f32.mrb[0].mxu0
      %v8487 = vadd.f32 0.0, %v8486
      %v8488 = vpop.f32.mrb[0].mxu0
      %8489 = vmatprep.mubr.f32.mxu0 0.0
      %8490 = vmatmul.mubr.f32.gmra.mrb[0].mxu0 %v7077
      %v8491 = vpop.f32.mrb[0].mxu0
      %v8492 = vadd.f32 0.0, %v8491
      %v8493 = vpop.f32.mrb[0].mxu0
      %8494 = vmatprep.mubr.f32.mxu0 0.0
      %8495 = vmatmul.mubr.f32.gmra.mrb[0].mxu0 %v7079
      %v8496 = vpop.f32.mrb[0].mxu0
      %v8497 = vadd.f32 0.0, %v8496
      %v8498 = vpop.f32.mrb[0].mxu0
      %8499 = vmatprep.mubr.f32.mxu0 0.0
      %8500 = vmatmul.mubr.f32.gmra.mrb[0].mxu0 %v8279
      %v8501 = vpop.f32.mrb[0].mxu0
      %v8502 = vadd.f32 0.0, %v8501
      %v8503 = vpop.f32.mrb[0].mxu0
      %8504 = vmatprep.mubr.f32.mxu0 0.0
      %8505 = vmatmul.mubr.f32.gmra.mrb[0].mxu0 %v8281
      %v8506 = vpop.f32.mrb[0].mxu0
      %v8507 = vadd.f32 0.0, %v8506
      %v8508 = vpop.f32.mrb[0].mxu0
      %8509 = vdwg.mxu0
      %v8510 = vadd.f32 %v8240, %v8352
      %v8511 = vadd.f32 %v8241, %v8357
      %v8512 = vadd.f32 %v8242, %v8362
      %v8513 = vadd.f32 %v8243, %v8367
      %v8514 = vadd.f32 %v8244, %v8372
      %v8515 = vadd.f32 %v8245, %v8377
      %v8516 = vadd.f32 %v8246, %v8382
      %v8517 = vadd.f32 %v8247, %v8387
      %v8518 = vadd.f32 %v8248, %v8392
      %v8519 = vadd.f32 %v8249, %v8397
      %v8520 = vadd.f32 %v8250, %v8402
      %v8521 = vadd.f32 %v8251, %v8407
      %v8522 = vadd.f32 %v8252, %v8412
      %v8523 = vadd.f32 %v8253, %v8417
      %v8524 = vadd.f32 %v8254, %v8422
      %v8525 = vadd.f32 %v8255, %v8427
      %v8526 = vadd.f32 %v8256, %v8432
      %v8527 = vadd.f32 %v8257, %v8437
      %v8528 = vadd.f32 %v8258, %v8442
      %v8529 = vadd.f32 %v8259, %v8447
      %v8530 = vadd.f32 %v8260, %v8452
      %v8531 = vadd.f32 %v8261, %v8457
      %v8532 = vadd.f32 %v8262, %v8462
      %v8533 = vadd.f32 %v8263, %v8467
      %v8534 = vadd.f32 %v8264, %v8472
      %v8535 = vadd.f32 %v8265, %v8477
      %v8536 = vadd.f32 %v8266, %v8482
      %v8537 = vadd.f32 %v8267, %v8487
      %v8538 = vadd.f32 %v8268, %v8492
      %v8539 = vadd.f32 %v8269, %v8497
      %v8540 = vadd.f32 %v8270, %v8502
      %v8541 = vadd.f32 %v8271, %v8507
      %v8542 = vrot.slane %v6879, 2
      %v8543 = vrot.slane %v6880, 2
      %v8544 = vsel %vm1420, %v8542, %v8543
      %v8545 = vrot.slane %v6881, 2
      %v8546 = vsel %vm1420, %v8543, %v8545
      %v8547 = vsel %vm439, %v8544, 0
      %v8549 = vsel %vm439, %v8546, 0
      %v8552 = vsel %vm901, %v8005, 0
      %8554 = vmatprep.subr.mxu0 0.0
      %8555 = vmatpush1.msra.mxu0 %v8552
      %8556 = vmatprep.subr.mxu0 0.0
      %8557 = vmatpush1.msra.mxu0 0.0
      %8558 = vmatprep.subr.mxu0 0.0
      %8559 = vmatpush1.msra.mxu0 0.0
      %8560 = vmatprep.subr.mxu0 0.0
      %8561 = vmatpush1.msra.mxu0 0.0
      %8562 = vmatprep.subr.mxu0 0.0
      %8563 = vmatpush1.msra.mxu0 0.0
      %8564 = vmatprep.subr.mxu0 0.0
      %8565 = vmatpush1.msra.mxu0 0.0
      %8566 = vmatprep.subr.mxu0 0.0
      %8567 = vmatpush1.msra.mxu0 0.0
      %8568 = vmatprep.subr.mxu0 0.0
      %8569 = vmatpush1.msra.mxu0 0.0
      %8570 = vmatprep.subr.mxu0 0.0
      %8571 = vmatpush1.msra.mxu0 0.0
      %8572 = vmatprep.subr.mxu0 0.0
      %8573 = vmatpush1.msra.mxu0 0.0
      %8574 = vmatprep.subr.mxu0 0.0
      %8575 = vmatpush1.msra.mxu0 0.0
      %8576 = vmatprep.subr.mxu0 0.0
      %8577 = vmatpush1.msra.mxu0 0.0
      %8578 = vmatprep.subr.mxu0 0.0
      %8579 = vmatpush1.msra.mxu0 0.0
      %8580 = vmatprep.subr.mxu0 0.0
      %8581 = vmatpush1.msra.mxu0 0.0
      %8582 = vmatprep.subr.mxu0 0.0
      %8583 = vmatpush1.msra.mxu0 0.0
      %8584 = vmatprep.subr.mxu0 0.0
      %8585 = vmatpush1.msra.mxu0 0.0
      %8586 = vmatprep.subr.mxu0 0.0
      %8587 = vmatpush1.msra.mxu0 0.0
      %8588 = vmatprep.subr.mxu0 0.0
      %8589 = vmatpush1.msra.mxu0 0.0
      %8590 = vmatprep.subr.mxu0 0.0
      %8591 = vmatpush1.msra.mxu0 0.0
      %8592 = vmatprep.subr.mxu0 0.0
      %8593 = vmatpush1.msra.mxu0 0.0
      %8594 = vmatprep.subr.mxu0 0.0
      %8595 = vmatpush1.msra.mxu0 0.0
      %8596 = vmatprep.subr.mxu0 0.0
      %8597 = vmatpush1.msra.mxu0 0.0
      %8598 = vmatprep.subr.mxu0 0.0
      %8599 = vmatpush1.msra.mxu0 0.0
      %8600 = vmatprep.subr.mxu0 0.0
      %8601 = vmatpush1.msra.mxu0 0.0
      %8602 = vmatprep.subr.mxu0 0.0
      %8603 = vmatpush1.msra.mxu0 0.0
      %8604 = vmatprep.subr.mxu0 0.0
      %8605 = vmatpush1.msra.mxu0 0.0
      %8606 = vmatprep.subr.mxu0 0.0
      %8607 = vmatpush1.msra.mxu0 0.0
      %8608 = vmatprep.subr.mxu0 0.0
      %8609 = vmatpush1.msra.mxu0 0.0
      %8610 = vmatprep.subr.mxu0 0.0
      %8611 = vmatpush1.msra.mxu0 0.0
      %8612 = vmatprep.subr.mxu0 0.0
      %8613 = vmatpush1.msra.mxu0 0.0
      %8614 = vmatprep.subr.mxu0 0.0
      %8615 = vmatpush1.msra.mxu0 0.0
      %8616 = vmatprep.subr.mxu0 0.0
      %8617 = vmatpush1.msra.mxu0 0.0
      %8618 = vmatprep.mubr.f32.mxu0 0.0
      %8619 = vmatmul.mubr.f32.gmra.mrb[0].mxu0 %v7683
      %v8620 = vpop.f32.mrb[0].mxu0
      %v8621 = vadd.f32 0.0, %v8620
      %v8622 = vpop.f32.mrb[0].mxu0
      %8623 = vmatprep.mubr.f32.mxu0 0.0
      %8624 = vmatmul.mubr.f32.gmra.mrb[0].mxu0 %v7685
      %v8625 = vpop.f32.mrb[0].mxu0
      %v8626 = vadd.f32 0.0, %v8625
      %v8627 = vpop.f32.mrb[0].mxu0
      %8628 = vmatprep.mubr.f32.mxu0 0.0
      %8629 = vmatmul.mubr.f32.gmra.mrb[0].mxu0 %v7687
      %v8630 = vpop.f32.mrb[0].mxu0
      %v8631 = vadd.f32 0.0, %v8630
      %v8632 = vpop.f32.mrb[0].mxu0
      %8633 = vmatprep.mubr.f32.mxu0 0.0
      %8634 = vmatmul.mubr.f32.gmra.mrb[0].mxu0 %v7689
      %v8635 = vpop.f32.mrb[0].mxu0
      %v8636 = vadd.f32 0.0, %v8635
      %v8637 = vpop.f32.mrb[0].mxu0
      %8638 = vmatprep.mubr.f32.mxu0 0.0
      %8639 = vmatmul.mubr.f32.gmra.mrb[0].mxu0 %v7691
      %v8640 = vpop.f32.mrb[0].mxu0
      %v8641 = vadd.f32 0.0, %v8640
      %v8642 = vpop.f32.mrb[0].mxu0
      %8643 = vmatprep.mubr.f32.mxu0 0.0
      %8644 = vmatmul.mubr.f32.gmra.mrb[0].mxu0 %v7693
      %v8645 = vpop.f32.mrb[0].mxu0
      %v8646 = vadd.f32 0.0, %v8645
      %v8647 = vpop.f32.mrb[0].mxu0
      %8648 = vmatprep.mubr.f32.mxu0 0.0
      %8649 = vmatmul.mubr.f32.gmra.mrb[0].mxu0 %v7695
      %v8650 = vpop.f32.mrb[0].mxu0
      %v8651 = vadd.f32 0.0, %v8650
      %v8652 = vpop.f32.mrb[0].mxu0
      %8653 = vmatprep.mubr.f32.mxu0 0.0
      %8654 = vmatmul.mubr.f32.gmra.mrb[0].mxu0 %v7697
      %v8655 = vpop.f32.mrb[0].mxu0
      %v8656 = vadd.f32 0.0, %v8655
      %v8657 = vpop.f32.mrb[0].mxu0
      %8658 = vmatprep.mubr.f32.mxu0 0.0
      %8659 = vmatmul.mubr.f32.gmra.mrb[0].mxu0 %v7699
      %v8660 = vpop.f32.mrb[0].mxu0
      %v8661 = vadd.f32 0.0, %v8660
      %v8662 = vpop.f32.mrb[0].mxu0
      %8663 = vmatprep.mubr.f32.mxu0 0.0
      %8664 = vmatmul.mubr.f32.gmra.mrb[0].mxu0 %v7701
      %v8665 = vpop.f32.mrb[0].mxu0
      %v8666 = vadd.f32 0.0, %v8665
      %v8667 = vpop.f32.mrb[0].mxu0
      %8668 = vmatprep.mubr.f32.mxu0 0.0
      %8669 = vmatmul.mubr.f32.gmra.mrb[0].mxu0 %v7703
      %v8670 = vpop.f32.mrb[0].mxu0
      %v8671 = vadd.f32 0.0, %v8670
      %v8672 = vpop.f32.mrb[0].mxu0
      %8673 = vmatprep.mubr.f32.mxu0 0.0
      %8674 = vmatmul.mubr.f32.gmra.mrb[0].mxu0 %v7705
      %v8675 = vpop.f32.mrb[0].mxu0
      %v8676 = vadd.f32 0.0, %v8675
      %v8677 = vpop.f32.mrb[0].mxu0
      %8678 = vmatprep.mubr.f32.mxu0 0.0
      %8679 = vmatmul.mubr.f32.gmra.mrb[0].mxu0 %v7707
      %v8680 = vpop.f32.mrb[0].mxu0
      %v8681 = vadd.f32 0.0, %v8680
      %v8682 = vpop.f32.mrb[0].mxu0
      %8683 = vmatprep.mubr.f32.mxu0 0.0
      %8684 = vmatmul.mubr.f32.gmra.mrb[0].mxu0 %v7709
      %v8685 = vpop.f32.mrb[0].mxu0
      %v8686 = vadd.f32 0.0, %v8685
      %v8687 = vpop.f32.mrb[0].mxu0
      %8688 = vmatprep.mubr.f32.mxu0 0.0
      %8689 = vmatmul.mubr.f32.gmra.mrb[0].mxu0 %v7711
      %v8690 = vpop.f32.mrb[0].mxu0
      %v8691 = vadd.f32 0.0, %v8690
      %v8692 = vpop.f32.mrb[0].mxu0
      %8693 = vmatprep.mubr.f32.mxu0 0.0
      %8694 = vmatmul.mubr.f32.gmra.mrb[0].mxu0 %v7713
      %v8695 = vpop.f32.mrb[0].mxu0
      %v8696 = vadd.f32 0.0, %v8695
      %v8697 = vpop.f32.mrb[0].mxu0
      %8698 = vmatprep.mubr.f32.mxu0 0.0
      %8699 = vmatmul.mubr.f32.gmra.mrb[0].mxu0 %v7715
      %v8700 = vpop.f32.mrb[0].mxu0
      %v8701 = vadd.f32 0.0, %v8700
      %v8702 = vpop.f32.mrb[0].mxu0
      %8703 = vmatprep.mubr.f32.mxu0 0.0
      %8704 = vmatmul.mubr.f32.gmra.mrb[0].mxu0 %v7717
      %v8705 = vpop.f32.mrb[0].mxu0
      %v8706 = vadd.f32 0.0, %v8705
      %v8707 = vpop.f32.mrb[0].mxu0
      %8708 = vmatprep.mubr.f32.mxu0 0.0
      %8709 = vmatmul.mubr.f32.gmra.mrb[0].mxu0 %v7719
      %v8710 = vpop.f32.mrb[0].mxu0
      %v8711 = vadd.f32 0.0, %v8710
      %v8712 = vpop.f32.mrb[0].mxu0
      %8713 = vmatprep.mubr.f32.mxu0 0.0
      %8714 = vmatmul.mubr.f32.gmra.mrb[0].mxu0 %v7721
      %v8715 = vpop.f32.mrb[0].mxu0
      %v8716 = vadd.f32 0.0, %v8715
      %v8717 = vpop.f32.mrb[0].mxu0
      %8718 = vmatprep.mubr.f32.mxu0 0.0
      %8719 = vmatmul.mubr.f32.gmra.mrb[0].mxu0 %v7723
      %v8720 = vpop.f32.mrb[0].mxu0
      %v8721 = vadd.f32 0.0, %v8720
      %v8722 = vpop.f32.mrb[0].mxu0
      %8723 = vmatprep.mubr.f32.mxu0 0.0
      %8724 = vmatmul.mubr.f32.gmra.mrb[0].mxu0 %v7725
      %v8725 = vpop.f32.mrb[0].mxu0
      %v8726 = vadd.f32 0.0, %v8725
      %v8727 = vpop.f32.mrb[0].mxu0
      %8728 = vmatprep.mubr.f32.mxu0 0.0
      %8729 = vmatmul.mubr.f32.gmra.mrb[0].mxu0 %v7727
      %v8730 = vpop.f32.mrb[0].mxu0
      %v8731 = vadd.f32 0.0, %v8730
      %v8732 = vpop.f32.mrb[0].mxu0
      %8733 = vmatprep.mubr.f32.mxu0 0.0
      %8734 = vmatmul.mubr.f32.gmra.mrb[0].mxu0 %v7729
      %v8735 = vpop.f32.mrb[0].mxu0
      %v8736 = vadd.f32 0.0, %v8735
      %v8737 = vpop.f32.mrb[0].mxu0
      %8738 = vmatprep.mubr.f32.mxu0 0.0
      %8739 = vmatmul.mubr.f32.gmra.mrb[0].mxu0 %v7731
      %v8740 = vpop.f32.mrb[0].mxu0
      %v8741 = vadd.f32 0.0, %v8740
      %v8742 = vpop.f32.mrb[0].mxu0
      %8743 = vmatprep.mubr.f32.mxu0 0.0
      %8744 = vmatmul.mubr.f32.gmra.mrb[0].mxu0 %v7733
      %v8745 = vpop.f32.mrb[0].mxu0
      %v8746 = vadd.f32 0.0, %v8745
      %v8747 = vpop.f32.mrb[0].mxu0
      %8748 = vmatprep.mubr.f32.mxu0 0.0
      %8749 = vmatmul.mubr.f32.gmra.mrb[0].mxu0 %v7735
      %v8750 = vpop.f32.mrb[0].mxu0
      %v8751 = vadd.f32 0.0, %v8750
      %v8752 = vpop.f32.mrb[0].mxu0
      %8753 = vmatprep.mubr.f32.mxu0 0.0
      %8754 = vmatmul.mubr.f32.gmra.mrb[0].mxu0 %v7737
      %v8755 = vpop.f32.mrb[0].mxu0
      %v8756 = vadd.f32 0.0, %v8755
      %v8757 = vpop.f32.mrb[0].mxu0
      %8758 = vmatprep.mubr.f32.mxu0 0.0
      %8759 = vmatmul.mubr.f32.gmra.mrb[0].mxu0 %v7739
      %v8760 = vpop.f32.mrb[0].mxu0
      %v8761 = vadd.f32 0.0, %v8760
      %v8762 = vpop.f32.mrb[0].mxu0
      %8763 = vmatprep.mubr.f32.mxu0 0.0
      %8764 = vmatmul.mubr.f32.gmra.mrb[0].mxu0 %v7741
      %v8765 = vpop.f32.mrb[0].mxu0
      %v8766 = vadd.f32 0.0, %v8765
      %v8767 = vpop.f32.mrb[0].mxu0
      %8768 = vmatprep.mubr.f32.mxu0 0.0
      %8769 = vmatmul.mubr.f32.gmra.mrb[0].mxu0 %v8547
      %v8770 = vpop.f32.mrb[0].mxu0
      %v8771 = vadd.f32 0.0, %v8770
      %v8772 = vpop.f32.mrb[0].mxu0
      %8773 = vmatprep.mubr.f32.mxu0 0.0
      %8774 = vmatmul.mubr.f32.gmra.mrb[0].mxu0 %v8549
      %v8775 = vpop.f32.mrb[0].mxu0
      %v8776 = vadd.f32 0.0, %v8775
      %v8777 = vpop.f32.mrb[0].mxu0
      %8778 = vdwg.mxu0
      %v8779 = vadd.f32 %v8510, %v8621
      %v8780 = vadd.f32 %v8511, %v8626
      %v8781 = vadd.f32 %v8512, %v8631
      %v8782 = vadd.f32 %v8513, %v8636
      %v8783 = vadd.f32 %v8514, %v8641
      %v8784 = vadd.f32 %v8515, %v8646
      %v8785 = vadd.f32 %v8516, %v8651
      %v8786 = vadd.f32 %v8517, %v8656
      %v8787 = vadd.f32 %v8518, %v8661
      %v8788 = vadd.f32 %v8519, %v8666
      %v8789 = vadd.f32 %v8520, %v8671
      %v8790 = vadd.f32 %v8521, %v8676
      %v8791 = vadd.f32 %v8522, %v8681
      %v8792 = vadd.f32 %v8523, %v8686
      %v8793 = vadd.f32 %v8524, %v8691
      %v8794 = vadd.f32 %v8525, %v8696
      %v8795 = vadd.f32 %v8526, %v8701
      %v8796 = vadd.f32 %v8527, %v8706
      %v8797 = vadd.f32 %v8528, %v8711
      %v8798 = vadd.f32 %v8529, %v8716
      %v8799 = vadd.f32 %v8530, %v8721
      %v8800 = vadd.f32 %v8531, %v8726
      %v8801 = vadd.f32 %v8532, %v8731
      %v8802 = vadd.f32 %v8533, %v8736
      %v8803 = vadd.f32 %v8534, %v8741
      %v8804 = vadd.f32 %v8535, %v8746
      %v8805 = vadd.f32 %v8536, %v8751
      %v8806 = vadd.f32 %v8537, %v8756
      %v8807 = vadd.f32 %v8538, %v8761
      %v8808 = vadd.f32 %v8539, %v8766
      %v8809 = vadd.f32 %v8540, %v8771
      %v8810 = vadd.f32 %v8541, %v8776
      %s8811 = scalar_lea.vmem %s7, 32
      %v8812 = vld [vmem:[%s8811] sm:$0xff]
      %v8813 = vld [vmem:[%s8811 + $0x8] sm:$0xf]
      %v8815 = vsel %vm439, %v6882, 0
      %v8818 = vsel %vm439, %v6883, 0
      %v8821 = vsel %vm901, %v8812, 0
      %8823 = vmatprep.subr.mxu0 0.0
      %8824 = vmatpush1.msra.mxu0 %v8821
      %8825 = vmatprep.subr.mxu0 0.0
      %8826 = vmatpush1.msra.mxu0 0.0
      %8827 = vmatprep.subr.mxu0 0.0
      %8828 = vmatpush1.msra.mxu0 0.0
      %8829 = vmatprep.subr.mxu0 0.0
      %8830 = vmatpush1.msra.mxu0 0.0
      %8831 = vmatprep.subr.mxu0 0.0
      %8832 = vmatpush1.msra.mxu0 0.0
      %8833 = vmatprep.subr.mxu0 0.0
      %8834 = vmatpush1.msra.mxu0 0.0
      %8835 = vmatprep.subr.mxu0 0.0
      %8836 = vmatpush1.msra.mxu0 0.0
      %8837 = vmatprep.subr.mxu0 0.0
      %8838 = vmatpush1.msra.mxu0 0.0
      %8839 = vmatprep.subr.mxu0 0.0
      %8840 = vmatpush1.msra.mxu0 0.0
      %8841 = vmatprep.subr.mxu0 0.0
      %8842 = vmatpush1.msra.mxu0 0.0
      %8843 = vmatprep.subr.mxu0 0.0
      %8844 = vmatpush1.msra.mxu0 0.0
      %8845 = vmatprep.subr.mxu0 0.0
      %8846 = vmatpush1.msra.mxu0 0.0
      %8847 = vmatprep.subr.mxu0 0.0
      %8848 = vmatpush1.msra.mxu0 0.0
      %8849 = vmatprep.subr.mxu0 0.0
      %8850 = vmatpush1.msra.mxu0 0.0
      %8851 = vmatprep.subr.mxu0 0.0
      %8852 = vmatpush1.msra.mxu0 0.0
      %8853 = vmatprep.subr.mxu0 0.0
      %8854 = vmatpush1.msra.mxu0 0.0
      %8855 = vmatprep.subr.mxu0 0.0
      %8856 = vmatpush1.msra.mxu0 0.0
      %8857 = vmatprep.subr.mxu0 0.0
      %8858 = vmatpush1.msra.mxu0 0.0
      %8859 = vmatprep.subr.mxu0 0.0
      %8860 = vmatpush1.msra.mxu0 0.0
      %8861 = vmatprep.subr.mxu0 0.0
      %8862 = vmatpush1.msra.mxu0 0.0
      %8863 = vmatprep.subr.mxu0 0.0
      %8864 = vmatpush1.msra.mxu0 0.0
      %8865 = vmatprep.subr.mxu0 0.0
      %8866 = vmatpush1.msra.mxu0 0.0
      %8867 = vmatprep.subr.mxu0 0.0
      %8868 = vmatpush1.msra.mxu0 0.0
      %8869 = vmatprep.subr.mxu0 0.0
      %8870 = vmatpush1.msra.mxu0 0.0
      %8871 = vmatprep.subr.mxu0 0.0
      %8872 = vmatpush1.msra.mxu0 0.0
      %8873 = vmatprep.subr.mxu0 0.0
      %8874 = vmatpush1.msra.mxu0 0.0
      %8875 = vmatprep.subr.mxu0 0.0
      %8876 = vmatpush1.msra.mxu0 0.0
      %8877 = vmatprep.subr.mxu0 0.0
      %8878 = vmatpush1.msra.mxu0 0.0
      %8879 = vmatprep.subr.mxu0 0.0
      %8880 = vmatpush1.msra.mxu0 0.0
      %8881 = vmatprep.subr.mxu0 0.0
      %8882 = vmatpush1.msra.mxu0 0.0
      %8883 = vmatprep.subr.mxu0 0.0
      %8884 = vmatpush1.msra.mxu0 0.0
      %8885 = vmatprep.subr.mxu0 0.0
      %8886 = vmatpush1.msra.mxu0 0.0
      %8887 = vmatprep.mubr.f32.mxu0 0.0
      %8888 = vmatmul.mubr.f32.gmra.mrb[0].mxu0 %v7316
      %v8889 = vpop.f32.mrb[0].mxu0
      %v8890 = vadd.f32 0.0, %v8889
      %v8891 = vpop.f32.mrb[0].mxu0
      %8892 = vmatprep.mubr.f32.mxu0 0.0
      %8893 = vmatmul.mubr.f32.gmra.mrb[0].mxu0 %v7318
      %v8894 = vpop.f32.mrb[0].mxu0
      %v8895 = vadd.f32 0.0, %v8894
      %v8896 = vpop.f32.mrb[0].mxu0
      %8897 = vmatprep.mubr.f32.mxu0 0.0
      %8898 = vmatmul.mubr.f32.gmra.mrb[0].mxu0 %v7320
      %v8899 = vpop.f32.mrb[0].mxu0
      %v8900 = vadd.f32 0.0, %v8899
      %v8901 = vpop.f32.mrb[0].mxu0
      %8902 = vmatprep.mubr.f32.mxu0 0.0
      %8903 = vmatmul.mubr.f32.gmra.mrb[0].mxu0 %v7322
      %v8904 = vpop.f32.mrb[0].mxu0
      %v8905 = vadd.f32 0.0, %v8904
      %v8906 = vpop.f32.mrb[0].mxu0
      %8907 = vmatprep.mubr.f32.mxu0 0.0
      %8908 = vmatmul.mubr.f32.gmra.mrb[0].mxu0 %v7324
      %v8909 = vpop.f32.mrb[0].mxu0
      %v8910 = vadd.f32 0.0, %v8909
      %v8911 = vpop.f32.mrb[0].mxu0
      %8912 = vmatprep.mubr.f32.mxu0 0.0
      %8913 = vmatmul.mubr.f32.gmra.mrb[0].mxu0 %v7326
      %v8914 = vpop.f32.mrb[0].mxu0
      %v8915 = vadd.f32 0.0, %v8914
      %v8916 = vpop.f32.mrb[0].mxu0
      %8917 = vmatprep.mubr.f32.mxu0 0.0
      %8918 = vmatmul.mubr.f32.gmra.mrb[0].mxu0 %v7328
      %v8919 = vpop.f32.mrb[0].mxu0
      %v8920 = vadd.f32 0.0, %v8919
      %v8921 = vpop.f32.mrb[0].mxu0
      %8922 = vmatprep.mubr.f32.mxu0 0.0
      %8923 = vmatmul.mubr.f32.gmra.mrb[0].mxu0 %v7330
      %v8924 = vpop.f32.mrb[0].mxu0
      %v8925 = vadd.f32 0.0, %v8924
      %v8926 = vpop.f32.mrb[0].mxu0
      %8927 = vmatprep.mubr.f32.mxu0 0.0
      %8928 = vmatmul.mubr.f32.gmra.mrb[0].mxu0 %v7332
      %v8929 = vpop.f32.mrb[0].mxu0
      %v8930 = vadd.f32 0.0, %v8929
      %v8931 = vpop.f32.mrb[0].mxu0
      %8932 = vmatprep.mubr.f32.mxu0 0.0
      %8933 = vmatmul.mubr.f32.gmra.mrb[0].mxu0 %v7334
      %v8934 = vpop.f32.mrb[0].mxu0
      %v8935 = vadd.f32 0.0, %v8934
      %v8936 = vpop.f32.mrb[0].mxu0
      %8937 = vmatprep.mubr.f32.mxu0 0.0
      %8938 = vmatmul.mubr.f32.gmra.mrb[0].mxu0 %v7336
      %v8939 = vpop.f32.mrb[0].mxu0
      %v8940 = vadd.f32 0.0, %v8939
      %v8941 = vpop.f32.mrb[0].mxu0
      %8942 = vmatprep.mubr.f32.mxu0 0.0
      %8943 = vmatmul.mubr.f32.gmra.mrb[0].mxu0 %v7338
      %v8944 = vpop.f32.mrb[0].mxu0
      %v8945 = vadd.f32 0.0, %v8944
      %v8946 = vpop.f32.mrb[0].mxu0
      %8947 = vmatprep.mubr.f32.mxu0 0.0
      %8948 = vmatmul.mubr.f32.gmra.mrb[0].mxu0 %v7340
      %v8949 = vpop.f32.mrb[0].mxu0
      %v8950 = vadd.f32 0.0, %v8949
      %v8951 = vpop.f32.mrb[0].mxu0
      %8952 = vmatprep.mubr.f32.mxu0 0.0
      %8953 = vmatmul.mubr.f32.gmra.mrb[0].mxu0 %v7342
      %v8954 = vpop.f32.mrb[0].mxu0
      %v8955 = vadd.f32 0.0, %v8954
      %v8956 = vpop.f32.mrb[0].mxu0
      %8957 = vmatprep.mubr.f32.mxu0 0.0
      %8958 = vmatmul.mubr.f32.gmra.mrb[0].mxu0 %v7344
      %v8959 = vpop.f32.mrb[0].mxu0
      %v8960 = vadd.f32 0.0, %v8959
      %v8961 = vpop.f32.mrb[0].mxu0
      %8962 = vmatprep.mubr.f32.mxu0 0.0
      %8963 = vmatmul.mubr.f32.gmra.mrb[0].mxu0 %v7346
      %v8964 = vpop.f32.mrb[0].mxu0
      %v8965 = vadd.f32 0.0, %v8964
      %v8966 = vpop.f32.mrb[0].mxu0
      %8967 = vmatprep.mubr.f32.mxu0 0.0
      %8968 = vmatmul.mubr.f32.gmra.mrb[0].mxu0 %v7348
      %v8969 = vpop.f32.mrb[0].mxu0
      %v8970 = vadd.f32 0.0, %v8969
      %v8971 = vpop.f32.mrb[0].mxu0
      %8972 = vmatprep.mubr.f32.mxu0 0.0
      %8973 = vmatmul.mubr.f32.gmra.mrb[0].mxu0 %v7350
      %v8974 = vpop.f32.mrb[0].mxu0
      %v8975 = vadd.f32 0.0, %v8974
      %v8976 = vpop.f32.mrb[0].mxu0
      %8977 = vmatprep.mubr.f32.mxu0 0.0
      %8978 = vmatmul.mubr.f32.gmra.mrb[0].mxu0 %v7352
      %v8979 = vpop.f32.mrb[0].mxu0
      %v8980 = vadd.f32 0.0, %v8979
      %v8981 = vpop.f32.mrb[0].mxu0
      %8982 = vmatprep.mubr.f32.mxu0 0.0
      %8983 = vmatmul.mubr.f32.gmra.mrb[0].mxu0 %v7354
      %v8984 = vpop.f32.mrb[0].mxu0
      %v8985 = vadd.f32 0.0, %v8984
      %v8986 = vpop.f32.mrb[0].mxu0
      %8987 = vmatprep.mubr.f32.mxu0 0.0
      %8988 = vmatmul.mubr.f32.gmra.mrb[0].mxu0 %v7356
      %v8989 = vpop.f32.mrb[0].mxu0
      %v8990 = vadd.f32 0.0, %v8989
      %v8991 = vpop.f32.mrb[0].mxu0
      %8992 = vmatprep.mubr.f32.mxu0 0.0
      %8993 = vmatmul.mubr.f32.gmra.mrb[0].mxu0 %v7358
      %v8994 = vpop.f32.mrb[0].mxu0
      %v8995 = vadd.f32 0.0, %v8994
      %v8996 = vpop.f32.mrb[0].mxu0
      %8997 = vmatprep.mubr.f32.mxu0 0.0
      %8998 = vmatmul.mubr.f32.gmra.mrb[0].mxu0 %v7360
      %v8999 = vpop.f32.mrb[0].mxu0
      %v9000 = vadd.f32 0.0, %v8999
      %v9001 = vpop.f32.mrb[0].mxu0
      %9002 = vmatprep.mubr.f32.mxu0 0.0
      %9003 = vmatmul.mubr.f32.gmra.mrb[0].mxu0 %v7362
      %v9004 = vpop.f32.mrb[0].mxu0
      %v9005 = vadd.f32 0.0, %v9004
      %v9006 = vpop.f32.mrb[0].mxu0
      %9007 = vmatprep.mubr.f32.mxu0 0.0
      %9008 = vmatmul.mubr.f32.gmra.mrb[0].mxu0 %v7364
      %v9009 = vpop.f32.mrb[0].mxu0
      %v9010 = vadd.f32 0.0, %v9009
      %v9011 = vpop.f32.mrb[0].mxu0
      %9012 = vmatprep.mubr.f32.mxu0 0.0
      %9013 = vmatmul.mubr.f32.gmra.mrb[0].mxu0 %v7366
      %v9014 = vpop.f32.mrb[0].mxu0
      %v9015 = vadd.f32 0.0, %v9014
      %v9016 = vpop.f32.mrb[0].mxu0
      %9017 = vmatprep.mubr.f32.mxu0 0.0
      %9018 = vmatmul.mubr.f32.gmra.mrb[0].mxu0 %v7368
      %v9019 = vpop.f32.mrb[0].mxu0
      %v9020 = vadd.f32 0.0, %v9019
      %v9021 = vpop.f32.mrb[0].mxu0
      %9022 = vmatprep.mubr.f32.mxu0 0.0
      %9023 = vmatmul.mubr.f32.gmra.mrb[0].mxu0 %v7370
      %v9024 = vpop.f32.mrb[0].mxu0
      %v9025 = vadd.f32 0.0, %v9024
      %v9026 = vpop.f32.mrb[0].mxu0
      %9027 = vmatprep.mubr.f32.mxu0 0.0
      %9028 = vmatmul.mubr.f32.gmra.mrb[0].mxu0 %v8007
      %v9029 = vpop.f32.mrb[0].mxu0
      %v9030 = vadd.f32 0.0, %v9029
      %v9031 = vpop.f32.mrb[0].mxu0
      %9032 = vmatprep.mubr.f32.mxu0 0.0
      %9033 = vmatmul.mubr.f32.gmra.mrb[0].mxu0 %v8010
      %v9034 = vpop.f32.mrb[0].mxu0
      %v9035 = vadd.f32 0.0, %v9034
      %v9036 = vpop.f32.mrb[0].mxu0
      %9037 = vmatprep.mubr.f32.mxu0 0.0
      %9038 = vmatmul.mubr.f32.gmra.mrb[0].mxu0 %v8815
      %v9039 = vpop.f32.mrb[0].mxu0
      %v9040 = vadd.f32 0.0, %v9039
      %v9041 = vpop.f32.mrb[0].mxu0
      %9042 = vmatprep.mubr.f32.mxu0 0.0
      %9043 = vmatmul.mubr.f32.gmra.mrb[0].mxu0 %v8818
      %v9044 = vpop.f32.mrb[0].mxu0
      %v9045 = vadd.f32 0.0, %v9044
      %v9046 = vpop.f32.mrb[0].mxu0
      %9047 = vdwg.mxu0
      %v9048 = vadd.f32 %v8779, %v8890
      %v9049 = vadd.f32 %v8780, %v8895
      %v9050 = vadd.f32 %v8781, %v8900
      %v9051 = vadd.f32 %v8782, %v8905
      %v9052 = vadd.f32 %v8783, %v8910
      %v9053 = vadd.f32 %v8784, %v8915
      %v9054 = vadd.f32 %v8785, %v8920
      %v9055 = vadd.f32 %v8786, %v8925
      %v9056 = vadd.f32 %v8787, %v8930
      %v9057 = vadd.f32 %v8788, %v8935
      %v9058 = vadd.f32 %v8789, %v8940
      %v9059 = vadd.f32 %v8790, %v8945
      %v9060 = vadd.f32 %v8791, %v8950
      %v9061 = vadd.f32 %v8792, %v8955
      %v9062 = vadd.f32 %v8793, %v8960
      %v9063 = vadd.f32 %v8794, %v8965
      %v9064 = vadd.f32 %v8795, %v8970
      %v9065 = vadd.f32 %v8796, %v8975
      %v9066 = vadd.f32 %v8797, %v8980
      %v9067 = vadd.f32 %v8798, %v8985
      %v9068 = vadd.f32 %v8799, %v8990
      %v9069 = vadd.f32 %v8800, %v8995
      %v9070 = vadd.f32 %v8801, %v9000
      %v9071 = vadd.f32 %v8802, %v9005
      %v9072 = vadd.f32 %v8803, %v9010
      %v9073 = vadd.f32 %v8804, %v9015
      %v9074 = vadd.f32 %v8805, %v9020
      %v9075 = vadd.f32 %v8806, %v9025
      %v9076 = vadd.f32 %v8807, %v9030
      %v9077 = vadd.f32 %v8808, %v9035
      %v9078 = vadd.f32 %v8809, %v9040
      %v9079 = vadd.f32 %v8810, %v9045
      %v9081 = vrot.slane %v6882, 1
      %v9082 = vrot.slane %v6883, 1
      %v9083 = vsel %vm754, %v9081, %v9082
      %v9084 = vrot.slane %v6884, 1
      %v9085 = vsel %vm754, %v9082, %v9084
      %v9086 = vrot.slane %v8812, 4
      %v9087 = vsel %vm439, %v9083, 0
      %v9089 = vsel %vm439, %v9085, 0
      %v9091 = vsel %vm901, %v9086, 0
      %9093 = vmatprep.subr.mxu0 0.0
      %9094 = vmatpush1.msra.mxu0 %v9091
      %9095 = vmatprep.subr.mxu0 0.0
      %9096 = vmatpush1.msra.mxu0 0.0
      %9097 = vmatprep.subr.mxu0 0.0
      %9098 = vmatpush1.msra.mxu0 0.0
      %9099 = vmatprep.subr.mxu0 0.0
      %9100 = vmatpush1.msra.mxu0 0.0
      %9101 = vmatprep.subr.mxu0 0.0
      %9102 = vmatpush1.msra.mxu0 0.0
      %9103 = vmatprep.subr.mxu0 0.0
      %9104 = vmatpush1.msra.mxu0 0.0
      %9105 = vmatprep.subr.mxu0 0.0
      %9106 = vmatpush1.msra.mxu0 0.0
      %9107 = vmatprep.subr.mxu0 0.0
      %9108 = vmatpush1.msra.mxu0 0.0
      %9109 = vmatprep.subr.mxu0 0.0
      %9110 = vmatpush1.msra.mxu0 0.0
      %9111 = vmatprep.subr.mxu0 0.0
      %9112 = vmatpush1.msra.mxu0 0.0
      %9113 = vmatprep.subr.mxu0 0.0
      %9114 = vmatpush1.msra.mxu0 0.0
      %9115 = vmatprep.subr.mxu0 0.0
      %9116 = vmatpush1.msra.mxu0 0.0
      %9117 = vmatprep.subr.mxu0 0.0
      %9118 = vmatpush1.msra.mxu0 0.0
      %9119 = vmatprep.subr.mxu0 0.0
      %9120 = vmatpush1.msra.mxu0 0.0
      %9121 = vmatprep.subr.mxu0 0.0
      %9122 = vmatpush1.msra.mxu0 0.0
      %9123 = vmatprep.subr.mxu0 0.0
      %9124 = vmatpush1.msra.mxu0 0.0
      %9125 = vmatprep.subr.mxu0 0.0
      %9126 = vmatpush1.msra.mxu0 0.0
      %9127 = vmatprep.subr.mxu0 0.0
      %9128 = vmatpush1.msra.mxu0 0.0
      %9129 = vmatprep.subr.mxu0 0.0
      %9130 = vmatpush1.msra.mxu0 0.0
      %9131 = vmatprep.subr.mxu0 0.0
      %9132 = vmatpush1.msra.mxu0 0.0
      %9133 = vmatprep.subr.mxu0 0.0
      %9134 = vmatpush1.msra.mxu0 0.0
      %9135 = vmatprep.subr.mxu0 0.0
      %9136 = vmatpush1.msra.mxu0 0.0
      %9137 = vmatprep.subr.mxu0 0.0
      %9138 = vmatpush1.msra.mxu0 0.0
      %9139 = vmatprep.subr.mxu0 0.0
      %9140 = vmatpush1.msra.mxu0 0.0
      %9141 = vmatprep.subr.mxu0 0.0
      %9142 = vmatpush1.msra.mxu0 0.0
      %9143 = vmatprep.subr.mxu0 0.0
      %9144 = vmatpush1.msra.mxu0 0.0
      %9145 = vmatprep.subr.mxu0 0.0
      %9146 = vmatpush1.msra.mxu0 0.0
      %9147 = vmatprep.subr.mxu0 0.0
      %9148 = vmatpush1.msra.mxu0 0.0
      %9149 = vmatprep.subr.mxu0 0.0
      %9150 = vmatpush1.msra.mxu0 0.0
      %9151 = vmatprep.subr.mxu0 0.0
      %9152 = vmatpush1.msra.mxu0 0.0
      %9153 = vmatprep.subr.mxu0 0.0
      %9154 = vmatpush1.msra.mxu0 0.0
      %9155 = vmatprep.subr.mxu0 0.0
      %9156 = vmatpush1.msra.mxu0 0.0
      %9157 = vmatprep.mubr.f32.mxu0 0.0
      %9158 = vmatmul.mubr.f32.gmra.mrb[0].mxu0 %v7025
      %v9159 = vpop.f32.mrb[0].mxu0
      %v9160 = vadd.f32 0.0, %v9159
      %v9161 = vpop.f32.mrb[0].mxu0
      %9162 = vmatprep.mubr.f32.mxu0 0.0
      %9163 = vmatmul.mubr.f32.gmra.mrb[0].mxu0 %v7027
      %v9164 = vpop.f32.mrb[0].mxu0
      %v9165 = vadd.f32 0.0, %v9164
      %v9166 = vpop.f32.mrb[0].mxu0
      %9167 = vmatprep.mubr.f32.mxu0 0.0
      %9168 = vmatmul.mubr.f32.gmra.mrb[0].mxu0 %v7029
      %v9169 = vpop.f32.mrb[0].mxu0
      %v9170 = vadd.f32 0.0, %v9169
      %v9171 = vpop.f32.mrb[0].mxu0
      %9172 = vmatprep.mubr.f32.mxu0 0.0
      %9173 = vmatmul.mubr.f32.gmra.mrb[0].mxu0 %v7031
      %v9174 = vpop.f32.mrb[0].mxu0
      %v9175 = vadd.f32 0.0, %v9174
      %v9176 = vpop.f32.mrb[0].mxu0
      %9177 = vmatprep.mubr.f32.mxu0 0.0
      %9178 = vmatmul.mubr.f32.gmra.mrb[0].mxu0 %v7033
      %v9179 = vpop.f32.mrb[0].mxu0
      %v9180 = vadd.f32 0.0, %v9179
      %v9181 = vpop.f32.mrb[0].mxu0
      %9182 = vmatprep.mubr.f32.mxu0 0.0
      %9183 = vmatmul.mubr.f32.gmra.mrb[0].mxu0 %v7035
      %v9184 = vpop.f32.mrb[0].mxu0
      %v9185 = vadd.f32 0.0, %v9184
      %v9186 = vpop.f32.mrb[0].mxu0
      %9187 = vmatprep.mubr.f32.mxu0 0.0
      %9188 = vmatmul.mubr.f32.gmra.mrb[0].mxu0 %v7037
      %v9189 = vpop.f32.mrb[0].mxu0
      %v9190 = vadd.f32 0.0, %v9189
      %v9191 = vpop.f32.mrb[0].mxu0
      %9192 = vmatprep.mubr.f32.mxu0 0.0
      %9193 = vmatmul.mubr.f32.gmra.mrb[0].mxu0 %v7039
      %v9194 = vpop.f32.mrb[0].mxu0
      %v9195 = vadd.f32 0.0, %v9194
      %v9196 = vpop.f32.mrb[0].mxu0
      %9197 = vmatprep.mubr.f32.mxu0 0.0
      %9198 = vmatmul.mubr.f32.gmra.mrb[0].mxu0 %v7041
      %v9199 = vpop.f32.mrb[0].mxu0
      %v9200 = vadd.f32 0.0, %v9199
      %v9201 = vpop.f32.mrb[0].mxu0
      %9202 = vmatprep.mubr.f32.mxu0 0.0
      %9203 = vmatmul.mubr.f32.gmra.mrb[0].mxu0 %v7043
      %v9204 = vpop.f32.mrb[0].mxu0
      %v9205 = vadd.f32 0.0, %v9204
      %v9206 = vpop.f32.mrb[0].mxu0
      %9207 = vmatprep.mubr.f32.mxu0 0.0
      %9208 = vmatmul.mubr.f32.gmra.mrb[0].mxu0 %v7045
      %v9209 = vpop.f32.mrb[0].mxu0
      %v9210 = vadd.f32 0.0, %v9209
      %v9211 = vpop.f32.mrb[0].mxu0
      %9212 = vmatprep.mubr.f32.mxu0 0.0
      %9213 = vmatmul.mubr.f32.gmra.mrb[0].mxu0 %v7047
      %v9214 = vpop.f32.mrb[0].mxu0
      %v9215 = vadd.f32 0.0, %v9214
      %v9216 = vpop.f32.mrb[0].mxu0
      %9217 = vmatprep.mubr.f32.mxu0 0.0
      %9218 = vmatmul.mubr.f32.gmra.mrb[0].mxu0 %v7049
      %v9219 = vpop.f32.mrb[0].mxu0
      %v9220 = vadd.f32 0.0, %v9219
      %v9221 = vpop.f32.mrb[0].mxu0
      %9222 = vmatprep.mubr.f32.mxu0 0.0
      %9223 = vmatmul.mubr.f32.gmra.mrb[0].mxu0 %v7051
      %v9224 = vpop.f32.mrb[0].mxu0
      %v9225 = vadd.f32 0.0, %v9224
      %v9226 = vpop.f32.mrb[0].mxu0
      %9227 = vmatprep.mubr.f32.mxu0 0.0
      %9228 = vmatmul.mubr.f32.gmra.mrb[0].mxu0 %v7053
      %v9229 = vpop.f32.mrb[0].mxu0
      %v9230 = vadd.f32 0.0, %v9229
      %v9231 = vpop.f32.mrb[0].mxu0
      %9232 = vmatprep.mubr.f32.mxu0 0.0
      %9233 = vmatmul.mubr.f32.gmra.mrb[0].mxu0 %v7055
      %v9234 = vpop.f32.mrb[0].mxu0
      %v9235 = vadd.f32 0.0, %v9234
      %v9236 = vpop.f32.mrb[0].mxu0
      %9237 = vmatprep.mubr.f32.mxu0 0.0
      %9238 = vmatmul.mubr.f32.gmra.mrb[0].mxu0 %v7057
      %v9239 = vpop.f32.mrb[0].mxu0
      %v9240 = vadd.f32 0.0, %v9239
      %v9241 = vpop.f32.mrb[0].mxu0
      %9242 = vmatprep.mubr.f32.mxu0 0.0
      %9243 = vmatmul.mubr.f32.gmra.mrb[0].mxu0 %v7059
      %v9244 = vpop.f32.mrb[0].mxu0
      %v9245 = vadd.f32 0.0, %v9244
      %v9246 = vpop.f32.mrb[0].mxu0
      %9247 = vmatprep.mubr.f32.mxu0 0.0
      %9248 = vmatmul.mubr.f32.gmra.mrb[0].mxu0 %v7061
      %v9249 = vpop.f32.mrb[0].mxu0
      %v9250 = vadd.f32 0.0, %v9249
      %v9251 = vpop.f32.mrb[0].mxu0
      %9252 = vmatprep.mubr.f32.mxu0 0.0
      %9253 = vmatmul.mubr.f32.gmra.mrb[0].mxu0 %v7063
      %v9254 = vpop.f32.mrb[0].mxu0
      %v9255 = vadd.f32 0.0, %v9254
      %v9256 = vpop.f32.mrb[0].mxu0
      %9257 = vmatprep.mubr.f32.mxu0 0.0
      %9258 = vmatmul.mubr.f32.gmra.mrb[0].mxu0 %v7065
      %v9259 = vpop.f32.mrb[0].mxu0
      %v9260 = vadd.f32 0.0, %v9259
      %v9261 = vpop.f32.mrb[0].mxu0
      %9262 = vmatprep.mubr.f32.mxu0 0.0
      %9263 = vmatmul.mubr.f32.gmra.mrb[0].mxu0 %v7067
      %v9264 = vpop.f32.mrb[0].mxu0
      %v9265 = vadd.f32 0.0, %v9264
      %v9266 = vpop.f32.mrb[0].mxu0
      %9267 = vmatprep.mubr.f32.mxu0 0.0
      %9268 = vmatmul.mubr.f32.gmra.mrb[0].mxu0 %v7069
      %v9269 = vpop.f32.mrb[0].mxu0
      %v9270 = vadd.f32 0.0, %v9269
      %v9271 = vpop.f32.mrb[0].mxu0
      %9272 = vmatprep.mubr.f32.mxu0 0.0
      %9273 = vmatmul.mubr.f32.gmra.mrb[0].mxu0 %v7071
      %v9274 = vpop.f32.mrb[0].mxu0
      %v9275 = vadd.f32 0.0, %v9274
      %v9276 = vpop.f32.mrb[0].mxu0
      %9277 = vmatprep.mubr.f32.mxu0 0.0
      %9278 = vmatmul.mubr.f32.gmra.mrb[0].mxu0 %v7073
      %v9279 = vpop.f32.mrb[0].mxu0
      %v9280 = vadd.f32 0.0, %v9279
      %v9281 = vpop.f32.mrb[0].mxu0
      %9282 = vmatprep.mubr.f32.mxu0 0.0
      %9283 = vmatmul.mubr.f32.gmra.mrb[0].mxu0 %v7075
      %v9284 = vpop.f32.mrb[0].mxu0
      %v9285 = vadd.f32 0.0, %v9284
      %v9286 = vpop.f32.mrb[0].mxu0
      %9287 = vmatprep.mubr.f32.mxu0 0.0
      %9288 = vmatmul.mubr.f32.gmra.mrb[0].mxu0 %v7077
      %v9289 = vpop.f32.mrb[0].mxu0
      %v9290 = vadd.f32 0.0, %v9289
      %v9291 = vpop.f32.mrb[0].mxu0
      %9292 = vmatprep.mubr.f32.mxu0 0.0
      %9293 = vmatmul.mubr.f32.gmra.mrb[0].mxu0 %v7079
      %v9294 = vpop.f32.mrb[0].mxu0
      %v9295 = vadd.f32 0.0, %v9294
      %v9296 = vpop.f32.mrb[0].mxu0
      %9297 = vmatprep.mubr.f32.mxu0 0.0
      %9298 = vmatmul.mubr.f32.gmra.mrb[0].mxu0 %v8279
      %v9299 = vpop.f32.mrb[0].mxu0
      %v9300 = vadd.f32 0.0, %v9299
      %v9301 = vpop.f32.mrb[0].mxu0
      %9302 = vmatprep.mubr.f32.mxu0 0.0
      %9303 = vmatmul.mubr.f32.gmra.mrb[0].mxu0 %v8281
      %v9304 = vpop.f32.mrb[0].mxu0
      %v9305 = vadd.f32 0.0, %v9304
      %v9306 = vpop.f32.mrb[0].mxu0
      %9307 = vmatprep.mubr.f32.mxu0 0.0
      %9308 = vmatmul.mubr.f32.gmra.mrb[0].mxu0 %v9087
      %v9309 = vpop.f32.mrb[0].mxu0
      %v9310 = vadd.f32 0.0, %v9309
      %v9311 = vpop.f32.mrb[0].mxu0
      %9312 = vmatprep.mubr.f32.mxu0 0.0
      %9313 = vmatmul.mubr.f32.gmra.mrb[0].mxu0 %v9089
      %v9314 = vpop.f32.mrb[0].mxu0
      %v9315 = vadd.f32 0.0, %v9314
      %v9316 = vpop.f32.mrb[0].mxu0
      %9317 = vdwg.mxu0
      %v9318 = vadd.f32 %v9048, %v9160
      %v9319 = vadd.f32 %v9049, %v9165
      %v9320 = vadd.f32 %v9050, %v9170
      %v9321 = vadd.f32 %v9051, %v9175
      %v9322 = vadd.f32 %v9052, %v9180
      %v9323 = vadd.f32 %v9053, %v9185
      %v9324 = vadd.f32 %v9054, %v9190
      %v9325 = vadd.f32 %v9055, %v9195
      %v9326 = vadd.f32 %v9056, %v9200
      %v9327 = vadd.f32 %v9057, %v9205
      %v9328 = vadd.f32 %v9058, %v9210
      %v9329 = vadd.f32 %v9059, %v9215
      %v9330 = vadd.f32 %v9060, %v9220
      %v9331 = vadd.f32 %v9061, %v9225
      %v9332 = vadd.f32 %v9062, %v9230
      %v9333 = vadd.f32 %v9063, %v9235
      %v9334 = vadd.f32 %v9064, %v9240
      %v9335 = vadd.f32 %v9065, %v9245
      %v9336 = vadd.f32 %v9066, %v9250
      %v9337 = vadd.f32 %v9067, %v9255
      %v9338 = vadd.f32 %v9068, %v9260
      %v9339 = vadd.f32 %v9069, %v9265
      %v9340 = vadd.f32 %v9070, %v9270
      %v9341 = vadd.f32 %v9071, %v9275
      %v9342 = vadd.f32 %v9072, %v9280
      %v9343 = vadd.f32 %v9073, %v9285
      %v9344 = vadd.f32 %v9074, %v9290
      %v9345 = vadd.f32 %v9075, %v9295
      %v9346 = vadd.f32 %v9076, %v9300
      %v9347 = vadd.f32 %v9077, %v9305
      %v9348 = vadd.f32 %v9078, %v9310
      %v9349 = vadd.f32 %v9079, %v9315
      %v9350 = vrot.slane %v6882, 2
      %v9351 = vrot.slane %v6883, 2
      %v9352 = vsel %vm1420, %v9350, %v9351
      %v9353 = vrot.slane %v6884, 2
      %v9354 = vsel %vm1420, %v9351, %v9353
      %v9355 = vsel %vm439, %v9352, 0
      %v9357 = vsel %vm439, %v9354, 0
      %v9360 = vsel %vm901, %v8813, 0
      %9362 = vmatprep.subr.mxu0 0.0
      %9363 = vmatpush1.msra.mxu0 %v9360
      %9364 = vmatprep.subr.mxu0 0.0
      %9365 = vmatpush1.msra.mxu0 0.0
      %9366 = vmatprep.subr.mxu0 0.0
      %9367 = vmatpush1.msra.mxu0 0.0
      %9368 = vmatprep.subr.mxu0 0.0
      %9369 = vmatpush1.msra.mxu0 0.0
      %9370 = vmatprep.subr.mxu0 0.0
      %9371 = vmatpush1.msra.mxu0 0.0
      %9372 = vmatprep.subr.mxu0 0.0
      %9373 = vmatpush1.msra.mxu0 0.0
      %9374 = vmatprep.subr.mxu0 0.0
      %9375 = vmatpush1.msra.mxu0 0.0
      %9376 = vmatprep.subr.mxu0 0.0
      %9377 = vmatpush1.msra.mxu0 0.0
      %9378 = vmatprep.subr.mxu0 0.0
      %9379 = vmatpush1.msra.mxu0 0.0
      %9380 = vmatprep.subr.mxu0 0.0
      %9381 = vmatpush1.msra.mxu0 0.0
      %9382 = vmatprep.subr.mxu0 0.0
      %9383 = vmatpush1.msra.mxu0 0.0
      %9384 = vmatprep.subr.mxu0 0.0
      %9385 = vmatpush1.msra.mxu0 0.0
      %9386 = vmatprep.subr.mxu0 0.0
      %9387 = vmatpush1.msra.mxu0 0.0
      %9388 = vmatprep.subr.mxu0 0.0
      %9389 = vmatpush1.msra.mxu0 0.0
      %9390 = vmatprep.subr.mxu0 0.0
      %9391 = vmatpush1.msra.mxu0 0.0
      %9392 = vmatprep.subr.mxu0 0.0
      %9393 = vmatpush1.msra.mxu0 0.0
      %9394 = vmatprep.subr.mxu0 0.0
      %9395 = vmatpush1.msra.mxu0 0.0
      %9396 = vmatprep.subr.mxu0 0.0
      %9397 = vmatpush1.msra.mxu0 0.0
      %9398 = vmatprep.subr.mxu0 0.0
      %9399 = vmatpush1.msra.mxu0 0.0
      %9400 = vmatprep.subr.mxu0 0.0
      %9401 = vmatpush1.msra.mxu0 0.0
      %9402 = vmatprep.subr.mxu0 0.0
      %9403 = vmatpush1.msra.mxu0 0.0
      %9404 = vmatprep.subr.mxu0 0.0
      %9405 = vmatpush1.msra.mxu0 0.0
      %9406 = vmatprep.subr.mxu0 0.0
      %9407 = vmatpush1.msra.mxu0 0.0
      %9408 = vmatprep.subr.mxu0 0.0
      %9409 = vmatpush1.msra.mxu0 0.0
      %9410 = vmatprep.subr.mxu0 0.0
      %9411 = vmatpush1.msra.mxu0 0.0
      %9412 = vmatprep.subr.mxu0 0.0
      %9413 = vmatpush1.msra.mxu0 0.0
      %9414 = vmatprep.subr.mxu0 0.0
      %9415 = vmatpush1.msra.mxu0 0.0
      %9416 = vmatprep.subr.mxu0 0.0
      %9417 = vmatpush1.msra.mxu0 0.0
      %9418 = vmatprep.subr.mxu0 0.0
      %9419 = vmatpush1.msra.mxu0 0.0
      %9420 = vmatprep.subr.mxu0 0.0
      %9421 = vmatpush1.msra.mxu0 0.0
      %9422 = vmatprep.subr.mxu0 0.0
      %9423 = vmatpush1.msra.mxu0 0.0
      %9424 = vmatprep.subr.mxu0 0.0
      %9425 = vmatpush1.msra.mxu0 0.0
      %9426 = vmatprep.mubr.f32.mxu0 0.0
      %9427 = vmatmul.mubr.f32.gmra.mrb[0].mxu0 %v7687
      %v9428 = vpop.f32.mrb[0].mxu0
      %v9429 = vadd.f32 0.0, %v9428
      %v9430 = vpop.f32.mrb[0].mxu0
      %9431 = vmatprep.mubr.f32.mxu0 0.0
      %9432 = vmatmul.mubr.f32.gmra.mrb[0].mxu0 %v7689
      %v9433 = vpop.f32.mrb[0].mxu0
      %v9434 = vadd.f32 0.0, %v9433
      %v9435 = vpop.f32.mrb[0].mxu0
      %9436 = vmatprep.mubr.f32.mxu0 0.0
      %9437 = vmatmul.mubr.f32.gmra.mrb[0].mxu0 %v7691
      %v9438 = vpop.f32.mrb[0].mxu0
      %v9439 = vadd.f32 0.0, %v9438
      %v9440 = vpop.f32.mrb[0].mxu0
      %9441 = vmatprep.mubr.f32.mxu0 0.0
      %9442 = vmatmul.mubr.f32.gmra.mrb[0].mxu0 %v7693
      %v9443 = vpop.f32.mrb[0].mxu0
      %v9444 = vadd.f32 0.0, %v9443
      %v9445 = vpop.f32.mrb[0].mxu0
      %9446 = vmatprep.mubr.f32.mxu0 0.0
      %9447 = vmatmul.mubr.f32.gmra.mrb[0].mxu0 %v7695
      %v9448 = vpop.f32.mrb[0].mxu0
      %v9449 = vadd.f32 0.0, %v9448
      %v9450 = vpop.f32.mrb[0].mxu0
      %9451 = vmatprep.mubr.f32.mxu0 0.0
      %9452 = vmatmul.mubr.f32.gmra.mrb[0].mxu0 %v7697
      %v9453 = vpop.f32.mrb[0].mxu0
      %v9454 = vadd.f32 0.0, %v9453
      %v9455 = vpop.f32.mrb[0].mxu0
      %9456 = vmatprep.mubr.f32.mxu0 0.0
      %9457 = vmatmul.mubr.f32.gmra.mrb[0].mxu0 %v7699
      %v9458 = vpop.f32.mrb[0].mxu0
      %v9459 = vadd.f32 0.0, %v9458
      %v9460 = vpop.f32.mrb[0].mxu0
      %9461 = vmatprep.mubr.f32.mxu0 0.0
      %9462 = vmatmul.mubr.f32.gmra.mrb[0].mxu0 %v7701
      %v9463 = vpop.f32.mrb[0].mxu0
      %v9464 = vadd.f32 0.0, %v9463
      %v9465 = vpop.f32.mrb[0].mxu0
      %9466 = vmatprep.mubr.f32.mxu0 0.0
      %9467 = vmatmul.mubr.f32.gmra.mrb[0].mxu0 %v7703
      %v9468 = vpop.f32.mrb[0].mxu0
      %v9469 = vadd.f32 0.0, %v9468
      %v9470 = vpop.f32.mrb[0].mxu0
      %9471 = vmatprep.mubr.f32.mxu0 0.0
      %9472 = vmatmul.mubr.f32.gmra.mrb[0].mxu0 %v7705
      %v9473 = vpop.f32.mrb[0].mxu0
      %v9474 = vadd.f32 0.0, %v9473
      %v9475 = vpop.f32.mrb[0].mxu0
      %9476 = vmatprep.mubr.f32.mxu0 0.0
      %9477 = vmatmul.mubr.f32.gmra.mrb[0].mxu0 %v7707
      %v9478 = vpop.f32.mrb[0].mxu0
      %v9479 = vadd.f32 0.0, %v9478
      %v9480 = vpop.f32.mrb[0].mxu0
      %9481 = vmatprep.mubr.f32.mxu0 0.0
      %9482 = vmatmul.mubr.f32.gmra.mrb[0].mxu0 %v7709
      %v9483 = vpop.f32.mrb[0].mxu0
      %v9484 = vadd.f32 0.0, %v9483
      %v9485 = vpop.f32.mrb[0].mxu0
      %9486 = vmatprep.mubr.f32.mxu0 0.0
      %9487 = vmatmul.mubr.f32.gmra.mrb[0].mxu0 %v7711
      %v9488 = vpop.f32.mrb[0].mxu0
      %v9489 = vadd.f32 0.0, %v9488
      %v9490 = vpop.f32.mrb[0].mxu0
      %9491 = vmatprep.mubr.f32.mxu0 0.0
      %9492 = vmatmul.mubr.f32.gmra.mrb[0].mxu0 %v7713
      %v9493 = vpop.f32.mrb[0].mxu0
      %v9494 = vadd.f32 0.0, %v9493
      %v9495 = vpop.f32.mrb[0].mxu0
      %9496 = vmatprep.mubr.f32.mxu0 0.0
      %9497 = vmatmul.mubr.f32.gmra.mrb[0].mxu0 %v7715
      %v9498 = vpop.f32.mrb[0].mxu0
      %v9499 = vadd.f32 0.0, %v9498
      %v9500 = vpop.f32.mrb[0].mxu0
      %9501 = vmatprep.mubr.f32.mxu0 0.0
      %9502 = vmatmul.mubr.f32.gmra.mrb[0].mxu0 %v7717
      %v9503 = vpop.f32.mrb[0].mxu0
      %v9504 = vadd.f32 0.0, %v9503
      %v9505 = vpop.f32.mrb[0].mxu0
      %9506 = vmatprep.mubr.f32.mxu0 0.0
      %9507 = vmatmul.mubr.f32.gmra.mrb[0].mxu0 %v7719
      %v9508 = vpop.f32.mrb[0].mxu0
      %v9509 = vadd.f32 0.0, %v9508
      %v9510 = vpop.f32.mrb[0].mxu0
      %9511 = vmatprep.mubr.f32.mxu0 0.0
      %9512 = vmatmul.mubr.f32.gmra.mrb[0].mxu0 %v7721
      %v9513 = vpop.f32.mrb[0].mxu0
      %v9514 = vadd.f32 0.0, %v9513
      %v9515 = vpop.f32.mrb[0].mxu0
      %9516 = vmatprep.mubr.f32.mxu0 0.0
      %9517 = vmatmul.mubr.f32.gmra.mrb[0].mxu0 %v7723
      %v9518 = vpop.f32.mrb[0].mxu0
      %v9519 = vadd.f32 0.0, %v9518
      %v9520 = vpop.f32.mrb[0].mxu0
      %9521 = vmatprep.mubr.f32.mxu0 0.0
      %9522 = vmatmul.mubr.f32.gmra.mrb[0].mxu0 %v7725
      %v9523 = vpop.f32.mrb[0].mxu0
      %v9524 = vadd.f32 0.0, %v9523
      %v9525 = vpop.f32.mrb[0].mxu0
      %9526 = vmatprep.mubr.f32.mxu0 0.0
      %9527 = vmatmul.mubr.f32.gmra.mrb[0].mxu0 %v7727
      %v9528 = vpop.f32.mrb[0].mxu0
      %v9529 = vadd.f32 0.0, %v9528
      %v9530 = vpop.f32.mrb[0].mxu0
      %9531 = vmatprep.mubr.f32.mxu0 0.0
      %9532 = vmatmul.mubr.f32.gmra.mrb[0].mxu0 %v7729
      %v9533 = vpop.f32.mrb[0].mxu0
      %v9534 = vadd.f32 0.0, %v9533
      %v9535 = vpop.f32.mrb[0].mxu0
      %9536 = vmatprep.mubr.f32.mxu0 0.0
      %9537 = vmatmul.mubr.f32.gmra.mrb[0].mxu0 %v7731
      %v9538 = vpop.f32.mrb[0].mxu0
      %v9539 = vadd.f32 0.0, %v9538
      %v9540 = vpop.f32.mrb[0].mxu0
      %9541 = vmatprep.mubr.f32.mxu0 0.0
      %9542 = vmatmul.mubr.f32.gmra.mrb[0].mxu0 %v7733
      %v9543 = vpop.f32.mrb[0].mxu0
      %v9544 = vadd.f32 0.0, %v9543
      %v9545 = vpop.f32.mrb[0].mxu0
      %9546 = vmatprep.mubr.f32.mxu0 0.0
      %9547 = vmatmul.mubr.f32.gmra.mrb[0].mxu0 %v7735
      %v9548 = vpop.f32.mrb[0].mxu0
      %v9549 = vadd.f32 0.0, %v9548
      %v9550 = vpop.f32.mrb[0].mxu0
      %9551 = vmatprep.mubr.f32.mxu0 0.0
      %9552 = vmatmul.mubr.f32.gmra.mrb[0].mxu0 %v7737
      %v9553 = vpop.f32.mrb[0].mxu0
      %v9554 = vadd.f32 0.0, %v9553
      %v9555 = vpop.f32.mrb[0].mxu0
      %9556 = vmatprep.mubr.f32.mxu0 0.0
      %9557 = vmatmul.mubr.f32.gmra.mrb[0].mxu0 %v7739
      %v9558 = vpop.f32.mrb[0].mxu0
      %v9559 = vadd.f32 0.0, %v9558
      %v9560 = vpop.f32.mrb[0].mxu0
      %9561 = vmatprep.mubr.f32.mxu0 0.0
      %9562 = vmatmul.mubr.f32.gmra.mrb[0].mxu0 %v7741
      %v9563 = vpop.f32.mrb[0].mxu0
      %v9564 = vadd.f32 0.0, %v9563
      %v9565 = vpop.f32.mrb[0].mxu0
      %9566 = vmatprep.mubr.f32.mxu0 0.0
      %9567 = vmatmul.mubr.f32.gmra.mrb[0].mxu0 %v8547
      %v9568 = vpop.f32.mrb[0].mxu0
      %v9569 = vadd.f32 0.0, %v9568
      %v9570 = vpop.f32.mrb[0].mxu0
      %9571 = vmatprep.mubr.f32.mxu0 0.0
      %9572 = vmatmul.mubr.f32.gmra.mrb[0].mxu0 %v8549
      %v9573 = vpop.f32.mrb[0].mxu0
      %v9574 = vadd.f32 0.0, %v9573
      %v9575 = vpop.f32.mrb[0].mxu0
      %9576 = vmatprep.mubr.f32.mxu0 0.0
      %9577 = vmatmul.mubr.f32.gmra.mrb[0].mxu0 %v9355
      %v9578 = vpop.f32.mrb[0].mxu0
      %v9579 = vadd.f32 0.0, %v9578
      %v9580 = vpop.f32.mrb[0].mxu0
      %9581 = vmatprep.mubr.f32.mxu0 0.0
      %9582 = vmatmul.mubr.f32.gmra.mrb[0].mxu0 %v9357
      %v9583 = vpop.f32.mrb[0].mxu0
      %v9584 = vadd.f32 0.0, %v9583
      %v9585 = vpop.f32.mrb[0].mxu0
      %9586 = vdwg.mxu0
      %v9587 = vadd.f32 %v9318, %v9429
      %v9588 = vadd.f32 %v9319, %v9434
      %v9589 = vadd.f32 %v9320, %v9439
      %v9590 = vadd.f32 %v9321, %v9444
      %v9591 = vadd.f32 %v9322, %v9449
      %v9592 = vadd.f32 %v9323, %v9454
      %v9593 = vadd.f32 %v9324, %v9459
      %v9594 = vadd.f32 %v9325, %v9464
      %v9595 = vadd.f32 %v9326, %v9469
      %v9596 = vadd.f32 %v9327, %v9474
      %v9597 = vadd.f32 %v9328, %v9479
      %v9598 = vadd.f32 %v9329, %v9484
      %v9599 = vadd.f32 %v9330, %v9489
      %v9600 = vadd.f32 %v9331, %v9494
      %v9601 = vadd.f32 %v9332, %v9499
      %v9602 = vadd.f32 %v9333, %v9504
      %v9603 = vadd.f32 %v9334, %v9509
      %v9604 = vadd.f32 %v9335, %v9514
      %v9605 = vadd.f32 %v9336, %v9519
      %v9606 = vadd.f32 %v9337, %v9524
      %v9607 = vadd.f32 %v9338, %v9529
      %v9608 = vadd.f32 %v9339, %v9534
      %v9609 = vadd.f32 %v9340, %v9539
      %v9610 = vadd.f32 %v9341, %v9544
      %v9611 = vadd.f32 %v9342, %v9549
      %v9612 = vadd.f32 %v9343, %v9554
      %v9613 = vadd.f32 %v9344, %v9559
      %v9614 = vadd.f32 %v9345, %v9564
      %v9615 = vadd.f32 %v9346, %v9569
      %v9616 = vadd.f32 %v9347, %v9574
      %v9617 = vadd.f32 %v9348, %v9579
      %v9618 = vadd.f32 %v9349, %v9584
      %v9620 = vlaneseq
      %v9621 = vshrl.u32 %v9620, 7
      %v9622 = vsub.s32 0, %v9621
      %v9623 = vrot.slane %v6828, %v9622
      %v9625 = vadd.f32 %v9587, %v9623
      %v9626 = vadd.f32 %v9588, %v9623
      %v9627 = vadd.f32 %v9589, %v9623
      %v9628 = vadd.f32 %v9590, %v9623
      %v9629 = vadd.f32 %v9591, %v9623
      %v9630 = vadd.f32 %v9592, %v9623
      %v9631 = vadd.f32 %v9593, %v9623
      %v9632 = vadd.f32 %v9594, %v9623
      %v9633 = vadd.f32 %v9595, %v9623
      %v9634 = vadd.f32 %v9596, %v9623
      %v9635 = vadd.f32 %v9597, %v9623
      %v9636 = vadd.f32 %v9598, %v9623
      %v9637 = vadd.f32 %v9599, %v9623
      %v9638 = vadd.f32 %v9600, %v9623
      %v9639 = vadd.f32 %v9601, %v9623
      %v9640 = vadd.f32 %v9602, %v9623
      %v9641 = vadd.f32 %v9603, %v9623
      %v9642 = vadd.f32 %v9604, %v9623
      %v9643 = vadd.f32 %v9605, %v9623
      %v9644 = vadd.f32 %v9606, %v9623
      %v9645 = vadd.f32 %v9607, %v9623
      %v9646 = vadd.f32 %v9608, %v9623
      %v9647 = vadd.f32 %v9609, %v9623
      %v9648 = vadd.f32 %v9610, %v9623
      %v9649 = vadd.f32 %v9611, %v9623
      %v9650 = vadd.f32 %v9612, %v9623
      %v9651 = vadd.f32 %v9613, %v9623
      %v9652 = vadd.f32 %v9614, %v9623
      %v9653 = vadd.f32 %v9615, %v9623
      %v9654 = vadd.f32 %v9616, %v9623
      %v9655 = vadd.f32 %v9617, %v9623
      %v9656 = vadd.f32 %v9618, %v9623
      %v9657 = vadd.f32 %v9625, %v9626
      %v9658 = vadd.f32 %v9657, %v9627
      %v9659 = vadd.f32 %v9658, %v9628
      %v9660 = vadd.f32 %v9659, %v9629
      %v9661 = vadd.f32 %v9660, %v9630
      %v9662 = vadd.f32 %v9661, %v9631
      %v9663 = vadd.f32 %v9662, %v9632
      %v9664 = vadd.f32 %v9663, %v9633
      %v9665 = vadd.f32 %v9664, %v9634
      %v9666 = vadd.f32 %v9665, %v9635
      %v9667 = vadd.f32 %v9666, %v9636
      %v9668 = vadd.f32 %v9667, %v9637
      %v9669 = vadd.f32 %v9668, %v9638
      %v9670 = vadd.f32 %v9669, %v9639
      %v9671 = vadd.f32 %v9670, %v9640
      %v9672 = vadd.f32 %v9671, %v9641
      %v9673 = vadd.f32 %v9672, %v9642
      %v9674 = vadd.f32 %v9673, %v9643
      %v9675 = vadd.f32 %v9674, %v9644
      %v9676 = vadd.f32 %v9675, %v9645
      %v9677 = vadd.f32 %v9676, %v9646
      %v9678 = vadd.f32 %v9677, %v9647
      %v9679 = vadd.f32 %v9678, %v9648
      %v9680 = vadd.f32 %v9679, %v9649
      %v9681 = vadd.f32 %v9680, %v9650
      %v9682 = vadd.f32 %v9681, %v9651
      %v9683 = vadd.f32 %v9682, %v9652
      %v9684 = vadd.f32 %v9683, %v9653
      %v9685 = vadd.f32 %v9684, %v9654
      %v9686 = vadd.f32 %v9685, %v9655
      %v9687 = vadd.f32 %v9686, %v9656
      %v9688 = vrot.slane %v9687, 4
      %v9689 = vadd.f32 %v9687, %v9688
      %v9690 = vrot.slane %v9689, 2
      %v9691 = vadd.f32 %v9689, %v9690
      %v9692 = vrot.slane %v9691, 1
      %v9693 = vadd.f32 %v9691, %v9692
      %v9694 = vmul.f32 %v9693, 0.00390625
      %v9695 = vsub.f32 %v9625, %v9694
      %v9696 = vsub.f32 %v9626, %v9694
      %v9697 = vsub.f32 %v9627, %v9694
      %v9698 = vsub.f32 %v9628, %v9694
      %v9699 = vsub.f32 %v9629, %v9694
      %v9700 = vsub.f32 %v9630, %v9694
      %v9701 = vsub.f32 %v9631, %v9694
      %v9702 = vsub.f32 %v9632, %v9694
      %v9703 = vsub.f32 %v9633, %v9694
      %v9704 = vsub.f32 %v9634, %v9694
      %v9705 = vsub.f32 %v9635, %v9694
      %v9706 = vsub.f32 %v9636, %v9694
      %v9707 = vsub.f32 %v9637, %v9694
      %v9708 = vsub.f32 %v9638, %v9694
      %v9709 = vsub.f32 %v9639, %v9694
      %v9710 = vsub.f32 %v9640, %v9694
      %v9711 = vsub.f32 %v9641, %v9694
      %v9712 = vsub.f32 %v9642, %v9694
      %v9713 = vsub.f32 %v9643, %v9694
      %v9714 = vsub.f32 %v9644, %v9694
      %v9715 = vsub.f32 %v9645, %v9694
      %v9716 = vsub.f32 %v9646, %v9694
      %v9717 = vsub.f32 %v9647, %v9694
      %v9718 = vsub.f32 %v9648, %v9694
      %v9719 = vsub.f32 %v9649, %v9694
      %v9720 = vsub.f32 %v9650, %v9694
      %v9721 = vsub.f32 %v9651, %v9694
      %v9722 = vsub.f32 %v9652, %v9694
      %v9723 = vsub.f32 %v9653, %v9694
      %v9724 = vsub.f32 %v9654, %v9694
      %v9725 = vsub.f32 %v9655, %v9694
      %v9726 = vsub.f32 %v9656, %v9694
      %v9727 = vmul.f32 %v9695, %v9695
      %v9728 = vmul.f32 %v9696, %v9696
      %v9729 = vmul.f32 %v9697, %v9697
      %v9730 = vmul.f32 %v9698, %v9698
      %v9731 = vmul.f32 %v9699, %v9699
      %v9732 = vmul.f32 %v9700, %v9700
      %v9733 = vmul.f32 %v9701, %v9701
      %v9734 = vmul.f32 %v9702, %v9702
      %v9735 = vmul.f32 %v9703, %v9703
      %v9736 = vmul.f32 %v9704, %v9704
      %v9737 = vmul.f32 %v9705, %v9705
      %v9738 = vmul.f32 %v9706, %v9706
      %v9739 = vmul.f32 %v9707, %v9707
      %v9740 = vmul.f32 %v9708, %v9708
      %v9741 = vmul.f32 %v9709, %v9709
      %v9742 = vmul.f32 %v9710, %v9710
      %v9743 = vmul.f32 %v9711, %v9711
      %v9744 = vmul.f32 %v9712, %v9712
      %v9745 = vmul.f32 %v9713, %v9713
      %v9746 = vmul.f32 %v9714, %v9714
      %v9747 = vmul.f32 %v9715, %v9715
      %v9748 = vmul.f32 %v9716, %v9716
      %v9749 = vmul.f32 %v9717, %v9717
      %v9750 = vmul.f32 %v9718, %v9718
      %v9751 = vmul.f32 %v9719, %v9719
      %v9752 = vmul.f32 %v9720, %v9720
      %v9753 = vmul.f32 %v9721, %v9721
      %v9754 = vmul.f32 %v9722, %v9722
      %v9755 = vmul.f32 %v9723, %v9723
      %v9756 = vmul.f32 %v9724, %v9724
      %v9757 = vmul.f32 %v9725, %v9725
      %v9758 = vmul.f32 %v9726, %v9726
      %v9759 = vadd.f32 %v9727, %v9728
      %v9760 = vadd.f32 %v9759, %v9729
      %v9761 = vadd.f32 %v9760, %v9730
      %v9762 = vadd.f32 %v9761, %v9731
      %v9763 = vadd.f32 %v9762, %v9732
      %v9764 = vadd.f32 %v9763, %v9733
      %v9765 = vadd.f32 %v9764, %v9734
      %v9766 = vadd.f32 %v9765, %v9735
      %v9767 = vadd.f32 %v9766, %v9736
      %v9768 = vadd.f32 %v9767, %v9737
      %v9769 = vadd.f32 %v9768, %v9738
      %v9770 = vadd.f32 %v9769, %v9739
      %v9771 = vadd.f32 %v9770, %v9740
      %v9772 = vadd.f32 %v9771, %v9741
      %v9773 = vadd.f32 %v9772, %v9742
      %v9774 = vadd.f32 %v9773, %v9743
      %v9775 = vadd.f32 %v9774, %v9744
      %v9776 = vadd.f32 %v9775, %v9745
      %v9777 = vadd.f32 %v9776, %v9746
      %v9778 = vadd.f32 %v9777, %v9747
      %v9779 = vadd.f32 %v9778, %v9748
      %v9780 = vadd.f32 %v9779, %v9749
      %v9781 = vadd.f32 %v9780, %v9750
      %v9782 = vadd.f32 %v9781, %v9751
      %v9783 = vadd.f32 %v9782, %v9752
      %v9784 = vadd.f32 %v9783, %v9753
      %v9785 = vadd.f32 %v9784, %v9754
      %v9786 = vadd.f32 %v9785, %v9755
      %v9787 = vadd.f32 %v9786, %v9756
      %v9788 = vadd.f32 %v9787, %v9757
      %v9789 = vadd.f32 %v9788, %v9758
      %v9790 = vrot.slane %v9789, 4
      %v9791 = vadd.f32 %v9789, %v9790
      %v9792 = vrot.slane %v9791, 2
      %v9793 = vadd.f32 %v9791, %v9792
      %v9794 = vrot.slane %v9793, 1
      %v9795 = vadd.f32 %v9793, %v9794
      %v9796 = vmul.f32 %v9795, 0.00390625
      %v9797 = vadd.f32 %v9796, 1e-05
      %v9798 = vrsqrt.pop %v9797
      %v9799 = vmul.f32 %v9695, %v9798
      %v9800 = vmul.f32 %v9696, %v9798
      %v9801 = vmul.f32 %v9697, %v9798
      %v9802 = vmul.f32 %v9698, %v9798
      %v9803 = vmul.f32 %v9699, %v9798
      %v9804 = vmul.f32 %v9700, %v9798
      %v9805 = vmul.f32 %v9701, %v9798
      %v9806 = vmul.f32 %v9702, %v9798
      %v9807 = vmul.f32 %v9703, %v9798
      %v9808 = vmul.f32 %v9704, %v9798
      %v9809 = vmul.f32 %v9705, %v9798
      %v9810 = vmul.f32 %v9706, %v9798
      %v9811 = vmul.f32 %v9707, %v9798
      %v9812 = vmul.f32 %v9708, %v9798
      %v9813 = vmul.f32 %v9709, %v9798
      %v9814 = vmul.f32 %v9710, %v9798
      %v9815 = vmul.f32 %v9711, %v9798
      %v9816 = vmul.f32 %v9712, %v9798
      %v9817 = vmul.f32 %v9713, %v9798
      %v9818 = vmul.f32 %v9714, %v9798
      %v9819 = vmul.f32 %v9715, %v9798
      %v9820 = vmul.f32 %v9716, %v9798
      %v9821 = vmul.f32 %v9717, %v9798
      %v9822 = vmul.f32 %v9718, %v9798
      %v9823 = vmul.f32 %v9719, %v9798
      %v9824 = vmul.f32 %v9720, %v9798
      %v9825 = vmul.f32 %v9721, %v9798
      %v9826 = vmul.f32 %v9722, %v9798
      %v9827 = vmul.f32 %v9723, %v9798
      %v9828 = vmul.f32 %v9724, %v9798
      %v9829 = vmul.f32 %v9725, %v9798
      %v9830 = vmul.f32 %v9726, %v9798
      %v9832 = vlaneseq
      %v9833 = vshrl.u32 %v9832, 7
      %v9834 = vsub.s32 0, %v9833
      %v9835 = vrot.slane %v6829, %v9834
      %v9837 = vmul.f32 %v9799, %v9835
      %v9838 = vmul.f32 %v9800, %v9835
      %v9839 = vmul.f32 %v9801, %v9835
      %v9840 = vmul.f32 %v9802, %v9835
      %v9841 = vmul.f32 %v9803, %v9835
      %v9842 = vmul.f32 %v9804, %v9835
      %v9843 = vmul.f32 %v9805, %v9835
      %v9844 = vmul.f32 %v9806, %v9835
      %v9845 = vmul.f32 %v9807, %v9835
      %v9846 = vmul.f32 %v9808, %v9835
      %v9847 = vmul.f32 %v9809, %v9835
      %v9848 = vmul.f32 %v9810, %v9835
      %v9849 = vmul.f32 %v9811, %v9835
      %v9850 = vmul.f32 %v9812, %v9835
      %v9851 = vmul.f32 %v9813, %v9835
      %v9852 = vmul.f32 %v9814, %v9835
      %v9853 = vmul.f32 %v9815, %v9835
      %v9854 = vmul.f32 %v9816, %v9835
      %v9855 = vmul.f32 %v9817, %v9835
      %v9856 = vmul.f32 %v9818, %v9835
      %v9857 = vmul.f32 %v9819, %v9835
      %v9858 = vmul.f32 %v9820, %v9835
      %v9859 = vmul.f32 %v9821, %v9835
      %v9860 = vmul.f32 %v9822, %v9835
      %v9861 = vmul.f32 %v9823, %v9835
      %v9862 = vmul.f32 %v9824, %v9835
      %v9863 = vmul.f32 %v9825, %v9835
      %v9864 = vmul.f32 %v9826, %v9835
      %v9865 = vmul.f32 %v9827, %v9835
      %v9866 = vmul.f32 %v9828, %v9835
      %v9867 = vmul.f32 %v9829, %v9835
      %v9868 = vmul.f32 %v9830, %v9835
      %v9870 = vlaneseq
      %v9871 = vshrl.u32 %v9870, 7
      %v9872 = vsub.s32 0, %v9871
      %v9873 = vrot.slane %v6830, %v9872
      %v9875 = vadd.f32 %v9837, %v9873
      %v9876 = vadd.f32 %v9838, %v9873
      %v9877 = vadd.f32 %v9839, %v9873
      %v9878 = vadd.f32 %v9840, %v9873
      %v9879 = vadd.f32 %v9841, %v9873
      %v9880 = vadd.f32 %v9842, %v9873
      %v9881 = vadd.f32 %v9843, %v9873
      %v9882 = vadd.f32 %v9844, %v9873
      %v9883 = vadd.f32 %v9845, %v9873
      %v9884 = vadd.f32 %v9846, %v9873
      %v9885 = vadd.f32 %v9847, %v9873
      %v9886 = vadd.f32 %v9848, %v9873
      %v9887 = vadd.f32 %v9849, %v9873
      %v9888 = vadd.f32 %v9850, %v9873
      %v9889 = vadd.f32 %v9851, %v9873
      %v9890 = vadd.f32 %v9852, %v9873
      %v9891 = vadd.f32 %v9853, %v9873
      %v9892 = vadd.f32 %v9854, %v9873
      %v9893 = vadd.f32 %v9855, %v9873
      %v9894 = vadd.f32 %v9856, %v9873
      %v9895 = vadd.f32 %v9857, %v9873
      %v9896 = vadd.f32 %v9858, %v9873
      %v9897 = vadd.f32 %v9859, %v9873
      %v9898 = vadd.f32 %v9860, %v9873
      %v9899 = vadd.f32 %v9861, %v9873
      %v9900 = vadd.f32 %v9862, %v9873
      %v9901 = vadd.f32 %v9863, %v9873
      %v9902 = vadd.f32 %v9864, %v9873
      %v9903 = vadd.f32 %v9865, %v9873
      %v9904 = vadd.f32 %v9866, %v9873
      %v9905 = vadd.f32 %v9867, %v9873
      %v9906 = vadd.f32 %v9868, %v9873
      %vm9907 = vcmp.gt.f32.partialorder %v9875, 0.0
      %vm9908 = vcmp.gt.f32.partialorder %v9876, 0.0
      %vm9909 = vcmp.gt.f32.partialorder %v9877, 0.0
      %vm9910 = vcmp.gt.f32.partialorder %v9878, 0.0
      %vm9911 = vcmp.gt.f32.partialorder %v9879, 0.0
      %vm9912 = vcmp.gt.f32.partialorder %v9880, 0.0
      %vm9913 = vcmp.gt.f32.partialorder %v9881, 0.0
      %vm9914 = vcmp.gt.f32.partialorder %v9882, 0.0
      %vm9915 = vcmp.gt.f32.partialorder %v9883, 0.0
      %vm9916 = vcmp.gt.f32.partialorder %v9884, 0.0
      %vm9917 = vcmp.gt.f32.partialorder %v9885, 0.0
      %vm9918 = vcmp.gt.f32.partialorder %v9886, 0.0
      %vm9919 = vcmp.gt.f32.partialorder %v9887, 0.0
      %vm9920 = vcmp.gt.f32.partialorder %v9888, 0.0
      %vm9921 = vcmp.gt.f32.partialorder %v9889, 0.0
      %vm9922 = vcmp.gt.f32.partialorder %v9890, 0.0
      %vm9923 = vcmp.gt.f32.partialorder %v9891, 0.0
      %vm9924 = vcmp.gt.f32.partialorder %v9892, 0.0
      %vm9925 = vcmp.gt.f32.partialorder %v9893, 0.0
      %vm9926 = vcmp.gt.f32.partialorder %v9894, 0.0
      %vm9927 = vcmp.gt.f32.partialorder %v9895, 0.0
      %vm9928 = vcmp.gt.f32.partialorder %v9896, 0.0
      %vm9929 = vcmp.gt.f32.partialorder %v9897, 0.0
      %vm9930 = vcmp.gt.f32.partialorder %v9898, 0.0
      %vm9931 = vcmp.gt.f32.partialorder %v9899, 0.0
      %vm9932 = vcmp.gt.f32.partialorder %v9900, 0.0
      %vm9933 = vcmp.gt.f32.partialorder %v9901, 0.0
      %vm9934 = vcmp.gt.f32.partialorder %v9902, 0.0
      %vm9935 = vcmp.gt.f32.partialorder %v9903, 0.0
      %vm9936 = vcmp.gt.f32.partialorder %v9904, 0.0
      %vm9937 = vcmp.gt.f32.partialorder %v9905, 0.0
      %vm9938 = vcmp.gt.f32.partialorder %v9906, 0.0
      %v9939 = vmul.f32 %v9875, 0.1
      %v9940 = vmul.f32 %v9876, 0.1
      %v9941 = vmul.f32 %v9877, 0.1
      %v9942 = vmul.f32 %v9878, 0.1
      %v9943 = vmul.f32 %v9879, 0.1
      %v9944 = vmul.f32 %v9880, 0.1
      %v9945 = vmul.f32 %v9881, 0.1
      %v9946 = vmul.f32 %v9882, 0.1
      %v9947 = vmul.f32 %v9883, 0.1
      %v9948 = vmul.f32 %v9884, 0.1
      %v9949 = vmul.f32 %v9885, 0.1
      %v9950 = vmul.f32 %v9886, 0.1
      %v9951 = vmul.f32 %v9887, 0.1
      %v9952 = vmul.f32 %v9888, 0.1
      %v9953 = vmul.f32 %v9889, 0.1
      %v9954 = vmul.f32 %v9890, 0.1
      %v9955 = vmul.f32 %v9891, 0.1
      %v9956 = vmul.f32 %v9892, 0.1
      %v9957 = vmul.f32 %v9893, 0.1
      %v9958 = vmul.f32 %v9894, 0.1
      %v9959 = vmul.f32 %v9895, 0.1
      %v9960 = vmul.f32 %v9896, 0.1
      %v9961 = vmul.f32 %v9897, 0.1
      %v9962 = vmul.f32 %v9898, 0.1
      %v9963 = vmul.f32 %v9899, 0.1
      %v9964 = vmul.f32 %v9900, 0.1
      %v9965 = vmul.f32 %v9901, 0.1
      %v9966 = vmul.f32 %v9902, 0.1
      %v9967 = vmul.f32 %v9903, 0.1
      %v9968 = vmul.f32 %v9904, 0.1
      %v9969 = vmul.f32 %v9905, 0.1
      %v9970 = vmul.f32 %v9906, 0.1
      %v9971 = vsel %vm9907, %v9875, %v9939
      %v9972 = vsel %vm9908, %v9876, %v9940
      %v9973 = vsel %vm9909, %v9877, %v9941
      %v9974 = vsel %vm9910, %v9878, %v9942
      %v9975 = vsel %vm9911, %v9879, %v9943
      %v9976 = vsel %vm9912, %v9880, %v9944
      %v9977 = vsel %vm9913, %v9881, %v9945
      %v9978 = vsel %vm9914, %v9882, %v9946
      %v9979 = vsel %vm9915, %v9883, %v9947
      %v9980 = vsel %vm9916, %v9884, %v9948
      %v9981 = vsel %vm9917, %v9885, %v9949
      %v9982 = vsel %vm9918, %v9886, %v9950
      %v9983 = vsel %vm9919, %v9887, %v9951
      %v9984 = vsel %vm9920, %v9888, %v9952
      %v9985 = vsel %vm9921, %v9889, %v9953
      %v9986 = vsel %vm9922, %v9890, %v9954
      %v9987 = vsel %vm9923, %v9891, %v9955
      %v9988 = vsel %vm9924, %v9892, %v9956
      %v9989 = vsel %vm9925, %v9893, %v9957
      %v9990 = vsel %vm9926, %v9894, %v9958
      %v9991 = vsel %vm9927, %v9895, %v9959
      %v9992 = vsel %vm9928, %v9896, %v9960
      %v9993 = vsel %vm9929, %v9897, %v9961
      %v9994 = vsel %vm9930, %v9898, %v9962
      %v9995 = vsel %vm9931, %v9899, %v9963
      %v9996 = vsel %vm9932, %v9900, %v9964
      %v9997 = vsel %vm9933, %v9901, %v9965
      %v9998 = vsel %vm9934, %v9902, %v9966
      %v9999 = vsel %vm9935, %v9903, %v9967
      %v10000 = vsel %vm9936, %v9904, %v9968
      %v10001 = vsel %vm9937, %v9905, %v9969
      %v10002 = vsel %vm9938, %v9906, %v9970
      %10003 = vst [vmem:[%s406] sm:$0xff] %v9971
      %10004 = vst [vmem:[%s406 + $0x8] sm:$0xff] %v9972
      %10005 = vst [vmem:[%s406 + $0x10] sm:$0xff] %v9973
      %10006 = vst [vmem:[%s406 + $0x18] sm:$0xff] %v9974
      %10007 = vst [vmem:[%s406 + $0x20] sm:$0xff] %v9975
      %10008 = vst [vmem:[%s406 + $0x28] sm:$0xff] %v9976
      %10009 = vst [vmem:[%s406 + $0x30] sm:$0xff] %v9977
      %10010 = vst [vmem:[%s406 + $0x38] sm:$0xff] %v9978
      %10011 = vst [vmem:[%s406 + $0x40] sm:$0xff] %v9979
      %10012 = vst [vmem:[%s406 + $0x48] sm:$0xff] %v9980
      %10013 = vst [vmem:[%s406 + $0x50] sm:$0xff] %v9981
      %10014 = vst [vmem:[%s406 + $0x58] sm:$0xff] %v9982
      %10015 = vst [vmem:[%s406 + $0x60] sm:$0xff] %v9983
      %10016 = vst [vmem:[%s406 + $0x68] sm:$0xff] %v9984
      %10017 = vst [vmem:[%s406 + $0x70] sm:$0xff] %v9985
      %10018 = vst [vmem:[%s406 + $0x78] sm:$0xff] %v9986
      %10019 = vst [vmem:[%s406 + $0x80] sm:$0xff] %v9987
      %10020 = vst [vmem:[%s406 + $0x88] sm:$0xff] %v9988
      %10021 = vst [vmem:[%s406 + $0x90] sm:$0xff] %v9989
      %10022 = vst [vmem:[%s406 + $0x98] sm:$0xff] %v9990
      %10023 = vst [vmem:[%s406 + $0xa0] sm:$0xff] %v9991
      %10024 = vst [vmem:[%s406 + $0xa8] sm:$0xff] %v9992
      %10025 = vst [vmem:[%s406 + $0xb0] sm:$0xff] %v9993
      %10026 = vst [vmem:[%s406 + $0xb8] sm:$0xff] %v9994
      %10027 = vst [vmem:[%s406 + $0xc0] sm:$0xff] %v9995
      %10028 = vst [vmem:[%s406 + $0xc8] sm:$0xff] %v9996
      %10029 = vst [vmem:[%s406 + $0xd0] sm:$0xff] %v9997
      %10030 = vst [vmem:[%s406 + $0xd8] sm:$0xff] %v9998
      %10031 = vst [vmem:[%s406 + $0xe0] sm:$0xff] %v9999
      %10032 = vst [vmem:[%s406 + $0xe8] sm:$0xff] %v10000
      %10033 = vst [vmem:[%s406 + $0xf0] sm:$0xff] %v10001
      %10034 = vst [vmem:[%s406 + $0xf8] sm:$0xff] %v10002
      %p10035 = scmp.lt.s32.totalorder %s22, 1
      %s10036 = scalar_select %p10035, %s22, 1
      %s10037 = smul.addr %s10036, 32
      %s10038 = smul.addr %s10037, 8
      %s10039 = scalar_lea.vmem %s11, %s10038
      // Predicated region
      $region65: #{upcat_forward.3} parent=63 // pred_check
        %p10040 = pneg %p281
      $region66: #{upcat_forward.3} parent=63 // pred_check_branch
        %10042 = sbr.rel (%p10040) target = $region68
      $region67: #{upcat_forward.3} parent=63 // pred_region
        _
      $region68: #{upcat_forward.3} parent=63 // pred_fallthru
        _
    $region64: #{upcat_forward.3} parent=5 // pred_fallthru
      _
    %p10043 = scmp.le.s32.totalorder 2, %s17
    // Predicated region
    $region69: #{upcat_forward.3} parent=5 // pred_check
      %p10044 = pneg %p10043
    $region70: #{upcat_forward.3} parent=5 // pred_check_branch
      %10046 = sbr.rel (%p10044) target = $region72
    $region71: #{upcat_forward.3} parent=5 // pred_region
      %s10047 = ssub.s32 %s17, 2
      // Predicated region
      $region73: #{upcat_forward.3} parent=71 // pred_check
        %p10048 = pneg %p287
      $region74: #{upcat_forward.3} parent=71 // pred_check_branch
        %10050 = sbr.rel (%p10048) target = $region76
      $region75: #{upcat_forward.3} parent=71 // pred_region
        %p10051 = scmp.lt.s32.totalorder %s23, 1
        %s10052 = scalar_select %p10051, %s23, 1
        %s10053 = smul.addr %s10052, 32
        %s10054 = smul.addr %s10053, 8
        %s10055 = scalar_lea.vmem %s11, %s10054
      $region76: #{upcat_forward.3} parent=71 // pred_fallthru
        _
    $region72: #{upcat_forward.3} parent=5 // pred_fallthru
      _
  $region6: #{upcat_forward.3} parent=0 // loop_footer
    %s21 = sadd.s32 1, %s17
  $region7: #{upcat_forward.3} parent=0 // loop_footer_branch
    %16 = sbr.rel target = $region3
  $region8: #{upcat_forward.3} parent=0 // loop_exit
    _

</llo_original>
